<compile_context>
chip_gen: v7x
topology: tpu7x:2x2x1
jax: 0.10.0
libtpu: 0.0.40
codegen_flags: <defaults>
</compile_context>

<pallas_src>
import functools

import jax
import jax.numpy as jnp
import numpy as np
from jax import lax
from jax.experimental import pallas as pl
from jax.experimental.pallas import tpu as pltpu

NEG_SLOPE = 0.2  # nn.LeakyReLU(0.2)


def _leaky(x):
    return jnp.where(x > 0, x, NEG_SLOPE * x)


# ---------------- fused Pallas kernel (B_blk images per grid step) ----------------

def _resnet_block_kernel(x_ref, w1_ref, b1_ref, w2_ref, b2_ref, o_ref, hpad_ref,
                         *, K, H, W, C, pad, B_blk, compute_dtype):
    """Fused ResNet block.

    x_ref    : (B_blk, Hp, Wp, C) f32   zero-padded NHWC input (residual read stays f32)
    w*_ref   : (K*K*C, C)               im2col weight matrix (tap-major, Cin-minor rows)
    b*_ref   : (1, C) f32               biases
    o_ref    : (B_blk, C, H*W)          lane-dense output (NCHW rows, H*W on lanes)
    hpad_ref : (B_blk, Hp, Wp, C)       zero-padded conv1 activation scratch (compute dt)
    """
    HW = H * W
    cdt = compute_dtype

    # Zero the padded activation scratch.  With the collapsed grid there is exactly one
    # grid step per TensorCore, so this store runs once per core; its zero border doubles
    # as conv2's zero padding (the interior is fully overwritten below before it is read).
    hpad_ref[...] = jnp.zeros_like(hpad_ref)

    for b in range(B_blk):  # static unroll; B_blk is 1 or 2
        # ---- conv1: in-register im2col (H*W, K*K*C) -> single MXU matmul, bias added once ----
        cols = [x_ref[b, pl.ds(kh, H), pl.ds(kw, W), :].reshape(HW, C)
                for kh in range(K) for kw in range(K)]
        lhs1 = jnp.concatenate(cols, axis=-1).astype(cdt)                    # (HW, K*K*C)
        acc1 = jnp.dot(lhs1, w1_ref[...],
                       preferred_element_type=jnp.float32) + b1_ref[...]      # (HW, C) f32

        # ---- LeakyReLU (f32 VPU), park in padded VMEM scratch; never touches HBM ----
        hpad_ref[b, pl.ds(pad, H), pl.ds(pad, W), :] = (
            _leaky(acc1).astype(cdt).reshape(H, W, C))

        # ---- conv2 on the VMEM-resident intermediate: second im2col + single matmul ----
        cols2 = [hpad_ref[b, pl.ds(kh, H), pl.ds(kw, W), :].reshape(HW, C)
                 for kh in range(K) for kw in range(K)]
        lhs2 = jnp.concatenate(cols2, axis=-1)                               # (HW, K*K*C)
        acc2 = jnp.dot(lhs2, w2_ref[...],
                       preferred_element_type=jnp.float32) + b2_ref[...]      # (HW, C) f32

        # ---- residual (exact f32, centre of the already-resident padded input) + LeakyReLU ----
        res = x_ref[b, pl.ds(pad, H), pl.ds(pad, W), :].reshape(HW, C)
        out = _leaky(acc2 + res)                                             # (HW, C) f32

        # ---- lane-dense store: (C, H*W) so every lane of the output store is live ----
        o_ref[b] = out.T.astype(o_ref.dtype)


# ---------------- wrapper (layout plumbing only; all math is inside the kernel) ----------------

def _default_grid_steps(N):
    """One fat grid step on single-TC chips (v5e/v6e); one parallel step per core on v7x."""
    kind = ""
    try:
        kind = jax.devices()[0].device_kind.lower()
    except Exception:
        pass
    two_cores = ("v7" in kind) or ("7x" in kind)
    if two_cores and N >= 2 and N % 2 == 0:
        return 2
    return 1


def resnet_block_forward(x_nchw, params, k_s=3, pad=1,
                         compute_dtype=jnp.bfloat16, grid_steps=None):
    """ResNetBlock(in_channel, k_s, s=1, p=pad, bn=False, leaky_relu=True, seperable=False)."""
    w1, b1, w2, b2 = params
    N, C, H, W = x_nchw.shape
    assert k_s == 2 * pad + 1, "stride-1 'same' conv expected (k_s = 2*pad + 1)"

    Hp, Wp = H + 2 * pad, W + 2 * pad
    KKC = k_s * k_s * C

    if grid_steps is None:
        grid_steps = _default_grid_steps(N)
    assert N % grid_steps == 0, "grid_steps must divide the batch size"
    B_blk = N // grid_steps

    # NCHW -> NHWC, zero-pad spatially once (conv1 padding).  Kept in f32 so the residual
    # read inside the kernel is exact; only the matmul operands are cast to compute_dtype.
    x_nhwc = jnp.transpose(x_nchw, (0, 2, 3, 1))
    xpad = jnp.pad(x_nhwc, ((0, 0), (pad, pad), (pad, pad), (0, 0))).astype(jnp.float32)

    # Conv2d weight (Cout, Cin, kh, kw) -> (kh*K*C + kw*C + Cin, Cout): im2col-ready matrix.
    w1k = jnp.transpose(w1, (2, 3, 1, 0)).reshape(KKC, C).astype(compute_dtype)
    w2k = jnp.transpose(w2, (2, 3, 1, 0)).reshape(KKC, C).astype(compute_dtype)
    b1r = b1.reshape(1, C).astype(jnp.float32)
    b2r = b2.reshape(1, C).astype(jnp.float32)

    kernel = functools.partial(_resnet_block_kernel, K=k_s, H=H, W=W, C=C, pad=pad,
                               B_blk=B_blk, compute_dtype=compute_dtype)

    el = jnp.dtype(compute_dtype).itemsize
    cost = pl.CostEstimate(
        flops=2 * 2 * N * H * W * KKC * C,                       # two convs, 2*M*Kd*C each
        transcendentals=0,
        bytes_accessed=N * Hp * Wp * C * 4 + 2 * KKC * C * el + 2 * C * 4
                       + N * H * W * C * x_nchw.dtype.itemsize,
    )

    out = pl.pallas_call(
        kernel,
        out_shape=jax.ShapeDtypeStruct((N, C, H * W), x_nchw.dtype),
        grid_spec=pltpu.PrefetchScalarGridSpec(
            num_scalar_prefetch=0,
            grid=(grid_steps,),
            in_specs=[
                pl.BlockSpec((B_blk, Hp, Wp, C), lambda g: (g, 0, 0, 0)),  # padded images
                pl.BlockSpec((KKC, C), lambda g: (0, 0)),                  # w1 (resident)
                pl.BlockSpec((1, C), lambda g: (0, 0)),                    # b1
                pl.BlockSpec((KKC, C), lambda g: (0, 0)),                  # w2 (resident)
                pl.BlockSpec((1, C), lambda g: (0, 0)),                    # b2
            ],
            out_specs=pl.BlockSpec((B_blk, C, H * W), lambda g: (g, 0, 0)),
            scratch_shapes=[
                pltpu.VMEM((B_blk, Hp, Wp, C), compute_dtype),  # zero-padded conv1 activation
            ],
        ),
        compiler_params=pltpu.CompilerParams(
            dimension_semantics=("parallel",),   # 2 steps on v7x -> both TCs; 1 step elsewhere
        ),
        cost_estimate=cost,
    )(xpad, w1k, b1r, w2k, b2r)

    # Output is already channel-major (NCHW); just split the flattened spatial dim.
    return out.reshape(N, C, H, W)


# ---------------- pure-JAX reference (correctness check) ----------------

def _reference(x, params, k_s=3, pad=1):
    w1, b1, w2, b2 = params
    dn = ("NCHW", "OIHW", "NCHW")

    def conv(z, w, b):
        y = lax.conv_general_dilated(z, w, (1, 1), [(pad, pad), (pad, pad)],
                                     dimension_numbers=dn,
                                     precision=lax.Precision.HIGHEST)
        return y + b[None, :, None, None]

    h = _leaky(conv(x, w1, b1))
    return _leaky(conv(h, w2, b2) + x)


if __name__ == "__main__":
    key = jax.random.PRNGKey(0)
    kx, k1, k2, k3, k4 = jax.random.split(key, 5)
    N, C, H, W = 2, 4, 16, 16
    k_s, pad = 3, 1

    x = jax.random.normal(kx, (N, C, H, W), jnp.float32)

    # Deterministic param init (PyTorch Conv2d-style uniform(-1/sqrt(fan_in), +)).
    fan_in = C * k_s * k_s
    bound = 1.0 / float(np.sqrt(fan_in))
    w1 = jax.random.uniform(k1, (C, C, k_s, k_s), jnp.float32, -bound, bound)
    b1 = jax.random.uniform(k2, (C,), jnp.float32, -bound, bound)
    w2 = jax.random.uniform(k3, (C, C, k_s, k_s), jnp.float32, -bound, bound)
    b2 = jax.random.uniform(k4, (C,), jnp.float32, -bound, bound)
    params = (w1, b1, w2, b2)

    ref = jax.block_until_ready(_reference(x, params, k_s, pad))

    # f32 matmul-operand path (tight tolerance), device-derived grid.
    out_f32 = jax.block_until_ready(
        resnet_block_forward(x, params, k_s, pad, compute_dtype=jnp.float32))
    assert out_f32.shape == x.shape
    np.testing.assert_allclose(np.asarray(out_f32), np.asarray(ref), atol=1e-3, rtol=1e-3)

    # Default bf16 matmul-operand path (f32 residual/bias/epilogue), looser tolerance.
    out_bf16 = jax.block_until_ready(resnet_block_forward(x, params, k_s, pad))
    np.testing.assert_allclose(np.asarray(out_bf16), np.asarray(ref), atol=5e-2, rtol=5e-2)

    # Also exercise the 2-step (v7x-style, one image per core) grid for coverage.
    out_2step = jax.block_until_ready(
        resnet_block_forward(x, params, k_s, pad, compute_dtype=jnp.float32, grid_steps=2))
    np.testing.assert_allclose(np.asarray(out_2step), np.asarray(ref), atol=1e-3, rtol=1e-3)

    print("KERNEL_OK")
</pallas_src>

<mosaic_0001>
module attributes {stable_mosaic.version = 11 : i64} {
  func.func @_resnet_block_kernel(%arg0: i32, %arg1: memref<2x18x18x4xf32, #tpu.memory_space<vmem>>, %arg2: memref<36x4xf32, #tpu.memory_space<vmem>>, %arg3: memref<1x4xf32, #tpu.memory_space<vmem>>, %arg4: memref<36x4xf32, #tpu.memory_space<vmem>>, %arg5: memref<1x4xf32, #tpu.memory_space<vmem>>, %arg6: memref<2x4x256xf32, #tpu.memory_space<vmem>>, %arg7: memref<2x18x18x4xf32, #tpu.memory_space<vmem>>) attributes {dimension_semantics = [#tpu.dimension_semantics<parallel>], iteration_bounds = array<i64: 1>, scalar_prefetch = 0 : i64, scratch_operands = 1 : i64, tpu.core_type = #tpu.core_type<tc>, window_params = [{transform_indices = @transform_0, window_bounds = array<i64: 2, 18, 18, 4>}, {pipeline_mode = #tpu.pipeline_mode<synchronous>, transform_indices = @transform_1, window_bounds = array<i64: 36, 4>}, {pipeline_mode = #tpu.pipeline_mode<synchronous>, transform_indices = @transform_2, window_bounds = array<i64: 1, 4>}, {pipeline_mode = #tpu.pipeline_mode<synchronous>, transform_indices = @transform_3, window_bounds = array<i64: 36, 4>}, {pipeline_mode = #tpu.pipeline_mode<synchronous>, transform_indices = @transform_4, window_bounds = array<i64: 1, 4>}, {transform_indices = @transform_5, window_bounds = array<i64: 2, 4, 256>}]} {
    %cst = arith.constant 0.000000e+00 : f32
    %0 = vector.broadcast %cst : f32 to vector<2x18x18x4xf32>
    %c0 = arith.constant 0 : index
    %c0_0 = arith.constant 0 : index
    %c0_1 = arith.constant 0 : index
    %c0_2 = arith.constant 0 : index
    %1 = vector.load %arg7[%c0, %c0_0, %c0_1, %c0_2] : memref<2x18x18x4xf32, #tpu.memory_space<vmem>>, vector<2x18x18x4xf32>
    tpu.vector_store %arg7[%c0, %c0_0, %c0_1, %c0_2], %0 {strides = array<i32>} : memref<2x18x18x4xf32, #tpu.memory_space<vmem>>, vector<2x18x18x4xf32>,
    %c0_3 = arith.constant 0 : index
    %c0_4 = arith.constant 0 : index
    %c0_5 = arith.constant 0 : index
    %c0_6 = arith.constant 0 : index
    %2 = vector.load %arg1[%c0_3, %c0_4, %c0_5, %c0_6] : memref<2x18x18x4xf32, #tpu.memory_space<vmem>>, vector<1x16x16x4xf32>
    %3 = vector.shape_cast %2 : vector<1x16x16x4xf32> to vector<16x16x4xf32>
    %4 = vector.shape_cast %3 : vector<16x16x4xf32> to vector<256x4xf32>
    %c0_7 = arith.constant 0 : index
    %c0_8 = arith.constant 0 : index
    %c1 = arith.constant 1 : index
    %c0_9 = arith.constant 0 : index
    %5 = vector.load %arg1[%c0_7, %c0_8, %c1, %c0_9] : memref<2x18x18x4xf32, #tpu.memory_space<vmem>>, vector<1x16x16x4xf32>
    %6 = vector.shape_cast %5 : vector<1x16x16x4xf32> to vector<16x16x4xf32>
    %7 = vector.shape_cast %6 : vector<16x16x4xf32> to vector<256x4xf32>
    %c0_10 = arith.constant 0 : index
    %c0_11 = arith.constant 0 : index
    %c2 = arith.constant 2 : index
    %c0_12 = arith.constant 0 : index
    %8 = vector.load %arg1[%c0_10, %c0_11, %c2, %c0_12] : memref<2x18x18x4xf32, #tpu.memory_space<vmem>>, vector<1x16x16x4xf32>
    %9 = vector.shape_cast %8 : vector<1x16x16x4xf32> to vector<16x16x4xf32>
    %10 = vector.shape_cast %9 : vector<16x16x4xf32> to vector<256x4xf32>
    %c0_13 = arith.constant 0 : index
    %c1_14 = arith.constant 1 : index
    %c0_15 = arith.constant 0 : index
    %c0_16 = arith.constant 0 : index
    %11 = vector.load %arg1[%c0_13, %c1_14, %c0_15, %c0_16] : memref<2x18x18x4xf32, #tpu.memory_space<vmem>>, vector<1x16x16x4xf32>
    %12 = vector.shape_cast %11 : vector<1x16x16x4xf32> to vector<16x16x4xf32>
    %13 = vector.shape_cast %12 : vector<16x16x4xf32> to vector<256x4xf32>
    %c0_17 = arith.constant 0 : index
    %c1_18 = arith.constant 1 : index
    %c1_19 = arith.constant 1 : index
    %c0_20 = arith.constant 0 : index
    %14 = vector.load %arg1[%c0_17, %c1_18, %c1_19, %c0_20] : memref<2x18x18x4xf32, #tpu.memory_space<vmem>>, vector<1x16x16x4xf32>
    %15 = vector.shape_cast %14 : vector<1x16x16x4xf32> to vector<16x16x4xf32>
    %16 = vector.shape_cast %15 : vector<16x16x4xf32> to vector<256x4xf32>
    %c0_21 = arith.constant 0 : index
    %c1_22 = arith.constant 1 : index
    %c2_23 = arith.constant 2 : index
    %c0_24 = arith.constant 0 : index
    %17 = vector.load %arg1[%c0_21, %c1_22, %c2_23, %c0_24] : memref<2x18x18x4xf32, #tpu.memory_space<vmem>>, vector<1x16x16x4xf32>
    %18 = vector.shape_cast %17 : vector<1x16x16x4xf32> to vector<16x16x4xf32>
    %19 = vector.shape_cast %18 : vector<16x16x4xf32> to vector<256x4xf32>
    %c0_25 = arith.constant 0 : index
    %c2_26 = arith.constant 2 : index
    %c0_27 = arith.constant 0 : index
    %c0_28 = arith.constant 0 : index
    %20 = vector.load %arg1[%c0_25, %c2_26, %c0_27, %c0_28] : memref<2x18x18x4xf32, #tpu.memory_space<vmem>>, vector<1x16x16x4xf32>
    %21 = vector.shape_cast %20 : vector<1x16x16x4xf32> to vector<16x16x4xf32>
    %22 = vector.shape_cast %21 : vector<16x16x4xf32> to vector<256x4xf32>
    %c0_29 = arith.constant 0 : index
    %c2_30 = arith.constant 2 : index
    %c1_31 = arith.constant 1 : index
    %c0_32 = arith.constant 0 : index
    %23 = vector.load %arg1[%c0_29, %c2_30, %c1_31, %c0_32] : memref<2x18x18x4xf32, #tpu.memory_space<vmem>>, vector<1x16x16x4xf32>
    %24 = vector.shape_cast %23 : vector<1x16x16x4xf32> to vector<16x16x4xf32>
    %25 = vector.shape_cast %24 : vector<16x16x4xf32> to vector<256x4xf32>
    %c0_33 = arith.constant 0 : index
    %c2_34 = arith.constant 2 : index
    %c2_35 = arith.constant 2 : index
    %c0_36 = arith.constant 0 : index
    %26 = vector.load %arg1[%c0_33, %c2_34, %c2_35, %c0_36] : memref<2x18x18x4xf32, #tpu.memory_space<vmem>>, vector<1x16x16x4xf32>
    %27 = vector.shape_cast %26 : vector<1x16x16x4xf32> to vector<16x16x4xf32>
    %28 = vector.shape_cast %27 : vector<16x16x4xf32> to vector<256x4xf32>
    %29 = tpu.concatenate %4, %7, %10, %13, %16, %19, %22, %25, %28 in 1 : vector<256x4xf32>, vector<256x4xf32>, vector<256x4xf32>, vector<256x4xf32>, vector<256x4xf32>, vector<256x4xf32>, vector<256x4xf32>, vector<256x4xf32>, vector<256x4xf32> -> vector<256x36xf32>
    %c0_37 = arith.constant 0 : index
    %c0_38 = arith.constant 0 : index
    %30 = vector.load %arg2[%c0_37, %c0_38] : memref<36x4xf32, #tpu.memory_space<vmem>>, vector<36x4xf32>
    %cst_39 = arith.constant dense<0.000000e+00> : vector<256x4xf32>
    %31 = tpu.matmul %29, %30, %cst_39 {dimension_numbers = #tpu.dot_dimension_numbers<[1], [0], [0], [1], [0, 0, 1, 1], [], []>} : vector<256x36xf32>, vector<36x4xf32>, vector<256x4xf32> -> vector<256x4xf32>
    %c0_40 = arith.constant 0 : index
    %c0_41 = arith.constant 0 : index
    %32 = vector.load %arg3[%c0_40, %c0_41] : memref<1x4xf32, #tpu.memory_space<vmem>>, vector<1x4xf32>
    %33 = vector.broadcast %32 : vector<1x4xf32> to vector<256x4xf32>
    %34 = arith.addf %31, %33 : vector<256x4xf32>
    %cst_42 = arith.constant 0.000000e+00 : f32
    %35 = vector.broadcast %cst_42 : f32 to vector<256x4xf32>
    %36 = arith.cmpf ogt, %34, %35 : vector<256x4xf32>
    %cst_43 = arith.constant 2.000000e-01 : f32
    %37 = vector.broadcast %cst_43 : f32 to vector<256x4xf32>
    %38 = arith.mulf %37, %34 : vector<256x4xf32>
    %39 = arith.select %36, %34, %38 : vector<256x4xi1>, vector<256x4xf32>
    %40 = vector.shape_cast %39 : vector<256x4xf32> to vector<16x16x4xf32>
    %c0_44 = arith.constant 0 : index
    %c1_45 = arith.constant 1 : index
    %c1_46 = arith.constant 1 : index
    %c0_47 = arith.constant 0 : index
    %41 = vector.load %arg7[%c0_44, %c1_45, %c1_46, %c0_47] : memref<2x18x18x4xf32, #tpu.memory_space<vmem>>, vector<1x16x16x4xf32>
    %42 = vector.shape_cast %41 : vector<1x16x16x4xf32> to vector<16x16x4xf32>
    %43 = vector.shape_cast %40 : vector<16x16x4xf32> to vector<1x16x16x4xf32>
    tpu.vector_store %arg7[%c0_44, %c1_45, %c1_46, %c0_47], %43 {strides = array<i32>} : memref<2x18x18x4xf32, #tpu.memory_space<vmem>>, vector<1x16x16x4xf32>,
    %c0_48 = arith.constant 0 : index
    %c0_49 = arith.constant 0 : index
    %c0_50 = arith.constant 0 : index
    %c0_51 = arith.constant 0 : index
    %44 = vector.load %arg7[%c0_48, %c0_49, %c0_50, %c0_51] : memref<2x18x18x4xf32, #tpu.memory_space<vmem>>, vector<1x16x16x4xf32>
    %45 = vector.shape_cast %44 : vector<1x16x16x4xf32> to vector<16x16x4xf32>
    %46 = vector.shape_cast %45 : vector<16x16x4xf32> to vector<256x4xf32>
    %c0_52 = arith.constant 0 : index
    %c0_53 = arith.constant 0 : index
    %c1_54 = arith.constant 1 : index
    %c0_55 = arith.constant 0 : index
    %47 = vector.load %arg7[%c0_52, %c0_53, %c1_54, %c0_55] : memref<2x18x18x4xf32, #tpu.memory_space<vmem>>, vector<1x16x16x4xf32>
    %48 = vector.shape_cast %47 : vector<1x16x16x4xf32> to vector<16x16x4xf32>
    %49 = vector.shape_cast %48 : vector<16x16x4xf32> to vector<256x4xf32>
    %c0_56 = arith.constant 0 : index
    %c0_57 = arith.constant 0 : index
    %c2_58 = arith.constant 2 : index
    %c0_59 = arith.constant 0 : index
    %50 = vector.load %arg7[%c0_56, %c0_57, %c2_58, %c0_59] : memref<2x18x18x4xf32, #tpu.memory_space<vmem>>, vector<1x16x16x4xf32>
    %51 = vector.shape_cast %50 : vector<1x16x16x4xf32> to vector<16x16x4xf32>
    %52 = vector.shape_cast %51 : vector<16x16x4xf32> to vector<256x4xf32>
    %c0_60 = arith.constant 0 : index
    %c1_61 = arith.constant 1 : index
    %c0_62 = arith.constant 0 : index
    %c0_63 = arith.constant 0 : index
    %53 = vector.load %arg7[%c0_60, %c1_61, %c0_62, %c0_63] : memref<2x18x18x4xf32, #tpu.memory_space<vmem>>, vector<1x16x16x4xf32>
    %54 = vector.shape_cast %53 : vector<1x16x16x4xf32> to vector<16x16x4xf32>
    %55 = vector.shape_cast %54 : vector<16x16x4xf32> to vector<256x4xf32>
    %c0_64 = arith.constant 0 : index
    %c1_65 = arith.constant 1 : index
    %c1_66 = arith.constant 1 : index
    %c0_67 = arith.constant 0 : index
    %56 = vector.load %arg7[%c0_64, %c1_65, %c1_66, %c0_67] : memref<2x18x18x4xf32, #tpu.memory_space<vmem>>, vector<1x16x16x4xf32>
    %57 = vector.shape_cast %56 : vector<1x16x16x4xf32> to vector<16x16x4xf32>
    %58 = vector.shape_cast %57 : vector<16x16x4xf32> to vector<256x4xf32>
    %c0_68 = arith.constant 0 : index
    %c1_69 = arith.constant 1 : index
    %c2_70 = arith.constant 2 : index
    %c0_71 = arith.constant 0 : index
    %59 = vector.load %arg7[%c0_68, %c1_69, %c2_70, %c0_71] : memref<2x18x18x4xf32, #tpu.memory_space<vmem>>, vector<1x16x16x4xf32>
    %60 = vector.shape_cast %59 : vector<1x16x16x4xf32> to vector<16x16x4xf32>
    %61 = vector.shape_cast %60 : vector<16x16x4xf32> to vector<256x4xf32>
    %c0_72 = arith.constant 0 : index
    %c2_73 = arith.constant 2 : index
    %c0_74 = arith.constant 0 : index
    %c0_75 = arith.constant 0 : index
    %62 = vector.load %arg7[%c0_72, %c2_73, %c0_74, %c0_75] : memref<2x18x18x4xf32, #tpu.memory_space<vmem>>, vector<1x16x16x4xf32>
    %63 = vector.shape_cast %62 : vector<1x16x16x4xf32> to vector<16x16x4xf32>
    %64 = vector.shape_cast %63 : vector<16x16x4xf32> to vector<256x4xf32>
    %c0_76 = arith.constant 0 : index
    %c2_77 = arith.constant 2 : index
    %c1_78 = arith.constant 1 : index
    %c0_79 = arith.constant 0 : index
    %65 = vector.load %arg7[%c0_76, %c2_77, %c1_78, %c0_79] : memref<2x18x18x4xf32, #tpu.memory_space<vmem>>, vector<1x16x16x4xf32>
    %66 = vector.shape_cast %65 : vector<1x16x16x4xf32> to vector<16x16x4xf32>
    %67 = vector.shape_cast %66 : vector<16x16x4xf32> to vector<256x4xf32>
    %c0_80 = arith.constant 0 : index
    %c2_81 = arith.constant 2 : index
    %c2_82 = arith.constant 2 : index
    %c0_83 = arith.constant 0 : index
    %68 = vector.load %arg7[%c0_80, %c2_81, %c2_82, %c0_83] : memref<2x18x18x4xf32, #tpu.memory_space<vmem>>, vector<1x16x16x4xf32>
    %69 = vector.shape_cast %68 : vector<1x16x16x4xf32> to vector<16x16x4xf32>
    %70 = vector.shape_cast %69 : vector<16x16x4xf32> to vector<256x4xf32>
    %71 = tpu.concatenate %46, %49, %52, %55, %58, %61, %64, %67, %70 in 1 : vector<256x4xf32>, vector<256x4xf32>, vector<256x4xf32>, vector<256x4xf32>, vector<256x4xf32>, vector<256x4xf32>, vector<256x4xf32>, vector<256x4xf32>, vector<256x4xf32> -> vector<256x36xf32>
    %c0_84 = arith.constant 0 : index
    %c0_85 = arith.constant 0 : index
    %72 = vector.load %arg4[%c0_84, %c0_85] : memref<36x4xf32, #tpu.memory_space<vmem>>, vector<36x4xf32>
    %cst_86 = arith.constant dense<0.000000e+00> : vector<256x4xf32>
    %73 = tpu.matmul %71, %72, %cst_86 {dimension_numbers = #tpu.dot_dimension_numbers<[1], [0], [0], [1], [0, 0, 1, 1], [], []>} : vector<256x36xf32>, vector<36x4xf32>, vector<256x4xf32> -> vector<256x4xf32>
    %c0_87 = arith.constant 0 : index
    %c0_88 = arith.constant 0 : index
    %74 = vector.load %arg5[%c0_87, %c0_88] : memref<1x4xf32, #tpu.memory_space<vmem>>, vector<1x4xf32>
    %75 = vector.broadcast %74 : vector<1x4xf32> to vector<256x4xf32>
    %76 = arith.addf %73, %75 : vector<256x4xf32>
    %c0_89 = arith.constant 0 : index
    %c1_90 = arith.constant 1 : index
    %c1_91 = arith.constant 1 : index
    %c0_92 = arith.constant 0 : index
    %77 = vector.load %arg1[%c0_89, %c1_90, %c1_91, %c0_92] : memref<2x18x18x4xf32, #tpu.memory_space<vmem>>, vector<1x16x16x4xf32>
    %78 = vector.shape_cast %77 : vector<1x16x16x4xf32> to vector<16x16x4xf32>
    %79 = vector.shape_cast %78 : vector<16x16x4xf32> to vector<256x4xf32>
    %80 = arith.addf %76, %79 : vector<256x4xf32>
    %cst_93 = arith.constant 0.000000e+00 : f32
    %81 = vector.broadcast %cst_93 : f32 to vector<256x4xf32>
    %82 = arith.cmpf ogt, %80, %81 : vector<256x4xf32>
    %cst_94 = arith.constant 2.000000e-01 : f32
    %83 = vector.broadcast %cst_94 : f32 to vector<256x4xf32>
    %84 = arith.mulf %83, %80 : vector<256x4xf32>
    %85 = arith.select %82, %80, %84 : vector<256x4xi1>, vector<256x4xf32>
    %86 = tpu.transpose %85, [1, 0] : vector<256x4xf32> -> vector<4x256xf32>
    %c0_95 = arith.constant 0 : index
    %c0_96 = arith.constant 0 : index
    %c0_97 = arith.constant 0 : index
    %87 = vector.load %arg6[%c0_95, %c0_96, %c0_97] : memref<2x4x256xf32, #tpu.memory_space<vmem>>, vector<1x4x256xf32>
    %88 = vector.shape_cast %87 : vector<1x4x256xf32> to vector<4x256xf32>
    %89 = vector.shape_cast %86 : vector<4x256xf32> to vector<1x4x256xf32>
    tpu.vector_store %arg6[%c0_95, %c0_96, %c0_97], %89 {strides = array<i32>} : memref<2x4x256xf32, #tpu.memory_space<vmem>>, vector<1x4x256xf32>,
    %c1_98 = arith.constant 1 : index
    %c0_99 = arith.constant 0 : index
    %c0_100 = arith.constant 0 : index
    %c0_101 = arith.constant 0 : index
    %90 = vector.load %arg1[%c1_98, %c0_99, %c0_100, %c0_101] : memref<2x18x18x4xf32, #tpu.memory_space<vmem>>, vector<1x16x16x4xf32>
    %91 = vector.shape_cast %90 : vector<1x16x16x4xf32> to vector<16x16x4xf32>
    %92 = vector.shape_cast %91 : vector<16x16x4xf32> to vector<256x4xf32>
    %c1_102 = arith.constant 1 : index
    %c0_103 = arith.constant 0 : index
    %c1_104 = arith.constant 1 : index
    %c0_105 = arith.constant 0 : index
    %93 = vector.load %arg1[%c1_102, %c0_103, %c1_104, %c0_105] : memref<2x18x18x4xf32, #tpu.memory_space<vmem>>, vector<1x16x16x4xf32>
    %94 = vector.shape_cast %93 : vector<1x16x16x4xf32> to vector<16x16x4xf32>
    %95 = vector.shape_cast %94 : vector<16x16x4xf32> to vector<256x4xf32>
    %c1_106 = arith.constant 1 : index
    %c0_107 = arith.constant 0 : index
    %c2_108 = arith.constant 2 : index
    %c0_109 = arith.constant 0 : index
    %96 = vector.load %arg1[%c1_106, %c0_107, %c2_108, %c0_109] : memref<2x18x18x4xf32, #tpu.memory_space<vmem>>, vector<1x16x16x4xf32>
    %97 = vector.shape_cast %96 : vector<1x16x16x4xf32> to vector<16x16x4xf32>
    %98 = vector.shape_cast %97 : vector<16x16x4xf32> to vector<256x4xf32>
    %c1_110 = arith.constant 1 : index
    %c1_111 = arith.constant 1 : index
    %c0_112 = arith.constant 0 : index
    %c0_113 = arith.constant 0 : index
    %99 = vector.load %arg1[%c1_110, %c1_111, %c0_112, %c0_113] : memref<2x18x18x4xf32, #tpu.memory_space<vmem>>, vector<1x16x16x4xf32>
    %100 = vector.shape_cast %99 : vector<1x16x16x4xf32> to vector<16x16x4xf32>
    %101 = vector.shape_cast %100 : vector<16x16x4xf32> to vector<256x4xf32>
    %c1_114 = arith.constant 1 : index
    %c1_115 = arith.constant 1 : index
    %c1_116 = arith.constant 1 : index
    %c0_117 = arith.constant 0 : index
    %102 = vector.load %arg1[%c1_114, %c1_115, %c1_116, %c0_117] : memref<2x18x18x4xf32, #tpu.memory_space<vmem>>, vector<1x16x16x4xf32>
    %103 = vector.shape_cast %102 : vector<1x16x16x4xf32> to vector<16x16x4xf32>
    %104 = vector.shape_cast %103 : vector<16x16x4xf32> to vector<256x4xf32>
    %c1_118 = arith.constant 1 : index
    %c1_119 = arith.constant 1 : index
    %c2_120 = arith.constant 2 : index
    %c0_121 = arith.constant 0 : index
    %105 = vector.load %arg1[%c1_118, %c1_119, %c2_120, %c0_121] : memref<2x18x18x4xf32, #tpu.memory_space<vmem>>, vector<1x16x16x4xf32>
    %106 = vector.shape_cast %105 : vector<1x16x16x4xf32> to vector<16x16x4xf32>
    %107 = vector.shape_cast %106 : vector<16x16x4xf32> to vector<256x4xf32>
    %c1_122 = arith.constant 1 : index
    %c2_123 = arith.constant 2 : index
    %c0_124 = arith.constant 0 : index
    %c0_125 = arith.constant 0 : index
    %108 = vector.load %arg1[%c1_122, %c2_123, %c0_124, %c0_125] : memref<2x18x18x4xf32, #tpu.memory_space<vmem>>, vector<1x16x16x4xf32>
    %109 = vector.shape_cast %108 : vector<1x16x16x4xf32> to vector<16x16x4xf32>
    %110 = vector.shape_cast %109 : vector<16x16x4xf32> to vector<256x4xf32>
    %c1_126 = arith.constant 1 : index
    %c2_127 = arith.constant 2 : index
    %c1_128 = arith.constant 1 : index
    %c0_129 = arith.constant 0 : index
    %111 = vector.load %arg1[%c1_126, %c2_127, %c1_128, %c0_129] : memref<2x18x18x4xf32, #tpu.memory_space<vmem>>, vector<1x16x16x4xf32>
    %112 = vector.shape_cast %111 : vector<1x16x16x4xf32> to vector<16x16x4xf32>
    %113 = vector.shape_cast %112 : vector<16x16x4xf32> to vector<256x4xf32>
    %c1_130 = arith.constant 1 : index
    %c2_131 = arith.constant 2 : index
    %c2_132 = arith.constant 2 : index
    %c0_133 = arith.constant 0 : index
    %114 = vector.load %arg1[%c1_130, %c2_131, %c2_132, %c0_133] : memref<2x18x18x4xf32, #tpu.memory_space<vmem>>, vector<1x16x16x4xf32>
    %115 = vector.shape_cast %114 : vector<1x16x16x4xf32> to vector<16x16x4xf32>
    %116 = vector.shape_cast %115 : vector<16x16x4xf32> to vector<256x4xf32>
    %117 = tpu.concatenate %92, %95, %98, %101, %104, %107, %110, %113, %116 in 1 : vector<256x4xf32>, vector<256x4xf32>, vector<256x4xf32>, vector<256x4xf32>, vector<256x4xf32>, vector<256x4xf32>, vector<256x4xf32>, vector<256x4xf32>, vector<256x4xf32> -> vector<256x36xf32>
    %c0_134 = arith.constant 0 : index
    %c0_135 = arith.constant 0 : index
    %118 = vector.load %arg2[%c0_134, %c0_135] : memref<36x4xf32, #tpu.memory_space<vmem>>, vector<36x4xf32>
    %cst_136 = arith.constant dense<0.000000e+00> : vector<256x4xf32>
    %119 = tpu.matmul %117, %118, %cst_136 {dimension_numbers = #tpu.dot_dimension_numbers<[1], [0], [0], [1], [0, 0, 1, 1], [], []>} : vector<256x36xf32>, vector<36x4xf32>, vector<256x4xf32> -> vector<256x4xf32>
    %c0_137 = arith.constant 0 : index
    %c0_138 = arith.constant 0 : index
    %120 = vector.load %arg3[%c0_137, %c0_138] : memref<1x4xf32, #tpu.memory_space<vmem>>, vector<1x4xf32>
    %121 = vector.broadcast %120 : vector<1x4xf32> to vector<256x4xf32>
    %122 = arith.addf %119, %121 : vector<256x4xf32>
    %cst_139 = arith.constant 0.000000e+00 : f32
    %123 = vector.broadcast %cst_139 : f32 to vector<256x4xf32>
    %124 = arith.cmpf ogt, %122, %123 : vector<256x4xf32>
    %cst_140 = arith.constant 2.000000e-01 : f32
    %125 = vector.broadcast %cst_140 : f32 to vector<256x4xf32>
    %126 = arith.mulf %125, %122 : vector<256x4xf32>
    %127 = arith.select %124, %122, %126 : vector<256x4xi1>, vector<256x4xf32>
    %128 = vector.shape_cast %127 : vector<256x4xf32> to vector<16x16x4xf32>
    %c1_141 = arith.constant 1 : index
    %c1_142 = arith.constant 1 : index
    %c1_143 = arith.constant 1 : index
    %c0_144 = arith.constant 0 : index
    %129 = vector.load %arg7[%c1_141, %c1_142, %c1_143, %c0_144] : memref<2x18x18x4xf32, #tpu.memory_space<vmem>>, vector<1x16x16x4xf32>
    %130 = vector.shape_cast %129 : vector<1x16x16x4xf32> to vector<16x16x4xf32>
    %131 = vector.shape_cast %128 : vector<16x16x4xf32> to vector<1x16x16x4xf32>
    tpu.vector_store %arg7[%c1_141, %c1_142, %c1_143, %c0_144], %131 {strides = array<i32>} : memref<2x18x18x4xf32, #tpu.memory_space<vmem>>, vector<1x16x16x4xf32>,
    %c1_145 = arith.constant 1 : index
    %c0_146 = arith.constant 0 : index
    %c0_147 = arith.constant 0 : index
    %c0_148 = arith.constant 0 : index
    %132 = vector.load %arg7[%c1_145, %c0_146, %c0_147, %c0_148] : memref<2x18x18x4xf32, #tpu.memory_space<vmem>>, vector<1x16x16x4xf32>
    %133 = vector.shape_cast %132 : vector<1x16x16x4xf32> to vector<16x16x4xf32>
    %134 = vector.shape_cast %133 : vector<16x16x4xf32> to vector<256x4xf32>
    %c1_149 = arith.constant 1 : index
    %c0_150 = arith.constant 0 : index
    %c1_151 = arith.constant 1 : index
    %c0_152 = arith.constant 0 : index
    %135 = vector.load %arg7[%c1_149, %c0_150, %c1_151, %c0_152] : memref<2x18x18x4xf32, #tpu.memory_space<vmem>>, vector<1x16x16x4xf32>
    %136 = vector.shape_cast %135 : vector<1x16x16x4xf32> to vector<16x16x4xf32>
    %137 = vector.shape_cast %136 : vector<16x16x4xf32> to vector<256x4xf32>
    %c1_153 = arith.constant 1 : index
    %c0_154 = arith.constant 0 : index
    %c2_155 = arith.constant 2 : index
    %c0_156 = arith.constant 0 : index
    %138 = vector.load %arg7[%c1_153, %c0_154, %c2_155, %c0_156] : memref<2x18x18x4xf32, #tpu.memory_space<vmem>>, vector<1x16x16x4xf32>
    %139 = vector.shape_cast %138 : vector<1x16x16x4xf32> to vector<16x16x4xf32>
    %140 = vector.shape_cast %139 : vector<16x16x4xf32> to vector<256x4xf32>
    %c1_157 = arith.constant 1 : index
    %c1_158 = arith.constant 1 : index
    %c0_159 = arith.constant 0 : index
    %c0_160 = arith.constant 0 : index
    %141 = vector.load %arg7[%c1_157, %c1_158, %c0_159, %c0_160] : memref<2x18x18x4xf32, #tpu.memory_space<vmem>>, vector<1x16x16x4xf32>
    %142 = vector.shape_cast %141 : vector<1x16x16x4xf32> to vector<16x16x4xf32>
    %143 = vector.shape_cast %142 : vector<16x16x4xf32> to vector<256x4xf32>
    %c1_161 = arith.constant 1 : index
    %c1_162 = arith.constant 1 : index
    %c1_163 = arith.constant 1 : index
    %c0_164 = arith.constant 0 : index
    %144 = vector.load %arg7[%c1_161, %c1_162, %c1_163, %c0_164] : memref<2x18x18x4xf32, #tpu.memory_space<vmem>>, vector<1x16x16x4xf32>
    %145 = vector.shape_cast %144 : vector<1x16x16x4xf32> to vector<16x16x4xf32>
    %146 = vector.shape_cast %145 : vector<16x16x4xf32> to vector<256x4xf32>
    %c1_165 = arith.constant 1 : index
    %c1_166 = arith.constant 1 : index
    %c2_167 = arith.constant 2 : index
    %c0_168 = arith.constant 0 : index
    %147 = vector.load %arg7[%c1_165, %c1_166, %c2_167, %c0_168] : memref<2x18x18x4xf32, #tpu.memory_space<vmem>>, vector<1x16x16x4xf32>
    %148 = vector.shape_cast %147 : vector<1x16x16x4xf32> to vector<16x16x4xf32>
    %149 = vector.shape_cast %148 : vector<16x16x4xf32> to vector<256x4xf32>
    %c1_169 = arith.constant 1 : index
    %c2_170 = arith.constant 2 : index
    %c0_171 = arith.constant 0 : index
    %c0_172 = arith.constant 0 : index
    %150 = vector.load %arg7[%c1_169, %c2_170, %c0_171, %c0_172] : memref<2x18x18x4xf32, #tpu.memory_space<vmem>>, vector<1x16x16x4xf32>
    %151 = vector.shape_cast %150 : vector<1x16x16x4xf32> to vector<16x16x4xf32>
    %152 = vector.shape_cast %151 : vector<16x16x4xf32> to vector<256x4xf32>
    %c1_173 = arith.constant 1 : index
    %c2_174 = arith.constant 2 : index
    %c1_175 = arith.constant 1 : index
    %c0_176 = arith.constant 0 : index
    %153 = vector.load %arg7[%c1_173, %c2_174, %c1_175, %c0_176] : memref<2x18x18x4xf32, #tpu.memory_space<vmem>>, vector<1x16x16x4xf32>
    %154 = vector.shape_cast %153 : vector<1x16x16x4xf32> to vector<16x16x4xf32>
    %155 = vector.shape_cast %154 : vector<16x16x4xf32> to vector<256x4xf32>
    %c1_177 = arith.constant 1 : index
    %c2_178 = arith.constant 2 : index
    %c2_179 = arith.constant 2 : index
    %c0_180 = arith.constant 0 : index
    %156 = vector.load %arg7[%c1_177, %c2_178, %c2_179, %c0_180] : memref<2x18x18x4xf32, #tpu.memory_space<vmem>>, vector<1x16x16x4xf32>
    %157 = vector.shape_cast %156 : vector<1x16x16x4xf32> to vector<16x16x4xf32>
    %158 = vector.shape_cast %157 : vector<16x16x4xf32> to vector<256x4xf32>
    %159 = tpu.concatenate %134, %137, %140, %143, %146, %149, %152, %155, %158 in 1 : vector<256x4xf32>, vector<256x4xf32>, vector<256x4xf32>, vector<256x4xf32>, vector<256x4xf32>, vector<256x4xf32>, vector<256x4xf32>, vector<256x4xf32>, vector<256x4xf32> -> vector<256x36xf32>
    %c0_181 = arith.constant 0 : index
    %c0_182 = arith.constant 0 : index
    %160 = vector.load %arg4[%c0_181, %c0_182] : memref<36x4xf32, #tpu.memory_space<vmem>>, vector<36x4xf32>
    %cst_183 = arith.constant dense<0.000000e+00> : vector<256x4xf32>
    %161 = tpu.matmul %159, %160, %cst_183 {dimension_numbers = #tpu.dot_dimension_numbers<[1], [0], [0], [1], [0, 0, 1, 1], [], []>} : vector<256x36xf32>, vector<36x4xf32>, vector<256x4xf32> -> vector<256x4xf32>
    %c0_184 = arith.constant 0 : index
    %c0_185 = arith.constant 0 : index
    %162 = vector.load %arg5[%c0_184, %c0_185] : memref<1x4xf32, #tpu.memory_space<vmem>>, vector<1x4xf32>
    %163 = vector.broadcast %162 : vector<1x4xf32> to vector<256x4xf32>
    %164 = arith.addf %161, %163 : vector<256x4xf32>
    %c1_186 = arith.constant 1 : index
    %c1_187 = arith.constant 1 : index
    %c1_188 = arith.constant 1 : index
    %c0_189 = arith.constant 0 : index
    %165 = vector.load %arg1[%c1_186, %c1_187, %c1_188, %c0_189] : memref<2x18x18x4xf32, #tpu.memory_space<vmem>>, vector<1x16x16x4xf32>
    %166 = vector.shape_cast %165 : vector<1x16x16x4xf32> to vector<16x16x4xf32>
    %167 = vector.shape_cast %166 : vector<16x16x4xf32> to vector<256x4xf32>
    %168 = arith.addf %164, %167 : vector<256x4xf32>
    %cst_190 = arith.constant 0.000000e+00 : f32
    %169 = vector.broadcast %cst_190 : f32 to vector<256x4xf32>
    %170 = arith.cmpf ogt, %168, %169 : vector<256x4xf32>
    %cst_191 = arith.constant 2.000000e-01 : f32
    %171 = vector.broadcast %cst_191 : f32 to vector<256x4xf32>
    %172 = arith.mulf %171, %168 : vector<256x4xf32>
    %173 = arith.select %170, %168, %172 : vector<256x4xi1>, vector<256x4xf32>
    %174 = tpu.transpose %173, [1, 0] : vector<256x4xf32> -> vector<4x256xf32>
    %c1_192 = arith.constant 1 : index
    %c0_193 = arith.constant 0 : index
    %c0_194 = arith.constant 0 : index
    %175 = vector.load %arg6[%c1_192, %c0_193, %c0_194] : memref<2x4x256xf32, #tpu.memory_space<vmem>>, vector<1x4x256xf32>
    %176 = vector.shape_cast %175 : vector<1x4x256xf32> to vector<4x256xf32>
    %177 = vector.shape_cast %174 : vector<4x256xf32> to vector<1x4x256xf32>
    tpu.vector_store %arg6[%c1_192, %c0_193, %c0_194], %177 {strides = array<i32>} : memref<2x4x256xf32, #tpu.memory_space<vmem>>, vector<1x4x256xf32>,
    return
  }
  func.func @transform_0(%arg0: i32) -> (i32, i32, i32, i32) {
    %c0_i32 = arith.constant 0 : i32
    %c0_i32_0 = arith.constant 0 : i32
    %c0_i32_1 = arith.constant 0 : i32
    %c0_i32_2 = arith.constant 0 : i32
    return %arg0, %c0_i32, %c0_i32_0, %c0_i32_1 : i32, i32, i32, i32
  }
  func.func @transform_1(%arg0: i32) -> (i32, i32) {
    %c0_i32 = arith.constant 0 : i32
    %c0_i32_0 = arith.constant 0 : i32
    %c0_i32_1 = arith.constant 0 : i32
    return %c0_i32, %c0_i32_0 : i32, i32
  }
  func.func @transform_2(%arg0: i32) -> (i32, i32) {
    %c0_i32 = arith.constant 0 : i32
    %c0_i32_0 = arith.constant 0 : i32
    %c0_i32_1 = arith.constant 0 : i32
    return %c0_i32, %c0_i32_0 : i32, i32
  }
  func.func @transform_3(%arg0: i32) -> (i32, i32) {
    %c0_i32 = arith.constant 0 : i32
    %c0_i32_0 = arith.constant 0 : i32
    %c0_i32_1 = arith.constant 0 : i32
    return %c0_i32, %c0_i32_0 : i32, i32
  }
  func.func @transform_4(%arg0: i32) -> (i32, i32) {
    %c0_i32 = arith.constant 0 : i32
    %c0_i32_0 = arith.constant 0 : i32
    %c0_i32_1 = arith.constant 0 : i32
    return %c0_i32, %c0_i32_0 : i32, i32
  }
  func.func @transform_5(%arg0: i32) -> (i32, i32, i32) {
    %c0_i32 = arith.constant 0 : i32
    %c0_i32_0 = arith.constant 0 : i32
    %c0_i32_1 = arith.constant 0 : i32
    return %arg0, %c0_i32, %c0_i32_0 : i32, i32, i32
  }
}

</mosaic_0001>

<llo_original>
// kernel: tpu_custom_call.1
$region0: #{tpu_custom_call.1}
  #allocation0 [shape = 'u32[]', space=smem, size = 0x4, offset = 0x4, fixed_abs, tag = 'smem constant byte address 0x4 - core index']
  #allocation1 [shape = 'u32[144,128]{1,0:T(1,128)}', space=vmem, size = 0x12000, scoped, tag = 'internal scratch']
  #allocation2 [shape = 'f32[2,18,18,4]{3,2,1,0:T(8,128)}', space=vmem, size = 0x6c000, scoped, tag = 'scratch operand']
  %s0 = inlined_call_operand.vmem [shape: f32[2,18,18,4], index: 0, kind: input, shape index: {}]
  %s1 = inlined_call_operand.vmem [shape: f32[36,4], index: 1, kind: input, shape index: {}]
  %s2 = inlined_call_operand.vmem [shape: f32[1,4], index: 2, kind: input, shape index: {}]
  %s3 = inlined_call_operand.vmem [shape: f32[36,4], index: 3, kind: input, shape index: {}]
  %s4 = inlined_call_operand.vmem [shape: f32[1,4], index: 4, kind: input, shape index: {}]
  %s5 = inlined_call_operand.hbm [shape: f32[2,4,256], index: 5, kind: output, shape index: {}]
  %s6 = sld [smem:[#allocation0]]
  $region30: #{tpu_custom_call.1} parent=0
    _
  %s8 = ssub.s32 1, %s6
  %s9 = scalar_select 0, %s8, %s6
  $region1: #{tpu_custom_call.1} parent=0
    #allocation3 [shape = 'u8[8192]{0}', space=vmem, size = 0x2000, scoped, tag = 'output window, operand 0, single buffered']
    #allocation4 [shape = 's32[1]{0}', space=sflag, size = 0x4, scoped, tag = 'scoped memory for tpu_custom_call.1']
    %10 = vsyncpa [#allocation4], 0
    // Predicated region
    $region2: #{tpu_custom_call.1} parent=1 // pred_check
      _
    $region3: #{tpu_custom_call.1} parent=1 // pred_check_branch
      %12 = sbr.rel (0) target = $region5
    $region4: #{tpu_custom_call.1} parent=1 // pred_region
      _
    $region5: #{tpu_custom_call.1} parent=1 // pred_fallthru
      _
    // Predicated region
    $region6: #{tpu_custom_call.1} parent=1 // pred_check
      _
    $region7: #{tpu_custom_call.1} parent=1 // pred_check_branch
      %14 = sbr.rel (0) target = $region9
    $region8: #{tpu_custom_call.1} parent=1 // pred_region
      _
    $region9: #{tpu_custom_call.1} parent=1 // pred_fallthru
      _
    // Predicated region
    $region10: #{tpu_custom_call.1} parent=1 // pred_check
      _
    $region11: #{tpu_custom_call.1} parent=1 // pred_check_branch
      %16 = sbr.rel (0) target = $region13
    $region12: #{tpu_custom_call.1} parent=1 // pred_region
      _
    $region13: #{tpu_custom_call.1} parent=1 // pred_fallthru
      _
    // Predicated region
    $region14: #{tpu_custom_call.1} parent=1 // pred_check
      _
    $region15: #{tpu_custom_call.1} parent=1 // pred_check_branch
      %18 = sbr.rel (0) target = $region17
    $region16: #{tpu_custom_call.1} parent=1 // pred_region
      _
    $region17: #{tpu_custom_call.1} parent=1 // pred_fallthru
      _
    // Predicated region
    $region18: #{tpu_custom_call.1} parent=1 // pred_check
      _
    $region19: #{tpu_custom_call.1} parent=1 // pred_check_branch
      %20 = sbr.rel (0) target = $region21
    $region20: #{tpu_custom_call.1} parent=1 // pred_region
      _
    $region21: #{tpu_custom_call.1} parent=1 // pred_fallthru
      _
    %vm21 = vcmask 31744
    %22 = vst.msk [vmem:[#allocation2] sm:$0xff] %vm21, 0.0
    %23 = vst.msk [vmem:[#allocation2 + $0x8] sm:$0xff] %vm21, 0.0
    %vm24 = vcmask 25600
    %25 = vst.msk [vmem:[#allocation2 + $0x10] sm:$0x3] %vm24, 0.0
    %26 = vst.msk [vmem:[#allocation2 + $0x18] sm:$0xff] %vm21, 0.0
    %27 = vst.msk [vmem:[#allocation2 + $0x20] sm:$0xff] %vm21, 0.0
    %28 = vst.msk [vmem:[#allocation2 + $0x28] sm:$0x3] %vm24, 0.0
    %29 = vst.msk [vmem:[#allocation2 + $0x30] sm:$0xff] %vm21, 0.0
    %30 = vst.msk [vmem:[#allocation2 + $0x38] sm:$0xff] %vm21, 0.0
    %31 = vst.msk [vmem:[#allocation2 + $0x40] sm:$0x3] %vm24, 0.0
    %32 = vst.msk [vmem:[#allocation2 + $0x48] sm:$0xff] %vm21, 0.0
    %33 = vst.msk [vmem:[#allocation2 + $0x50] sm:$0xff] %vm21, 0.0
    %34 = vst.msk [vmem:[#allocation2 + $0x58] sm:$0x3] %vm24, 0.0
    %35 = vst.msk [vmem:[#allocation2 + $0x60] sm:$0xff] %vm21, 0.0
    %36 = vst.msk [vmem:[#allocation2 + $0x68] sm:$0xff] %vm21, 0.0
    %37 = vst.msk [vmem:[#allocation2 + $0x70] sm:$0x3] %vm24, 0.0
    %38 = vst.msk [vmem:[#allocation2 + $0x78] sm:$0xff] %vm21, 0.0
    %39 = vst.msk [vmem:[#allocation2 + $0x80] sm:$0xff] %vm21, 0.0
    %40 = vst.msk [vmem:[#allocation2 + $0x88] sm:$0x3] %vm24, 0.0
    %41 = vst.msk [vmem:[#allocation2 + $0x90] sm:$0xff] %vm21, 0.0
    %42 = vst.msk [vmem:[#allocation2 + $0x98] sm:$0xff] %vm21, 0.0
    %43 = vst.msk [vmem:[#allocation2 + $0xa0] sm:$0x3] %vm24, 0.0
    %44 = vst.msk [vmem:[#allocation2 + $0xa8] sm:$0xff] %vm21, 0.0
    %45 = vst.msk [vmem:[#allocation2 + $0xb0] sm:$0xff] %vm21, 0.0
    %46 = vst.msk [vmem:[#allocation2 + $0xb8] sm:$0x3] %vm24, 0.0
    %47 = vst.msk [vmem:[#allocation2 + $0xc0] sm:$0xff] %vm21, 0.0
    %48 = vst.msk [vmem:[#allocation2 + $0xc8] sm:$0xff] %vm21, 0.0
    %49 = vst.msk [vmem:[#allocation2 + $0xd0] sm:$0x3] %vm24, 0.0
    %50 = vst.msk [vmem:[#allocation2 + $0xd8] sm:$0xff] %vm21, 0.0
    %51 = vst.msk [vmem:[#allocation2 + $0xe0] sm:$0xff] %vm21, 0.0
    %52 = vst.msk [vmem:[#allocation2 + $0xe8] sm:$0x3] %vm24, 0.0
    %53 = vst.msk [vmem:[#allocation2 + $0xf0] sm:$0xff] %vm21, 0.0
    %54 = vst.msk [vmem:[#allocation2 + $0xf8] sm:$0xff] %vm21, 0.0
    %55 = vst.msk [vmem:[#allocation2 + $0x100] sm:$0x3] %vm24, 0.0
    %56 = vst.msk [vmem:[#allocation2 + $0x108] sm:$0xff] %vm21, 0.0
    %57 = vst.msk [vmem:[#allocation2 + $0x110] sm:$0xff] %vm21, 0.0
    %58 = vst.msk [vmem:[#allocation2 + $0x118] sm:$0x3] %vm24, 0.0
    %59 = vst.msk [vmem:[#allocation2 + $0x120] sm:$0xff] %vm21, 0.0
    %60 = vst.msk [vmem:[#allocation2 + $0x128] sm:$0xff] %vm21, 0.0
    %61 = vst.msk [vmem:[#allocation2 + $0x130] sm:$0x3] %vm24, 0.0
    %62 = vst.msk [vmem:[#allocation2 + $0x138] sm:$0xff] %vm21, 0.0
    %63 = vst.msk [vmem:[#allocation2 + $0x140] sm:$0xff] %vm21, 0.0
    %64 = vst.msk [vmem:[#allocation2 + $0x148] sm:$0x3] %vm24, 0.0
    %65 = vst.msk [vmem:[#allocation2 + $0x150] sm:$0xff] %vm21, 0.0
    %66 = vst.msk [vmem:[#allocation2 + $0x158] sm:$0xff] %vm21, 0.0
    %67 = vst.msk [vmem:[#allocation2 + $0x160] sm:$0x3] %vm24, 0.0
    %68 = vst.msk [vmem:[#allocation2 + $0x168] sm:$0xff] %vm21, 0.0
    %69 = vst.msk [vmem:[#allocation2 + $0x170] sm:$0xff] %vm21, 0.0
    %70 = vst.msk [vmem:[#allocation2 + $0x178] sm:$0x3] %vm24, 0.0
    %71 = vst.msk [vmem:[#allocation2 + $0x180] sm:$0xff] %vm21, 0.0
    %72 = vst.msk [vmem:[#allocation2 + $0x188] sm:$0xff] %vm21, 0.0
    %73 = vst.msk [vmem:[#allocation2 + $0x190] sm:$0x3] %vm24, 0.0
    %74 = vst.msk [vmem:[#allocation2 + $0x198] sm:$0xff] %vm21, 0.0
    %75 = vst.msk [vmem:[#allocation2 + $0x1a0] sm:$0xff] %vm21, 0.0
    %76 = vst.msk [vmem:[#allocation2 + $0x1a8] sm:$0x3] %vm24, 0.0
    %77 = vst.msk [vmem:[#allocation2 + $0x1b0] sm:$0xff] %vm21, 0.0
    %78 = vst.msk [vmem:[#allocation2 + $0x1b8] sm:$0xff] %vm21, 0.0
    %79 = vst.msk [vmem:[#allocation2 + $0x1c0] sm:$0x3] %vm24, 0.0
    %80 = vst.msk [vmem:[#allocation2 + $0x1c8] sm:$0xff] %vm21, 0.0
    %81 = vst.msk [vmem:[#allocation2 + $0x1d0] sm:$0xff] %vm21, 0.0
    %82 = vst.msk [vmem:[#allocation2 + $0x1d8] sm:$0x3] %vm24, 0.0
    %83 = vst.msk [vmem:[#allocation2 + $0x1e0] sm:$0xff] %vm21, 0.0
    %84 = vst.msk [vmem:[#allocation2 + $0x1e8] sm:$0xff] %vm21, 0.0
    %85 = vst.msk [vmem:[#allocation2 + $0x1f0] sm:$0x3] %vm24, 0.0
    %86 = vst.msk [vmem:[#allocation2 + $0x1f8] sm:$0xff] %vm21, 0.0
    %87 = vst.msk [vmem:[#allocation2 + $0x200] sm:$0xff] %vm21, 0.0
    %88 = vst.msk [vmem:[#allocation2 + $0x208] sm:$0x3] %vm24, 0.0
    %89 = vst.msk [vmem:[#allocation2 + $0x210] sm:$0xff] %vm21, 0.0
    %90 = vst.msk [vmem:[#allocation2 + $0x218] sm:$0xff] %vm21, 0.0
    %91 = vst.msk [vmem:[#allocation2 + $0x220] sm:$0x3] %vm24, 0.0
    %92 = vst.msk [vmem:[#allocation2 + $0x228] sm:$0xff] %vm21, 0.0
    %93 = vst.msk [vmem:[#allocation2 + $0x230] sm:$0xff] %vm21, 0.0
    %94 = vst.msk [vmem:[#allocation2 + $0x238] sm:$0x3] %vm24, 0.0
    %95 = vst.msk [vmem:[#allocation2 + $0x240] sm:$0xff] %vm21, 0.0
    %96 = vst.msk [vmem:[#allocation2 + $0x248] sm:$0xff] %vm21, 0.0
    %97 = vst.msk [vmem:[#allocation2 + $0x250] sm:$0x3] %vm24, 0.0
    %98 = vst.msk [vmem:[#allocation2 + $0x258] sm:$0xff] %vm21, 0.0
    %99 = vst.msk [vmem:[#allocation2 + $0x260] sm:$0xff] %vm21, 0.0
    %100 = vst.msk [vmem:[#allocation2 + $0x268] sm:$0x3] %vm24, 0.0
    %101 = vst.msk [vmem:[#allocation2 + $0x270] sm:$0xff] %vm21, 0.0
    %102 = vst.msk [vmem:[#allocation2 + $0x278] sm:$0xff] %vm21, 0.0
    %103 = vst.msk [vmem:[#allocation2 + $0x280] sm:$0x3] %vm24, 0.0
    %104 = vst.msk [vmem:[#allocation2 + $0x288] sm:$0xff] %vm21, 0.0
    %105 = vst.msk [vmem:[#allocation2 + $0x290] sm:$0xff] %vm21, 0.0
    %106 = vst.msk [vmem:[#allocation2 + $0x298] sm:$0x3] %vm24, 0.0
    %107 = vst.msk [vmem:[#allocation2 + $0x2a0] sm:$0xff] %vm21, 0.0
    %108 = vst.msk [vmem:[#allocation2 + $0x2a8] sm:$0xff] %vm21, 0.0
    %109 = vst.msk [vmem:[#allocation2 + $0x2b0] sm:$0x3] %vm24, 0.0
    %110 = vst.msk [vmem:[#allocation2 + $0x2b8] sm:$0xff] %vm21, 0.0
    %111 = vst.msk [vmem:[#allocation2 + $0x2c0] sm:$0xff] %vm21, 0.0
    %112 = vst.msk [vmem:[#allocation2 + $0x2c8] sm:$0x3] %vm24, 0.0
    %113 = vst.msk [vmem:[#allocation2 + $0x2d0] sm:$0xff] %vm21, 0.0
    %114 = vst.msk [vmem:[#allocation2 + $0x2d8] sm:$0xff] %vm21, 0.0
    %115 = vst.msk [vmem:[#allocation2 + $0x2e0] sm:$0x3] %vm24, 0.0
    %116 = vst.msk [vmem:[#allocation2 + $0x2e8] sm:$0xff] %vm21, 0.0
    %117 = vst.msk [vmem:[#allocation2 + $0x2f0] sm:$0xff] %vm21, 0.0
    %118 = vst.msk [vmem:[#allocation2 + $0x2f8] sm:$0x3] %vm24, 0.0
    %119 = vst.msk [vmem:[#allocation2 + $0x300] sm:$0xff] %vm21, 0.0
    %120 = vst.msk [vmem:[#allocation2 + $0x308] sm:$0xff] %vm21, 0.0
    %121 = vst.msk [vmem:[#allocation2 + $0x310] sm:$0x3] %vm24, 0.0
    %122 = vst.msk [vmem:[#allocation2 + $0x318] sm:$0xff] %vm21, 0.0
    %123 = vst.msk [vmem:[#allocation2 + $0x320] sm:$0xff] %vm21, 0.0
    %124 = vst.msk [vmem:[#allocation2 + $0x328] sm:$0x3] %vm24, 0.0
    %125 = vst.msk [vmem:[#allocation2 + $0x330] sm:$0xff] %vm21, 0.0
    %126 = vst.msk [vmem:[#allocation2 + $0x338] sm:$0xff] %vm21, 0.0
    %127 = vst.msk [vmem:[#allocation2 + $0x340] sm:$0x3] %vm24, 0.0
    %128 = vst.msk [vmem:[#allocation2 + $0x348] sm:$0xff] %vm21, 0.0
    %129 = vst.msk [vmem:[#allocation2 + $0x350] sm:$0xff] %vm21, 0.0
    %130 = vst.msk [vmem:[#allocation2 + $0x358] sm:$0x3] %vm24, 0.0
    %v131 = vld [vmem:[%s0] sm:$0xff]
    %v132 = vld [vmem:[%s0 + $0x8] sm:$0xff]
    %v133 = vld [vmem:[%s0 + $0x18] sm:$0xff]
    %v134 = vld [vmem:[%s0 + $0x20] sm:$0xff]
    %v135 = vld [vmem:[%s0 + $0x30] sm:$0xff]
    %v136 = vld [vmem:[%s0 + $0x38] sm:$0xff]
    %v137 = vld [vmem:[%s0 + $0x48] sm:$0xff]
    %v138 = vld [vmem:[%s0 + $0x50] sm:$0xff]
    %v139 = vld [vmem:[%s0 + $0x60] sm:$0xff]
    %v140 = vld [vmem:[%s0 + $0x68] sm:$0xff]
    %v141 = vld [vmem:[%s0 + $0x78] sm:$0xff]
    %v142 = vld [vmem:[%s0 + $0x80] sm:$0xff]
    %v143 = vld [vmem:[%s0 + $0x90] sm:$0xff]
    %v144 = vld [vmem:[%s0 + $0x98] sm:$0xff]
    %v145 = vld [vmem:[%s0 + $0xa8] sm:$0xff]
    %v146 = vld [vmem:[%s0 + $0xb0] sm:$0xff]
    %v147 = vld [vmem:[%s0 + $0xc0] sm:$0xff]
    %v148 = vld [vmem:[%s0 + $0xc8] sm:$0xff]
    %v149 = vld [vmem:[%s0 + $0xd8] sm:$0xff]
    %v150 = vld [vmem:[%s0 + $0xe0] sm:$0xff]
    %v151 = vld [vmem:[%s0 + $0xf0] sm:$0xff]
    %v152 = vld [vmem:[%s0 + $0xf8] sm:$0xff]
    %v153 = vld [vmem:[%s0 + $0x108] sm:$0xff]
    %v154 = vld [vmem:[%s0 + $0x110] sm:$0xff]
    %v155 = vld [vmem:[%s0 + $0x120] sm:$0xff]
    %v156 = vld [vmem:[%s0 + $0x128] sm:$0xff]
    %v157 = vld [vmem:[%s0 + $0x138] sm:$0xff]
    %v158 = vld [vmem:[%s0 + $0x140] sm:$0xff]
    %v159 = vld [vmem:[%s0 + $0x150] sm:$0xff]
    %v160 = vld [vmem:[%s0 + $0x158] sm:$0xff]
    %v161 = vld [vmem:[%s0 + $0x168] sm:$0xff]
    %v162 = vld [vmem:[%s0 + $0x170] sm:$0xff]
    %v163 = vld [vmem:[%s0 + $0x1] sm:$0xff]
    %v164 = vld [vmem:[%s0 + $0x9] sm:$0xff]
    %v165 = vld [vmem:[%s0 + $0x19] sm:$0xff]
    %v166 = vld [vmem:[%s0 + $0x21] sm:$0xff]
    %v167 = vld [vmem:[%s0 + $0x31] sm:$0xff]
    %v168 = vld [vmem:[%s0 + $0x39] sm:$0xff]
    %v169 = vld [vmem:[%s0 + $0x49] sm:$0xff]
    %v170 = vld [vmem:[%s0 + $0x51] sm:$0xff]
    %v171 = vld [vmem:[%s0 + $0x61] sm:$0xff]
    %v172 = vld [vmem:[%s0 + $0x69] sm:$0xff]
    %v173 = vld [vmem:[%s0 + $0x79] sm:$0xff]
    %v174 = vld [vmem:[%s0 + $0x81] sm:$0xff]
    %v175 = vld [vmem:[%s0 + $0x91] sm:$0xff]
    %v176 = vld [vmem:[%s0 + $0x99] sm:$0xff]
    %v177 = vld [vmem:[%s0 + $0xa9] sm:$0xff]
    %v178 = vld [vmem:[%s0 + $0xb1] sm:$0xff]
    %v179 = vld [vmem:[%s0 + $0xc1] sm:$0xff]
    %v180 = vld [vmem:[%s0 + $0xc9] sm:$0xff]
    %v181 = vld [vmem:[%s0 + $0xd9] sm:$0xff]
    %v182 = vld [vmem:[%s0 + $0xe1] sm:$0xff]
    %v183 = vld [vmem:[%s0 + $0xf1] sm:$0xff]
    %v184 = vld [vmem:[%s0 + $0xf9] sm:$0xff]
    %v185 = vld [vmem:[%s0 + $0x109] sm:$0xff]
    %v186 = vld [vmem:[%s0 + $0x111] sm:$0xff]
    %v187 = vld [vmem:[%s0 + $0x121] sm:$0xff]
    %v188 = vld [vmem:[%s0 + $0x129] sm:$0xff]
    %v189 = vld [vmem:[%s0 + $0x139] sm:$0xff]
    %v190 = vld [vmem:[%s0 + $0x141] sm:$0xff]
    %v191 = vld [vmem:[%s0 + $0x151] sm:$0xff]
    %v192 = vld [vmem:[%s0 + $0x159] sm:$0xff]
    %v193 = vld [vmem:[%s0 + $0x169] sm:$0xff]
    %v194 = vld [vmem:[%s0 + $0x171] sm:$0xff]
    %v195 = vld [vmem:[%s0 + $0x2] sm:$0xff]
    %v196 = vld [vmem:[%s0 + $0xa] sm:$0xff]
    %v197 = vld [vmem:[%s0 + $0x1a] sm:$0xff]
    %v198 = vld [vmem:[%s0 + $0x22] sm:$0xff]
    %v199 = vld [vmem:[%s0 + $0x32] sm:$0xff]
    %v200 = vld [vmem:[%s0 + $0x3a] sm:$0xff]
    %v201 = vld [vmem:[%s0 + $0x4a] sm:$0xff]
    %v202 = vld [vmem:[%s0 + $0x52] sm:$0xff]
    %v203 = vld [vmem:[%s0 + $0x62] sm:$0xff]
    %v204 = vld [vmem:[%s0 + $0x6a] sm:$0xff]
    %v205 = vld [vmem:[%s0 + $0x7a] sm:$0xff]
    %v206 = vld [vmem:[%s0 + $0x82] sm:$0xff]
    %v207 = vld [vmem:[%s0 + $0x92] sm:$0xff]
    %v208 = vld [vmem:[%s0 + $0x9a] sm:$0xff]
    %v209 = vld [vmem:[%s0 + $0xaa] sm:$0xff]
    %v210 = vld [vmem:[%s0 + $0xb2] sm:$0xff]
    %v211 = vld [vmem:[%s0 + $0xc2] sm:$0xff]
    %v212 = vld [vmem:[%s0 + $0xca] sm:$0xff]
    %v213 = vld [vmem:[%s0 + $0xda] sm:$0xff]
    %v214 = vld [vmem:[%s0 + $0xe2] sm:$0xff]
    %v215 = vld [vmem:[%s0 + $0xf2] sm:$0xff]
    %v216 = vld [vmem:[%s0 + $0xfa] sm:$0xff]
    %v217 = vld [vmem:[%s0 + $0x10a] sm:$0xff]
    %v218 = vld [vmem:[%s0 + $0x112] sm:$0xff]
    %v219 = vld [vmem:[%s0 + $0x122] sm:$0xff]
    %v220 = vld [vmem:[%s0 + $0x12a] sm:$0xff]
    %v221 = vld [vmem:[%s0 + $0x13a] sm:$0xff]
    %v222 = vld [vmem:[%s0 + $0x142] sm:$0xff]
    %v223 = vld [vmem:[%s0 + $0x152] sm:$0xff]
    %v224 = vld [vmem:[%s0 + $0x15a] sm:$0xff]
    %v225 = vld [vmem:[%s0 + $0x16a] sm:$0xff]
    %v226 = vld [vmem:[%s0 + $0x172] sm:$0xff]
    %s227 = scalar_lea.vmem %s0, 24
    %v228 = vld [vmem:[%s227] sm:$0xff]
    %v229 = vld [vmem:[%s227 + $0x8] sm:$0xff]
    %v230 = vld [vmem:[%s227 + $0x18] sm:$0xff]
    %v231 = vld [vmem:[%s227 + $0x20] sm:$0xff]
    %v232 = vld [vmem:[%s227 + $0x30] sm:$0xff]
    %v233 = vld [vmem:[%s227 + $0x38] sm:$0xff]
    %v234 = vld [vmem:[%s227 + $0x48] sm:$0xff]
    %v235 = vld [vmem:[%s227 + $0x50] sm:$0xff]
    %v236 = vld [vmem:[%s227 + $0x60] sm:$0xff]
    %v237 = vld [vmem:[%s227 + $0x68] sm:$0xff]
    %v238 = vld [vmem:[%s227 + $0x78] sm:$0xff]
    %v239 = vld [vmem:[%s227 + $0x80] sm:$0xff]
    %v240 = vld [vmem:[%s227 + $0x90] sm:$0xff]
    %v241 = vld [vmem:[%s227 + $0x98] sm:$0xff]
    %v242 = vld [vmem:[%s227 + $0xa8] sm:$0xff]
    %v243 = vld [vmem:[%s227 + $0xb0] sm:$0xff]
    %v244 = vld [vmem:[%s227 + $0xc0] sm:$0xff]
    %v245 = vld [vmem:[%s227 + $0xc8] sm:$0xff]
    %v246 = vld [vmem:[%s227 + $0xd8] sm:$0xff]
    %v247 = vld [vmem:[%s227 + $0xe0] sm:$0xff]
    %v248 = vld [vmem:[%s227 + $0xf0] sm:$0xff]
    %v249 = vld [vmem:[%s227 + $0xf8] sm:$0xff]
    %v250 = vld [vmem:[%s227 + $0x108] sm:$0xff]
    %v251 = vld [vmem:[%s227 + $0x110] sm:$0xff]
    %v252 = vld [vmem:[%s227 + $0x120] sm:$0xff]
    %v253 = vld [vmem:[%s227 + $0x128] sm:$0xff]
    %v254 = vld [vmem:[%s227 + $0x138] sm:$0xff]
    %v255 = vld [vmem:[%s227 + $0x140] sm:$0xff]
    %v256 = vld [vmem:[%s227 + $0x150] sm:$0xff]
    %v257 = vld [vmem:[%s227 + $0x158] sm:$0xff]
    %v258 = vld [vmem:[%s227 + $0x168] sm:$0xff]
    %v259 = vld [vmem:[%s227 + $0x170] sm:$0xff]
    %v260 = vld [vmem:[%s227 + $0x1] sm:$0xff]
    %v261 = vld [vmem:[%s227 + $0x9] sm:$0xff]
    %v262 = vld [vmem:[%s227 + $0x19] sm:$0xff]
    %v263 = vld [vmem:[%s227 + $0x21] sm:$0xff]
    %v264 = vld [vmem:[%s227 + $0x31] sm:$0xff]
    %v265 = vld [vmem:[%s227 + $0x39] sm:$0xff]
    %v266 = vld [vmem:[%s227 + $0x49] sm:$0xff]
    %v267 = vld [vmem:[%s227 + $0x51] sm:$0xff]
    %v268 = vld [vmem:[%s227 + $0x61] sm:$0xff]
    %v269 = vld [vmem:[%s227 + $0x69] sm:$0xff]
    %v270 = vld [vmem:[%s227 + $0x79] sm:$0xff]
    %v271 = vld [vmem:[%s227 + $0x81] sm:$0xff]
    %v272 = vld [vmem:[%s227 + $0x91] sm:$0xff]
    %v273 = vld [vmem:[%s227 + $0x99] sm:$0xff]
    %v274 = vld [vmem:[%s227 + $0xa9] sm:$0xff]
    %v275 = vld [vmem:[%s227 + $0xb1] sm:$0xff]
    %v276 = vld [vmem:[%s227 + $0xc1] sm:$0xff]
    %v277 = vld [vmem:[%s227 + $0xc9] sm:$0xff]
    %v278 = vld [vmem:[%s227 + $0xd9] sm:$0xff]
    %v279 = vld [vmem:[%s227 + $0xe1] sm:$0xff]
    %v280 = vld [vmem:[%s227 + $0xf1] sm:$0xff]
    %v281 = vld [vmem:[%s227 + $0xf9] sm:$0xff]
    %v282 = vld [vmem:[%s227 + $0x109] sm:$0xff]
    %v283 = vld [vmem:[%s227 + $0x111] sm:$0xff]
    %v284 = vld [vmem:[%s227 + $0x121] sm:$0xff]
    %v285 = vld [vmem:[%s227 + $0x129] sm:$0xff]
    %v286 = vld [vmem:[%s227 + $0x139] sm:$0xff]
    %v287 = vld [vmem:[%s227 + $0x141] sm:$0xff]
    %v288 = vld [vmem:[%s227 + $0x151] sm:$0xff]
    %v289 = vld [vmem:[%s227 + $0x159] sm:$0xff]
    %v290 = vld [vmem:[%s227 + $0x169] sm:$0xff]
    %v291 = vld [vmem:[%s227 + $0x171] sm:$0xff]
    %v292 = vld [vmem:[%s227 + $0x2] sm:$0xff]
    %v293 = vld [vmem:[%s227 + $0xa] sm:$0xff]
    %v294 = vld [vmem:[%s227 + $0x1a] sm:$0xff]
    %v295 = vld [vmem:[%s227 + $0x22] sm:$0xff]
    %v296 = vld [vmem:[%s227 + $0x32] sm:$0xff]
    %v297 = vld [vmem:[%s227 + $0x3a] sm:$0xff]
    %v298 = vld [vmem:[%s227 + $0x4a] sm:$0xff]
    %v299 = vld [vmem:[%s227 + $0x52] sm:$0xff]
    %v300 = vld [vmem:[%s227 + $0x62] sm:$0xff]
    %v301 = vld [vmem:[%s227 + $0x6a] sm:$0xff]
    %v302 = vld [vmem:[%s227 + $0x7a] sm:$0xff]
    %v303 = vld [vmem:[%s227 + $0x82] sm:$0xff]
    %v304 = vld [vmem:[%s227 + $0x92] sm:$0xff]
    %v305 = vld [vmem:[%s227 + $0x9a] sm:$0xff]
    %v306 = vld [vmem:[%s227 + $0xaa] sm:$0xff]
    %v307 = vld [vmem:[%s227 + $0xb2] sm:$0xff]
    %v308 = vld [vmem:[%s227 + $0xc2] sm:$0xff]
    %v309 = vld [vmem:[%s227 + $0xca] sm:$0xff]
    %v310 = vld [vmem:[%s227 + $0xda] sm:$0xff]
    %v311 = vld [vmem:[%s227 + $0xe2] sm:$0xff]
    %v312 = vld [vmem:[%s227 + $0xf2] sm:$0xff]
    %v313 = vld [vmem:[%s227 + $0xfa] sm:$0xff]
    %v314 = vld [vmem:[%s227 + $0x10a] sm:$0xff]
    %v315 = vld [vmem:[%s227 + $0x112] sm:$0xff]
    %v316 = vld [vmem:[%s227 + $0x122] sm:$0xff]
    %v317 = vld [vmem:[%s227 + $0x12a] sm:$0xff]
    %v318 = vld [vmem:[%s227 + $0x13a] sm:$0xff]
    %v319 = vld [vmem:[%s227 + $0x142] sm:$0xff]
    %v320 = vld [vmem:[%s227 + $0x152] sm:$0xff]
    %v321 = vld [vmem:[%s227 + $0x15a] sm:$0xff]
    %v322 = vld [vmem:[%s227 + $0x16a] sm:$0xff]
    %v323 = vld [vmem:[%s227 + $0x172] sm:$0xff]
    %s324 = scalar_lea.vmem %s0, 48
    %v325 = vld [vmem:[%s324] sm:$0xff]
    %v326 = vld [vmem:[%s324 + $0x8] sm:$0xff]
    %v327 = vld [vmem:[%s324 + $0x18] sm:$0xff]
    %v328 = vld [vmem:[%s324 + $0x20] sm:$0xff]
    %v329 = vld [vmem:[%s324 + $0x30] sm:$0xff]
    %v330 = vld [vmem:[%s324 + $0x38] sm:$0xff]
    %v331 = vld [vmem:[%s324 + $0x48] sm:$0xff]
    %v332 = vld [vmem:[%s324 + $0x50] sm:$0xff]
    %v333 = vld [vmem:[%s324 + $0x60] sm:$0xff]
    %v334 = vld [vmem:[%s324 + $0x68] sm:$0xff]
    %v335 = vld [vmem:[%s324 + $0x78] sm:$0xff]
    %v336 = vld [vmem:[%s324 + $0x80] sm:$0xff]
    %v337 = vld [vmem:[%s324 + $0x90] sm:$0xff]
    %v338 = vld [vmem:[%s324 + $0x98] sm:$0xff]
    %v339 = vld [vmem:[%s324 + $0xa8] sm:$0xff]
    %v340 = vld [vmem:[%s324 + $0xb0] sm:$0xff]
    %v341 = vld [vmem:[%s324 + $0xc0] sm:$0xff]
    %v342 = vld [vmem:[%s324 + $0xc8] sm:$0xff]
    %v343 = vld [vmem:[%s324 + $0xd8] sm:$0xff]
    %v344 = vld [vmem:[%s324 + $0xe0] sm:$0xff]
    %v345 = vld [vmem:[%s324 + $0xf0] sm:$0xff]
    %v346 = vld [vmem:[%s324 + $0xf8] sm:$0xff]
    %v347 = vld [vmem:[%s324 + $0x108] sm:$0xff]
    %v348 = vld [vmem:[%s324 + $0x110] sm:$0xff]
    %v349 = vld [vmem:[%s324 + $0x120] sm:$0xff]
    %v350 = vld [vmem:[%s324 + $0x128] sm:$0xff]
    %v351 = vld [vmem:[%s324 + $0x138] sm:$0xff]
    %v352 = vld [vmem:[%s324 + $0x140] sm:$0xff]
    %v353 = vld [vmem:[%s324 + $0x150] sm:$0xff]
    %v354 = vld [vmem:[%s324 + $0x158] sm:$0xff]
    %v355 = vld [vmem:[%s324 + $0x168] sm:$0xff]
    %v356 = vld [vmem:[%s324 + $0x170] sm:$0xff]
    %v357 = vld [vmem:[%s324 + $0x1] sm:$0xff]
    %v358 = vld [vmem:[%s324 + $0x9] sm:$0xff]
    %v359 = vld [vmem:[%s324 + $0x19] sm:$0xff]
    %v360 = vld [vmem:[%s324 + $0x21] sm:$0xff]
    %v361 = vld [vmem:[%s324 + $0x31] sm:$0xff]
    %v362 = vld [vmem:[%s324 + $0x39] sm:$0xff]
    %v363 = vld [vmem:[%s324 + $0x49] sm:$0xff]
    %v364 = vld [vmem:[%s324 + $0x51] sm:$0xff]
    %v365 = vld [vmem:[%s324 + $0x61] sm:$0xff]
    %v366 = vld [vmem:[%s324 + $0x69] sm:$0xff]
    %v367 = vld [vmem:[%s324 + $0x79] sm:$0xff]
    %v368 = vld [vmem:[%s324 + $0x81] sm:$0xff]
    %v369 = vld [vmem:[%s324 + $0x91] sm:$0xff]
    %v370 = vld [vmem:[%s324 + $0x99] sm:$0xff]
    %v371 = vld [vmem:[%s324 + $0xa9] sm:$0xff]
    %v372 = vld [vmem:[%s324 + $0xb1] sm:$0xff]
    %v373 = vld [vmem:[%s324 + $0xc1] sm:$0xff]
    %v374 = vld [vmem:[%s324 + $0xc9] sm:$0xff]
    %v375 = vld [vmem:[%s324 + $0xd9] sm:$0xff]
    %v376 = vld [vmem:[%s324 + $0xe1] sm:$0xff]
    %v377 = vld [vmem:[%s324 + $0xf1] sm:$0xff]
    %v378 = vld [vmem:[%s324 + $0xf9] sm:$0xff]
    %v379 = vld [vmem:[%s324 + $0x109] sm:$0xff]
    %v380 = vld [vmem:[%s324 + $0x111] sm:$0xff]
    %v381 = vld [vmem:[%s324 + $0x121] sm:$0xff]
    %v382 = vld [vmem:[%s324 + $0x129] sm:$0xff]
    %v383 = vld [vmem:[%s324 + $0x139] sm:$0xff]
    %v384 = vld [vmem:[%s324 + $0x141] sm:$0xff]
    %v385 = vld [vmem:[%s324 + $0x151] sm:$0xff]
    %v386 = vld [vmem:[%s324 + $0x159] sm:$0xff]
    %v387 = vld [vmem:[%s324 + $0x169] sm:$0xff]
    %v388 = vld [vmem:[%s324 + $0x171] sm:$0xff]
    %v389 = vld [vmem:[%s324 + $0x2] sm:$0xff]
    %v390 = vld [vmem:[%s324 + $0xa] sm:$0xff]
    %v391 = vld [vmem:[%s324 + $0x1a] sm:$0xff]
    %v392 = vld [vmem:[%s324 + $0x22] sm:$0xff]
    %v393 = vld [vmem:[%s324 + $0x32] sm:$0xff]
    %v394 = vld [vmem:[%s324 + $0x3a] sm:$0xff]
    %v395 = vld [vmem:[%s324 + $0x4a] sm:$0xff]
    %v396 = vld [vmem:[%s324 + $0x52] sm:$0xff]
    %v397 = vld [vmem:[%s324 + $0x62] sm:$0xff]
    %v398 = vld [vmem:[%s324 + $0x6a] sm:$0xff]
    %v399 = vld [vmem:[%s324 + $0x7a] sm:$0xff]
    %v400 = vld [vmem:[%s324 + $0x82] sm:$0xff]
    %v401 = vld [vmem:[%s324 + $0x92] sm:$0xff]
    %v402 = vld [vmem:[%s324 + $0x9a] sm:$0xff]
    %v403 = vld [vmem:[%s324 + $0xaa] sm:$0xff]
    %v404 = vld [vmem:[%s324 + $0xb2] sm:$0xff]
    %v405 = vld [vmem:[%s324 + $0xc2] sm:$0xff]
    %v406 = vld [vmem:[%s324 + $0xca] sm:$0xff]
    %v407 = vld [vmem:[%s324 + $0xda] sm:$0xff]
    %v408 = vld [vmem:[%s324 + $0xe2] sm:$0xff]
    %v409 = vld [vmem:[%s324 + $0xf2] sm:$0xff]
    %v410 = vld [vmem:[%s324 + $0xfa] sm:$0xff]
    %v411 = vld [vmem:[%s324 + $0x10a] sm:$0xff]
    %v412 = vld [vmem:[%s324 + $0x112] sm:$0xff]
    %v413 = vld [vmem:[%s324 + $0x122] sm:$0xff]
    %v414 = vld [vmem:[%s324 + $0x12a] sm:$0xff]
    %v415 = vld [vmem:[%s324 + $0x13a] sm:$0xff]
    %v416 = vld [vmem:[%s324 + $0x142] sm:$0xff]
    %v417 = vld [vmem:[%s324 + $0x152] sm:$0xff]
    %v418 = vld [vmem:[%s324 + $0x15a] sm:$0xff]
    %v419 = vld [vmem:[%s324 + $0x16a] sm:$0xff]
    %v420 = vld [vmem:[%s324 + $0x172] sm:$0xff]
    %453 = vrot.lane.b32.xlu0 %v163, 4
    %v454 = vpop.permute.xlu0 %453
    %455 = vrot.lane.b32.xlu0 %v164, 4
    %v456 = vpop.permute.xlu0 %455
    %457 = vrot.lane.b32.xlu0 %v165, 4
    %v458 = vpop.permute.xlu0 %457
    %459 = vrot.lane.b32.xlu0 %v166, 4
    %v460 = vpop.permute.xlu0 %459
    %461 = vrot.lane.b32.xlu0 %v167, 4
    %v462 = vpop.permute.xlu0 %461
    %463 = vrot.lane.b32.xlu0 %v168, 4
    %v464 = vpop.permute.xlu0 %463
    %465 = vrot.lane.b32.xlu0 %v169, 4
    %v466 = vpop.permute.xlu0 %465
    %467 = vrot.lane.b32.xlu0 %v170, 4
    %v468 = vpop.permute.xlu0 %467
    %469 = vrot.lane.b32.xlu0 %v171, 4
    %v470 = vpop.permute.xlu0 %469
    %471 = vrot.lane.b32.xlu0 %v172, 4
    %v472 = vpop.permute.xlu0 %471
    %473 = vrot.lane.b32.xlu0 %v173, 4
    %v474 = vpop.permute.xlu0 %473
    %475 = vrot.lane.b32.xlu0 %v174, 4
    %v476 = vpop.permute.xlu0 %475
    %477 = vrot.lane.b32.xlu0 %v175, 4
    %v478 = vpop.permute.xlu0 %477
    %479 = vrot.lane.b32.xlu0 %v176, 4
    %v480 = vpop.permute.xlu0 %479
    %481 = vrot.lane.b32.xlu0 %v177, 4
    %v482 = vpop.permute.xlu0 %481
    %483 = vrot.lane.b32.xlu0 %v178, 4
    %v484 = vpop.permute.xlu0 %483
    %485 = vrot.lane.b32.xlu0 %v179, 4
    %v486 = vpop.permute.xlu0 %485
    %487 = vrot.lane.b32.xlu0 %v180, 4
    %v488 = vpop.permute.xlu0 %487
    %489 = vrot.lane.b32.xlu0 %v181, 4
    %v490 = vpop.permute.xlu0 %489
    %491 = vrot.lane.b32.xlu0 %v182, 4
    %v492 = vpop.permute.xlu0 %491
    %493 = vrot.lane.b32.xlu0 %v183, 4
    %v494 = vpop.permute.xlu0 %493
    %495 = vrot.lane.b32.xlu0 %v184, 4
    %v496 = vpop.permute.xlu0 %495
    %497 = vrot.lane.b32.xlu0 %v185, 4
    %v498 = vpop.permute.xlu0 %497
    %499 = vrot.lane.b32.xlu0 %v186, 4
    %v500 = vpop.permute.xlu0 %499
    %501 = vrot.lane.b32.xlu0 %v187, 4
    %v502 = vpop.permute.xlu0 %501
    %503 = vrot.lane.b32.xlu0 %v188, 4
    %v504 = vpop.permute.xlu0 %503
    %505 = vrot.lane.b32.xlu0 %v189, 4
    %v506 = vpop.permute.xlu0 %505
    %507 = vrot.lane.b32.xlu0 %v190, 4
    %v508 = vpop.permute.xlu0 %507
    %509 = vrot.lane.b32.xlu0 %v191, 4
    %v510 = vpop.permute.xlu0 %509
    %511 = vrot.lane.b32.xlu0 %v192, 4
    %v512 = vpop.permute.xlu0 %511
    %513 = vrot.lane.b32.xlu0 %v193, 4
    %v514 = vpop.permute.xlu0 %513
    %515 = vrot.lane.b32.xlu0 %v194, 4
    %v516 = vpop.permute.xlu0 %515
    %581 = vrot.lane.b32.xlu0 %v195, 8
    %v582 = vpop.permute.xlu0 %581
    %583 = vrot.lane.b32.xlu0 %v196, 8
    %v584 = vpop.permute.xlu0 %583
    %585 = vrot.lane.b32.xlu0 %v197, 8
    %v586 = vpop.permute.xlu0 %585
    %587 = vrot.lane.b32.xlu0 %v198, 8
    %v588 = vpop.permute.xlu0 %587
    %589 = vrot.lane.b32.xlu0 %v199, 8
    %v590 = vpop.permute.xlu0 %589
    %591 = vrot.lane.b32.xlu0 %v200, 8
    %v592 = vpop.permute.xlu0 %591
    %593 = vrot.lane.b32.xlu0 %v201, 8
    %v594 = vpop.permute.xlu0 %593
    %595 = vrot.lane.b32.xlu0 %v202, 8
    %v596 = vpop.permute.xlu0 %595
    %597 = vrot.lane.b32.xlu0 %v203, 8
    %v598 = vpop.permute.xlu0 %597
    %599 = vrot.lane.b32.xlu0 %v204, 8
    %v600 = vpop.permute.xlu0 %599
    %601 = vrot.lane.b32.xlu0 %v205, 8
    %v602 = vpop.permute.xlu0 %601
    %603 = vrot.lane.b32.xlu0 %v206, 8
    %v604 = vpop.permute.xlu0 %603
    %605 = vrot.lane.b32.xlu0 %v207, 8
    %v606 = vpop.permute.xlu0 %605
    %607 = vrot.lane.b32.xlu0 %v208, 8
    %v608 = vpop.permute.xlu0 %607
    %609 = vrot.lane.b32.xlu0 %v209, 8
    %v610 = vpop.permute.xlu0 %609
    %611 = vrot.lane.b32.xlu0 %v210, 8
    %v612 = vpop.permute.xlu0 %611
    %613 = vrot.lane.b32.xlu0 %v211, 8
    %v614 = vpop.permute.xlu0 %613
    %615 = vrot.lane.b32.xlu0 %v212, 8
    %v616 = vpop.permute.xlu0 %615
    %617 = vrot.lane.b32.xlu0 %v213, 8
    %v618 = vpop.permute.xlu0 %617
    %619 = vrot.lane.b32.xlu0 %v214, 8
    %v620 = vpop.permute.xlu0 %619
    %621 = vrot.lane.b32.xlu0 %v215, 8
    %v622 = vpop.permute.xlu0 %621
    %623 = vrot.lane.b32.xlu0 %v216, 8
    %v624 = vpop.permute.xlu0 %623
    %625 = vrot.lane.b32.xlu0 %v217, 8
    %v626 = vpop.permute.xlu0 %625
    %627 = vrot.lane.b32.xlu0 %v218, 8
    %v628 = vpop.permute.xlu0 %627
    %629 = vrot.lane.b32.xlu0 %v219, 8
    %v630 = vpop.permute.xlu0 %629
    %631 = vrot.lane.b32.xlu0 %v220, 8
    %v632 = vpop.permute.xlu0 %631
    %633 = vrot.lane.b32.xlu0 %v221, 8
    %v634 = vpop.permute.xlu0 %633
    %635 = vrot.lane.b32.xlu0 %v222, 8
    %v636 = vpop.permute.xlu0 %635
    %637 = vrot.lane.b32.xlu0 %v223, 8
    %v638 = vpop.permute.xlu0 %637
    %639 = vrot.lane.b32.xlu0 %v224, 8
    %v640 = vpop.permute.xlu0 %639
    %641 = vrot.lane.b32.xlu0 %v225, 8
    %v642 = vpop.permute.xlu0 %641
    %643 = vrot.lane.b32.xlu0 %v226, 8
    %v644 = vpop.permute.xlu0 %643
    %709 = vrot.lane.b32.xlu0 %v228, 12
    %v710 = vpop.permute.xlu0 %709
    %711 = vrot.lane.b32.xlu0 %v229, 12
    %v712 = vpop.permute.xlu0 %711
    %713 = vrot.lane.b32.xlu0 %v230, 12
    %v714 = vpop.permute.xlu0 %713
    %715 = vrot.lane.b32.xlu0 %v231, 12
    %v716 = vpop.permute.xlu0 %715
    %717 = vrot.lane.b32.xlu0 %v232, 12
    %v718 = vpop.permute.xlu0 %717
    %719 = vrot.lane.b32.xlu0 %v233, 12
    %v720 = vpop.permute.xlu0 %719
    %721 = vrot.lane.b32.xlu0 %v234, 12
    %v722 = vpop.permute.xlu0 %721
    %723 = vrot.lane.b32.xlu0 %v235, 12
    %v724 = vpop.permute.xlu0 %723
    %725 = vrot.lane.b32.xlu0 %v236, 12
    %v726 = vpop.permute.xlu0 %725
    %727 = vrot.lane.b32.xlu0 %v237, 12
    %v728 = vpop.permute.xlu0 %727
    %729 = vrot.lane.b32.xlu0 %v238, 12
    %v730 = vpop.permute.xlu0 %729
    %731 = vrot.lane.b32.xlu0 %v239, 12
    %v732 = vpop.permute.xlu0 %731
    %733 = vrot.lane.b32.xlu0 %v240, 12
    %v734 = vpop.permute.xlu0 %733
    %735 = vrot.lane.b32.xlu0 %v241, 12
    %v736 = vpop.permute.xlu0 %735
    %737 = vrot.lane.b32.xlu0 %v242, 12
    %v738 = vpop.permute.xlu0 %737
    %739 = vrot.lane.b32.xlu0 %v243, 12
    %v740 = vpop.permute.xlu0 %739
    %741 = vrot.lane.b32.xlu0 %v244, 12
    %v742 = vpop.permute.xlu0 %741
    %743 = vrot.lane.b32.xlu0 %v245, 12
    %v744 = vpop.permute.xlu0 %743
    %745 = vrot.lane.b32.xlu0 %v246, 12
    %v746 = vpop.permute.xlu0 %745
    %747 = vrot.lane.b32.xlu0 %v247, 12
    %v748 = vpop.permute.xlu0 %747
    %749 = vrot.lane.b32.xlu0 %v248, 12
    %v750 = vpop.permute.xlu0 %749
    %751 = vrot.lane.b32.xlu0 %v249, 12
    %v752 = vpop.permute.xlu0 %751
    %753 = vrot.lane.b32.xlu0 %v250, 12
    %v754 = vpop.permute.xlu0 %753
    %755 = vrot.lane.b32.xlu0 %v251, 12
    %v756 = vpop.permute.xlu0 %755
    %757 = vrot.lane.b32.xlu0 %v252, 12
    %v758 = vpop.permute.xlu0 %757
    %759 = vrot.lane.b32.xlu0 %v253, 12
    %v760 = vpop.permute.xlu0 %759
    %761 = vrot.lane.b32.xlu0 %v254, 12
    %v762 = vpop.permute.xlu0 %761
    %763 = vrot.lane.b32.xlu0 %v255, 12
    %v764 = vpop.permute.xlu0 %763
    %765 = vrot.lane.b32.xlu0 %v256, 12
    %v766 = vpop.permute.xlu0 %765
    %767 = vrot.lane.b32.xlu0 %v257, 12
    %v768 = vpop.permute.xlu0 %767
    %769 = vrot.lane.b32.xlu0 %v258, 12
    %v770 = vpop.permute.xlu0 %769
    %771 = vrot.lane.b32.xlu0 %v259, 12
    %v772 = vpop.permute.xlu0 %771
    %837 = vrot.lane.b32.xlu0 %v260, 16
    %v838 = vpop.permute.xlu0 %837
    %839 = vrot.lane.b32.xlu0 %v261, 16
    %v840 = vpop.permute.xlu0 %839
    %841 = vrot.lane.b32.xlu0 %v262, 16
    %v842 = vpop.permute.xlu0 %841
    %843 = vrot.lane.b32.xlu0 %v263, 16
    %v844 = vpop.permute.xlu0 %843
    %845 = vrot.lane.b32.xlu0 %v264, 16
    %v846 = vpop.permute.xlu0 %845
    %847 = vrot.lane.b32.xlu0 %v265, 16
    %v848 = vpop.permute.xlu0 %847
    %849 = vrot.lane.b32.xlu0 %v266, 16
    %v850 = vpop.permute.xlu0 %849
    %851 = vrot.lane.b32.xlu0 %v267, 16
    %v852 = vpop.permute.xlu0 %851
    %853 = vrot.lane.b32.xlu0 %v268, 16
    %v854 = vpop.permute.xlu0 %853
    %855 = vrot.lane.b32.xlu0 %v269, 16
    %v856 = vpop.permute.xlu0 %855
    %857 = vrot.lane.b32.xlu0 %v270, 16
    %v858 = vpop.permute.xlu0 %857
    %859 = vrot.lane.b32.xlu0 %v271, 16
    %v860 = vpop.permute.xlu0 %859
    %861 = vrot.lane.b32.xlu0 %v272, 16
    %v862 = vpop.permute.xlu0 %861
    %863 = vrot.lane.b32.xlu0 %v273, 16
    %v864 = vpop.permute.xlu0 %863
    %865 = vrot.lane.b32.xlu0 %v274, 16
    %v866 = vpop.permute.xlu0 %865
    %867 = vrot.lane.b32.xlu0 %v275, 16
    %v868 = vpop.permute.xlu0 %867
    %869 = vrot.lane.b32.xlu0 %v276, 16
    %v870 = vpop.permute.xlu0 %869
    %871 = vrot.lane.b32.xlu0 %v277, 16
    %v872 = vpop.permute.xlu0 %871
    %873 = vrot.lane.b32.xlu0 %v278, 16
    %v874 = vpop.permute.xlu0 %873
    %875 = vrot.lane.b32.xlu0 %v279, 16
    %v876 = vpop.permute.xlu0 %875
    %877 = vrot.lane.b32.xlu0 %v280, 16
    %v878 = vpop.permute.xlu0 %877
    %879 = vrot.lane.b32.xlu0 %v281, 16
    %v880 = vpop.permute.xlu0 %879
    %881 = vrot.lane.b32.xlu0 %v282, 16
    %v882 = vpop.permute.xlu0 %881
    %883 = vrot.lane.b32.xlu0 %v283, 16
    %v884 = vpop.permute.xlu0 %883
    %885 = vrot.lane.b32.xlu0 %v284, 16
    %v886 = vpop.permute.xlu0 %885
    %887 = vrot.lane.b32.xlu0 %v285, 16
    %v888 = vpop.permute.xlu0 %887
    %889 = vrot.lane.b32.xlu0 %v286, 16
    %v890 = vpop.permute.xlu0 %889
    %891 = vrot.lane.b32.xlu0 %v287, 16
    %v892 = vpop.permute.xlu0 %891
    %893 = vrot.lane.b32.xlu0 %v288, 16
    %v894 = vpop.permute.xlu0 %893
    %895 = vrot.lane.b32.xlu0 %v289, 16
    %v896 = vpop.permute.xlu0 %895
    %897 = vrot.lane.b32.xlu0 %v290, 16
    %v898 = vpop.permute.xlu0 %897
    %899 = vrot.lane.b32.xlu0 %v291, 16
    %v900 = vpop.permute.xlu0 %899
    %965 = vrot.lane.b32.xlu0 %v292, 20
    %v966 = vpop.permute.xlu0 %965
    %967 = vrot.lane.b32.xlu0 %v293, 20
    %v968 = vpop.permute.xlu0 %967
    %969 = vrot.lane.b32.xlu0 %v294, 20
    %v970 = vpop.permute.xlu0 %969
    %971 = vrot.lane.b32.xlu0 %v295, 20
    %v972 = vpop.permute.xlu0 %971
    %973 = vrot.lane.b32.xlu0 %v296, 20
    %v974 = vpop.permute.xlu0 %973
    %975 = vrot.lane.b32.xlu0 %v297, 20
    %v976 = vpop.permute.xlu0 %975
    %977 = vrot.lane.b32.xlu0 %v298, 20
    %v978 = vpop.permute.xlu0 %977
    %979 = vrot.lane.b32.xlu0 %v299, 20
    %v980 = vpop.permute.xlu0 %979
    %981 = vrot.lane.b32.xlu0 %v300, 20
    %v982 = vpop.permute.xlu0 %981
    %983 = vrot.lane.b32.xlu0 %v301, 20
    %v984 = vpop.permute.xlu0 %983
    %985 = vrot.lane.b32.xlu0 %v302, 20
    %v986 = vpop.permute.xlu0 %985
    %987 = vrot.lane.b32.xlu0 %v303, 20
    %v988 = vpop.permute.xlu0 %987
    %989 = vrot.lane.b32.xlu0 %v304, 20
    %v990 = vpop.permute.xlu0 %989
    %991 = vrot.lane.b32.xlu0 %v305, 20
    %v992 = vpop.permute.xlu0 %991
    %993 = vrot.lane.b32.xlu0 %v306, 20
    %v994 = vpop.permute.xlu0 %993
    %995 = vrot.lane.b32.xlu0 %v307, 20
    %v996 = vpop.permute.xlu0 %995
    %997 = vrot.lane.b32.xlu0 %v308, 20
    %v998 = vpop.permute.xlu0 %997
    %999 = vrot.lane.b32.xlu0 %v309, 20
    %v1000 = vpop.permute.xlu0 %999
    %1001 = vrot.lane.b32.xlu0 %v310, 20
    %v1002 = vpop.permute.xlu0 %1001
    %1003 = vrot.lane.b32.xlu0 %v311, 20
    %v1004 = vpop.permute.xlu0 %1003
    %1005 = vrot.lane.b32.xlu0 %v312, 20
    %v1006 = vpop.permute.xlu0 %1005
    %1007 = vrot.lane.b32.xlu0 %v313, 20
    %v1008 = vpop.permute.xlu0 %1007
    %1009 = vrot.lane.b32.xlu0 %v314, 20
    %v1010 = vpop.permute.xlu0 %1009
    %1011 = vrot.lane.b32.xlu0 %v315, 20
    %v1012 = vpop.permute.xlu0 %1011
    %1013 = vrot.lane.b32.xlu0 %v316, 20
    %v1014 = vpop.permute.xlu0 %1013
    %1015 = vrot.lane.b32.xlu0 %v317, 20
    %v1016 = vpop.permute.xlu0 %1015
    %1017 = vrot.lane.b32.xlu0 %v318, 20
    %v1018 = vpop.permute.xlu0 %1017
    %1019 = vrot.lane.b32.xlu0 %v319, 20
    %v1020 = vpop.permute.xlu0 %1019
    %1021 = vrot.lane.b32.xlu0 %v320, 20
    %v1022 = vpop.permute.xlu0 %1021
    %1023 = vrot.lane.b32.xlu0 %v321, 20
    %v1024 = vpop.permute.xlu0 %1023
    %1025 = vrot.lane.b32.xlu0 %v322, 20
    %v1026 = vpop.permute.xlu0 %1025
    %1027 = vrot.lane.b32.xlu0 %v323, 20
    %v1028 = vpop.permute.xlu0 %1027
    %1093 = vrot.lane.b32.xlu0 %v325, 24
    %v1094 = vpop.permute.xlu0 %1093
    %1095 = vrot.lane.b32.xlu0 %v326, 24
    %v1096 = vpop.permute.xlu0 %1095
    %1097 = vrot.lane.b32.xlu0 %v327, 24
    %v1098 = vpop.permute.xlu0 %1097
    %1099 = vrot.lane.b32.xlu0 %v328, 24
    %v1100 = vpop.permute.xlu0 %1099
    %1101 = vrot.lane.b32.xlu0 %v329, 24
    %v1102 = vpop.permute.xlu0 %1101
    %1103 = vrot.lane.b32.xlu0 %v330, 24
    %v1104 = vpop.permute.xlu0 %1103
    %1105 = vrot.lane.b32.xlu0 %v331, 24
    %v1106 = vpop.permute.xlu0 %1105
    %1107 = vrot.lane.b32.xlu0 %v332, 24
    %v1108 = vpop.permute.xlu0 %1107
    %1109 = vrot.lane.b32.xlu0 %v333, 24
    %v1110 = vpop.permute.xlu0 %1109
    %1111 = vrot.lane.b32.xlu0 %v334, 24
    %v1112 = vpop.permute.xlu0 %1111
    %1113 = vrot.lane.b32.xlu0 %v335, 24
    %v1114 = vpop.permute.xlu0 %1113
    %1115 = vrot.lane.b32.xlu0 %v336, 24
    %v1116 = vpop.permute.xlu0 %1115
    %1117 = vrot.lane.b32.xlu0 %v337, 24
    %v1118 = vpop.permute.xlu0 %1117
    %1119 = vrot.lane.b32.xlu0 %v338, 24
    %v1120 = vpop.permute.xlu0 %1119
    %1121 = vrot.lane.b32.xlu0 %v339, 24
    %v1122 = vpop.permute.xlu0 %1121
    %1123 = vrot.lane.b32.xlu0 %v340, 24
    %v1124 = vpop.permute.xlu0 %1123
    %1125 = vrot.lane.b32.xlu0 %v341, 24
    %v1126 = vpop.permute.xlu0 %1125
    %1127 = vrot.lane.b32.xlu0 %v342, 24
    %v1128 = vpop.permute.xlu0 %1127
    %1129 = vrot.lane.b32.xlu0 %v343, 24
    %v1130 = vpop.permute.xlu0 %1129
    %1131 = vrot.lane.b32.xlu0 %v344, 24
    %v1132 = vpop.permute.xlu0 %1131
    %1133 = vrot.lane.b32.xlu0 %v345, 24
    %v1134 = vpop.permute.xlu0 %1133
    %1135 = vrot.lane.b32.xlu0 %v346, 24
    %v1136 = vpop.permute.xlu0 %1135
    %1137 = vrot.lane.b32.xlu0 %v347, 24
    %v1138 = vpop.permute.xlu0 %1137
    %1139 = vrot.lane.b32.xlu0 %v348, 24
    %v1140 = vpop.permute.xlu0 %1139
    %1141 = vrot.lane.b32.xlu0 %v349, 24
    %v1142 = vpop.permute.xlu0 %1141
    %1143 = vrot.lane.b32.xlu0 %v350, 24
    %v1144 = vpop.permute.xlu0 %1143
    %1145 = vrot.lane.b32.xlu0 %v351, 24
    %v1146 = vpop.permute.xlu0 %1145
    %1147 = vrot.lane.b32.xlu0 %v352, 24
    %v1148 = vpop.permute.xlu0 %1147
    %1149 = vrot.lane.b32.xlu0 %v353, 24
    %v1150 = vpop.permute.xlu0 %1149
    %1151 = vrot.lane.b32.xlu0 %v354, 24
    %v1152 = vpop.permute.xlu0 %1151
    %1153 = vrot.lane.b32.xlu0 %v355, 24
    %v1154 = vpop.permute.xlu0 %1153
    %1155 = vrot.lane.b32.xlu0 %v356, 24
    %v1156 = vpop.permute.xlu0 %1155
    %1221 = vrot.lane.b32.xlu0 %v357, 28
    %v1222 = vpop.permute.xlu0 %1221
    %1223 = vrot.lane.b32.xlu0 %v358, 28
    %v1224 = vpop.permute.xlu0 %1223
    %1225 = vrot.lane.b32.xlu0 %v359, 28
    %v1226 = vpop.permute.xlu0 %1225
    %1227 = vrot.lane.b32.xlu0 %v360, 28
    %v1228 = vpop.permute.xlu0 %1227
    %1229 = vrot.lane.b32.xlu0 %v361, 28
    %v1230 = vpop.permute.xlu0 %1229
    %1231 = vrot.lane.b32.xlu0 %v362, 28
    %v1232 = vpop.permute.xlu0 %1231
    %1233 = vrot.lane.b32.xlu0 %v363, 28
    %v1234 = vpop.permute.xlu0 %1233
    %1235 = vrot.lane.b32.xlu0 %v364, 28
    %v1236 = vpop.permute.xlu0 %1235
    %1237 = vrot.lane.b32.xlu0 %v365, 28
    %v1238 = vpop.permute.xlu0 %1237
    %1239 = vrot.lane.b32.xlu0 %v366, 28
    %v1240 = vpop.permute.xlu0 %1239
    %1241 = vrot.lane.b32.xlu0 %v367, 28
    %v1242 = vpop.permute.xlu0 %1241
    %1243 = vrot.lane.b32.xlu0 %v368, 28
    %v1244 = vpop.permute.xlu0 %1243
    %1245 = vrot.lane.b32.xlu0 %v369, 28
    %v1246 = vpop.permute.xlu0 %1245
    %1247 = vrot.lane.b32.xlu0 %v370, 28
    %v1248 = vpop.permute.xlu0 %1247
    %1249 = vrot.lane.b32.xlu0 %v371, 28
    %v1250 = vpop.permute.xlu0 %1249
    %1251 = vrot.lane.b32.xlu0 %v372, 28
    %v1252 = vpop.permute.xlu0 %1251
    %1253 = vrot.lane.b32.xlu0 %v373, 28
    %v1254 = vpop.permute.xlu0 %1253
    %1255 = vrot.lane.b32.xlu0 %v374, 28
    %v1256 = vpop.permute.xlu0 %1255
    %1257 = vrot.lane.b32.xlu0 %v375, 28
    %v1258 = vpop.permute.xlu0 %1257
    %1259 = vrot.lane.b32.xlu0 %v376, 28
    %v1260 = vpop.permute.xlu0 %1259
    %1261 = vrot.lane.b32.xlu0 %v377, 28
    %v1262 = vpop.permute.xlu0 %1261
    %1263 = vrot.lane.b32.xlu0 %v378, 28
    %v1264 = vpop.permute.xlu0 %1263
    %1265 = vrot.lane.b32.xlu0 %v379, 28
    %v1266 = vpop.permute.xlu0 %1265
    %1267 = vrot.lane.b32.xlu0 %v380, 28
    %v1268 = vpop.permute.xlu0 %1267
    %1269 = vrot.lane.b32.xlu0 %v381, 28
    %v1270 = vpop.permute.xlu0 %1269
    %1271 = vrot.lane.b32.xlu0 %v382, 28
    %v1272 = vpop.permute.xlu0 %1271
    %1273 = vrot.lane.b32.xlu0 %v383, 28
    %v1274 = vpop.permute.xlu0 %1273
    %1275 = vrot.lane.b32.xlu0 %v384, 28
    %v1276 = vpop.permute.xlu0 %1275
    %1277 = vrot.lane.b32.xlu0 %v385, 28
    %v1278 = vpop.permute.xlu0 %1277
    %1279 = vrot.lane.b32.xlu0 %v386, 28
    %v1280 = vpop.permute.xlu0 %1279
    %1281 = vrot.lane.b32.xlu0 %v387, 28
    %v1282 = vpop.permute.xlu0 %1281
    %1283 = vrot.lane.b32.xlu0 %v388, 28
    %v1284 = vpop.permute.xlu0 %1283
    %1349 = vrot.lane.b32.xlu0 %v389, 32
    %v1350 = vpop.permute.xlu0 %1349
    %1351 = vrot.lane.b32.xlu0 %v390, 32
    %v1352 = vpop.permute.xlu0 %1351
    %1353 = vrot.lane.b32.xlu0 %v391, 32
    %v1354 = vpop.permute.xlu0 %1353
    %1355 = vrot.lane.b32.xlu0 %v392, 32
    %v1356 = vpop.permute.xlu0 %1355
    %1357 = vrot.lane.b32.xlu0 %v393, 32
    %v1358 = vpop.permute.xlu0 %1357
    %1359 = vrot.lane.b32.xlu0 %v394, 32
    %v1360 = vpop.permute.xlu0 %1359
    %1361 = vrot.lane.b32.xlu0 %v395, 32
    %v1362 = vpop.permute.xlu0 %1361
    %1363 = vrot.lane.b32.xlu0 %v396, 32
    %v1364 = vpop.permute.xlu0 %1363
    %1365 = vrot.lane.b32.xlu0 %v397, 32
    %v1366 = vpop.permute.xlu0 %1365
    %1367 = vrot.lane.b32.xlu0 %v398, 32
    %v1368 = vpop.permute.xlu0 %1367
    %1369 = vrot.lane.b32.xlu0 %v399, 32
    %v1370 = vpop.permute.xlu0 %1369
    %1371 = vrot.lane.b32.xlu0 %v400, 32
    %v1372 = vpop.permute.xlu0 %1371
    %1373 = vrot.lane.b32.xlu0 %v401, 32
    %v1374 = vpop.permute.xlu0 %1373
    %1375 = vrot.lane.b32.xlu0 %v402, 32
    %v1376 = vpop.permute.xlu0 %1375
    %1377 = vrot.lane.b32.xlu0 %v403, 32
    %v1378 = vpop.permute.xlu0 %1377
    %1379 = vrot.lane.b32.xlu0 %v404, 32
    %v1380 = vpop.permute.xlu0 %1379
    %1381 = vrot.lane.b32.xlu0 %v405, 32
    %v1382 = vpop.permute.xlu0 %1381
    %1383 = vrot.lane.b32.xlu0 %v406, 32
    %v1384 = vpop.permute.xlu0 %1383
    %1385 = vrot.lane.b32.xlu0 %v407, 32
    %v1386 = vpop.permute.xlu0 %1385
    %1387 = vrot.lane.b32.xlu0 %v408, 32
    %v1388 = vpop.permute.xlu0 %1387
    %1389 = vrot.lane.b32.xlu0 %v409, 32
    %v1390 = vpop.permute.xlu0 %1389
    %1391 = vrot.lane.b32.xlu0 %v410, 32
    %v1392 = vpop.permute.xlu0 %1391
    %1393 = vrot.lane.b32.xlu0 %v411, 32
    %v1394 = vpop.permute.xlu0 %1393
    %1395 = vrot.lane.b32.xlu0 %v412, 32
    %v1396 = vpop.permute.xlu0 %1395
    %1397 = vrot.lane.b32.xlu0 %v413, 32
    %v1398 = vpop.permute.xlu0 %1397
    %1399 = vrot.lane.b32.xlu0 %v414, 32
    %v1400 = vpop.permute.xlu0 %1399
    %1401 = vrot.lane.b32.xlu0 %v415, 32
    %v1402 = vpop.permute.xlu0 %1401
    %1403 = vrot.lane.b32.xlu0 %v416, 32
    %v1404 = vpop.permute.xlu0 %1403
    %1405 = vrot.lane.b32.xlu0 %v417, 32
    %v1406 = vpop.permute.xlu0 %1405
    %1407 = vrot.lane.b32.xlu0 %v418, 32
    %v1408 = vpop.permute.xlu0 %1407
    %1409 = vrot.lane.b32.xlu0 %v419, 32
    %v1410 = vpop.permute.xlu0 %1409
    %1411 = vrot.lane.b32.xlu0 %v420, 32
    %v1412 = vpop.permute.xlu0 %1411
    %v1445 = vsel %vm21, %v131, %v454
    %v1446 = vsel %vm21, %v132, %v456
    %v1447 = vsel %vm21, %v133, %v458
    %v1448 = vsel %vm21, %v134, %v460
    %v1449 = vsel %vm21, %v135, %v462
    %v1450 = vsel %vm21, %v136, %v464
    %v1451 = vsel %vm21, %v137, %v466
    %v1452 = vsel %vm21, %v138, %v468
    %v1453 = vsel %vm21, %v139, %v470
    %v1454 = vsel %vm21, %v140, %v472
    %v1455 = vsel %vm21, %v141, %v474
    %v1456 = vsel %vm21, %v142, %v476
    %v1457 = vsel %vm21, %v143, %v478
    %v1458 = vsel %vm21, %v144, %v480
    %v1459 = vsel %vm21, %v145, %v482
    %v1460 = vsel %vm21, %v146, %v484
    %v1461 = vsel %vm21, %v147, %v486
    %v1462 = vsel %vm21, %v148, %v488
    %v1463 = vsel %vm21, %v149, %v490
    %v1464 = vsel %vm21, %v150, %v492
    %v1465 = vsel %vm21, %v151, %v494
    %v1466 = vsel %vm21, %v152, %v496
    %v1467 = vsel %vm21, %v153, %v498
    %v1468 = vsel %vm21, %v154, %v500
    %v1469 = vsel %vm21, %v155, %v502
    %v1470 = vsel %vm21, %v156, %v504
    %v1471 = vsel %vm21, %v157, %v506
    %v1472 = vsel %vm21, %v158, %v508
    %v1473 = vsel %vm21, %v159, %v510
    %v1474 = vsel %vm21, %v160, %v512
    %v1475 = vsel %vm21, %v161, %v514
    %v1476 = vsel %vm21, %v162, %v516
    %vm1477 = vcmask 64512
    %v1478 = vsel %vm1477, %v1445, %v582
    %v1479 = vsel %vm1477, %v1446, %v584
    %v1480 = vsel %vm1477, %v1447, %v586
    %v1481 = vsel %vm1477, %v1448, %v588
    %v1482 = vsel %vm1477, %v1449, %v590
    %v1483 = vsel %vm1477, %v1450, %v592
    %v1484 = vsel %vm1477, %v1451, %v594
    %v1485 = vsel %vm1477, %v1452, %v596
    %v1486 = vsel %vm1477, %v1453, %v598
    %v1487 = vsel %vm1477, %v1454, %v600
    %v1488 = vsel %vm1477, %v1455, %v602
    %v1489 = vsel %vm1477, %v1456, %v604
    %v1490 = vsel %vm1477, %v1457, %v606
    %v1491 = vsel %vm1477, %v1458, %v608
    %v1492 = vsel %vm1477, %v1459, %v610
    %v1493 = vsel %vm1477, %v1460, %v612
    %v1494 = vsel %vm1477, %v1461, %v614
    %v1495 = vsel %vm1477, %v1462, %v616
    %v1496 = vsel %vm1477, %v1463, %v618
    %v1497 = vsel %vm1477, %v1464, %v620
    %v1498 = vsel %vm1477, %v1465, %v622
    %v1499 = vsel %vm1477, %v1466, %v624
    %v1500 = vsel %vm1477, %v1467, %v626
    %v1501 = vsel %vm1477, %v1468, %v628
    %v1502 = vsel %vm1477, %v1469, %v630
    %v1503 = vsel %vm1477, %v1470, %v632
    %v1504 = vsel %vm1477, %v1471, %v634
    %v1505 = vsel %vm1477, %v1472, %v636
    %v1506 = vsel %vm1477, %v1473, %v638
    %v1507 = vsel %vm1477, %v1474, %v640
    %v1508 = vsel %vm1477, %v1475, %v642
    %v1509 = vsel %vm1477, %v1476, %v644
    %vm1510 = vcmask 97280
    %v1511 = vsel %vm1510, %v1478, %v710
    %v1512 = vsel %vm1510, %v1479, %v712
    %v1513 = vsel %vm1510, %v1480, %v714
    %v1514 = vsel %vm1510, %v1481, %v716
    %v1515 = vsel %vm1510, %v1482, %v718
    %v1516 = vsel %vm1510, %v1483, %v720
    %v1517 = vsel %vm1510, %v1484, %v722
    %v1518 = vsel %vm1510, %v1485, %v724
    %v1519 = vsel %vm1510, %v1486, %v726
    %v1520 = vsel %vm1510, %v1487, %v728
    %v1521 = vsel %vm1510, %v1488, %v730
    %v1522 = vsel %vm1510, %v1489, %v732
    %v1523 = vsel %vm1510, %v1490, %v734
    %v1524 = vsel %vm1510, %v1491, %v736
    %v1525 = vsel %vm1510, %v1492, %v738
    %v1526 = vsel %vm1510, %v1493, %v740
    %v1527 = vsel %vm1510, %v1494, %v742
    %v1528 = vsel %vm1510, %v1495, %v744
    %v1529 = vsel %vm1510, %v1496, %v746
    %v1530 = vsel %vm1510, %v1497, %v748
    %v1531 = vsel %vm1510, %v1498, %v750
    %v1532 = vsel %vm1510, %v1499, %v752
    %v1533 = vsel %vm1510, %v1500, %v754
    %v1534 = vsel %vm1510, %v1501, %v756
    %v1535 = vsel %vm1510, %v1502, %v758
    %v1536 = vsel %vm1510, %v1503, %v760
    %v1537 = vsel %vm1510, %v1504, %v762
    %v1538 = vsel %vm1510, %v1505, %v764
    %v1539 = vsel %vm1510, %v1506, %v766
    %v1540 = vsel %vm1510, %v1507, %v768
    %v1541 = vsel %vm1510, %v1508, %v770
    %v1542 = vsel %vm1510, %v1509, %v772
    %vm1543 = vcmask 130048
    %v1544 = vsel %vm1543, %v1511, %v838
    %v1545 = vsel %vm1543, %v1512, %v840
    %v1546 = vsel %vm1543, %v1513, %v842
    %v1547 = vsel %vm1543, %v1514, %v844
    %v1548 = vsel %vm1543, %v1515, %v846
    %v1549 = vsel %vm1543, %v1516, %v848
    %v1550 = vsel %vm1543, %v1517, %v850
    %v1551 = vsel %vm1543, %v1518, %v852
    %v1552 = vsel %vm1543, %v1519, %v854
    %v1553 = vsel %vm1543, %v1520, %v856
    %v1554 = vsel %vm1543, %v1521, %v858
    %v1555 = vsel %vm1543, %v1522, %v860
    %v1556 = vsel %vm1543, %v1523, %v862
    %v1557 = vsel %vm1543, %v1524, %v864
    %v1558 = vsel %vm1543, %v1525, %v866
    %v1559 = vsel %vm1543, %v1526, %v868
    %v1560 = vsel %vm1543, %v1527, %v870
    %v1561 = vsel %vm1543, %v1528, %v872
    %v1562 = vsel %vm1543, %v1529, %v874
    %v1563 = vsel %vm1543, %v1530, %v876
    %v1564 = vsel %vm1543, %v1531, %v878
    %v1565 = vsel %vm1543, %v1532, %v880
    %v1566 = vsel %vm1543, %v1533, %v882
    %v1567 = vsel %vm1543, %v1534, %v884
    %v1568 = vsel %vm1543, %v1535, %v886
    %v1569 = vsel %vm1543, %v1536, %v888
    %v1570 = vsel %vm1543, %v1537, %v890
    %v1571 = vsel %vm1543, %v1538, %v892
    %v1572 = vsel %vm1543, %v1539, %v894
    %v1573 = vsel %vm1543, %v1540, %v896
    %v1574 = vsel %vm1543, %v1541, %v898
    %v1575 = vsel %vm1543, %v1542, %v900
    %vm1576 = vcmask 162816
    %v1577 = vsel %vm1576, %v1544, %v966
    %v1578 = vsel %vm1576, %v1545, %v968
    %v1579 = vsel %vm1576, %v1546, %v970
    %v1580 = vsel %vm1576, %v1547, %v972
    %v1581 = vsel %vm1576, %v1548, %v974
    %v1582 = vsel %vm1576, %v1549, %v976
    %v1583 = vsel %vm1576, %v1550, %v978
    %v1584 = vsel %vm1576, %v1551, %v980
    %v1585 = vsel %vm1576, %v1552, %v982
    %v1586 = vsel %vm1576, %v1553, %v984
    %v1587 = vsel %vm1576, %v1554, %v986
    %v1588 = vsel %vm1576, %v1555, %v988
    %v1589 = vsel %vm1576, %v1556, %v990
    %v1590 = vsel %vm1576, %v1557, %v992
    %v1591 = vsel %vm1576, %v1558, %v994
    %v1592 = vsel %vm1576, %v1559, %v996
    %v1593 = vsel %vm1576, %v1560, %v998
    %v1594 = vsel %vm1576, %v1561, %v1000
    %v1595 = vsel %vm1576, %v1562, %v1002
    %v1596 = vsel %vm1576, %v1563, %v1004
    %v1597 = vsel %vm1576, %v1564, %v1006
    %v1598 = vsel %vm1576, %v1565, %v1008
    %v1599 = vsel %vm1576, %v1566, %v1010
    %v1600 = vsel %vm1576, %v1567, %v1012
    %v1601 = vsel %vm1576, %v1568, %v1014
    %v1602 = vsel %vm1576, %v1569, %v1016
    %v1603 = vsel %vm1576, %v1570, %v1018
    %v1604 = vsel %vm1576, %v1571, %v1020
    %v1605 = vsel %vm1576, %v1572, %v1022
    %v1606 = vsel %vm1576, %v1573, %v1024
    %v1607 = vsel %vm1576, %v1574, %v1026
    %v1608 = vsel %vm1576, %v1575, %v1028
    %vm1609 = vcmask 195584
    %v1610 = vsel %vm1609, %v1577, %v1094
    %v1611 = vsel %vm1609, %v1578, %v1096
    %v1612 = vsel %vm1609, %v1579, %v1098
    %v1613 = vsel %vm1609, %v1580, %v1100
    %v1614 = vsel %vm1609, %v1581, %v1102
    %v1615 = vsel %vm1609, %v1582, %v1104
    %v1616 = vsel %vm1609, %v1583, %v1106
    %v1617 = vsel %vm1609, %v1584, %v1108
    %v1618 = vsel %vm1609, %v1585, %v1110
    %v1619 = vsel %vm1609, %v1586, %v1112
    %v1620 = vsel %vm1609, %v1587, %v1114
    %v1621 = vsel %vm1609, %v1588, %v1116
    %v1622 = vsel %vm1609, %v1589, %v1118
    %v1623 = vsel %vm1609, %v1590, %v1120
    %v1624 = vsel %vm1609, %v1591, %v1122
    %v1625 = vsel %vm1609, %v1592, %v1124
    %v1626 = vsel %vm1609, %v1593, %v1126
    %v1627 = vsel %vm1609, %v1594, %v1128
    %v1628 = vsel %vm1609, %v1595, %v1130
    %v1629 = vsel %vm1609, %v1596, %v1132
    %v1630 = vsel %vm1609, %v1597, %v1134
    %v1631 = vsel %vm1609, %v1598, %v1136
    %v1632 = vsel %vm1609, %v1599, %v1138
    %v1633 = vsel %vm1609, %v1600, %v1140
    %v1634 = vsel %vm1609, %v1601, %v1142
    %v1635 = vsel %vm1609, %v1602, %v1144
    %v1636 = vsel %vm1609, %v1603, %v1146
    %v1637 = vsel %vm1609, %v1604, %v1148
    %v1638 = vsel %vm1609, %v1605, %v1150
    %v1639 = vsel %vm1609, %v1606, %v1152
    %v1640 = vsel %vm1609, %v1607, %v1154
    %v1641 = vsel %vm1609, %v1608, %v1156
    %vm1642 = vcmask 228352
    %v1643 = vsel %vm1642, %v1610, %v1222
    %v1644 = vsel %vm1642, %v1611, %v1224
    %v1645 = vsel %vm1642, %v1612, %v1226
    %v1646 = vsel %vm1642, %v1613, %v1228
    %v1647 = vsel %vm1642, %v1614, %v1230
    %v1648 = vsel %vm1642, %v1615, %v1232
    %v1649 = vsel %vm1642, %v1616, %v1234
    %v1650 = vsel %vm1642, %v1617, %v1236
    %v1651 = vsel %vm1642, %v1618, %v1238
    %v1652 = vsel %vm1642, %v1619, %v1240
    %v1653 = vsel %vm1642, %v1620, %v1242
    %v1654 = vsel %vm1642, %v1621, %v1244
    %v1655 = vsel %vm1642, %v1622, %v1246
    %v1656 = vsel %vm1642, %v1623, %v1248
    %v1657 = vsel %vm1642, %v1624, %v1250
    %v1658 = vsel %vm1642, %v1625, %v1252
    %v1659 = vsel %vm1642, %v1626, %v1254
    %v1660 = vsel %vm1642, %v1627, %v1256
    %v1661 = vsel %vm1642, %v1628, %v1258
    %v1662 = vsel %vm1642, %v1629, %v1260
    %v1663 = vsel %vm1642, %v1630, %v1262
    %v1664 = vsel %vm1642, %v1631, %v1264
    %v1665 = vsel %vm1642, %v1632, %v1266
    %v1666 = vsel %vm1642, %v1633, %v1268
    %v1667 = vsel %vm1642, %v1634, %v1270
    %v1668 = vsel %vm1642, %v1635, %v1272
    %v1669 = vsel %vm1642, %v1636, %v1274
    %v1670 = vsel %vm1642, %v1637, %v1276
    %v1671 = vsel %vm1642, %v1638, %v1278
    %v1672 = vsel %vm1642, %v1639, %v1280
    %v1673 = vsel %vm1642, %v1640, %v1282
    %v1674 = vsel %vm1642, %v1641, %v1284
    %vm1675 = vcmask 261120
    %v1676 = vsel %vm1675, %v1643, %v1350
    %v1677 = vsel %vm1675, %v1644, %v1352
    %v1678 = vsel %vm1675, %v1645, %v1354
    %v1679 = vsel %vm1675, %v1646, %v1356
    %v1680 = vsel %vm1675, %v1647, %v1358
    %v1681 = vsel %vm1675, %v1648, %v1360
    %v1682 = vsel %vm1675, %v1649, %v1362
    %v1683 = vsel %vm1675, %v1650, %v1364
    %v1684 = vsel %vm1675, %v1651, %v1366
    %v1685 = vsel %vm1675, %v1652, %v1368
    %v1686 = vsel %vm1675, %v1653, %v1370
    %v1687 = vsel %vm1675, %v1654, %v1372
    %v1688 = vsel %vm1675, %v1655, %v1374
    %v1689 = vsel %vm1675, %v1656, %v1376
    %v1690 = vsel %vm1675, %v1657, %v1378
    %v1691 = vsel %vm1675, %v1658, %v1380
    %v1692 = vsel %vm1675, %v1659, %v1382
    %v1693 = vsel %vm1675, %v1660, %v1384
    %v1694 = vsel %vm1675, %v1661, %v1386
    %v1695 = vsel %vm1675, %v1662, %v1388
    %v1696 = vsel %vm1675, %v1663, %v1390
    %v1697 = vsel %vm1675, %v1664, %v1392
    %v1698 = vsel %vm1675, %v1665, %v1394
    %v1699 = vsel %vm1675, %v1666, %v1396
    %v1700 = vsel %vm1675, %v1667, %v1398
    %v1701 = vsel %vm1675, %v1668, %v1400
    %v1702 = vsel %vm1675, %v1669, %v1402
    %v1703 = vsel %vm1675, %v1670, %v1404
    %v1704 = vsel %vm1675, %v1671, %v1406
    %v1705 = vsel %vm1675, %v1672, %v1408
    %v1706 = vsel %vm1675, %v1673, %v1410
    %v1707 = vsel %vm1675, %v1674, %v1412
    %v1708 = vld [vmem:[%s1] sm:$0xff]
    %v1709 = vld [vmem:[%s1 + $0x8] sm:$0xff]
    %v1710 = vld [vmem:[%s1 + $0x10] sm:$0xff]
    %v1711 = vld [vmem:[%s1 + $0x18] sm:$0xff]
    %v1712 = vld [vmem:[%s1 + $0x20] sm:$0xf]
    %v1713 = vld [vmem:[%s2] sm:$0x1]
    %v1715 = vlaneseq
    %v1716 = vshrl.u32 %v1715, 7
    %v1717 = vsub.s32 0, %v1716
    %v1718 = vrot.slane %v1713, %v1717
    %vm1720 = vcmask 293888
    %v1722 = vsel %vm1720, %v1676, 0
    %v1725 = vsel %vm1720, %v1677, 0
    %v1728 = vsel %vm1720, %v1678, 0
    %v1731 = vsel %vm1720, %v1679, 0
    %v1734 = vsel %vm1720, %v1680, 0
    %v1737 = vsel %vm1720, %v1681, 0
    %v1740 = vsel %vm1720, %v1682, 0
    %v1743 = vsel %vm1720, %v1683, 0
    %v1746 = vsel %vm1720, %v1684, 0
    %v1749 = vsel %vm1720, %v1685, 0
    %v1752 = vsel %vm1720, %v1686, 0
    %v1755 = vsel %vm1720, %v1687, 0
    %v1758 = vsel %vm1720, %v1688, 0
    %v1761 = vsel %vm1720, %v1689, 0
    %v1764 = vsel %vm1720, %v1690, 0
    %v1767 = vsel %vm1720, %v1691, 0
    %v1770 = vsel %vm1720, %v1692, 0
    %v1773 = vsel %vm1720, %v1693, 0
    %v1776 = vsel %vm1720, %v1694, 0
    %v1779 = vsel %vm1720, %v1695, 0
    %v1782 = vsel %vm1720, %v1696, 0
    %v1785 = vsel %vm1720, %v1697, 0
    %v1788 = vsel %vm1720, %v1698, 0
    %v1791 = vsel %vm1720, %v1699, 0
    %v1794 = vsel %vm1720, %v1700, 0
    %v1797 = vsel %vm1720, %v1701, 0
    %v1800 = vsel %vm1720, %v1702, 0
    %v1803 = vsel %vm1720, %v1703, 0
    %v1806 = vsel %vm1720, %v1704, 0
    %v1809 = vsel %vm1720, %v1705, 0
    %v1812 = vsel %vm1720, %v1706, 0
    %v1815 = vsel %vm1720, %v1707, 0
    %vm1817 = vcmask 1043456
    %v1819 = vsel %vm1817, %v1712, 0
    %1821 = vmatprep.subr.mxu0 0.0
    %1822 = vmatpush1.msra.mxu0 %v1708
    %1823 = vmatprep.subr.mxu0 0.0
    %1824 = vmatpush1.msra.mxu0 %v1709
    %1825 = vmatprep.subr.mxu0 0.0
    %1826 = vmatpush1.msra.mxu0 %v1710
    %1827 = vmatprep.subr.mxu0 0.0
    %1828 = vmatpush1.msra.mxu0 %v1711
    %1829 = vmatprep.subr.mxu0 0.0
    %1830 = vmatpush1.msra.mxu0 %v1819
    %1831 = vmatprep.subr.mxu0 0.0
    %1832 = vmatpush1.msra.mxu0 0.0
    %1833 = vmatprep.subr.mxu0 0.0
    %1834 = vmatpush1.msra.mxu0 0.0
    %1835 = vmatprep.subr.mxu0 0.0
    %1836 = vmatpush1.msra.mxu0 0.0
    %1837 = vmatprep.subr.mxu0 0.0
    %1838 = vmatpush1.msra.mxu0 0.0
    %1839 = vmatprep.subr.mxu0 0.0
    %1840 = vmatpush1.msra.mxu0 0.0
    %1841 = vmatprep.subr.mxu0 0.0
    %1842 = vmatpush1.msra.mxu0 0.0
    %1843 = vmatprep.subr.mxu0 0.0
    %1844 = vmatpush1.msra.mxu0 0.0
    %1845 = vmatprep.subr.mxu0 0.0
    %1846 = vmatpush1.msra.mxu0 0.0
    %1847 = vmatprep.subr.mxu0 0.0
    %1848 = vmatpush1.msra.mxu0 0.0
    %1849 = vmatprep.subr.mxu0 0.0
    %1850 = vmatpush1.msra.mxu0 0.0
    %1851 = vmatprep.subr.mxu0 0.0
    %1852 = vmatpush1.msra.mxu0 0.0
    %1853 = vmatprep.subr.mxu0 0.0
    %1854 = vmatpush1.msra.mxu0 0.0
    %1855 = vmatprep.subr.mxu0 0.0
    %1856 = vmatpush1.msra.mxu0 0.0
    %1857 = vmatprep.subr.mxu0 0.0
    %1858 = vmatpush1.msra.mxu0 0.0
    %1859 = vmatprep.subr.mxu0 0.0
    %1860 = vmatpush1.msra.mxu0 0.0
    %1861 = vmatprep.subr.mxu0 0.0
    %1862 = vmatpush1.msra.mxu0 0.0
    %1863 = vmatprep.subr.mxu0 0.0
    %1864 = vmatpush1.msra.mxu0 0.0
    %1865 = vmatprep.subr.mxu0 0.0
    %1866 = vmatpush1.msra.mxu0 0.0
    %1867 = vmatprep.subr.mxu0 0.0
    %1868 = vmatpush1.msra.mxu0 0.0
    %1869 = vmatprep.subr.mxu0 0.0
    %1870 = vmatpush1.msra.mxu0 0.0
    %1871 = vmatprep.subr.mxu0 0.0
    %1872 = vmatpush1.msra.mxu0 0.0
    %1873 = vmatprep.subr.mxu0 0.0
    %1874 = vmatpush1.msra.mxu0 0.0
    %1875 = vmatprep.subr.mxu0 0.0
    %1876 = vmatpush1.msra.mxu0 0.0
    %1877 = vmatprep.subr.mxu0 0.0
    %1878 = vmatpush1.msra.mxu0 0.0
    %1879 = vmatprep.subr.mxu0 0.0
    %1880 = vmatpush1.msra.mxu0 0.0
    %1881 = vmatprep.subr.mxu0 0.0
    %1882 = vmatpush1.msra.mxu0 0.0
    %1883 = vmatprep.subr.mxu0 0.0
    %1884 = vmatpush1.msra.mxu0 0.0
    %1885 = vmatprep.mubr.f32.mxu0 0.0
    %1886 = vmatmul.mubr.f32.gmra.mrb[0].mxu0 %v1722
    %v1887 = vpop.f32.mrb[0].mxu0
    %v1888 = vadd.f32 %v1718, %v1887
    %v1889 = vpop.f32.mrb[0].mxu0
    %1890 = vmatprep.mubr.f32.mxu0 0.0
    %1891 = vmatmul.mubr.f32.gmra.mrb[0].mxu0 %v1725
    %v1892 = vpop.f32.mrb[0].mxu0
    %v1893 = vadd.f32 %v1718, %v1892
    %v1894 = vpop.f32.mrb[0].mxu0
    %1895 = vmatprep.mubr.f32.mxu0 0.0
    %1896 = vmatmul.mubr.f32.gmra.mrb[0].mxu0 %v1728
    %v1897 = vpop.f32.mrb[0].mxu0
    %v1898 = vadd.f32 %v1718, %v1897
    %v1899 = vpop.f32.mrb[0].mxu0
    %1900 = vmatprep.mubr.f32.mxu0 0.0
    %1901 = vmatmul.mubr.f32.gmra.mrb[0].mxu0 %v1731
    %v1902 = vpop.f32.mrb[0].mxu0
    %v1903 = vadd.f32 %v1718, %v1902
    %v1904 = vpop.f32.mrb[0].mxu0
    %1905 = vmatprep.mubr.f32.mxu0 0.0
    %1906 = vmatmul.mubr.f32.gmra.mrb[0].mxu0 %v1734
    %v1907 = vpop.f32.mrb[0].mxu0
    %v1908 = vadd.f32 %v1718, %v1907
    %v1909 = vpop.f32.mrb[0].mxu0
    %1910 = vmatprep.mubr.f32.mxu0 0.0
    %1911 = vmatmul.mubr.f32.gmra.mrb[0].mxu0 %v1737
    %v1912 = vpop.f32.mrb[0].mxu0
    %v1913 = vadd.f32 %v1718, %v1912
    %v1914 = vpop.f32.mrb[0].mxu0
    %1915 = vmatprep.mubr.f32.mxu0 0.0
    %1916 = vmatmul.mubr.f32.gmra.mrb[0].mxu0 %v1740
    %v1917 = vpop.f32.mrb[0].mxu0
    %v1918 = vadd.f32 %v1718, %v1917
    %v1919 = vpop.f32.mrb[0].mxu0
    %1920 = vmatprep.mubr.f32.mxu0 0.0
    %1921 = vmatmul.mubr.f32.gmra.mrb[0].mxu0 %v1743
    %v1922 = vpop.f32.mrb[0].mxu0
    %v1923 = vadd.f32 %v1718, %v1922
    %v1924 = vpop.f32.mrb[0].mxu0
    %1925 = vmatprep.mubr.f32.mxu0 0.0
    %1926 = vmatmul.mubr.f32.gmra.mrb[0].mxu0 %v1746
    %v1927 = vpop.f32.mrb[0].mxu0
    %v1928 = vadd.f32 %v1718, %v1927
    %v1929 = vpop.f32.mrb[0].mxu0
    %1930 = vmatprep.mubr.f32.mxu0 0.0
    %1931 = vmatmul.mubr.f32.gmra.mrb[0].mxu0 %v1749
    %v1932 = vpop.f32.mrb[0].mxu0
    %v1933 = vadd.f32 %v1718, %v1932
    %v1934 = vpop.f32.mrb[0].mxu0
    %1935 = vmatprep.mubr.f32.mxu0 0.0
    %1936 = vmatmul.mubr.f32.gmra.mrb[0].mxu0 %v1752
    %v1937 = vpop.f32.mrb[0].mxu0
    %v1938 = vadd.f32 %v1718, %v1937
    %v1939 = vpop.f32.mrb[0].mxu0
    %1940 = vmatprep.mubr.f32.mxu0 0.0
    %1941 = vmatmul.mubr.f32.gmra.mrb[0].mxu0 %v1755
    %v1942 = vpop.f32.mrb[0].mxu0
    %v1943 = vadd.f32 %v1718, %v1942
    %v1944 = vpop.f32.mrb[0].mxu0
    %1945 = vmatprep.mubr.f32.mxu0 0.0
    %1946 = vmatmul.mubr.f32.gmra.mrb[0].mxu0 %v1758
    %v1947 = vpop.f32.mrb[0].mxu0
    %v1948 = vadd.f32 %v1718, %v1947
    %v1949 = vpop.f32.mrb[0].mxu0
    %1950 = vmatprep.mubr.f32.mxu0 0.0
    %1951 = vmatmul.mubr.f32.gmra.mrb[0].mxu0 %v1761
    %v1952 = vpop.f32.mrb[0].mxu0
    %v1953 = vadd.f32 %v1718, %v1952
    %v1954 = vpop.f32.mrb[0].mxu0
    %1955 = vmatprep.mubr.f32.mxu0 0.0
    %1956 = vmatmul.mubr.f32.gmra.mrb[0].mxu0 %v1764
    %v1957 = vpop.f32.mrb[0].mxu0
    %v1958 = vadd.f32 %v1718, %v1957
    %v1959 = vpop.f32.mrb[0].mxu0
    %1960 = vmatprep.mubr.f32.mxu0 0.0
    %1961 = vmatmul.mubr.f32.gmra.mrb[0].mxu0 %v1767
    %v1962 = vpop.f32.mrb[0].mxu0
    %v1963 = vadd.f32 %v1718, %v1962
    %v1964 = vpop.f32.mrb[0].mxu0
    %1965 = vmatprep.mubr.f32.mxu0 0.0
    %1966 = vmatmul.mubr.f32.gmra.mrb[0].mxu0 %v1770
    %v1967 = vpop.f32.mrb[0].mxu0
    %v1968 = vadd.f32 %v1718, %v1967
    %v1969 = vpop.f32.mrb[0].mxu0
    %1970 = vmatprep.mubr.f32.mxu0 0.0
    %1971 = vmatmul.mubr.f32.gmra.mrb[0].mxu0 %v1773
    %v1972 = vpop.f32.mrb[0].mxu0
    %v1973 = vadd.f32 %v1718, %v1972
    %v1974 = vpop.f32.mrb[0].mxu0
    %1975 = vmatprep.mubr.f32.mxu0 0.0
    %1976 = vmatmul.mubr.f32.gmra.mrb[0].mxu0 %v1776
    %v1977 = vpop.f32.mrb[0].mxu0
    %v1978 = vadd.f32 %v1718, %v1977
    %v1979 = vpop.f32.mrb[0].mxu0
    %1980 = vmatprep.mubr.f32.mxu0 0.0
    %1981 = vmatmul.mubr.f32.gmra.mrb[0].mxu0 %v1779
    %v1982 = vpop.f32.mrb[0].mxu0
    %v1983 = vadd.f32 %v1718, %v1982
    %v1984 = vpop.f32.mrb[0].mxu0
    %1985 = vmatprep.mubr.f32.mxu0 0.0
    %1986 = vmatmul.mubr.f32.gmra.mrb[0].mxu0 %v1782
    %v1987 = vpop.f32.mrb[0].mxu0
    %v1988 = vadd.f32 %v1718, %v1987
    %v1989 = vpop.f32.mrb[0].mxu0
    %1990 = vmatprep.mubr.f32.mxu0 0.0
    %1991 = vmatmul.mubr.f32.gmra.mrb[0].mxu0 %v1785
    %v1992 = vpop.f32.mrb[0].mxu0
    %v1993 = vadd.f32 %v1718, %v1992
    %v1994 = vpop.f32.mrb[0].mxu0
    %1995 = vmatprep.mubr.f32.mxu0 0.0
    %1996 = vmatmul.mubr.f32.gmra.mrb[0].mxu0 %v1788
    %v1997 = vpop.f32.mrb[0].mxu0
    %v1998 = vadd.f32 %v1718, %v1997
    %v1999 = vpop.f32.mrb[0].mxu0
    %2000 = vmatprep.mubr.f32.mxu0 0.0
    %2001 = vmatmul.mubr.f32.gmra.mrb[0].mxu0 %v1791
    %v2002 = vpop.f32.mrb[0].mxu0
    %v2003 = vadd.f32 %v1718, %v2002
    %v2004 = vpop.f32.mrb[0].mxu0
    %2005 = vmatprep.mubr.f32.mxu0 0.0
    %2006 = vmatmul.mubr.f32.gmra.mrb[0].mxu0 %v1794
    %v2007 = vpop.f32.mrb[0].mxu0
    %v2008 = vadd.f32 %v1718, %v2007
    %v2009 = vpop.f32.mrb[0].mxu0
    %2010 = vmatprep.mubr.f32.mxu0 0.0
    %2011 = vmatmul.mubr.f32.gmra.mrb[0].mxu0 %v1797
    %v2012 = vpop.f32.mrb[0].mxu0
    %v2013 = vadd.f32 %v1718, %v2012
    %v2014 = vpop.f32.mrb[0].mxu0
    %2015 = vmatprep.mubr.f32.mxu0 0.0
    %2016 = vmatmul.mubr.f32.gmra.mrb[0].mxu0 %v1800
    %v2017 = vpop.f32.mrb[0].mxu0
    %v2018 = vadd.f32 %v1718, %v2017
    %v2019 = vpop.f32.mrb[0].mxu0
    %2020 = vmatprep.mubr.f32.mxu0 0.0
    %2021 = vmatmul.mubr.f32.gmra.mrb[0].mxu0 %v1803
    %v2022 = vpop.f32.mrb[0].mxu0
    %v2023 = vadd.f32 %v1718, %v2022
    %v2024 = vpop.f32.mrb[0].mxu0
    %2025 = vmatprep.mubr.f32.mxu0 0.0
    %2026 = vmatmul.mubr.f32.gmra.mrb[0].mxu0 %v1806
    %v2027 = vpop.f32.mrb[0].mxu0
    %v2028 = vadd.f32 %v1718, %v2027
    %v2029 = vpop.f32.mrb[0].mxu0
    %2030 = vmatprep.mubr.f32.mxu0 0.0
    %2031 = vmatmul.mubr.f32.gmra.mrb[0].mxu0 %v1809
    %v2032 = vpop.f32.mrb[0].mxu0
    %v2033 = vadd.f32 %v1718, %v2032
    %v2034 = vpop.f32.mrb[0].mxu0
    %2035 = vmatprep.mubr.f32.mxu0 0.0
    %2036 = vmatmul.mubr.f32.gmra.mrb[0].mxu0 %v1812
    %v2037 = vpop.f32.mrb[0].mxu0
    %v2038 = vadd.f32 %v1718, %v2037
    %v2039 = vpop.f32.mrb[0].mxu0
    %2040 = vmatprep.mubr.f32.mxu0 0.0
    %2041 = vmatmul.mubr.f32.gmra.mrb[0].mxu0 %v1815
    %v2042 = vpop.f32.mrb[0].mxu0
    %v2043 = vadd.f32 %v1718, %v2042
    %v2044 = vpop.f32.mrb[0].mxu0
    %2045 = vdwg.mxu0
    %vm2046 = vcmp.gt.f32.partialorder %v1888, 0.0
    %vm2047 = vcmp.gt.f32.partialorder %v1893, 0.0
    %vm2048 = vcmp.gt.f32.partialorder %v1898, 0.0
    %vm2049 = vcmp.gt.f32.partialorder %v1903, 0.0
    %vm2050 = vcmp.gt.f32.partialorder %v1908, 0.0
    %vm2051 = vcmp.gt.f32.partialorder %v1913, 0.0
    %vm2052 = vcmp.gt.f32.partialorder %v1918, 0.0
    %vm2053 = vcmp.gt.f32.partialorder %v1923, 0.0
    %vm2054 = vcmp.gt.f32.partialorder %v1928, 0.0
    %vm2055 = vcmp.gt.f32.partialorder %v1933, 0.0
    %vm2056 = vcmp.gt.f32.partialorder %v1938, 0.0
    %vm2057 = vcmp.gt.f32.partialorder %v1943, 0.0
    %vm2058 = vcmp.gt.f32.partialorder %v1948, 0.0
    %vm2059 = vcmp.gt.f32.partialorder %v1953, 0.0
    %vm2060 = vcmp.gt.f32.partialorder %v1958, 0.0
    %vm2061 = vcmp.gt.f32.partialorder %v1963, 0.0
    %vm2062 = vcmp.gt.f32.partialorder %v1968, 0.0
    %vm2063 = vcmp.gt.f32.partialorder %v1973, 0.0
    %vm2064 = vcmp.gt.f32.partialorder %v1978, 0.0
    %vm2065 = vcmp.gt.f32.partialorder %v1983, 0.0
    %vm2066 = vcmp.gt.f32.partialorder %v1988, 0.0
    %vm2067 = vcmp.gt.f32.partialorder %v1993, 0.0
    %vm2068 = vcmp.gt.f32.partialorder %v1998, 0.0
    %vm2069 = vcmp.gt.f32.partialorder %v2003, 0.0
    %vm2070 = vcmp.gt.f32.partialorder %v2008, 0.0
    %vm2071 = vcmp.gt.f32.partialorder %v2013, 0.0
    %vm2072 = vcmp.gt.f32.partialorder %v2018, 0.0
    %vm2073 = vcmp.gt.f32.partialorder %v2023, 0.0
    %vm2074 = vcmp.gt.f32.partialorder %v2028, 0.0
    %vm2075 = vcmp.gt.f32.partialorder %v2033, 0.0
    %vm2076 = vcmp.gt.f32.partialorder %v2038, 0.0
    %vm2077 = vcmp.gt.f32.partialorder %v2043, 0.0
    %v2078 = vmul.f32 %v1888, 0.2
    %v2079 = vmul.f32 %v1893, 0.2
    %v2080 = vmul.f32 %v1898, 0.2
    %v2081 = vmul.f32 %v1903, 0.2
    %v2082 = vmul.f32 %v1908, 0.2
    %v2083 = vmul.f32 %v1913, 0.2
    %v2084 = vmul.f32 %v1918, 0.2
    %v2085 = vmul.f32 %v1923, 0.2
    %v2086 = vmul.f32 %v1928, 0.2
    %v2087 = vmul.f32 %v1933, 0.2
    %v2088 = vmul.f32 %v1938, 0.2
    %v2089 = vmul.f32 %v1943, 0.2
    %v2090 = vmul.f32 %v1948, 0.2
    %v2091 = vmul.f32 %v1953, 0.2
    %v2092 = vmul.f32 %v1958, 0.2
    %v2093 = vmul.f32 %v1963, 0.2
    %v2094 = vmul.f32 %v1968, 0.2
    %v2095 = vmul.f32 %v1973, 0.2
    %v2096 = vmul.f32 %v1978, 0.2
    %v2097 = vmul.f32 %v1983, 0.2
    %v2098 = vmul.f32 %v1988, 0.2
    %v2099 = vmul.f32 %v1993, 0.2
    %v2100 = vmul.f32 %v1998, 0.2
    %v2101 = vmul.f32 %v2003, 0.2
    %v2102 = vmul.f32 %v2008, 0.2
    %v2103 = vmul.f32 %v2013, 0.2
    %v2104 = vmul.f32 %v2018, 0.2
    %v2105 = vmul.f32 %v2023, 0.2
    %v2106 = vmul.f32 %v2028, 0.2
    %v2107 = vmul.f32 %v2033, 0.2
    %v2108 = vmul.f32 %v2038, 0.2
    %v2109 = vmul.f32 %v2043, 0.2
    %v2110 = vsel %vm2046, %v1888, %v2078
    %v2111 = vsel %vm2047, %v1893, %v2079
    %v2112 = vsel %vm2048, %v1898, %v2080
    %v2113 = vsel %vm2049, %v1903, %v2081
    %v2114 = vsel %vm2050, %v1908, %v2082
    %v2115 = vsel %vm2051, %v1913, %v2083
    %v2116 = vsel %vm2052, %v1918, %v2084
    %v2117 = vsel %vm2053, %v1923, %v2085
    %v2118 = vsel %vm2054, %v1928, %v2086
    %v2119 = vsel %vm2055, %v1933, %v2087
    %v2120 = vsel %vm2056, %v1938, %v2088
    %v2121 = vsel %vm2057, %v1943, %v2089
    %v2122 = vsel %vm2058, %v1948, %v2090
    %v2123 = vsel %vm2059, %v1953, %v2091
    %v2124 = vsel %vm2060, %v1958, %v2092
    %v2125 = vsel %vm2061, %v1963, %v2093
    %v2126 = vsel %vm2062, %v1968, %v2094
    %v2127 = vsel %vm2063, %v1973, %v2095
    %v2128 = vsel %vm2064, %v1978, %v2096
    %v2129 = vsel %vm2065, %v1983, %v2097
    %v2130 = vsel %vm2066, %v1988, %v2098
    %v2131 = vsel %vm2067, %v1993, %v2099
    %v2132 = vsel %vm2068, %v1998, %v2100
    %v2133 = vsel %vm2069, %v2003, %v2101
    %v2134 = vsel %vm2070, %v2008, %v2102
    %v2135 = vsel %vm2071, %v2013, %v2103
    %v2136 = vsel %vm2072, %v2018, %v2104
    %v2137 = vsel %vm2073, %v2023, %v2105
    %v2138 = vsel %vm2074, %v2028, %v2106
    %v2139 = vsel %vm2075, %v2033, %v2107
    %v2140 = vsel %vm2076, %v2038, %v2108
    %v2141 = vsel %vm2077, %v2043, %v2109
    %s2142 = scalar_lea.vmem [#allocation2], 24
    %2143 = vst.msk [vmem:[%s2142 + $0x1] sm:$0xff] %vm21, %v2110
    %2144 = vst.msk [vmem:[%s2142 + $0x9] sm:$0xff] %vm21, %v2111
    %2145 = vst.msk [vmem:[%s2142 + $0x19] sm:$0xff] %vm21, %v2112
    %2146 = vst.msk [vmem:[%s2142 + $0x21] sm:$0xff] %vm21, %v2113
    %2147 = vst.msk [vmem:[%s2142 + $0x31] sm:$0xff] %vm21, %v2114
    %2148 = vst.msk [vmem:[%s2142 + $0x39] sm:$0xff] %vm21, %v2115
    %2149 = vst.msk [vmem:[%s2142 + $0x49] sm:$0xff] %vm21, %v2116
    %2150 = vst.msk [vmem:[%s2142 + $0x51] sm:$0xff] %vm21, %v2117
    %2151 = vst.msk [vmem:[%s2142 + $0x61] sm:$0xff] %vm21, %v2118
    %2152 = vst.msk [vmem:[%s2142 + $0x69] sm:$0xff] %vm21, %v2119
    %2153 = vst.msk [vmem:[%s2142 + $0x79] sm:$0xff] %vm21, %v2120
    %2154 = vst.msk [vmem:[%s2142 + $0x81] sm:$0xff] %vm21, %v2121
    %2155 = vst.msk [vmem:[%s2142 + $0x91] sm:$0xff] %vm21, %v2122
    %2156 = vst.msk [vmem:[%s2142 + $0x99] sm:$0xff] %vm21, %v2123
    %2157 = vst.msk [vmem:[%s2142 + $0xa9] sm:$0xff] %vm21, %v2124
    %2158 = vst.msk [vmem:[%s2142 + $0xb1] sm:$0xff] %vm21, %v2125
    %2159 = vst.msk [vmem:[%s2142 + $0xc1] sm:$0xff] %vm21, %v2126
    %2160 = vst.msk [vmem:[%s2142 + $0xc9] sm:$0xff] %vm21, %v2127
    %2161 = vst.msk [vmem:[%s2142 + $0xd9] sm:$0xff] %vm21, %v2128
    %2162 = vst.msk [vmem:[%s2142 + $0xe1] sm:$0xff] %vm21, %v2129
    %2163 = vst.msk [vmem:[%s2142 + $0xf1] sm:$0xff] %vm21, %v2130
    %2164 = vst.msk [vmem:[%s2142 + $0xf9] sm:$0xff] %vm21, %v2131
    %2165 = vst.msk [vmem:[%s2142 + $0x109] sm:$0xff] %vm21, %v2132
    %2166 = vst.msk [vmem:[%s2142 + $0x111] sm:$0xff] %vm21, %v2133
    %2167 = vst.msk [vmem:[%s2142 + $0x121] sm:$0xff] %vm21, %v2134
    %2168 = vst.msk [vmem:[%s2142 + $0x129] sm:$0xff] %vm21, %v2135
    %2169 = vst.msk [vmem:[%s2142 + $0x139] sm:$0xff] %vm21, %v2136
    %2170 = vst.msk [vmem:[%s2142 + $0x141] sm:$0xff] %vm21, %v2137
    %2171 = vst.msk [vmem:[%s2142 + $0x151] sm:$0xff] %vm21, %v2138
    %2172 = vst.msk [vmem:[%s2142 + $0x159] sm:$0xff] %vm21, %v2139
    %2173 = vst.msk [vmem:[%s2142 + $0x169] sm:$0xff] %vm21, %v2140
    %2174 = vst.msk [vmem:[%s2142 + $0x171] sm:$0xff] %vm21, %v2141
    %v2175 = vld [vmem:[#allocation2] sm:$0xff]
    %v2176 = vld [vmem:[#allocation2 + $0x8] sm:$0xff]
    %v2177 = vld [vmem:[#allocation2 + $0x18] sm:$0xff]
    %v2178 = vld [vmem:[#allocation2 + $0x20] sm:$0xff]
    %v2179 = vld [vmem:[#allocation2 + $0x30] sm:$0xff]
    %v2180 = vld [vmem:[#allocation2 + $0x38] sm:$0xff]
    %v2181 = vld [vmem:[#allocation2 + $0x48] sm:$0xff]
    %v2182 = vld [vmem:[#allocation2 + $0x50] sm:$0xff]
    %v2183 = vld [vmem:[#allocation2 + $0x60] sm:$0xff]
    %v2184 = vld [vmem:[#allocation2 + $0x68] sm:$0xff]
    %v2185 = vld [vmem:[#allocation2 + $0x78] sm:$0xff]
    %v2186 = vld [vmem:[#allocation2 + $0x80] sm:$0xff]
    %v2187 = vld [vmem:[#allocation2 + $0x90] sm:$0xff]
    %v2188 = vld [vmem:[#allocation2 + $0x98] sm:$0xff]
    %v2189 = vld [vmem:[#allocation2 + $0xa8] sm:$0xff]
    %v2190 = vld [vmem:[#allocation2 + $0xb0] sm:$0xff]
    %v2191 = vld [vmem:[#allocation2 + $0xc0] sm:$0xff]
    %v2192 = vld [vmem:[#allocation2 + $0xc8] sm:$0xff]
    %v2193 = vld [vmem:[#allocation2 + $0xd8] sm:$0xff]
    %v2194 = vld [vmem:[#allocation2 + $0xe0] sm:$0xff]
    %v2195 = vld [vmem:[#allocation2 + $0xf0] sm:$0xff]
    %v2196 = vld [vmem:[#allocation2 + $0xf8] sm:$0xff]
    %v2197 = vld [vmem:[#allocation2 + $0x108] sm:$0xff]
    %v2198 = vld [vmem:[#allocation2 + $0x110] sm:$0xff]
    %v2199 = vld [vmem:[#allocation2 + $0x120] sm:$0xff]
    %v2200 = vld [vmem:[#allocation2 + $0x128] sm:$0xff]
    %v2201 = vld [vmem:[#allocation2 + $0x138] sm:$0xff]
    %v2202 = vld [vmem:[#allocation2 + $0x140] sm:$0xff]
    %v2203 = vld [vmem:[#allocation2 + $0x150] sm:$0xff]
    %v2204 = vld [vmem:[#allocation2 + $0x158] sm:$0xff]
    %v2205 = vld [vmem:[#allocation2 + $0x168] sm:$0xff]
    %v2206 = vld [vmem:[#allocation2 + $0x170] sm:$0xff]
    %v2207 = vld [vmem:[#allocation2 + $0x1] sm:$0xff]
    %v2208 = vld [vmem:[#allocation2 + $0x9] sm:$0xff]
    %v2209 = vld [vmem:[#allocation2 + $0x19] sm:$0xff]
    %v2210 = vld [vmem:[#allocation2 + $0x21] sm:$0xff]
    %v2211 = vld [vmem:[#allocation2 + $0x31] sm:$0xff]
    %v2212 = vld [vmem:[#allocation2 + $0x39] sm:$0xff]
    %v2213 = vld [vmem:[#allocation2 + $0x49] sm:$0xff]
    %v2214 = vld [vmem:[#allocation2 + $0x51] sm:$0xff]
    %v2215 = vld [vmem:[#allocation2 + $0x61] sm:$0xff]
    %v2216 = vld [vmem:[#allocation2 + $0x69] sm:$0xff]
    %v2217 = vld [vmem:[#allocation2 + $0x79] sm:$0xff]
    %v2218 = vld [vmem:[#allocation2 + $0x81] sm:$0xff]
    %v2219 = vld [vmem:[#allocation2 + $0x91] sm:$0xff]
    %v2220 = vld [vmem:[#allocation2 + $0x99] sm:$0xff]
    %v2221 = vld [vmem:[#allocation2 + $0xa9] sm:$0xff]
    %v2222 = vld [vmem:[#allocation2 + $0xb1] sm:$0xff]
    %v2223 = vld [vmem:[#allocation2 + $0xc1] sm:$0xff]
    %v2224 = vld [vmem:[#allocation2 + $0xc9] sm:$0xff]
    %v2225 = vld [vmem:[#allocation2 + $0xd9] sm:$0xff]
    %v2226 = vld [vmem:[#allocation2 + $0xe1] sm:$0xff]
    %v2227 = vld [vmem:[#allocation2 + $0xf1] sm:$0xff]
    %v2228 = vld [vmem:[#allocation2 + $0xf9] sm:$0xff]
    %v2229 = vld [vmem:[#allocation2 + $0x109] sm:$0xff]
    %v2230 = vld [vmem:[#allocation2 + $0x111] sm:$0xff]
    %v2231 = vld [vmem:[#allocation2 + $0x121] sm:$0xff]
    %v2232 = vld [vmem:[#allocation2 + $0x129] sm:$0xff]
    %v2233 = vld [vmem:[#allocation2 + $0x139] sm:$0xff]
    %v2234 = vld [vmem:[#allocation2 + $0x141] sm:$0xff]
    %v2235 = vld [vmem:[#allocation2 + $0x151] sm:$0xff]
    %v2236 = vld [vmem:[#allocation2 + $0x159] sm:$0xff]
    %v2237 = vld [vmem:[#allocation2 + $0x169] sm:$0xff]
    %v2238 = vld [vmem:[#allocation2 + $0x171] sm:$0xff]
    %v2239 = vld [vmem:[#allocation2 + $0x2] sm:$0xff]
    %v2240 = vld [vmem:[#allocation2 + $0xa] sm:$0xff]
    %v2241 = vld [vmem:[#allocation2 + $0x1a] sm:$0xff]
    %v2242 = vld [vmem:[#allocation2 + $0x22] sm:$0xff]
    %v2243 = vld [vmem:[#allocation2 + $0x32] sm:$0xff]
    %v2244 = vld [vmem:[#allocation2 + $0x3a] sm:$0xff]
    %v2245 = vld [vmem:[#allocation2 + $0x4a] sm:$0xff]
    %v2246 = vld [vmem:[#allocation2 + $0x52] sm:$0xff]
    %v2247 = vld [vmem:[#allocation2 + $0x62] sm:$0xff]
    %v2248 = vld [vmem:[#allocation2 + $0x6a] sm:$0xff]
    %v2249 = vld [vmem:[#allocation2 + $0x7a] sm:$0xff]
    %v2250 = vld [vmem:[#allocation2 + $0x82] sm:$0xff]
    %v2251 = vld [vmem:[#allocation2 + $0x92] sm:$0xff]
    %v2252 = vld [vmem:[#allocation2 + $0x9a] sm:$0xff]
    %v2253 = vld [vmem:[#allocation2 + $0xaa] sm:$0xff]
    %v2254 = vld [vmem:[#allocation2 + $0xb2] sm:$0xff]
    %v2255 = vld [vmem:[#allocation2 + $0xc2] sm:$0xff]
    %v2256 = vld [vmem:[#allocation2 + $0xca] sm:$0xff]
    %v2257 = vld [vmem:[#allocation2 + $0xda] sm:$0xff]
    %v2258 = vld [vmem:[#allocation2 + $0xe2] sm:$0xff]
    %v2259 = vld [vmem:[#allocation2 + $0xf2] sm:$0xff]
    %v2260 = vld [vmem:[#allocation2 + $0xfa] sm:$0xff]
    %v2261 = vld [vmem:[#allocation2 + $0x10a] sm:$0xff]
    %v2262 = vld [vmem:[#allocation2 + $0x112] sm:$0xff]
    %v2263 = vld [vmem:[#allocation2 + $0x122] sm:$0xff]
    %v2264 = vld [vmem:[#allocation2 + $0x12a] sm:$0xff]
    %v2265 = vld [vmem:[#allocation2 + $0x13a] sm:$0xff]
    %v2266 = vld [vmem:[#allocation2 + $0x142] sm:$0xff]
    %v2267 = vld [vmem:[#allocation2 + $0x152] sm:$0xff]
    %v2268 = vld [vmem:[#allocation2 + $0x15a] sm:$0xff]
    %v2269 = vld [vmem:[#allocation2 + $0x16a] sm:$0xff]
    %v2270 = vld [vmem:[#allocation2 + $0x172] sm:$0xff]
    %v2271 = vld [vmem:[%s2142] sm:$0xff]
    %v2272 = vld [vmem:[%s2142 + $0x8] sm:$0xff]
    %v2273 = vld [vmem:[%s2142 + $0x18] sm:$0xff]
    %v2274 = vld [vmem:[%s2142 + $0x20] sm:$0xff]
    %v2275 = vld [vmem:[%s2142 + $0x30] sm:$0xff]
    %v2276 = vld [vmem:[%s2142 + $0x38] sm:$0xff]
    %v2277 = vld [vmem:[%s2142 + $0x48] sm:$0xff]
    %v2278 = vld [vmem:[%s2142 + $0x50] sm:$0xff]
    %v2279 = vld [vmem:[%s2142 + $0x60] sm:$0xff]
    %v2280 = vld [vmem:[%s2142 + $0x68] sm:$0xff]
    %v2281 = vld [vmem:[%s2142 + $0x78] sm:$0xff]
    %v2282 = vld [vmem:[%s2142 + $0x80] sm:$0xff]
    %v2283 = vld [vmem:[%s2142 + $0x90] sm:$0xff]
    %v2284 = vld [vmem:[%s2142 + $0x98] sm:$0xff]
    %v2285 = vld [vmem:[%s2142 + $0xa8] sm:$0xff]
    %v2286 = vld [vmem:[%s2142 + $0xb0] sm:$0xff]
    %v2287 = vld [vmem:[%s2142 + $0xc0] sm:$0xff]
    %v2288 = vld [vmem:[%s2142 + $0xc8] sm:$0xff]
    %v2289 = vld [vmem:[%s2142 + $0xd8] sm:$0xff]
    %v2290 = vld [vmem:[%s2142 + $0xe0] sm:$0xff]
    %v2291 = vld [vmem:[%s2142 + $0xf0] sm:$0xff]
    %v2292 = vld [vmem:[%s2142 + $0xf8] sm:$0xff]
    %v2293 = vld [vmem:[%s2142 + $0x108] sm:$0xff]
    %v2294 = vld [vmem:[%s2142 + $0x110] sm:$0xff]
    %v2295 = vld [vmem:[%s2142 + $0x120] sm:$0xff]
    %v2296 = vld [vmem:[%s2142 + $0x128] sm:$0xff]
    %v2297 = vld [vmem:[%s2142 + $0x138] sm:$0xff]
    %v2298 = vld [vmem:[%s2142 + $0x140] sm:$0xff]
    %v2299 = vld [vmem:[%s2142 + $0x150] sm:$0xff]
    %v2300 = vld [vmem:[%s2142 + $0x158] sm:$0xff]
    %v2301 = vld [vmem:[%s2142 + $0x168] sm:$0xff]
    %v2302 = vld [vmem:[%s2142 + $0x170] sm:$0xff]
    %v2303 = vld [vmem:[%s2142 + $0x1] sm:$0xff]
    %v2304 = vld [vmem:[%s2142 + $0x9] sm:$0xff]
    %v2305 = vld [vmem:[%s2142 + $0x19] sm:$0xff]
    %v2306 = vld [vmem:[%s2142 + $0x21] sm:$0xff]
    %v2307 = vld [vmem:[%s2142 + $0x31] sm:$0xff]
    %v2308 = vld [vmem:[%s2142 + $0x39] sm:$0xff]
    %v2309 = vld [vmem:[%s2142 + $0x49] sm:$0xff]
    %v2310 = vld [vmem:[%s2142 + $0x51] sm:$0xff]
    %v2311 = vld [vmem:[%s2142 + $0x61] sm:$0xff]
    %v2312 = vld [vmem:[%s2142 + $0x69] sm:$0xff]
    %v2313 = vld [vmem:[%s2142 + $0x79] sm:$0xff]
    %v2314 = vld [vmem:[%s2142 + $0x81] sm:$0xff]
    %v2315 = vld [vmem:[%s2142 + $0x91] sm:$0xff]
    %v2316 = vld [vmem:[%s2142 + $0x99] sm:$0xff]
    %v2317 = vld [vmem:[%s2142 + $0xa9] sm:$0xff]
    %v2318 = vld [vmem:[%s2142 + $0xb1] sm:$0xff]
    %v2319 = vld [vmem:[%s2142 + $0xc1] sm:$0xff]
    %v2320 = vld [vmem:[%s2142 + $0xc9] sm:$0xff]
    %v2321 = vld [vmem:[%s2142 + $0xd9] sm:$0xff]
    %v2322 = vld [vmem:[%s2142 + $0xe1] sm:$0xff]
    %v2323 = vld [vmem:[%s2142 + $0xf1] sm:$0xff]
    %v2324 = vld [vmem:[%s2142 + $0xf9] sm:$0xff]
    %v2325 = vld [vmem:[%s2142 + $0x109] sm:$0xff]
    %v2326 = vld [vmem:[%s2142 + $0x111] sm:$0xff]
    %v2327 = vld [vmem:[%s2142 + $0x121] sm:$0xff]
    %v2328 = vld [vmem:[%s2142 + $0x129] sm:$0xff]
    %v2329 = vld [vmem:[%s2142 + $0x139] sm:$0xff]
    %v2330 = vld [vmem:[%s2142 + $0x141] sm:$0xff]
    %v2331 = vld [vmem:[%s2142 + $0x151] sm:$0xff]
    %v2332 = vld [vmem:[%s2142 + $0x159] sm:$0xff]
    %v2333 = vld [vmem:[%s2142 + $0x169] sm:$0xff]
    %v2334 = vld [vmem:[%s2142 + $0x171] sm:$0xff]
    %v2335 = vld [vmem:[%s2142 + $0x2] sm:$0xff]
    %v2336 = vld [vmem:[%s2142 + $0xa] sm:$0xff]
    %v2337 = vld [vmem:[%s2142 + $0x1a] sm:$0xff]
    %v2338 = vld [vmem:[%s2142 + $0x22] sm:$0xff]
    %v2339 = vld [vmem:[%s2142 + $0x32] sm:$0xff]
    %v2340 = vld [vmem:[%s2142 + $0x3a] sm:$0xff]
    %v2341 = vld [vmem:[%s2142 + $0x4a] sm:$0xff]
    %v2342 = vld [vmem:[%s2142 + $0x52] sm:$0xff]
    %v2343 = vld [vmem:[%s2142 + $0x62] sm:$0xff]
    %v2344 = vld [vmem:[%s2142 + $0x6a] sm:$0xff]
    %v2345 = vld [vmem:[%s2142 + $0x7a] sm:$0xff]
    %v2346 = vld [vmem:[%s2142 + $0x82] sm:$0xff]
    %v2347 = vld [vmem:[%s2142 + $0x92] sm:$0xff]
    %v2348 = vld [vmem:[%s2142 + $0x9a] sm:$0xff]
    %v2349 = vld [vmem:[%s2142 + $0xaa] sm:$0xff]
    %v2350 = vld [vmem:[%s2142 + $0xb2] sm:$0xff]
    %v2351 = vld [vmem:[%s2142 + $0xc2] sm:$0xff]
    %v2352 = vld [vmem:[%s2142 + $0xca] sm:$0xff]
    %v2353 = vld [vmem:[%s2142 + $0xda] sm:$0xff]
    %v2354 = vld [vmem:[%s2142 + $0xe2] sm:$0xff]
    %v2355 = vld [vmem:[%s2142 + $0xf2] sm:$0xff]
    %v2356 = vld [vmem:[%s2142 + $0xfa] sm:$0xff]
    %v2357 = vld [vmem:[%s2142 + $0x10a] sm:$0xff]
    %v2358 = vld [vmem:[%s2142 + $0x112] sm:$0xff]
    %v2359 = vld [vmem:[%s2142 + $0x122] sm:$0xff]
    %v2360 = vld [vmem:[%s2142 + $0x12a] sm:$0xff]
    %v2361 = vld [vmem:[%s2142 + $0x13a] sm:$0xff]
    %v2362 = vld [vmem:[%s2142 + $0x142] sm:$0xff]
    %v2363 = vld [vmem:[%s2142 + $0x152] sm:$0xff]
    %v2364 = vld [vmem:[%s2142 + $0x15a] sm:$0xff]
    %v2365 = vld [vmem:[%s2142 + $0x16a] sm:$0xff]
    %v2366 = vld [vmem:[%s2142 + $0x172] sm:$0xff]
    %s2367 = scalar_lea.vmem [#allocation2], 48
    %v2368 = vld [vmem:[%s2367] sm:$0xff]
    %v2369 = vld [vmem:[%s2367 + $0x8] sm:$0xff]
    %v2370 = vld [vmem:[%s2367 + $0x18] sm:$0xff]
    %v2371 = vld [vmem:[%s2367 + $0x20] sm:$0xff]
    %v2372 = vld [vmem:[%s2367 + $0x30] sm:$0xff]
    %v2373 = vld [vmem:[%s2367 + $0x38] sm:$0xff]
    %v2374 = vld [vmem:[%s2367 + $0x48] sm:$0xff]
    %v2375 = vld [vmem:[%s2367 + $0x50] sm:$0xff]
    %v2376 = vld [vmem:[%s2367 + $0x60] sm:$0xff]
    %v2377 = vld [vmem:[%s2367 + $0x68] sm:$0xff]
    %v2378 = vld [vmem:[%s2367 + $0x78] sm:$0xff]
    %v2379 = vld [vmem:[%s2367 + $0x80] sm:$0xff]
    %v2380 = vld [vmem:[%s2367 + $0x90] sm:$0xff]
    %v2381 = vld [vmem:[%s2367 + $0x98] sm:$0xff]
    %v2382 = vld [vmem:[%s2367 + $0xa8] sm:$0xff]
    %v2383 = vld [vmem:[%s2367 + $0xb0] sm:$0xff]
    %v2384 = vld [vmem:[%s2367 + $0xc0] sm:$0xff]
    %v2385 = vld [vmem:[%s2367 + $0xc8] sm:$0xff]
    %v2386 = vld [vmem:[%s2367 + $0xd8] sm:$0xff]
    %v2387 = vld [vmem:[%s2367 + $0xe0] sm:$0xff]
    %v2388 = vld [vmem:[%s2367 + $0xf0] sm:$0xff]
    %v2389 = vld [vmem:[%s2367 + $0xf8] sm:$0xff]
    %v2390 = vld [vmem:[%s2367 + $0x108] sm:$0xff]
    %v2391 = vld [vmem:[%s2367 + $0x110] sm:$0xff]
    %v2392 = vld [vmem:[%s2367 + $0x120] sm:$0xff]
    %v2393 = vld [vmem:[%s2367 + $0x128] sm:$0xff]
    %v2394 = vld [vmem:[%s2367 + $0x138] sm:$0xff]
    %v2395 = vld [vmem:[%s2367 + $0x140] sm:$0xff]
    %v2396 = vld [vmem:[%s2367 + $0x150] sm:$0xff]
    %v2397 = vld [vmem:[%s2367 + $0x158] sm:$0xff]
    %v2398 = vld [vmem:[%s2367 + $0x168] sm:$0xff]
    %v2399 = vld [vmem:[%s2367 + $0x170] sm:$0xff]
    %v2400 = vld [vmem:[%s2367 + $0x1] sm:$0xff]
    %v2401 = vld [vmem:[%s2367 + $0x9] sm:$0xff]
    %v2402 = vld [vmem:[%s2367 + $0x19] sm:$0xff]
    %v2403 = vld [vmem:[%s2367 + $0x21] sm:$0xff]
    %v2404 = vld [vmem:[%s2367 + $0x31] sm:$0xff]
    %v2405 = vld [vmem:[%s2367 + $0x39] sm:$0xff]
    %v2406 = vld [vmem:[%s2367 + $0x49] sm:$0xff]
    %v2407 = vld [vmem:[%s2367 + $0x51] sm:$0xff]
    %v2408 = vld [vmem:[%s2367 + $0x61] sm:$0xff]
    %v2409 = vld [vmem:[%s2367 + $0x69] sm:$0xff]
    %v2410 = vld [vmem:[%s2367 + $0x79] sm:$0xff]
    %v2411 = vld [vmem:[%s2367 + $0x81] sm:$0xff]
    %v2412 = vld [vmem:[%s2367 + $0x91] sm:$0xff]
    %v2413 = vld [vmem:[%s2367 + $0x99] sm:$0xff]
    %v2414 = vld [vmem:[%s2367 + $0xa9] sm:$0xff]
    %v2415 = vld [vmem:[%s2367 + $0xb1] sm:$0xff]
    %v2416 = vld [vmem:[%s2367 + $0xc1] sm:$0xff]
    %v2417 = vld [vmem:[%s2367 + $0xc9] sm:$0xff]
    %v2418 = vld [vmem:[%s2367 + $0xd9] sm:$0xff]
    %v2419 = vld [vmem:[%s2367 + $0xe1] sm:$0xff]
    %v2420 = vld [vmem:[%s2367 + $0xf1] sm:$0xff]
    %v2421 = vld [vmem:[%s2367 + $0xf9] sm:$0xff]
    %v2422 = vld [vmem:[%s2367 + $0x109] sm:$0xff]
    %v2423 = vld [vmem:[%s2367 + $0x111] sm:$0xff]
    %v2424 = vld [vmem:[%s2367 + $0x121] sm:$0xff]
    %v2425 = vld [vmem:[%s2367 + $0x129] sm:$0xff]
    %v2426 = vld [vmem:[%s2367 + $0x139] sm:$0xff]
    %v2427 = vld [vmem:[%s2367 + $0x141] sm:$0xff]
    %v2428 = vld [vmem:[%s2367 + $0x151] sm:$0xff]
    %v2429 = vld [vmem:[%s2367 + $0x159] sm:$0xff]
    %v2430 = vld [vmem:[%s2367 + $0x169] sm:$0xff]
    %v2431 = vld [vmem:[%s2367 + $0x171] sm:$0xff]
    %v2432 = vld [vmem:[%s2367 + $0x2] sm:$0xff]
    %v2433 = vld [vmem:[%s2367 + $0xa] sm:$0xff]
    %v2434 = vld [vmem:[%s2367 + $0x1a] sm:$0xff]
    %v2435 = vld [vmem:[%s2367 + $0x22] sm:$0xff]
    %v2436 = vld [vmem:[%s2367 + $0x32] sm:$0xff]
    %v2437 = vld [vmem:[%s2367 + $0x3a] sm:$0xff]
    %v2438 = vld [vmem:[%s2367 + $0x4a] sm:$0xff]
    %v2439 = vld [vmem:[%s2367 + $0x52] sm:$0xff]
    %v2440 = vld [vmem:[%s2367 + $0x62] sm:$0xff]
    %v2441 = vld [vmem:[%s2367 + $0x6a] sm:$0xff]
    %v2442 = vld [vmem:[%s2367 + $0x7a] sm:$0xff]
    %v2443 = vld [vmem:[%s2367 + $0x82] sm:$0xff]
    %v2444 = vld [vmem:[%s2367 + $0x92] sm:$0xff]
    %v2445 = vld [vmem:[%s2367 + $0x9a] sm:$0xff]
    %v2446 = vld [vmem:[%s2367 + $0xaa] sm:$0xff]
    %v2447 = vld [vmem:[%s2367 + $0xb2] sm:$0xff]
    %v2448 = vld [vmem:[%s2367 + $0xc2] sm:$0xff]
    %v2449 = vld [vmem:[%s2367 + $0xca] sm:$0xff]
    %v2450 = vld [vmem:[%s2367 + $0xda] sm:$0xff]
    %v2451 = vld [vmem:[%s2367 + $0xe2] sm:$0xff]
    %v2452 = vld [vmem:[%s2367 + $0xf2] sm:$0xff]
    %v2453 = vld [vmem:[%s2367 + $0xfa] sm:$0xff]
    %v2454 = vld [vmem:[%s2367 + $0x10a] sm:$0xff]
    %v2455 = vld [vmem:[%s2367 + $0x112] sm:$0xff]
    %v2456 = vld [vmem:[%s2367 + $0x122] sm:$0xff]
    %v2457 = vld [vmem:[%s2367 + $0x12a] sm:$0xff]
    %v2458 = vld [vmem:[%s2367 + $0x13a] sm:$0xff]
    %v2459 = vld [vmem:[%s2367 + $0x142] sm:$0xff]
    %v2460 = vld [vmem:[%s2367 + $0x152] sm:$0xff]
    %v2461 = vld [vmem:[%s2367 + $0x15a] sm:$0xff]
    %v2462 = vld [vmem:[%s2367 + $0x16a] sm:$0xff]
    %v2463 = vld [vmem:[%s2367 + $0x172] sm:$0xff]
    %2496 = vrot.lane.b32.xlu0 %v2207, 4
    %v2497 = vpop.permute.xlu0 %2496
    %2498 = vrot.lane.b32.xlu0 %v2208, 4
    %v2499 = vpop.permute.xlu0 %2498
    %2500 = vrot.lane.b32.xlu0 %v2209, 4
    %v2501 = vpop.permute.xlu0 %2500
    %2502 = vrot.lane.b32.xlu0 %v2210, 4
    %v2503 = vpop.permute.xlu0 %2502
    %2504 = vrot.lane.b32.xlu0 %v2211, 4
    %v2505 = vpop.permute.xlu0 %2504
    %2506 = vrot.lane.b32.xlu0 %v2212, 4
    %v2507 = vpop.permute.xlu0 %2506
    %2508 = vrot.lane.b32.xlu0 %v2213, 4
    %v2509 = vpop.permute.xlu0 %2508
    %2510 = vrot.lane.b32.xlu0 %v2214, 4
    %v2511 = vpop.permute.xlu0 %2510
    %2512 = vrot.lane.b32.xlu0 %v2215, 4
    %v2513 = vpop.permute.xlu0 %2512
    %2514 = vrot.lane.b32.xlu0 %v2216, 4
    %v2515 = vpop.permute.xlu0 %2514
    %2516 = vrot.lane.b32.xlu0 %v2217, 4
    %v2517 = vpop.permute.xlu0 %2516
    %2518 = vrot.lane.b32.xlu0 %v2218, 4
    %v2519 = vpop.permute.xlu0 %2518
    %2520 = vrot.lane.b32.xlu0 %v2219, 4
    %v2521 = vpop.permute.xlu0 %2520
    %2522 = vrot.lane.b32.xlu0 %v2220, 4
    %v2523 = vpop.permute.xlu0 %2522
    %2524 = vrot.lane.b32.xlu0 %v2221, 4
    %v2525 = vpop.permute.xlu0 %2524
    %2526 = vrot.lane.b32.xlu0 %v2222, 4
    %v2527 = vpop.permute.xlu0 %2526
    %2528 = vrot.lane.b32.xlu0 %v2223, 4
    %v2529 = vpop.permute.xlu0 %2528
    %2530 = vrot.lane.b32.xlu0 %v2224, 4
    %v2531 = vpop.permute.xlu0 %2530
    %2532 = vrot.lane.b32.xlu0 %v2225, 4
    %v2533 = vpop.permute.xlu0 %2532
    %2534 = vrot.lane.b32.xlu0 %v2226, 4
    %v2535 = vpop.permute.xlu0 %2534
    %2536 = vrot.lane.b32.xlu0 %v2227, 4
    %v2537 = vpop.permute.xlu0 %2536
    %2538 = vrot.lane.b32.xlu0 %v2228, 4
    %v2539 = vpop.permute.xlu0 %2538
    %2540 = vrot.lane.b32.xlu0 %v2229, 4
    %v2541 = vpop.permute.xlu0 %2540
    %2542 = vrot.lane.b32.xlu0 %v2230, 4
    %v2543 = vpop.permute.xlu0 %2542
    %2544 = vrot.lane.b32.xlu0 %v2231, 4
    %v2545 = vpop.permute.xlu0 %2544
    %2546 = vrot.lane.b32.xlu0 %v2232, 4
    %v2547 = vpop.permute.xlu0 %2546
    %2548 = vrot.lane.b32.xlu0 %v2233, 4
    %v2549 = vpop.permute.xlu0 %2548
    %2550 = vrot.lane.b32.xlu0 %v2234, 4
    %v2551 = vpop.permute.xlu0 %2550
    %2552 = vrot.lane.b32.xlu0 %v2235, 4
    %v2553 = vpop.permute.xlu0 %2552
    %2554 = vrot.lane.b32.xlu0 %v2236, 4
    %v2555 = vpop.permute.xlu0 %2554
    %2556 = vrot.lane.b32.xlu0 %v2237, 4
    %v2557 = vpop.permute.xlu0 %2556
    %2558 = vrot.lane.b32.xlu0 %v2238, 4
    %v2559 = vpop.permute.xlu0 %2558
    %2624 = vrot.lane.b32.xlu0 %v2239, 8
    %v2625 = vpop.permute.xlu0 %2624
    %2626 = vrot.lane.b32.xlu0 %v2240, 8
    %v2627 = vpop.permute.xlu0 %2626
    %2628 = vrot.lane.b32.xlu0 %v2241, 8
    %v2629 = vpop.permute.xlu0 %2628
    %2630 = vrot.lane.b32.xlu0 %v2242, 8
    %v2631 = vpop.permute.xlu0 %2630
    %2632 = vrot.lane.b32.xlu0 %v2243, 8
    %v2633 = vpop.permute.xlu0 %2632
    %2634 = vrot.lane.b32.xlu0 %v2244, 8
    %v2635 = vpop.permute.xlu0 %2634
    %2636 = vrot.lane.b32.xlu0 %v2245, 8
    %v2637 = vpop.permute.xlu0 %2636
    %2638 = vrot.lane.b32.xlu0 %v2246, 8
    %v2639 = vpop.permute.xlu0 %2638
    %2640 = vrot.lane.b32.xlu0 %v2247, 8
    %v2641 = vpop.permute.xlu0 %2640
    %2642 = vrot.lane.b32.xlu0 %v2248, 8
    %v2643 = vpop.permute.xlu0 %2642
    %2644 = vrot.lane.b32.xlu0 %v2249, 8
    %v2645 = vpop.permute.xlu0 %2644
    %2646 = vrot.lane.b32.xlu0 %v2250, 8
    %v2647 = vpop.permute.xlu0 %2646
    %2648 = vrot.lane.b32.xlu0 %v2251, 8
    %v2649 = vpop.permute.xlu0 %2648
    %2650 = vrot.lane.b32.xlu0 %v2252, 8
    %v2651 = vpop.permute.xlu0 %2650
    %2652 = vrot.lane.b32.xlu0 %v2253, 8
    %v2653 = vpop.permute.xlu0 %2652
    %2654 = vrot.lane.b32.xlu0 %v2254, 8
    %v2655 = vpop.permute.xlu0 %2654
    %2656 = vrot.lane.b32.xlu0 %v2255, 8
    %v2657 = vpop.permute.xlu0 %2656
    %2658 = vrot.lane.b32.xlu0 %v2256, 8
    %v2659 = vpop.permute.xlu0 %2658
    %2660 = vrot.lane.b32.xlu0 %v2257, 8
    %v2661 = vpop.permute.xlu0 %2660
    %2662 = vrot.lane.b32.xlu0 %v2258, 8
    %v2663 = vpop.permute.xlu0 %2662
    %2664 = vrot.lane.b32.xlu0 %v2259, 8
    %v2665 = vpop.permute.xlu0 %2664
    %2666 = vrot.lane.b32.xlu0 %v2260, 8
    %v2667 = vpop.permute.xlu0 %2666
    %2668 = vrot.lane.b32.xlu0 %v2261, 8
    %v2669 = vpop.permute.xlu0 %2668
    %2670 = vrot.lane.b32.xlu0 %v2262, 8
    %v2671 = vpop.permute.xlu0 %2670
    %2672 = vrot.lane.b32.xlu0 %v2263, 8
    %v2673 = vpop.permute.xlu0 %2672
    %2674 = vrot.lane.b32.xlu0 %v2264, 8
    %v2675 = vpop.permute.xlu0 %2674
    %2676 = vrot.lane.b32.xlu0 %v2265, 8
    %v2677 = vpop.permute.xlu0 %2676
    %2678 = vrot.lane.b32.xlu0 %v2266, 8
    %v2679 = vpop.permute.xlu0 %2678
    %2680 = vrot.lane.b32.xlu0 %v2267, 8
    %v2681 = vpop.permute.xlu0 %2680
    %2682 = vrot.lane.b32.xlu0 %v2268, 8
    %v2683 = vpop.permute.xlu0 %2682
    %2684 = vrot.lane.b32.xlu0 %v2269, 8
    %v2685 = vpop.permute.xlu0 %2684
    %2686 = vrot.lane.b32.xlu0 %v2270, 8
    %v2687 = vpop.permute.xlu0 %2686
    %2752 = vrot.lane.b32.xlu0 %v2271, 12
    %v2753 = vpop.permute.xlu0 %2752
    %2754 = vrot.lane.b32.xlu0 %v2272, 12
    %v2755 = vpop.permute.xlu0 %2754
    %2756 = vrot.lane.b32.xlu0 %v2273, 12
    %v2757 = vpop.permute.xlu0 %2756
    %2758 = vrot.lane.b32.xlu0 %v2274, 12
    %v2759 = vpop.permute.xlu0 %2758
    %2760 = vrot.lane.b32.xlu0 %v2275, 12
    %v2761 = vpop.permute.xlu0 %2760
    %2762 = vrot.lane.b32.xlu0 %v2276, 12
    %v2763 = vpop.permute.xlu0 %2762
    %2764 = vrot.lane.b32.xlu0 %v2277, 12
    %v2765 = vpop.permute.xlu0 %2764
    %2766 = vrot.lane.b32.xlu0 %v2278, 12
    %v2767 = vpop.permute.xlu0 %2766
    %2768 = vrot.lane.b32.xlu0 %v2279, 12
    %v2769 = vpop.permute.xlu0 %2768
    %2770 = vrot.lane.b32.xlu0 %v2280, 12
    %v2771 = vpop.permute.xlu0 %2770
    %2772 = vrot.lane.b32.xlu0 %v2281, 12
    %v2773 = vpop.permute.xlu0 %2772
    %2774 = vrot.lane.b32.xlu0 %v2282, 12
    %v2775 = vpop.permute.xlu0 %2774
    %2776 = vrot.lane.b32.xlu0 %v2283, 12
    %v2777 = vpop.permute.xlu0 %2776
    %2778 = vrot.lane.b32.xlu0 %v2284, 12
    %v2779 = vpop.permute.xlu0 %2778
    %2780 = vrot.lane.b32.xlu0 %v2285, 12
    %v2781 = vpop.permute.xlu0 %2780
    %2782 = vrot.lane.b32.xlu0 %v2286, 12
    %v2783 = vpop.permute.xlu0 %2782
    %2784 = vrot.lane.b32.xlu0 %v2287, 12
    %v2785 = vpop.permute.xlu0 %2784
    %2786 = vrot.lane.b32.xlu0 %v2288, 12
    %v2787 = vpop.permute.xlu0 %2786
    %2788 = vrot.lane.b32.xlu0 %v2289, 12
    %v2789 = vpop.permute.xlu0 %2788
    %2790 = vrot.lane.b32.xlu0 %v2290, 12
    %v2791 = vpop.permute.xlu0 %2790
    %2792 = vrot.lane.b32.xlu0 %v2291, 12
    %v2793 = vpop.permute.xlu0 %2792
    %2794 = vrot.lane.b32.xlu0 %v2292, 12
    %v2795 = vpop.permute.xlu0 %2794
    %2796 = vrot.lane.b32.xlu0 %v2293, 12
    %v2797 = vpop.permute.xlu0 %2796
    %2798 = vrot.lane.b32.xlu0 %v2294, 12
    %v2799 = vpop.permute.xlu0 %2798
    %2800 = vrot.lane.b32.xlu0 %v2295, 12
    %v2801 = vpop.permute.xlu0 %2800
    %2802 = vrot.lane.b32.xlu0 %v2296, 12
    %v2803 = vpop.permute.xlu0 %2802
    %2804 = vrot.lane.b32.xlu0 %v2297, 12
    %v2805 = vpop.permute.xlu0 %2804
    %2806 = vrot.lane.b32.xlu0 %v2298, 12
    %v2807 = vpop.permute.xlu0 %2806
    %2808 = vrot.lane.b32.xlu0 %v2299, 12
    %v2809 = vpop.permute.xlu0 %2808
    %2810 = vrot.lane.b32.xlu0 %v2300, 12
    %v2811 = vpop.permute.xlu0 %2810
    %2812 = vrot.lane.b32.xlu0 %v2301, 12
    %v2813 = vpop.permute.xlu0 %2812
    %2814 = vrot.lane.b32.xlu0 %v2302, 12
    %v2815 = vpop.permute.xlu0 %2814
    %2880 = vrot.lane.b32.xlu0 %v2303, 16
    %v2881 = vpop.permute.xlu0 %2880
    %2882 = vrot.lane.b32.xlu0 %v2304, 16
    %v2883 = vpop.permute.xlu0 %2882
    %2884 = vrot.lane.b32.xlu0 %v2305, 16
    %v2885 = vpop.permute.xlu0 %2884
    %2886 = vrot.lane.b32.xlu0 %v2306, 16
    %v2887 = vpop.permute.xlu0 %2886
    %2888 = vrot.lane.b32.xlu0 %v2307, 16
    %v2889 = vpop.permute.xlu0 %2888
    %2890 = vrot.lane.b32.xlu0 %v2308, 16
    %v2891 = vpop.permute.xlu0 %2890
    %2892 = vrot.lane.b32.xlu0 %v2309, 16
    %v2893 = vpop.permute.xlu0 %2892
    %2894 = vrot.lane.b32.xlu0 %v2310, 16
    %v2895 = vpop.permute.xlu0 %2894
    %2896 = vrot.lane.b32.xlu0 %v2311, 16
    %v2897 = vpop.permute.xlu0 %2896
    %2898 = vrot.lane.b32.xlu0 %v2312, 16
    %v2899 = vpop.permute.xlu0 %2898
    %2900 = vrot.lane.b32.xlu0 %v2313, 16
    %v2901 = vpop.permute.xlu0 %2900
    %2902 = vrot.lane.b32.xlu0 %v2314, 16
    %v2903 = vpop.permute.xlu0 %2902
    %2904 = vrot.lane.b32.xlu0 %v2315, 16
    %v2905 = vpop.permute.xlu0 %2904
    %2906 = vrot.lane.b32.xlu0 %v2316, 16
    %v2907 = vpop.permute.xlu0 %2906
    %2908 = vrot.lane.b32.xlu0 %v2317, 16
    %v2909 = vpop.permute.xlu0 %2908
    %2910 = vrot.lane.b32.xlu0 %v2318, 16
    %v2911 = vpop.permute.xlu0 %2910
    %2912 = vrot.lane.b32.xlu0 %v2319, 16
    %v2913 = vpop.permute.xlu0 %2912
    %2914 = vrot.lane.b32.xlu0 %v2320, 16
    %v2915 = vpop.permute.xlu0 %2914
    %2916 = vrot.lane.b32.xlu0 %v2321, 16
    %v2917 = vpop.permute.xlu0 %2916
    %2918 = vrot.lane.b32.xlu0 %v2322, 16
    %v2919 = vpop.permute.xlu0 %2918
    %2920 = vrot.lane.b32.xlu0 %v2323, 16
    %v2921 = vpop.permute.xlu0 %2920
    %2922 = vrot.lane.b32.xlu0 %v2324, 16
    %v2923 = vpop.permute.xlu0 %2922
    %2924 = vrot.lane.b32.xlu0 %v2325, 16
    %v2925 = vpop.permute.xlu0 %2924
    %2926 = vrot.lane.b32.xlu0 %v2326, 16
    %v2927 = vpop.permute.xlu0 %2926
    %2928 = vrot.lane.b32.xlu0 %v2327, 16
    %v2929 = vpop.permute.xlu0 %2928
    %2930 = vrot.lane.b32.xlu0 %v2328, 16
    %v2931 = vpop.permute.xlu0 %2930
    %2932 = vrot.lane.b32.xlu0 %v2329, 16
    %v2933 = vpop.permute.xlu0 %2932
    %2934 = vrot.lane.b32.xlu0 %v2330, 16
    %v2935 = vpop.permute.xlu0 %2934
    %2936 = vrot.lane.b32.xlu0 %v2331, 16
    %v2937 = vpop.permute.xlu0 %2936
    %2938 = vrot.lane.b32.xlu0 %v2332, 16
    %v2939 = vpop.permute.xlu0 %2938
    %2940 = vrot.lane.b32.xlu0 %v2333, 16
    %v2941 = vpop.permute.xlu0 %2940
    %2942 = vrot.lane.b32.xlu0 %v2334, 16
    %v2943 = vpop.permute.xlu0 %2942
    %3008 = vrot.lane.b32.xlu0 %v2335, 20
    %v3009 = vpop.permute.xlu0 %3008
    %3010 = vrot.lane.b32.xlu0 %v2336, 20
    %v3011 = vpop.permute.xlu0 %3010
    %3012 = vrot.lane.b32.xlu0 %v2337, 20
    %v3013 = vpop.permute.xlu0 %3012
    %3014 = vrot.lane.b32.xlu0 %v2338, 20
    %v3015 = vpop.permute.xlu0 %3014
    %3016 = vrot.lane.b32.xlu0 %v2339, 20
    %v3017 = vpop.permute.xlu0 %3016
    %3018 = vrot.lane.b32.xlu0 %v2340, 20
    %v3019 = vpop.permute.xlu0 %3018
    %3020 = vrot.lane.b32.xlu0 %v2341, 20
    %v3021 = vpop.permute.xlu0 %3020
    %3022 = vrot.lane.b32.xlu0 %v2342, 20
    %v3023 = vpop.permute.xlu0 %3022
    %3024 = vrot.lane.b32.xlu0 %v2343, 20
    %v3025 = vpop.permute.xlu0 %3024
    %3026 = vrot.lane.b32.xlu0 %v2344, 20
    %v3027 = vpop.permute.xlu0 %3026
    %3028 = vrot.lane.b32.xlu0 %v2345, 20
    %v3029 = vpop.permute.xlu0 %3028
    %3030 = vrot.lane.b32.xlu0 %v2346, 20
    %v3031 = vpop.permute.xlu0 %3030
    %3032 = vrot.lane.b32.xlu0 %v2347, 20
    %v3033 = vpop.permute.xlu0 %3032
    %3034 = vrot.lane.b32.xlu0 %v2348, 20
    %v3035 = vpop.permute.xlu0 %3034
    %3036 = vrot.lane.b32.xlu0 %v2349, 20
    %v3037 = vpop.permute.xlu0 %3036
    %3038 = vrot.lane.b32.xlu0 %v2350, 20
    %v3039 = vpop.permute.xlu0 %3038
    %3040 = vrot.lane.b32.xlu0 %v2351, 20
    %v3041 = vpop.permute.xlu0 %3040
    %3042 = vrot.lane.b32.xlu0 %v2352, 20
    %v3043 = vpop.permute.xlu0 %3042
    %3044 = vrot.lane.b32.xlu0 %v2353, 20
    %v3045 = vpop.permute.xlu0 %3044
    %3046 = vrot.lane.b32.xlu0 %v2354, 20
    %v3047 = vpop.permute.xlu0 %3046
    %3048 = vrot.lane.b32.xlu0 %v2355, 20
    %v3049 = vpop.permute.xlu0 %3048
    %3050 = vrot.lane.b32.xlu0 %v2356, 20
    %v3051 = vpop.permute.xlu0 %3050
    %3052 = vrot.lane.b32.xlu0 %v2357, 20
    %v3053 = vpop.permute.xlu0 %3052
    %3054 = vrot.lane.b32.xlu0 %v2358, 20
    %v3055 = vpop.permute.xlu0 %3054
    %3056 = vrot.lane.b32.xlu0 %v2359, 20
    %v3057 = vpop.permute.xlu0 %3056
    %3058 = vrot.lane.b32.xlu0 %v2360, 20
    %v3059 = vpop.permute.xlu0 %3058
    %3060 = vrot.lane.b32.xlu0 %v2361, 20
    %v3061 = vpop.permute.xlu0 %3060
    %3062 = vrot.lane.b32.xlu0 %v2362, 20
    %v3063 = vpop.permute.xlu0 %3062
    %3064 = vrot.lane.b32.xlu0 %v2363, 20
    %v3065 = vpop.permute.xlu0 %3064
    %3066 = vrot.lane.b32.xlu0 %v2364, 20
    %v3067 = vpop.permute.xlu0 %3066
    %3068 = vrot.lane.b32.xlu0 %v2365, 20
    %v3069 = vpop.permute.xlu0 %3068
    %3070 = vrot.lane.b32.xlu0 %v2366, 20
    %v3071 = vpop.permute.xlu0 %3070
    %3136 = vrot.lane.b32.xlu0 %v2368, 24
    %v3137 = vpop.permute.xlu0 %3136
    %3138 = vrot.lane.b32.xlu0 %v2369, 24
    %v3139 = vpop.permute.xlu0 %3138
    %3140 = vrot.lane.b32.xlu0 %v2370, 24
    %v3141 = vpop.permute.xlu0 %3140
    %3142 = vrot.lane.b32.xlu0 %v2371, 24
    %v3143 = vpop.permute.xlu0 %3142
    %3144 = vrot.lane.b32.xlu0 %v2372, 24
    %v3145 = vpop.permute.xlu0 %3144
    %3146 = vrot.lane.b32.xlu0 %v2373, 24
    %v3147 = vpop.permute.xlu0 %3146
    %3148 = vrot.lane.b32.xlu0 %v2374, 24
    %v3149 = vpop.permute.xlu0 %3148
    %3150 = vrot.lane.b32.xlu0 %v2375, 24
    %v3151 = vpop.permute.xlu0 %3150
    %3152 = vrot.lane.b32.xlu0 %v2376, 24
    %v3153 = vpop.permute.xlu0 %3152
    %3154 = vrot.lane.b32.xlu0 %v2377, 24
    %v3155 = vpop.permute.xlu0 %3154
    %3156 = vrot.lane.b32.xlu0 %v2378, 24
    %v3157 = vpop.permute.xlu0 %3156
    %3158 = vrot.lane.b32.xlu0 %v2379, 24
    %v3159 = vpop.permute.xlu0 %3158
    %3160 = vrot.lane.b32.xlu0 %v2380, 24
    %v3161 = vpop.permute.xlu0 %3160
    %3162 = vrot.lane.b32.xlu0 %v2381, 24
    %v3163 = vpop.permute.xlu0 %3162
    %3164 = vrot.lane.b32.xlu0 %v2382, 24
    %v3165 = vpop.permute.xlu0 %3164
    %3166 = vrot.lane.b32.xlu0 %v2383, 24
    %v3167 = vpop.permute.xlu0 %3166
    %3168 = vrot.lane.b32.xlu0 %v2384, 24
    %v3169 = vpop.permute.xlu0 %3168
    %3170 = vrot.lane.b32.xlu0 %v2385, 24
    %v3171 = vpop.permute.xlu0 %3170
    %3172 = vrot.lane.b32.xlu0 %v2386, 24
    %v3173 = vpop.permute.xlu0 %3172
    %3174 = vrot.lane.b32.xlu0 %v2387, 24
    %v3175 = vpop.permute.xlu0 %3174
    %3176 = vrot.lane.b32.xlu0 %v2388, 24
    %v3177 = vpop.permute.xlu0 %3176
    %3178 = vrot.lane.b32.xlu0 %v2389, 24
    %v3179 = vpop.permute.xlu0 %3178
    %3180 = vrot.lane.b32.xlu0 %v2390, 24
    %v3181 = vpop.permute.xlu0 %3180
    %3182 = vrot.lane.b32.xlu0 %v2391, 24
    %v3183 = vpop.permute.xlu0 %3182
    %3184 = vrot.lane.b32.xlu0 %v2392, 24
    %v3185 = vpop.permute.xlu0 %3184
    %3186 = vrot.lane.b32.xlu0 %v2393, 24
    %v3187 = vpop.permute.xlu0 %3186
    %3188 = vrot.lane.b32.xlu0 %v2394, 24
    %v3189 = vpop.permute.xlu0 %3188
    %3190 = vrot.lane.b32.xlu0 %v2395, 24
    %v3191 = vpop.permute.xlu0 %3190
    %3192 = vrot.lane.b32.xlu0 %v2396, 24
    %v3193 = vpop.permute.xlu0 %3192
    %3194 = vrot.lane.b32.xlu0 %v2397, 24
    %v3195 = vpop.permute.xlu0 %3194
    %3196 = vrot.lane.b32.xlu0 %v2398, 24
    %v3197 = vpop.permute.xlu0 %3196
    %3198 = vrot.lane.b32.xlu0 %v2399, 24
    %v3199 = vpop.permute.xlu0 %3198
    %3264 = vrot.lane.b32.xlu0 %v2400, 28
    %v3265 = vpop.permute.xlu0 %3264
    %3266 = vrot.lane.b32.xlu0 %v2401, 28
    %v3267 = vpop.permute.xlu0 %3266
    %3268 = vrot.lane.b32.xlu0 %v2402, 28
    %v3269 = vpop.permute.xlu0 %3268
    %3270 = vrot.lane.b32.xlu0 %v2403, 28
    %v3271 = vpop.permute.xlu0 %3270
    %3272 = vrot.lane.b32.xlu0 %v2404, 28
    %v3273 = vpop.permute.xlu0 %3272
    %3274 = vrot.lane.b32.xlu0 %v2405, 28
    %v3275 = vpop.permute.xlu0 %3274
    %3276 = vrot.lane.b32.xlu0 %v2406, 28
    %v3277 = vpop.permute.xlu0 %3276
    %3278 = vrot.lane.b32.xlu0 %v2407, 28
    %v3279 = vpop.permute.xlu0 %3278
    %3280 = vrot.lane.b32.xlu0 %v2408, 28
    %v3281 = vpop.permute.xlu0 %3280
    %3282 = vrot.lane.b32.xlu0 %v2409, 28
    %v3283 = vpop.permute.xlu0 %3282
    %3284 = vrot.lane.b32.xlu0 %v2410, 28
    %v3285 = vpop.permute.xlu0 %3284
    %3286 = vrot.lane.b32.xlu0 %v2411, 28
    %v3287 = vpop.permute.xlu0 %3286
    %3288 = vrot.lane.b32.xlu0 %v2412, 28
    %v3289 = vpop.permute.xlu0 %3288
    %3290 = vrot.lane.b32.xlu0 %v2413, 28
    %v3291 = vpop.permute.xlu0 %3290
    %3292 = vrot.lane.b32.xlu0 %v2414, 28
    %v3293 = vpop.permute.xlu0 %3292
    %3294 = vrot.lane.b32.xlu0 %v2415, 28
    %v3295 = vpop.permute.xlu0 %3294
    %3296 = vrot.lane.b32.xlu0 %v2416, 28
    %v3297 = vpop.permute.xlu0 %3296
    %3298 = vrot.lane.b32.xlu0 %v2417, 28
    %v3299 = vpop.permute.xlu0 %3298
    %3300 = vrot.lane.b32.xlu0 %v2418, 28
    %v3301 = vpop.permute.xlu0 %3300
    %3302 = vrot.lane.b32.xlu0 %v2419, 28
    %v3303 = vpop.permute.xlu0 %3302
    %3304 = vrot.lane.b32.xlu0 %v2420, 28
    %v3305 = vpop.permute.xlu0 %3304
    %3306 = vrot.lane.b32.xlu0 %v2421, 28
    %v3307 = vpop.permute.xlu0 %3306
    %3308 = vrot.lane.b32.xlu0 %v2422, 28
    %v3309 = vpop.permute.xlu0 %3308
    %3310 = vrot.lane.b32.xlu0 %v2423, 28
    %v3311 = vpop.permute.xlu0 %3310
    %3312 = vrot.lane.b32.xlu0 %v2424, 28
    %v3313 = vpop.permute.xlu0 %3312
    %3314 = vrot.lane.b32.xlu0 %v2425, 28
    %v3315 = vpop.permute.xlu0 %3314
    %3316 = vrot.lane.b32.xlu0 %v2426, 28
    %v3317 = vpop.permute.xlu0 %3316
    %3318 = vrot.lane.b32.xlu0 %v2427, 28
    %v3319 = vpop.permute.xlu0 %3318
    %3320 = vrot.lane.b32.xlu0 %v2428, 28
    %v3321 = vpop.permute.xlu0 %3320
    %3322 = vrot.lane.b32.xlu0 %v2429, 28
    %v3323 = vpop.permute.xlu0 %3322
    %3324 = vrot.lane.b32.xlu0 %v2430, 28
    %v3325 = vpop.permute.xlu0 %3324
    %3326 = vrot.lane.b32.xlu0 %v2431, 28
    %v3327 = vpop.permute.xlu0 %3326
    %3392 = vrot.lane.b32.xlu0 %v2432, 32
    %v3393 = vpop.permute.xlu0 %3392
    %3394 = vrot.lane.b32.xlu0 %v2433, 32
    %v3395 = vpop.permute.xlu0 %3394
    %3396 = vrot.lane.b32.xlu0 %v2434, 32
    %v3397 = vpop.permute.xlu0 %3396
    %3398 = vrot.lane.b32.xlu0 %v2435, 32
    %v3399 = vpop.permute.xlu0 %3398
    %3400 = vrot.lane.b32.xlu0 %v2436, 32
    %v3401 = vpop.permute.xlu0 %3400
    %3402 = vrot.lane.b32.xlu0 %v2437, 32
    %v3403 = vpop.permute.xlu0 %3402
    %3404 = vrot.lane.b32.xlu0 %v2438, 32
    %v3405 = vpop.permute.xlu0 %3404
    %3406 = vrot.lane.b32.xlu0 %v2439, 32
    %v3407 = vpop.permute.xlu0 %3406
    %3408 = vrot.lane.b32.xlu0 %v2440, 32
    %v3409 = vpop.permute.xlu0 %3408
    %3410 = vrot.lane.b32.xlu0 %v2441, 32
    %v3411 = vpop.permute.xlu0 %3410
    %3412 = vrot.lane.b32.xlu0 %v2442, 32
    %v3413 = vpop.permute.xlu0 %3412
    %3414 = vrot.lane.b32.xlu0 %v2443, 32
    %v3415 = vpop.permute.xlu0 %3414
    %3416 = vrot.lane.b32.xlu0 %v2444, 32
    %v3417 = vpop.permute.xlu0 %3416
    %3418 = vrot.lane.b32.xlu0 %v2445, 32
    %v3419 = vpop.permute.xlu0 %3418
    %3420 = vrot.lane.b32.xlu0 %v2446, 32
    %v3421 = vpop.permute.xlu0 %3420
    %3422 = vrot.lane.b32.xlu0 %v2447, 32
    %v3423 = vpop.permute.xlu0 %3422
    %3424 = vrot.lane.b32.xlu0 %v2448, 32
    %v3425 = vpop.permute.xlu0 %3424
    %3426 = vrot.lane.b32.xlu0 %v2449, 32
    %v3427 = vpop.permute.xlu0 %3426
    %3428 = vrot.lane.b32.xlu0 %v2450, 32
    %v3429 = vpop.permute.xlu0 %3428
    %3430 = vrot.lane.b32.xlu0 %v2451, 32
    %v3431 = vpop.permute.xlu0 %3430
    %3432 = vrot.lane.b32.xlu0 %v2452, 32
    %v3433 = vpop.permute.xlu0 %3432
    %3434 = vrot.lane.b32.xlu0 %v2453, 32
    %v3435 = vpop.permute.xlu0 %3434
    %3436 = vrot.lane.b32.xlu0 %v2454, 32
    %v3437 = vpop.permute.xlu0 %3436
    %3438 = vrot.lane.b32.xlu0 %v2455, 32
    %v3439 = vpop.permute.xlu0 %3438
    %3440 = vrot.lane.b32.xlu0 %v2456, 32
    %v3441 = vpop.permute.xlu0 %3440
    %3442 = vrot.lane.b32.xlu0 %v2457, 32
    %v3443 = vpop.permute.xlu0 %3442
    %3444 = vrot.lane.b32.xlu0 %v2458, 32
    %v3445 = vpop.permute.xlu0 %3444
    %3446 = vrot.lane.b32.xlu0 %v2459, 32
    %v3447 = vpop.permute.xlu0 %3446
    %3448 = vrot.lane.b32.xlu0 %v2460, 32
    %v3449 = vpop.permute.xlu0 %3448
    %3450 = vrot.lane.b32.xlu0 %v2461, 32
    %v3451 = vpop.permute.xlu0 %3450
    %3452 = vrot.lane.b32.xlu0 %v2462, 32
    %v3453 = vpop.permute.xlu0 %3452
    %3454 = vrot.lane.b32.xlu0 %v2463, 32
    %v3455 = vpop.permute.xlu0 %3454
    %v3488 = vsel %vm21, %v2175, %v2497
    %v3489 = vsel %vm21, %v2176, %v2499
    %v3490 = vsel %vm21, %v2177, %v2501
    %v3491 = vsel %vm21, %v2178, %v2503
    %v3492 = vsel %vm21, %v2179, %v2505
    %v3493 = vsel %vm21, %v2180, %v2507
    %v3494 = vsel %vm21, %v2181, %v2509
    %v3495 = vsel %vm21, %v2182, %v2511
    %v3496 = vsel %vm21, %v2183, %v2513
    %v3497 = vsel %vm21, %v2184, %v2515
    %v3498 = vsel %vm21, %v2185, %v2517
    %v3499 = vsel %vm21, %v2186, %v2519
    %v3500 = vsel %vm21, %v2187, %v2521
    %v3501 = vsel %vm21, %v2188, %v2523
    %v3502 = vsel %vm21, %v2189, %v2525
    %v3503 = vsel %vm21, %v2190, %v2527
    %v3504 = vsel %vm21, %v2191, %v2529
    %v3505 = vsel %vm21, %v2192, %v2531
    %v3506 = vsel %vm21, %v2193, %v2533
    %v3507 = vsel %vm21, %v2194, %v2535
    %v3508 = vsel %vm21, %v2195, %v2537
    %v3509 = vsel %vm21, %v2196, %v2539
    %v3510 = vsel %vm21, %v2197, %v2541
    %v3511 = vsel %vm21, %v2198, %v2543
    %v3512 = vsel %vm21, %v2199, %v2545
    %v3513 = vsel %vm21, %v2200, %v2547
    %v3514 = vsel %vm21, %v2201, %v2549
    %v3515 = vsel %vm21, %v2202, %v2551
    %v3516 = vsel %vm21, %v2203, %v2553
    %v3517 = vsel %vm21, %v2204, %v2555
    %v3518 = vsel %vm21, %v2205, %v2557
    %v3519 = vsel %vm21, %v2206, %v2559
    %v3520 = vsel %vm1477, %v3488, %v2625
    %v3521 = vsel %vm1477, %v3489, %v2627
    %v3522 = vsel %vm1477, %v3490, %v2629
    %v3523 = vsel %vm1477, %v3491, %v2631
    %v3524 = vsel %vm1477, %v3492, %v2633
    %v3525 = vsel %vm1477, %v3493, %v2635
    %v3526 = vsel %vm1477, %v3494, %v2637
    %v3527 = vsel %vm1477, %v3495, %v2639
    %v3528 = vsel %vm1477, %v3496, %v2641
    %v3529 = vsel %vm1477, %v3497, %v2643
    %v3530 = vsel %vm1477, %v3498, %v2645
    %v3531 = vsel %vm1477, %v3499, %v2647
    %v3532 = vsel %vm1477, %v3500, %v2649
    %v3533 = vsel %vm1477, %v3501, %v2651
    %v3534 = vsel %vm1477, %v3502, %v2653
    %v3535 = vsel %vm1477, %v3503, %v2655
    %v3536 = vsel %vm1477, %v3504, %v2657
    %v3537 = vsel %vm1477, %v3505, %v2659
    %v3538 = vsel %vm1477, %v3506, %v2661
    %v3539 = vsel %vm1477, %v3507, %v2663
    %v3540 = vsel %vm1477, %v3508, %v2665
    %v3541 = vsel %vm1477, %v3509, %v2667
    %v3542 = vsel %vm1477, %v3510, %v2669
    %v3543 = vsel %vm1477, %v3511, %v2671
    %v3544 = vsel %vm1477, %v3512, %v2673
    %v3545 = vsel %vm1477, %v3513, %v2675
    %v3546 = vsel %vm1477, %v3514, %v2677
    %v3547 = vsel %vm1477, %v3515, %v2679
    %v3548 = vsel %vm1477, %v3516, %v2681
    %v3549 = vsel %vm1477, %v3517, %v2683
    %v3550 = vsel %vm1477, %v3518, %v2685
    %v3551 = vsel %vm1477, %v3519, %v2687
    %v3552 = vsel %vm1510, %v3520, %v2753
    %v3553 = vsel %vm1510, %v3521, %v2755
    %v3554 = vsel %vm1510, %v3522, %v2757
    %v3555 = vsel %vm1510, %v3523, %v2759
    %v3556 = vsel %vm1510, %v3524, %v2761
    %v3557 = vsel %vm1510, %v3525, %v2763
    %v3558 = vsel %vm1510, %v3526, %v2765
    %v3559 = vsel %vm1510, %v3527, %v2767
    %v3560 = vsel %vm1510, %v3528, %v2769
    %v3561 = vsel %vm1510, %v3529, %v2771
    %v3562 = vsel %vm1510, %v3530, %v2773
    %v3563 = vsel %vm1510, %v3531, %v2775
    %v3564 = vsel %vm1510, %v3532, %v2777
    %v3565 = vsel %vm1510, %v3533, %v2779
    %v3566 = vsel %vm1510, %v3534, %v2781
    %v3567 = vsel %vm1510, %v3535, %v2783
    %v3568 = vsel %vm1510, %v3536, %v2785
    %v3569 = vsel %vm1510, %v3537, %v2787
    %v3570 = vsel %vm1510, %v3538, %v2789
    %v3571 = vsel %vm1510, %v3539, %v2791
    %v3572 = vsel %vm1510, %v3540, %v2793
    %v3573 = vsel %vm1510, %v3541, %v2795
    %v3574 = vsel %vm1510, %v3542, %v2797
    %v3575 = vsel %vm1510, %v3543, %v2799
    %v3576 = vsel %vm1510, %v3544, %v2801
    %v3577 = vsel %vm1510, %v3545, %v2803
    %v3578 = vsel %vm1510, %v3546, %v2805
    %v3579 = vsel %vm1510, %v3547, %v2807
    %v3580 = vsel %vm1510, %v3548, %v2809
    %v3581 = vsel %vm1510, %v3549, %v2811
    %v3582 = vsel %vm1510, %v3550, %v2813
    %v3583 = vsel %vm1510, %v3551, %v2815
    %v3584 = vsel %vm1543, %v3552, %v2881
    %v3585 = vsel %vm1543, %v3553, %v2883
    %v3586 = vsel %vm1543, %v3554, %v2885
    %v3587 = vsel %vm1543, %v3555, %v2887
    %v3588 = vsel %vm1543, %v3556, %v2889
    %v3589 = vsel %vm1543, %v3557, %v2891
    %v3590 = vsel %vm1543, %v3558, %v2893
    %v3591 = vsel %vm1543, %v3559, %v2895
    %v3592 = vsel %vm1543, %v3560, %v2897
    %v3593 = vsel %vm1543, %v3561, %v2899
    %v3594 = vsel %vm1543, %v3562, %v2901
    %v3595 = vsel %vm1543, %v3563, %v2903
    %v3596 = vsel %vm1543, %v3564, %v2905
    %v3597 = vsel %vm1543, %v3565, %v2907
    %v3598 = vsel %vm1543, %v3566, %v2909
    %v3599 = vsel %vm1543, %v3567, %v2911
    %v3600 = vsel %vm1543, %v3568, %v2913
    %v3601 = vsel %vm1543, %v3569, %v2915
    %v3602 = vsel %vm1543, %v3570, %v2917
    %v3603 = vsel %vm1543, %v3571, %v2919
    %v3604 = vsel %vm1543, %v3572, %v2921
    %v3605 = vsel %vm1543, %v3573, %v2923
    %v3606 = vsel %vm1543, %v3574, %v2925
    %v3607 = vsel %vm1543, %v3575, %v2927
    %v3608 = vsel %vm1543, %v3576, %v2929
    %v3609 = vsel %vm1543, %v3577, %v2931
    %v3610 = vsel %vm1543, %v3578, %v2933
    %v3611 = vsel %vm1543, %v3579, %v2935
    %v3612 = vsel %vm1543, %v3580, %v2937
    %v3613 = vsel %vm1543, %v3581, %v2939
    %v3614 = vsel %vm1543, %v3582, %v2941
    %v3615 = vsel %vm1543, %v3583, %v2943
    %v3616 = vsel %vm1576, %v3584, %v3009
    %v3617 = vsel %vm1576, %v3585, %v3011
    %v3618 = vsel %vm1576, %v3586, %v3013
    %v3619 = vsel %vm1576, %v3587, %v3015
    %v3620 = vsel %vm1576, %v3588, %v3017
    %v3621 = vsel %vm1576, %v3589, %v3019
    %v3622 = vsel %vm1576, %v3590, %v3021
    %v3623 = vsel %vm1576, %v3591, %v3023
    %v3624 = vsel %vm1576, %v3592, %v3025
    %v3625 = vsel %vm1576, %v3593, %v3027
    %v3626 = vsel %vm1576, %v3594, %v3029
    %v3627 = vsel %vm1576, %v3595, %v3031
    %v3628 = vsel %vm1576, %v3596, %v3033
    %v3629 = vsel %vm1576, %v3597, %v3035
    %v3630 = vsel %vm1576, %v3598, %v3037
    %v3631 = vsel %vm1576, %v3599, %v3039
    %v3632 = vsel %vm1576, %v3600, %v3041
    %v3633 = vsel %vm1576, %v3601, %v3043
    %v3634 = vsel %vm1576, %v3602, %v3045
    %v3635 = vsel %vm1576, %v3603, %v3047
    %v3636 = vsel %vm1576, %v3604, %v3049
    %v3637 = vsel %vm1576, %v3605, %v3051
    %v3638 = vsel %vm1576, %v3606, %v3053
    %v3639 = vsel %vm1576, %v3607, %v3055
    %v3640 = vsel %vm1576, %v3608, %v3057
    %v3641 = vsel %vm1576, %v3609, %v3059
    %v3642 = vsel %vm1576, %v3610, %v3061
    %v3643 = vsel %vm1576, %v3611, %v3063
    %v3644 = vsel %vm1576, %v3612, %v3065
    %v3645 = vsel %vm1576, %v3613, %v3067
    %v3646 = vsel %vm1576, %v3614, %v3069
    %v3647 = vsel %vm1576, %v3615, %v3071
    %v3648 = vsel %vm1609, %v3616, %v3137
    %v3649 = vsel %vm1609, %v3617, %v3139
    %v3650 = vsel %vm1609, %v3618, %v3141
    %v3651 = vsel %vm1609, %v3619, %v3143
    %v3652 = vsel %vm1609, %v3620, %v3145
    %v3653 = vsel %vm1609, %v3621, %v3147
    %v3654 = vsel %vm1609, %v3622, %v3149
    %v3655 = vsel %vm1609, %v3623, %v3151
    %v3656 = vsel %vm1609, %v3624, %v3153
    %v3657 = vsel %vm1609, %v3625, %v3155
    %v3658 = vsel %vm1609, %v3626, %v3157
    %v3659 = vsel %vm1609, %v3627, %v3159
    %v3660 = vsel %vm1609, %v3628, %v3161
    %v3661 = vsel %vm1609, %v3629, %v3163
    %v3662 = vsel %vm1609, %v3630, %v3165
    %v3663 = vsel %vm1609, %v3631, %v3167
    %v3664 = vsel %vm1609, %v3632, %v3169
    %v3665 = vsel %vm1609, %v3633, %v3171
    %v3666 = vsel %vm1609, %v3634, %v3173
    %v3667 = vsel %vm1609, %v3635, %v3175
    %v3668 = vsel %vm1609, %v3636, %v3177
    %v3669 = vsel %vm1609, %v3637, %v3179
    %v3670 = vsel %vm1609, %v3638, %v3181
    %v3671 = vsel %vm1609, %v3639, %v3183
    %v3672 = vsel %vm1609, %v3640, %v3185
    %v3673 = vsel %vm1609, %v3641, %v3187
    %v3674 = vsel %vm1609, %v3642, %v3189
    %v3675 = vsel %vm1609, %v3643, %v3191
    %v3676 = vsel %vm1609, %v3644, %v3193
    %v3677 = vsel %vm1609, %v3645, %v3195
    %v3678 = vsel %vm1609, %v3646, %v3197
    %v3679 = vsel %vm1609, %v3647, %v3199
    %v3680 = vsel %vm1642, %v3648, %v3265
    %v3681 = vsel %vm1642, %v3649, %v3267
    %v3682 = vsel %vm1642, %v3650, %v3269
    %v3683 = vsel %vm1642, %v3651, %v3271
    %v3684 = vsel %vm1642, %v3652, %v3273
    %v3685 = vsel %vm1642, %v3653, %v3275
    %v3686 = vsel %vm1642, %v3654, %v3277
    %v3687 = vsel %vm1642, %v3655, %v3279
    %v3688 = vsel %vm1642, %v3656, %v3281
    %v3689 = vsel %vm1642, %v3657, %v3283
    %v3690 = vsel %vm1642, %v3658, %v3285
    %v3691 = vsel %vm1642, %v3659, %v3287
    %v3692 = vsel %vm1642, %v3660, %v3289
    %v3693 = vsel %vm1642, %v3661, %v3291
    %v3694 = vsel %vm1642, %v3662, %v3293
    %v3695 = vsel %vm1642, %v3663, %v3295
    %v3696 = vsel %vm1642, %v3664, %v3297
    %v3697 = vsel %vm1642, %v3665, %v3299
    %v3698 = vsel %vm1642, %v3666, %v3301
    %v3699 = vsel %vm1642, %v3667, %v3303
    %v3700 = vsel %vm1642, %v3668, %v3305
    %v3701 = vsel %vm1642, %v3669, %v3307
    %v3702 = vsel %vm1642, %v3670, %v3309
    %v3703 = vsel %vm1642, %v3671, %v3311
    %v3704 = vsel %vm1642, %v3672, %v3313
    %v3705 = vsel %vm1642, %v3673, %v3315
    %v3706 = vsel %vm1642, %v3674, %v3317
    %v3707 = vsel %vm1642, %v3675, %v3319
    %v3708 = vsel %vm1642, %v3676, %v3321
    %v3709 = vsel %vm1642, %v3677, %v3323
    %v3710 = vsel %vm1642, %v3678, %v3325
    %v3711 = vsel %vm1642, %v3679, %v3327
    %v3712 = vsel %vm1675, %v3680, %v3393
    %v3713 = vsel %vm1675, %v3681, %v3395
    %v3714 = vsel %vm1675, %v3682, %v3397
    %v3715 = vsel %vm1675, %v3683, %v3399
    %v3716 = vsel %vm1675, %v3684, %v3401
    %v3717 = vsel %vm1675, %v3685, %v3403
    %v3718 = vsel %vm1675, %v3686, %v3405
    %v3719 = vsel %vm1675, %v3687, %v3407
    %v3720 = vsel %vm1675, %v3688, %v3409
    %v3721 = vsel %vm1675, %v3689, %v3411
    %v3722 = vsel %vm1675, %v3690, %v3413
    %v3723 = vsel %vm1675, %v3691, %v3415
    %v3724 = vsel %vm1675, %v3692, %v3417
    %v3725 = vsel %vm1675, %v3693, %v3419
    %v3726 = vsel %vm1675, %v3694, %v3421
    %v3727 = vsel %vm1675, %v3695, %v3423
    %v3728 = vsel %vm1675, %v3696, %v3425
    %v3729 = vsel %vm1675, %v3697, %v3427
    %v3730 = vsel %vm1675, %v3698, %v3429
    %v3731 = vsel %vm1675, %v3699, %v3431
    %v3732 = vsel %vm1675, %v3700, %v3433
    %v3733 = vsel %vm1675, %v3701, %v3435
    %v3734 = vsel %vm1675, %v3702, %v3437
    %v3735 = vsel %vm1675, %v3703, %v3439
    %v3736 = vsel %vm1675, %v3704, %v3441
    %v3737 = vsel %vm1675, %v3705, %v3443
    %v3738 = vsel %vm1675, %v3706, %v3445
    %v3739 = vsel %vm1675, %v3707, %v3447
    %v3740 = vsel %vm1675, %v3708, %v3449
    %v3741 = vsel %vm1675, %v3709, %v3451
    %v3742 = vsel %vm1675, %v3710, %v3453
    %v3743 = vsel %vm1675, %v3711, %v3455
    %v3744 = vld [vmem:[%s3] sm:$0xff]
    %v3745 = vld [vmem:[%s3 + $0x8] sm:$0xff]
    %v3746 = vld [vmem:[%s3 + $0x10] sm:$0xff]
    %v3747 = vld [vmem:[%s3 + $0x18] sm:$0xff]
    %v3748 = vld [vmem:[%s3 + $0x20] sm:$0xf]
    %v3749 = vld [vmem:[%s4] sm:$0x1]
    %v3751 = vlaneseq
    %v3752 = vshrl.u32 %v3751, 7
    %v3753 = vsub.s32 0, %v3752
    %v3754 = vrot.slane %v3749, %v3753
    %v3757 = vsel %vm1720, %v3712, 0
    %v3760 = vsel %vm1720, %v3713, 0
    %v3763 = vsel %vm1720, %v3714, 0
    %v3766 = vsel %vm1720, %v3715, 0
    %v3769 = vsel %vm1720, %v3716, 0
    %v3772 = vsel %vm1720, %v3717, 0
    %v3775 = vsel %vm1720, %v3718, 0
    %v3778 = vsel %vm1720, %v3719, 0
    %v3781 = vsel %vm1720, %v3720, 0
    %v3784 = vsel %vm1720, %v3721, 0
    %v3787 = vsel %vm1720, %v3722, 0
    %v3790 = vsel %vm1720, %v3723, 0
    %v3793 = vsel %vm1720, %v3724, 0
    %v3796 = vsel %vm1720, %v3725, 0
    %v3799 = vsel %vm1720, %v3726, 0
    %v3802 = vsel %vm1720, %v3727, 0
    %v3805 = vsel %vm1720, %v3728, 0
    %v3808 = vsel %vm1720, %v3729, 0
    %v3811 = vsel %vm1720, %v3730, 0
    %v3814 = vsel %vm1720, %v3731, 0
    %v3817 = vsel %vm1720, %v3732, 0
    %v3820 = vsel %vm1720, %v3733, 0
    %v3823 = vsel %vm1720, %v3734, 0
    %v3826 = vsel %vm1720, %v3735, 0
    %v3829 = vsel %vm1720, %v3736, 0
    %v3832 = vsel %vm1720, %v3737, 0
    %v3835 = vsel %vm1720, %v3738, 0
    %v3838 = vsel %vm1720, %v3739, 0
    %v3841 = vsel %vm1720, %v3740, 0
    %v3844 = vsel %vm1720, %v3741, 0
    %v3847 = vsel %vm1720, %v3742, 0
    %v3850 = vsel %vm1720, %v3743, 0
    %v3853 = vsel %vm1817, %v3748, 0
    %3855 = vmatprep.subr.mxu0 0.0
    %3856 = vmatpush1.msra.mxu0 %v3744
    %3857 = vmatprep.subr.mxu0 0.0
    %3858 = vmatpush1.msra.mxu0 %v3745
    %3859 = vmatprep.subr.mxu0 0.0
    %3860 = vmatpush1.msra.mxu0 %v3746
    %3861 = vmatprep.subr.mxu0 0.0
    %3862 = vmatpush1.msra.mxu0 %v3747
    %3863 = vmatprep.subr.mxu0 0.0
    %3864 = vmatpush1.msra.mxu0 %v3853
    %3865 = vmatprep.subr.mxu0 0.0
    %3866 = vmatpush1.msra.mxu0 0.0
    %3867 = vmatprep.subr.mxu0 0.0
    %3868 = vmatpush1.msra.mxu0 0.0
    %3869 = vmatprep.subr.mxu0 0.0
    %3870 = vmatpush1.msra.mxu0 0.0
    %3871 = vmatprep.subr.mxu0 0.0
    %3872 = vmatpush1.msra.mxu0 0.0
    %3873 = vmatprep.subr.mxu0 0.0
    %3874 = vmatpush1.msra.mxu0 0.0
    %3875 = vmatprep.subr.mxu0 0.0
    %3876 = vmatpush1.msra.mxu0 0.0
    %3877 = vmatprep.subr.mxu0 0.0
    %3878 = vmatpush1.msra.mxu0 0.0
    %3879 = vmatprep.subr.mxu0 0.0
    %3880 = vmatpush1.msra.mxu0 0.0
    %3881 = vmatprep.subr.mxu0 0.0
    %3882 = vmatpush1.msra.mxu0 0.0
    %3883 = vmatprep.subr.mxu0 0.0
    %3884 = vmatpush1.msra.mxu0 0.0
    %3885 = vmatprep.subr.mxu0 0.0
    %3886 = vmatpush1.msra.mxu0 0.0
    %3887 = vmatprep.subr.mxu0 0.0
    %3888 = vmatpush1.msra.mxu0 0.0
    %3889 = vmatprep.subr.mxu0 0.0
    %3890 = vmatpush1.msra.mxu0 0.0
    %3891 = vmatprep.subr.mxu0 0.0
    %3892 = vmatpush1.msra.mxu0 0.0
    %3893 = vmatprep.subr.mxu0 0.0
    %3894 = vmatpush1.msra.mxu0 0.0
    %3895 = vmatprep.subr.mxu0 0.0
    %3896 = vmatpush1.msra.mxu0 0.0
    %3897 = vmatprep.subr.mxu0 0.0
    %3898 = vmatpush1.msra.mxu0 0.0
    %3899 = vmatprep.subr.mxu0 0.0
    %3900 = vmatpush1.msra.mxu0 0.0
    %3901 = vmatprep.subr.mxu0 0.0
    %3902 = vmatpush1.msra.mxu0 0.0
    %3903 = vmatprep.subr.mxu0 0.0
    %3904 = vmatpush1.msra.mxu0 0.0
    %3905 = vmatprep.subr.mxu0 0.0
    %3906 = vmatpush1.msra.mxu0 0.0
    %3907 = vmatprep.subr.mxu0 0.0
    %3908 = vmatpush1.msra.mxu0 0.0
    %3909 = vmatprep.subr.mxu0 0.0
    %3910 = vmatpush1.msra.mxu0 0.0
    %3911 = vmatprep.subr.mxu0 0.0
    %3912 = vmatpush1.msra.mxu0 0.0
    %3913 = vmatprep.subr.mxu0 0.0
    %3914 = vmatpush1.msra.mxu0 0.0
    %3915 = vmatprep.subr.mxu0 0.0
    %3916 = vmatpush1.msra.mxu0 0.0
    %3917 = vmatprep.subr.mxu0 0.0
    %3918 = vmatpush1.msra.mxu0 0.0
    %3919 = vmatprep.mubr.f32.mxu0 0.0
    %3920 = vmatmul.mubr.f32.gmra.mrb[0].mxu0 %v3757
    %v3921 = vpop.f32.mrb[0].mxu0
    %v3922 = vadd.f32 %v3754, %v3921
    %v3923 = vpop.f32.mrb[0].mxu0
    %3924 = vmatprep.mubr.f32.mxu0 0.0
    %3925 = vmatmul.mubr.f32.gmra.mrb[0].mxu0 %v3760
    %v3926 = vpop.f32.mrb[0].mxu0
    %v3927 = vadd.f32 %v3754, %v3926
    %v3928 = vpop.f32.mrb[0].mxu0
    %3929 = vmatprep.mubr.f32.mxu0 0.0
    %3930 = vmatmul.mubr.f32.gmra.mrb[0].mxu0 %v3763
    %v3931 = vpop.f32.mrb[0].mxu0
    %v3932 = vadd.f32 %v3754, %v3931
    %v3933 = vpop.f32.mrb[0].mxu0
    %3934 = vmatprep.mubr.f32.mxu0 0.0
    %3935 = vmatmul.mubr.f32.gmra.mrb[0].mxu0 %v3766
    %v3936 = vpop.f32.mrb[0].mxu0
    %v3937 = vadd.f32 %v3754, %v3936
    %v3938 = vpop.f32.mrb[0].mxu0
    %3939 = vmatprep.mubr.f32.mxu0 0.0
    %3940 = vmatmul.mubr.f32.gmra.mrb[0].mxu0 %v3769
    %v3941 = vpop.f32.mrb[0].mxu0
    %v3942 = vadd.f32 %v3754, %v3941
    %v3943 = vpop.f32.mrb[0].mxu0
    %3944 = vmatprep.mubr.f32.mxu0 0.0
    %3945 = vmatmul.mubr.f32.gmra.mrb[0].mxu0 %v3772
    %v3946 = vpop.f32.mrb[0].mxu0
    %v3947 = vadd.f32 %v3754, %v3946
    %v3948 = vpop.f32.mrb[0].mxu0
    %3949 = vmatprep.mubr.f32.mxu0 0.0
    %3950 = vmatmul.mubr.f32.gmra.mrb[0].mxu0 %v3775
    %v3951 = vpop.f32.mrb[0].mxu0
    %v3952 = vadd.f32 %v3754, %v3951
    %v3953 = vpop.f32.mrb[0].mxu0
    %3954 = vmatprep.mubr.f32.mxu0 0.0
    %3955 = vmatmul.mubr.f32.gmra.mrb[0].mxu0 %v3778
    %v3956 = vpop.f32.mrb[0].mxu0
    %v3957 = vadd.f32 %v3754, %v3956
    %v3958 = vpop.f32.mrb[0].mxu0
    %3959 = vmatprep.mubr.f32.mxu0 0.0
    %3960 = vmatmul.mubr.f32.gmra.mrb[0].mxu0 %v3781
    %v3961 = vpop.f32.mrb[0].mxu0
    %v3962 = vadd.f32 %v3754, %v3961
    %v3963 = vpop.f32.mrb[0].mxu0
    %3964 = vmatprep.mubr.f32.mxu0 0.0
    %3965 = vmatmul.mubr.f32.gmra.mrb[0].mxu0 %v3784
    %v3966 = vpop.f32.mrb[0].mxu0
    %v3967 = vadd.f32 %v3754, %v3966
    %v3968 = vpop.f32.mrb[0].mxu0
    %3969 = vmatprep.mubr.f32.mxu0 0.0
    %3970 = vmatmul.mubr.f32.gmra.mrb[0].mxu0 %v3787
    %v3971 = vpop.f32.mrb[0].mxu0
    %v3972 = vadd.f32 %v3754, %v3971
    %v3973 = vpop.f32.mrb[0].mxu0
    %3974 = vmatprep.mubr.f32.mxu0 0.0
    %3975 = vmatmul.mubr.f32.gmra.mrb[0].mxu0 %v3790
    %v3976 = vpop.f32.mrb[0].mxu0
    %v3977 = vadd.f32 %v3754, %v3976
    %v3978 = vpop.f32.mrb[0].mxu0
    %3979 = vmatprep.mubr.f32.mxu0 0.0
    %3980 = vmatmul.mubr.f32.gmra.mrb[0].mxu0 %v3793
    %v3981 = vpop.f32.mrb[0].mxu0
    %v3982 = vadd.f32 %v3754, %v3981
    %v3983 = vpop.f32.mrb[0].mxu0
    %3984 = vmatprep.mubr.f32.mxu0 0.0
    %3985 = vmatmul.mubr.f32.gmra.mrb[0].mxu0 %v3796
    %v3986 = vpop.f32.mrb[0].mxu0
    %v3987 = vadd.f32 %v3754, %v3986
    %v3988 = vpop.f32.mrb[0].mxu0
    %3989 = vmatprep.mubr.f32.mxu0 0.0
    %3990 = vmatmul.mubr.f32.gmra.mrb[0].mxu0 %v3799
    %v3991 = vpop.f32.mrb[0].mxu0
    %v3992 = vadd.f32 %v3754, %v3991
    %v3993 = vpop.f32.mrb[0].mxu0
    %3994 = vmatprep.mubr.f32.mxu0 0.0
    %3995 = vmatmul.mubr.f32.gmra.mrb[0].mxu0 %v3802
    %v3996 = vpop.f32.mrb[0].mxu0
    %v3997 = vadd.f32 %v3754, %v3996
    %v3998 = vpop.f32.mrb[0].mxu0
    %3999 = vmatprep.mubr.f32.mxu0 0.0
    %4000 = vmatmul.mubr.f32.gmra.mrb[0].mxu0 %v3805
    %v4001 = vpop.f32.mrb[0].mxu0
    %v4002 = vadd.f32 %v3754, %v4001
    %v4003 = vpop.f32.mrb[0].mxu0
    %4004 = vmatprep.mubr.f32.mxu0 0.0
    %4005 = vmatmul.mubr.f32.gmra.mrb[0].mxu0 %v3808
    %v4006 = vpop.f32.mrb[0].mxu0
    %v4007 = vadd.f32 %v3754, %v4006
    %v4008 = vpop.f32.mrb[0].mxu0
    %4009 = vmatprep.mubr.f32.mxu0 0.0
    %4010 = vmatmul.mubr.f32.gmra.mrb[0].mxu0 %v3811
    %v4011 = vpop.f32.mrb[0].mxu0
    %v4012 = vadd.f32 %v3754, %v4011
    %v4013 = vpop.f32.mrb[0].mxu0
    %4014 = vmatprep.mubr.f32.mxu0 0.0
    %4015 = vmatmul.mubr.f32.gmra.mrb[0].mxu0 %v3814
    %v4016 = vpop.f32.mrb[0].mxu0
    %v4017 = vadd.f32 %v3754, %v4016
    %v4018 = vpop.f32.mrb[0].mxu0
    %4019 = vmatprep.mubr.f32.mxu0 0.0
    %4020 = vmatmul.mubr.f32.gmra.mrb[0].mxu0 %v3817
    %v4021 = vpop.f32.mrb[0].mxu0
    %v4022 = vadd.f32 %v3754, %v4021
    %v4023 = vpop.f32.mrb[0].mxu0
    %4024 = vmatprep.mubr.f32.mxu0 0.0
    %4025 = vmatmul.mubr.f32.gmra.mrb[0].mxu0 %v3820
    %v4026 = vpop.f32.mrb[0].mxu0
    %v4027 = vadd.f32 %v3754, %v4026
    %v4028 = vpop.f32.mrb[0].mxu0
    %4029 = vmatprep.mubr.f32.mxu0 0.0
    %4030 = vmatmul.mubr.f32.gmra.mrb[0].mxu0 %v3823
    %v4031 = vpop.f32.mrb[0].mxu0
    %v4032 = vadd.f32 %v3754, %v4031
    %v4033 = vpop.f32.mrb[0].mxu0
    %4034 = vmatprep.mubr.f32.mxu0 0.0
    %4035 = vmatmul.mubr.f32.gmra.mrb[0].mxu0 %v3826
    %v4036 = vpop.f32.mrb[0].mxu0
    %v4037 = vadd.f32 %v3754, %v4036
    %v4038 = vpop.f32.mrb[0].mxu0
    %4039 = vmatprep.mubr.f32.mxu0 0.0
    %4040 = vmatmul.mubr.f32.gmra.mrb[0].mxu0 %v3829
    %v4041 = vpop.f32.mrb[0].mxu0
    %v4042 = vadd.f32 %v3754, %v4041
    %v4043 = vpop.f32.mrb[0].mxu0
    %4044 = vmatprep.mubr.f32.mxu0 0.0
    %4045 = vmatmul.mubr.f32.gmra.mrb[0].mxu0 %v3832
    %v4046 = vpop.f32.mrb[0].mxu0
    %v4047 = vadd.f32 %v3754, %v4046
    %v4048 = vpop.f32.mrb[0].mxu0
    %4049 = vmatprep.mubr.f32.mxu0 0.0
    %4050 = vmatmul.mubr.f32.gmra.mrb[0].mxu0 %v3835
    %v4051 = vpop.f32.mrb[0].mxu0
    %v4052 = vadd.f32 %v3754, %v4051
    %v4053 = vpop.f32.mrb[0].mxu0
    %4054 = vmatprep.mubr.f32.mxu0 0.0
    %4055 = vmatmul.mubr.f32.gmra.mrb[0].mxu0 %v3838
    %v4056 = vpop.f32.mrb[0].mxu0
    %v4057 = vadd.f32 %v3754, %v4056
    %v4058 = vpop.f32.mrb[0].mxu0
    %4059 = vmatprep.mubr.f32.mxu0 0.0
    %4060 = vmatmul.mubr.f32.gmra.mrb[0].mxu0 %v3841
    %v4061 = vpop.f32.mrb[0].mxu0
    %v4062 = vadd.f32 %v3754, %v4061
    %v4063 = vpop.f32.mrb[0].mxu0
    %4064 = vmatprep.mubr.f32.mxu0 0.0
    %4065 = vmatmul.mubr.f32.gmra.mrb[0].mxu0 %v3844
    %v4066 = vpop.f32.mrb[0].mxu0
    %v4067 = vadd.f32 %v3754, %v4066
    %v4068 = vpop.f32.mrb[0].mxu0
    %4069 = vmatprep.mubr.f32.mxu0 0.0
    %4070 = vmatmul.mubr.f32.gmra.mrb[0].mxu0 %v3847
    %v4071 = vpop.f32.mrb[0].mxu0
    %v4072 = vadd.f32 %v3754, %v4071
    %v4073 = vpop.f32.mrb[0].mxu0
    %4074 = vmatprep.mubr.f32.mxu0 0.0
    %4075 = vmatmul.mubr.f32.gmra.mrb[0].mxu0 %v3850
    %v4076 = vpop.f32.mrb[0].mxu0
    %v4077 = vadd.f32 %v3754, %v4076
    %v4078 = vpop.f32.mrb[0].mxu0
    %4079 = vdwg.mxu0
    %v4080 = vld [vmem:[%s227 + $0x1] sm:$0xff]
    %v4081 = vld [vmem:[%s227 + $0x9] sm:$0xff]
    %v4082 = vld [vmem:[%s227 + $0x19] sm:$0xff]
    %v4083 = vld [vmem:[%s227 + $0x21] sm:$0xff]
    %v4084 = vld [vmem:[%s227 + $0x31] sm:$0xff]
    %v4085 = vld [vmem:[%s227 + $0x39] sm:$0xff]
    %v4086 = vld [vmem:[%s227 + $0x49] sm:$0xff]
    %v4087 = vld [vmem:[%s227 + $0x51] sm:$0xff]
    %v4088 = vld [vmem:[%s227 + $0x61] sm:$0xff]
    %v4089 = vld [vmem:[%s227 + $0x69] sm:$0xff]
    %v4090 = vld [vmem:[%s227 + $0x79] sm:$0xff]
    %v4091 = vld [vmem:[%s227 + $0x81] sm:$0xff]
    %v4092 = vld [vmem:[%s227 + $0x91] sm:$0xff]
    %v4093 = vld [vmem:[%s227 + $0x99] sm:$0xff]
    %v4094 = vld [vmem:[%s227 + $0xa9] sm:$0xff]
    %v4095 = vld [vmem:[%s227 + $0xb1] sm:$0xff]
    %v4096 = vld [vmem:[%s227 + $0xc1] sm:$0xff]
    %v4097 = vld [vmem:[%s227 + $0xc9] sm:$0xff]
    %v4098 = vld [vmem:[%s227 + $0xd9] sm:$0xff]
    %v4099 = vld [vmem:[%s227 + $0xe1] sm:$0xff]
    %v4100 = vld [vmem:[%s227 + $0xf1] sm:$0xff]
    %v4101 = vld [vmem:[%s227 + $0xf9] sm:$0xff]
    %v4102 = vld [vmem:[%s227 + $0x109] sm:$0xff]
    %v4103 = vld [vmem:[%s227 + $0x111] sm:$0xff]
    %v4104 = vld [vmem:[%s227 + $0x121] sm:$0xff]
    %v4105 = vld [vmem:[%s227 + $0x129] sm:$0xff]
    %v4106 = vld [vmem:[%s227 + $0x139] sm:$0xff]
    %v4107 = vld [vmem:[%s227 + $0x141] sm:$0xff]
    %v4108 = vld [vmem:[%s227 + $0x151] sm:$0xff]
    %v4109 = vld [vmem:[%s227 + $0x159] sm:$0xff]
    %v4110 = vld [vmem:[%s227 + $0x169] sm:$0xff]
    %v4111 = vld [vmem:[%s227 + $0x171] sm:$0xff]
    %v4112 = vadd.f32 %v3922, %v4080
    %v4113 = vadd.f32 %v3927, %v4081
    %v4114 = vadd.f32 %v3932, %v4082
    %v4115 = vadd.f32 %v3937, %v4083
    %v4116 = vadd.f32 %v3942, %v4084
    %v4117 = vadd.f32 %v3947, %v4085
    %v4118 = vadd.f32 %v3952, %v4086
    %v4119 = vadd.f32 %v3957, %v4087
    %v4120 = vadd.f32 %v3962, %v4088
    %v4121 = vadd.f32 %v3967, %v4089
    %v4122 = vadd.f32 %v3972, %v4090
    %v4123 = vadd.f32 %v3977, %v4091
    %v4124 = vadd.f32 %v3982, %v4092
    %v4125 = vadd.f32 %v3987, %v4093
    %v4126 = vadd.f32 %v3992, %v4094
    %v4127 = vadd.f32 %v3997, %v4095
    %v4128 = vadd.f32 %v4002, %v4096
    %v4129 = vadd.f32 %v4007, %v4097
    %v4130 = vadd.f32 %v4012, %v4098
    %v4131 = vadd.f32 %v4017, %v4099
    %v4132 = vadd.f32 %v4022, %v4100
    %v4133 = vadd.f32 %v4027, %v4101
    %v4134 = vadd.f32 %v4032, %v4102
    %v4135 = vadd.f32 %v4037, %v4103
    %v4136 = vadd.f32 %v4042, %v4104
    %v4137 = vadd.f32 %v4047, %v4105
    %v4138 = vadd.f32 %v4052, %v4106
    %v4139 = vadd.f32 %v4057, %v4107
    %v4140 = vadd.f32 %v4062, %v4108
    %v4141 = vadd.f32 %v4067, %v4109
    %v4142 = vadd.f32 %v4072, %v4110
    %v4143 = vadd.f32 %v4077, %v4111
    %vm4144 = vcmp.gt.f32.partialorder %v4112, 0.0
    %vm4145 = vcmp.gt.f32.partialorder %v4113, 0.0
    %vm4146 = vcmp.gt.f32.partialorder %v4114, 0.0
    %vm4147 = vcmp.gt.f32.partialorder %v4115, 0.0
    %vm4148 = vcmp.gt.f32.partialorder %v4116, 0.0
    %vm4149 = vcmp.gt.f32.partialorder %v4117, 0.0
    %vm4150 = vcmp.gt.f32.partialorder %v4118, 0.0
    %vm4151 = vcmp.gt.f32.partialorder %v4119, 0.0
    %vm4152 = vcmp.gt.f32.partialorder %v4120, 0.0
    %vm4153 = vcmp.gt.f32.partialorder %v4121, 0.0
    %vm4154 = vcmp.gt.f32.partialorder %v4122, 0.0
    %vm4155 = vcmp.gt.f32.partialorder %v4123, 0.0
    %vm4156 = vcmp.gt.f32.partialorder %v4124, 0.0
    %vm4157 = vcmp.gt.f32.partialorder %v4125, 0.0
    %vm4158 = vcmp.gt.f32.partialorder %v4126, 0.0
    %vm4159 = vcmp.gt.f32.partialorder %v4127, 0.0
    %vm4160 = vcmp.gt.f32.partialorder %v4128, 0.0
    %vm4161 = vcmp.gt.f32.partialorder %v4129, 0.0
    %vm4162 = vcmp.gt.f32.partialorder %v4130, 0.0
    %vm4163 = vcmp.gt.f32.partialorder %v4131, 0.0
    %vm4164 = vcmp.gt.f32.partialorder %v4132, 0.0
    %vm4165 = vcmp.gt.f32.partialorder %v4133, 0.0
    %vm4166 = vcmp.gt.f32.partialorder %v4134, 0.0
    %vm4167 = vcmp.gt.f32.partialorder %v4135, 0.0
    %vm4168 = vcmp.gt.f32.partialorder %v4136, 0.0
    %vm4169 = vcmp.gt.f32.partialorder %v4137, 0.0
    %vm4170 = vcmp.gt.f32.partialorder %v4138, 0.0
    %vm4171 = vcmp.gt.f32.partialorder %v4139, 0.0
    %vm4172 = vcmp.gt.f32.partialorder %v4140, 0.0
    %vm4173 = vcmp.gt.f32.partialorder %v4141, 0.0
    %vm4174 = vcmp.gt.f32.partialorder %v4142, 0.0
    %vm4175 = vcmp.gt.f32.partialorder %v4143, 0.0
    %v4176 = vmul.f32 %v4112, 0.2
    %v4177 = vmul.f32 %v4113, 0.2
    %v4178 = vmul.f32 %v4114, 0.2
    %v4179 = vmul.f32 %v4115, 0.2
    %v4180 = vmul.f32 %v4116, 0.2
    %v4181 = vmul.f32 %v4117, 0.2
    %v4182 = vmul.f32 %v4118, 0.2
    %v4183 = vmul.f32 %v4119, 0.2
    %v4184 = vmul.f32 %v4120, 0.2
    %v4185 = vmul.f32 %v4121, 0.2
    %v4186 = vmul.f32 %v4122, 0.2
    %v4187 = vmul.f32 %v4123, 0.2
    %v4188 = vmul.f32 %v4124, 0.2
    %v4189 = vmul.f32 %v4125, 0.2
    %v4190 = vmul.f32 %v4126, 0.2
    %v4191 = vmul.f32 %v4127, 0.2
    %v4192 = vmul.f32 %v4128, 0.2
    %v4193 = vmul.f32 %v4129, 0.2
    %v4194 = vmul.f32 %v4130, 0.2
    %v4195 = vmul.f32 %v4131, 0.2
    %v4196 = vmul.f32 %v4132, 0.2
    %v4197 = vmul.f32 %v4133, 0.2
    %v4198 = vmul.f32 %v4134, 0.2
    %v4199 = vmul.f32 %v4135, 0.2
    %v4200 = vmul.f32 %v4136, 0.2
    %v4201 = vmul.f32 %v4137, 0.2
    %v4202 = vmul.f32 %v4138, 0.2
    %v4203 = vmul.f32 %v4139, 0.2
    %v4204 = vmul.f32 %v4140, 0.2
    %v4205 = vmul.f32 %v4141, 0.2
    %v4206 = vmul.f32 %v4142, 0.2
    %v4207 = vmul.f32 %v4143, 0.2
    %v4208 = vsel %vm4144, %v4112, %v4176
    %v4209 = vsel %vm4145, %v4113, %v4177
    %v4210 = vsel %vm4146, %v4114, %v4178
    %v4211 = vsel %vm4147, %v4115, %v4179
    %v4212 = vsel %vm4148, %v4116, %v4180
    %v4213 = vsel %vm4149, %v4117, %v4181
    %v4214 = vsel %vm4150, %v4118, %v4182
    %v4215 = vsel %vm4151, %v4119, %v4183
    %v4216 = vsel %vm4152, %v4120, %v4184
    %v4217 = vsel %vm4153, %v4121, %v4185
    %v4218 = vsel %vm4154, %v4122, %v4186
    %v4219 = vsel %vm4155, %v4123, %v4187
    %v4220 = vsel %vm4156, %v4124, %v4188
    %v4221 = vsel %vm4157, %v4125, %v4189
    %v4222 = vsel %vm4158, %v4126, %v4190
    %v4223 = vsel %vm4159, %v4127, %v4191
    %v4224 = vsel %vm4160, %v4128, %v4192
    %v4225 = vsel %vm4161, %v4129, %v4193
    %v4226 = vsel %vm4162, %v4130, %v4194
    %v4227 = vsel %vm4163, %v4131, %v4195
    %v4228 = vsel %vm4164, %v4132, %v4196
    %v4229 = vsel %vm4165, %v4133, %v4197
    %v4230 = vsel %vm4166, %v4134, %v4198
    %v4231 = vsel %vm4167, %v4135, %v4199
    %v4232 = vsel %vm4168, %v4136, %v4200
    %v4233 = vsel %vm4169, %v4137, %v4201
    %v4234 = vsel %vm4170, %v4138, %v4202
    %v4235 = vsel %vm4171, %v4139, %v4203
    %v4236 = vsel %vm4172, %v4140, %v4204
    %v4237 = vsel %vm4173, %v4141, %v4205
    %v4238 = vsel %vm4174, %v4142, %v4206
    %v4239 = vsel %vm4175, %v4143, %v4207
    %4240 = vxpose.xlu0.b32.start [1/16] %v4208, 128
    %4241 = vxpose.xlu0.b32.cont [2/16] %v4209, 128
    %4242 = vxpose.xlu0.b32.cont [3/16] %v4210, 128
    %4243 = vxpose.xlu0.b32.cont [4/16] %v4211, 128
    %4244 = vxpose.xlu0.b32.cont [5/16] %v4212, 128
    %4245 = vxpose.xlu0.b32.cont [6/16] %v4213, 128
    %4246 = vxpose.xlu0.b32.cont [7/16] %v4214, 128
    %4247 = vxpose.xlu0.b32.cont [8/16] %v4215, 128
    %4248 = vxpose.xlu0.b32.cont [9/16] %v4216, 128
    %4249 = vxpose.xlu0.b32.cont [10/16] %v4217, 128
    %4250 = vxpose.xlu0.b32.cont [11/16] %v4218, 128
    %4251 = vxpose.xlu0.b32.cont [12/16] %v4219, 128
    %4252 = vxpose.xlu0.b32.cont [13/16] %v4220, 128
    %4253 = vxpose.xlu0.b32.cont [14/16] %v4221, 128
    %4254 = vxpose.xlu0.b32.cont [15/16] %v4222, 128
    %4255 = vxpose.xlu0.b32.end [16/16] %v4223, 128
    %v4256 = vpop.trf.xlu0
    %v4257 = vpop.trf.xlu0
    %v4258 = vpop.trf.xlu0
    %v4259 = vpop.trf.xlu0
    %v4260 = vpop.trf.xlu0
    %v4261 = vpop.trf.xlu0
    %v4262 = vpop.trf.xlu0
    %v4263 = vpop.trf.xlu0
    %v4264 = vpop.trf.xlu0
    %v4265 = vpop.trf.xlu0
    %v4266 = vpop.trf.xlu0
    %v4267 = vpop.trf.xlu0
    %v4268 = vpop.trf.xlu0
    %v4269 = vpop.trf.xlu0
    %v4270 = vpop.trf.xlu0
    %v4271 = vpop.trf.xlu0
    %4272 = vxpose.xlu0.b32.start [1/16] %v4224, 128
    %4273 = vxpose.xlu0.b32.cont [2/16] %v4225, 128
    %4274 = vxpose.xlu0.b32.cont [3/16] %v4226, 128
    %4275 = vxpose.xlu0.b32.cont [4/16] %v4227, 128
    %4276 = vxpose.xlu0.b32.cont [5/16] %v4228, 128
    %4277 = vxpose.xlu0.b32.cont [6/16] %v4229, 128
    %4278 = vxpose.xlu0.b32.cont [7/16] %v4230, 128
    %4279 = vxpose.xlu0.b32.cont [8/16] %v4231, 128
    %4280 = vxpose.xlu0.b32.cont [9/16] %v4232, 128
    %4281 = vxpose.xlu0.b32.cont [10/16] %v4233, 128
    %4282 = vxpose.xlu0.b32.cont [11/16] %v4234, 128
    %4283 = vxpose.xlu0.b32.cont [12/16] %v4235, 128
    %4284 = vxpose.xlu0.b32.cont [13/16] %v4236, 128
    %4285 = vxpose.xlu0.b32.cont [14/16] %v4237, 128
    %4286 = vxpose.xlu0.b32.cont [15/16] %v4238, 128
    %4287 = vxpose.xlu0.b32.end [16/16] %v4239, 128
    %v4288 = vpop.trf.xlu0
    %v4289 = vpop.trf.xlu0
    %v4290 = vpop.trf.xlu0
    %v4291 = vpop.trf.xlu0
    %v4292 = vpop.trf.xlu0
    %v4293 = vpop.trf.xlu0
    %v4294 = vpop.trf.xlu0
    %v4295 = vpop.trf.xlu0
    %v4296 = vpop.trf.xlu0
    %v4297 = vpop.trf.xlu0
    %v4298 = vpop.trf.xlu0
    %v4299 = vpop.trf.xlu0
    %v4300 = vpop.trf.xlu0
    %v4301 = vpop.trf.xlu0
    %v4302 = vpop.trf.xlu0
    %v4303 = vpop.trf.xlu0
    %v4306 = vcombine.low %v4256, %v4288
    %4308 = vst [vmem:[#allocation3] sm:$0xff] %v4306
    %s4309 = scalar_lea.vmem %s0, 432
    %v4310 = vld [vmem:[%s4309] sm:$0xff]
    %v4311 = vld [vmem:[%s4309 + $0x8] sm:$0xff]
    %v4312 = vld [vmem:[%s4309 + $0x18] sm:$0xff]
    %v4313 = vld [vmem:[%s4309 + $0x20] sm:$0xff]
    %v4314 = vld [vmem:[%s4309 + $0x30] sm:$0xff]
    %v4315 = vld [vmem:[%s4309 + $0x38] sm:$0xff]
    %v4316 = vld [vmem:[%s4309 + $0x48] sm:$0xff]
    %v4317 = vld [vmem:[%s4309 + $0x50] sm:$0xff]
    %v4318 = vld [vmem:[%s4309 + $0x60] sm:$0xff]
    %v4319 = vld [vmem:[%s4309 + $0x68] sm:$0xff]
    %v4320 = vld [vmem:[%s4309 + $0x78] sm:$0xff]
    %v4321 = vld [vmem:[%s4309 + $0x80] sm:$0xff]
    %v4322 = vld [vmem:[%s4309 + $0x90] sm:$0xff]
    %v4323 = vld [vmem:[%s4309 + $0x98] sm:$0xff]
    %v4324 = vld [vmem:[%s4309 + $0xa8] sm:$0xff]
    %v4325 = vld [vmem:[%s4309 + $0xb0] sm:$0xff]
    %v4326 = vld [vmem:[%s4309 + $0xc0] sm:$0xff]
    %v4327 = vld [vmem:[%s4309 + $0xc8] sm:$0xff]
    %v4328 = vld [vmem:[%s4309 + $0xd8] sm:$0xff]
    %v4329 = vld [vmem:[%s4309 + $0xe0] sm:$0xff]
    %v4330 = vld [vmem:[%s4309 + $0xf0] sm:$0xff]
    %v4331 = vld [vmem:[%s4309 + $0xf8] sm:$0xff]
    %v4332 = vld [vmem:[%s4309 + $0x108] sm:$0xff]
    %v4333 = vld [vmem:[%s4309 + $0x110] sm:$0xff]
    %v4334 = vld [vmem:[%s4309 + $0x120] sm:$0xff]
    %v4335 = vld [vmem:[%s4309 + $0x128] sm:$0xff]
    %v4336 = vld [vmem:[%s4309 + $0x138] sm:$0xff]
    %v4337 = vld [vmem:[%s4309 + $0x140] sm:$0xff]
    %v4338 = vld [vmem:[%s4309 + $0x150] sm:$0xff]
    %v4339 = vld [vmem:[%s4309 + $0x158] sm:$0xff]
    %v4340 = vld [vmem:[%s4309 + $0x168] sm:$0xff]
    %v4341 = vld [vmem:[%s4309 + $0x170] sm:$0xff]
    %v4342 = vld [vmem:[%s4309 + $0x1] sm:$0xff]
    %v4343 = vld [vmem:[%s4309 + $0x9] sm:$0xff]
    %v4344 = vld [vmem:[%s4309 + $0x19] sm:$0xff]
    %v4345 = vld [vmem:[%s4309 + $0x21] sm:$0xff]
    %v4346 = vld [vmem:[%s4309 + $0x31] sm:$0xff]
    %v4347 = vld [vmem:[%s4309 + $0x39] sm:$0xff]
    %v4348 = vld [vmem:[%s4309 + $0x49] sm:$0xff]
    %v4349 = vld [vmem:[%s4309 + $0x51] sm:$0xff]
    %v4350 = vld [vmem:[%s4309 + $0x61] sm:$0xff]
    %v4351 = vld [vmem:[%s4309 + $0x69] sm:$0xff]
    %v4352 = vld [vmem:[%s4309 + $0x79] sm:$0xff]
    %v4353 = vld [vmem:[%s4309 + $0x81] sm:$0xff]
    %v4354 = vld [vmem:[%s4309 + $0x91] sm:$0xff]
    %v4355 = vld [vmem:[%s4309 + $0x99] sm:$0xff]
    %v4356 = vld [vmem:[%s4309 + $0xa9] sm:$0xff]
    %v4357 = vld [vmem:[%s4309 + $0xb1] sm:$0xff]
    %v4358 = vld [vmem:[%s4309 + $0xc1] sm:$0xff]
    %v4359 = vld [vmem:[%s4309 + $0xc9] sm:$0xff]
    %v4360 = vld [vmem:[%s4309 + $0xd9] sm:$0xff]
    %v4361 = vld [vmem:[%s4309 + $0xe1] sm:$0xff]
    %v4362 = vld [vmem:[%s4309 + $0xf1] sm:$0xff]
    %v4363 = vld [vmem:[%s4309 + $0xf9] sm:$0xff]
    %v4364 = vld [vmem:[%s4309 + $0x109] sm:$0xff]
    %v4365 = vld [vmem:[%s4309 + $0x111] sm:$0xff]
    %v4366 = vld [vmem:[%s4309 + $0x121] sm:$0xff]
    %v4367 = vld [vmem:[%s4309 + $0x129] sm:$0xff]
    %v4368 = vld [vmem:[%s4309 + $0x139] sm:$0xff]
    %v4369 = vld [vmem:[%s4309 + $0x141] sm:$0xff]
    %v4370 = vld [vmem:[%s4309 + $0x151] sm:$0xff]
    %v4371 = vld [vmem:[%s4309 + $0x159] sm:$0xff]
    %v4372 = vld [vmem:[%s4309 + $0x169] sm:$0xff]
    %v4373 = vld [vmem:[%s4309 + $0x171] sm:$0xff]
    %v4374 = vld [vmem:[%s4309 + $0x2] sm:$0xff]
    %v4375 = vld [vmem:[%s4309 + $0xa] sm:$0xff]
    %v4376 = vld [vmem:[%s4309 + $0x1a] sm:$0xff]
    %v4377 = vld [vmem:[%s4309 + $0x22] sm:$0xff]
    %v4378 = vld [vmem:[%s4309 + $0x32] sm:$0xff]
    %v4379 = vld [vmem:[%s4309 + $0x3a] sm:$0xff]
    %v4380 = vld [vmem:[%s4309 + $0x4a] sm:$0xff]
    %v4381 = vld [vmem:[%s4309 + $0x52] sm:$0xff]
    %v4382 = vld [vmem:[%s4309 + $0x62] sm:$0xff]
    %v4383 = vld [vmem:[%s4309 + $0x6a] sm:$0xff]
    %v4384 = vld [vmem:[%s4309 + $0x7a] sm:$0xff]
    %v4385 = vld [vmem:[%s4309 + $0x82] sm:$0xff]
    %v4386 = vld [vmem:[%s4309 + $0x92] sm:$0xff]
    %v4387 = vld [vmem:[%s4309 + $0x9a] sm:$0xff]
    %v4388 = vld [vmem:[%s4309 + $0xaa] sm:$0xff]
    %v4389 = vld [vmem:[%s4309 + $0xb2] sm:$0xff]
    %v4390 = vld [vmem:[%s4309 + $0xc2] sm:$0xff]
    %v4391 = vld [vmem:[%s4309 + $0xca] sm:$0xff]
    %v4392 = vld [vmem:[%s4309 + $0xda] sm:$0xff]
    %v4393 = vld [vmem:[%s4309 + $0xe2] sm:$0xff]
    %v4394 = vld [vmem:[%s4309 + $0xf2] sm:$0xff]
    %v4395 = vld [vmem:[%s4309 + $0xfa] sm:$0xff]
    %v4396 = vld [vmem:[%s4309 + $0x10a] sm:$0xff]
    %v4397 = vld [vmem:[%s4309 + $0x112] sm:$0xff]
    %v4398 = vld [vmem:[%s4309 + $0x122] sm:$0xff]
    %v4399 = vld [vmem:[%s4309 + $0x12a] sm:$0xff]
    %v4400 = vld [vmem:[%s4309 + $0x13a] sm:$0xff]
    %v4401 = vld [vmem:[%s4309 + $0x142] sm:$0xff]
    %v4402 = vld [vmem:[%s4309 + $0x152] sm:$0xff]
    %v4403 = vld [vmem:[%s4309 + $0x15a] sm:$0xff]
    %v4404 = vld [vmem:[%s4309 + $0x16a] sm:$0xff]
    %v4405 = vld [vmem:[%s4309 + $0x172] sm:$0xff]
    %s4406 = scalar_lea.vmem %s0, 456
    %v4407 = vld [vmem:[%s4406] sm:$0xff]
    %v4408 = vld [vmem:[%s4406 + $0x8] sm:$0xff]
    %v4409 = vld [vmem:[%s4406 + $0x18] sm:$0xff]
    %v4410 = vld [vmem:[%s4406 + $0x20] sm:$0xff]
    %v4411 = vld [vmem:[%s4406 + $0x30] sm:$0xff]
    %v4412 = vld [vmem:[%s4406 + $0x38] sm:$0xff]
    %v4413 = vld [vmem:[%s4406 + $0x48] sm:$0xff]
    %v4414 = vld [vmem:[%s4406 + $0x50] sm:$0xff]
    %v4415 = vld [vmem:[%s4406 + $0x60] sm:$0xff]
    %v4416 = vld [vmem:[%s4406 + $0x68] sm:$0xff]
    %v4417 = vld [vmem:[%s4406 + $0x78] sm:$0xff]
    %v4418 = vld [vmem:[%s4406 + $0x80] sm:$0xff]
    %v4419 = vld [vmem:[%s4406 + $0x90] sm:$0xff]
    %v4420 = vld [vmem:[%s4406 + $0x98] sm:$0xff]
    %v4421 = vld [vmem:[%s4406 + $0xa8] sm:$0xff]
    %v4422 = vld [vmem:[%s4406 + $0xb0] sm:$0xff]
    %v4423 = vld [vmem:[%s4406 + $0xc0] sm:$0xff]
    %v4424 = vld [vmem:[%s4406 + $0xc8] sm:$0xff]
    %v4425 = vld [vmem:[%s4406 + $0xd8] sm:$0xff]
    %v4426 = vld [vmem:[%s4406 + $0xe0] sm:$0xff]
    %v4427 = vld [vmem:[%s4406 + $0xf0] sm:$0xff]
    %v4428 = vld [vmem:[%s4406 + $0xf8] sm:$0xff]
    %v4429 = vld [vmem:[%s4406 + $0x108] sm:$0xff]
    %v4430 = vld [vmem:[%s4406 + $0x110] sm:$0xff]
    %v4431 = vld [vmem:[%s4406 + $0x120] sm:$0xff]
    %v4432 = vld [vmem:[%s4406 + $0x128] sm:$0xff]
    %v4433 = vld [vmem:[%s4406 + $0x138] sm:$0xff]
    %v4434 = vld [vmem:[%s4406 + $0x140] sm:$0xff]
    %v4435 = vld [vmem:[%s4406 + $0x150] sm:$0xff]
    %v4436 = vld [vmem:[%s4406 + $0x158] sm:$0xff]
    %v4437 = vld [vmem:[%s4406 + $0x168] sm:$0xff]
    %v4438 = vld [vmem:[%s4406 + $0x170] sm:$0xff]
    %v4439 = vld [vmem:[%s4406 + $0x1] sm:$0xff]
    %v4440 = vld [vmem:[%s4406 + $0x9] sm:$0xff]
    %v4441 = vld [vmem:[%s4406 + $0x19] sm:$0xff]
    %v4442 = vld [vmem:[%s4406 + $0x21] sm:$0xff]
    %v4443 = vld [vmem:[%s4406 + $0x31] sm:$0xff]
    %v4444 = vld [vmem:[%s4406 + $0x39] sm:$0xff]
    %v4445 = vld [vmem:[%s4406 + $0x49] sm:$0xff]
    %v4446 = vld [vmem:[%s4406 + $0x51] sm:$0xff]
    %v4447 = vld [vmem:[%s4406 + $0x61] sm:$0xff]
    %v4448 = vld [vmem:[%s4406 + $0x69] sm:$0xff]
    %v4449 = vld [vmem:[%s4406 + $0x79] sm:$0xff]
    %v4450 = vld [vmem:[%s4406 + $0x81] sm:$0xff]
    %v4451 = vld [vmem:[%s4406 + $0x91] sm:$0xff]
    %v4452 = vld [vmem:[%s4406 + $0x99] sm:$0xff]
    %v4453 = vld [vmem:[%s4406 + $0xa9] sm:$0xff]
    %v4454 = vld [vmem:[%s4406 + $0xb1] sm:$0xff]
    %v4455 = vld [vmem:[%s4406 + $0xc1] sm:$0xff]
    %v4456 = vld [vmem:[%s4406 + $0xc9] sm:$0xff]
    %v4457 = vld [vmem:[%s4406 + $0xd9] sm:$0xff]
    %v4458 = vld [vmem:[%s4406 + $0xe1] sm:$0xff]
    %v4459 = vld [vmem:[%s4406 + $0xf1] sm:$0xff]
    %v4460 = vld [vmem:[%s4406 + $0xf9] sm:$0xff]
    %v4461 = vld [vmem:[%s4406 + $0x109] sm:$0xff]
    %v4462 = vld [vmem:[%s4406 + $0x111] sm:$0xff]
    %v4463 = vld [vmem:[%s4406 + $0x121] sm:$0xff]
    %v4464 = vld [vmem:[%s4406 + $0x129] sm:$0xff]
    %v4465 = vld [vmem:[%s4406 + $0x139] sm:$0xff]
    %v4466 = vld [vmem:[%s4406 + $0x141] sm:$0xff]
    %v4467 = vld [vmem:[%s4406 + $0x151] sm:$0xff]
    %v4468 = vld [vmem:[%s4406 + $0x159] sm:$0xff]
    %v4469 = vld [vmem:[%s4406 + $0x169] sm:$0xff]
    %v4470 = vld [vmem:[%s4406 + $0x171] sm:$0xff]
    %v4471 = vld [vmem:[%s4406 + $0x2] sm:$0xff]
    %v4472 = vld [vmem:[%s4406 + $0xa] sm:$0xff]
    %v4473 = vld [vmem:[%s4406 + $0x1a] sm:$0xff]
    %v4474 = vld [vmem:[%s4406 + $0x22] sm:$0xff]
    %v4475 = vld [vmem:[%s4406 + $0x32] sm:$0xff]
    %v4476 = vld [vmem:[%s4406 + $0x3a] sm:$0xff]
    %v4477 = vld [vmem:[%s4406 + $0x4a] sm:$0xff]
    %v4478 = vld [vmem:[%s4406 + $0x52] sm:$0xff]
    %v4479 = vld [vmem:[%s4406 + $0x62] sm:$0xff]
    %v4480 = vld [vmem:[%s4406 + $0x6a] sm:$0xff]
    %v4481 = vld [vmem:[%s4406 + $0x7a] sm:$0xff]
    %v4482 = vld [vmem:[%s4406 + $0x82] sm:$0xff]
    %v4483 = vld [vmem:[%s4406 + $0x92] sm:$0xff]
    %v4484 = vld [vmem:[%s4406 + $0x9a] sm:$0xff]
    %v4485 = vld [vmem:[%s4406 + $0xaa] sm:$0xff]
    %v4486 = vld [vmem:[%s4406 + $0xb2] sm:$0xff]
    %v4487 = vld [vmem:[%s4406 + $0xc2] sm:$0xff]
    %v4488 = vld [vmem:[%s4406 + $0xca] sm:$0xff]
    %v4489 = vld [vmem:[%s4406 + $0xda] sm:$0xff]
    %v4490 = vld [vmem:[%s4406 + $0xe2] sm:$0xff]
    %v4491 = vld [vmem:[%s4406 + $0xf2] sm:$0xff]
    %v4492 = vld [vmem:[%s4406 + $0xfa] sm:$0xff]
    %v4493 = vld [vmem:[%s4406 + $0x10a] sm:$0xff]
    %v4494 = vld [vmem:[%s4406 + $0x112] sm:$0xff]
    %v4495 = vld [vmem:[%s4406 + $0x122] sm:$0xff]
    %v4496 = vld [vmem:[%s4406 + $0x12a] sm:$0xff]
    %v4497 = vld [vmem:[%s4406 + $0x13a] sm:$0xff]
    %v4498 = vld [vmem:[%s4406 + $0x142] sm:$0xff]
    %v4499 = vld [vmem:[%s4406 + $0x152] sm:$0xff]
    %v4500 = vld [vmem:[%s4406 + $0x15a] sm:$0xff]
    %v4501 = vld [vmem:[%s4406 + $0x16a] sm:$0xff]
    %v4502 = vld [vmem:[%s4406 + $0x172] sm:$0xff]
    %s4503 = scalar_lea.vmem %s0, 480
    %v4504 = vld [vmem:[%s4503] sm:$0xff]
    %v4505 = vld [vmem:[%s4503 + $0x8] sm:$0xff]
    %v4506 = vld [vmem:[%s4503 + $0x18] sm:$0xff]
    %v4507 = vld [vmem:[%s4503 + $0x20] sm:$0xff]
    %v4508 = vld [vmem:[%s4503 + $0x30] sm:$0xff]
    %v4509 = vld [vmem:[%s4503 + $0x38] sm:$0xff]
    %v4510 = vld [vmem:[%s4503 + $0x48] sm:$0xff]
    %v4511 = vld [vmem:[%s4503 + $0x50] sm:$0xff]
    %v4512 = vld [vmem:[%s4503 + $0x60] sm:$0xff]
    %v4513 = vld [vmem:[%s4503 + $0x68] sm:$0xff]
    %v4514 = vld [vmem:[%s4503 + $0x78] sm:$0xff]
    %v4515 = vld [vmem:[%s4503 + $0x80] sm:$0xff]
    %v4516 = vld [vmem:[%s4503 + $0x90] sm:$0xff]
    %v4517 = vld [vmem:[%s4503 + $0x98] sm:$0xff]
    %v4518 = vld [vmem:[%s4503 + $0xa8] sm:$0xff]
    %v4519 = vld [vmem:[%s4503 + $0xb0] sm:$0xff]
    %v4520 = vld [vmem:[%s4503 + $0xc0] sm:$0xff]
    %v4521 = vld [vmem:[%s4503 + $0xc8] sm:$0xff]
    %v4522 = vld [vmem:[%s4503 + $0xd8] sm:$0xff]
    %v4523 = vld [vmem:[%s4503 + $0xe0] sm:$0xff]
    %v4524 = vld [vmem:[%s4503 + $0xf0] sm:$0xff]
    %v4525 = vld [vmem:[%s4503 + $0xf8] sm:$0xff]
    %v4526 = vld [vmem:[%s4503 + $0x108] sm:$0xff]
    %v4527 = vld [vmem:[%s4503 + $0x110] sm:$0xff]
    %v4528 = vld [vmem:[%s4503 + $0x120] sm:$0xff]
    %v4529 = vld [vmem:[%s4503 + $0x128] sm:$0xff]
    %v4530 = vld [vmem:[%s4503 + $0x138] sm:$0xff]
    %v4531 = vld [vmem:[%s4503 + $0x140] sm:$0xff]
    %v4532 = vld [vmem:[%s4503 + $0x150] sm:$0xff]
    %v4533 = vld [vmem:[%s4503 + $0x158] sm:$0xff]
    %v4534 = vld [vmem:[%s4503 + $0x168] sm:$0xff]
    %v4535 = vld [vmem:[%s4503 + $0x170] sm:$0xff]
    %v4536 = vld [vmem:[%s4503 + $0x1] sm:$0xff]
    %v4537 = vld [vmem:[%s4503 + $0x9] sm:$0xff]
    %v4538 = vld [vmem:[%s4503 + $0x19] sm:$0xff]
    %v4539 = vld [vmem:[%s4503 + $0x21] sm:$0xff]
    %v4540 = vld [vmem:[%s4503 + $0x31] sm:$0xff]
    %v4541 = vld [vmem:[%s4503 + $0x39] sm:$0xff]
    %v4542 = vld [vmem:[%s4503 + $0x49] sm:$0xff]
    %v4543 = vld [vmem:[%s4503 + $0x51] sm:$0xff]
    %v4544 = vld [vmem:[%s4503 + $0x61] sm:$0xff]
    %v4545 = vld [vmem:[%s4503 + $0x69] sm:$0xff]
    %v4546 = vld [vmem:[%s4503 + $0x79] sm:$0xff]
    %v4547 = vld [vmem:[%s4503 + $0x81] sm:$0xff]
    %v4548 = vld [vmem:[%s4503 + $0x91] sm:$0xff]
    %v4549 = vld [vmem:[%s4503 + $0x99] sm:$0xff]
    %v4550 = vld [vmem:[%s4503 + $0xa9] sm:$0xff]
    %v4551 = vld [vmem:[%s4503 + $0xb1] sm:$0xff]
    %v4552 = vld [vmem:[%s4503 + $0xc1] sm:$0xff]
    %v4553 = vld [vmem:[%s4503 + $0xc9] sm:$0xff]
    %v4554 = vld [vmem:[%s4503 + $0xd9] sm:$0xff]
    %v4555 = vld [vmem:[%s4503 + $0xe1] sm:$0xff]
    %v4556 = vld [vmem:[%s4503 + $0xf1] sm:$0xff]
    %v4557 = vld [vmem:[%s4503 + $0xf9] sm:$0xff]
    %v4558 = vld [vmem:[%s4503 + $0x109] sm:$0xff]
    %v4559 = vld [vmem:[%s4503 + $0x111] sm:$0xff]
    %v4560 = vld [vmem:[%s4503 + $0x121] sm:$0xff]
    %v4561 = vld [vmem:[%s4503 + $0x129] sm:$0xff]
    %v4562 = vld [vmem:[%s4503 + $0x139] sm:$0xff]
    %v4563 = vld [vmem:[%s4503 + $0x141] sm:$0xff]
    %v4564 = vld [vmem:[%s4503 + $0x151] sm:$0xff]
    %v4565 = vld [vmem:[%s4503 + $0x159] sm:$0xff]
    %v4566 = vld [vmem:[%s4503 + $0x169] sm:$0xff]
    %v4567 = vld [vmem:[%s4503 + $0x171] sm:$0xff]
    %v4568 = vld [vmem:[%s4503 + $0x2] sm:$0xff]
    %v4569 = vld [vmem:[%s4503 + $0xa] sm:$0xff]
    %v4570 = vld [vmem:[%s4503 + $0x1a] sm:$0xff]
    %v4571 = vld [vmem:[%s4503 + $0x22] sm:$0xff]
    %v4572 = vld [vmem:[%s4503 + $0x32] sm:$0xff]
    %v4573 = vld [vmem:[%s4503 + $0x3a] sm:$0xff]
    %v4574 = vld [vmem:[%s4503 + $0x4a] sm:$0xff]
    %v4575 = vld [vmem:[%s4503 + $0x52] sm:$0xff]
    %v4576 = vld [vmem:[%s4503 + $0x62] sm:$0xff]
    %v4577 = vld [vmem:[%s4503 + $0x6a] sm:$0xff]
    %v4578 = vld [vmem:[%s4503 + $0x7a] sm:$0xff]
    %v4579 = vld [vmem:[%s4503 + $0x82] sm:$0xff]
    %v4580 = vld [vmem:[%s4503 + $0x92] sm:$0xff]
    %v4581 = vld [vmem:[%s4503 + $0x9a] sm:$0xff]
    %v4582 = vld [vmem:[%s4503 + $0xaa] sm:$0xff]
    %v4583 = vld [vmem:[%s4503 + $0xb2] sm:$0xff]
    %v4584 = vld [vmem:[%s4503 + $0xc2] sm:$0xff]
    %v4585 = vld [vmem:[%s4503 + $0xca] sm:$0xff]
    %v4586 = vld [vmem:[%s4503 + $0xda] sm:$0xff]
    %v4587 = vld [vmem:[%s4503 + $0xe2] sm:$0xff]
    %v4588 = vld [vmem:[%s4503 + $0xf2] sm:$0xff]
    %v4589 = vld [vmem:[%s4503 + $0xfa] sm:$0xff]
    %v4590 = vld [vmem:[%s4503 + $0x10a] sm:$0xff]
    %v4591 = vld [vmem:[%s4503 + $0x112] sm:$0xff]
    %v4592 = vld [vmem:[%s4503 + $0x122] sm:$0xff]
    %v4593 = vld [vmem:[%s4503 + $0x12a] sm:$0xff]
    %v4594 = vld [vmem:[%s4503 + $0x13a] sm:$0xff]
    %v4595 = vld [vmem:[%s4503 + $0x142] sm:$0xff]
    %v4596 = vld [vmem:[%s4503 + $0x152] sm:$0xff]
    %v4597 = vld [vmem:[%s4503 + $0x15a] sm:$0xff]
    %v4598 = vld [vmem:[%s4503 + $0x16a] sm:$0xff]
    %v4599 = vld [vmem:[%s4503 + $0x172] sm:$0xff]
    %4632 = vrot.lane.b32.xlu0 %v4342, 4
    %v4633 = vpop.permute.xlu0 %4632
    %4634 = vrot.lane.b32.xlu0 %v4343, 4
    %v4635 = vpop.permute.xlu0 %4634
    %4636 = vrot.lane.b32.xlu0 %v4344, 4
    %v4637 = vpop.permute.xlu0 %4636
    %4638 = vrot.lane.b32.xlu0 %v4345, 4
    %v4639 = vpop.permute.xlu0 %4638
    %4640 = vrot.lane.b32.xlu0 %v4346, 4
    %v4641 = vpop.permute.xlu0 %4640
    %4642 = vrot.lane.b32.xlu0 %v4347, 4
    %v4643 = vpop.permute.xlu0 %4642
    %4644 = vrot.lane.b32.xlu0 %v4348, 4
    %v4645 = vpop.permute.xlu0 %4644
    %4646 = vrot.lane.b32.xlu0 %v4349, 4
    %v4647 = vpop.permute.xlu0 %4646
    %4648 = vrot.lane.b32.xlu0 %v4350, 4
    %v4649 = vpop.permute.xlu0 %4648
    %4650 = vrot.lane.b32.xlu0 %v4351, 4
    %v4651 = vpop.permute.xlu0 %4650
    %4652 = vrot.lane.b32.xlu0 %v4352, 4
    %v4653 = vpop.permute.xlu0 %4652
    %4654 = vrot.lane.b32.xlu0 %v4353, 4
    %v4655 = vpop.permute.xlu0 %4654
    %4656 = vrot.lane.b32.xlu0 %v4354, 4
    %v4657 = vpop.permute.xlu0 %4656
    %4658 = vrot.lane.b32.xlu0 %v4355, 4
    %v4659 = vpop.permute.xlu0 %4658
    %4660 = vrot.lane.b32.xlu0 %v4356, 4
    %v4661 = vpop.permute.xlu0 %4660
    %4662 = vrot.lane.b32.xlu0 %v4357, 4
    %v4663 = vpop.permute.xlu0 %4662
    %4664 = vrot.lane.b32.xlu0 %v4358, 4
    %v4665 = vpop.permute.xlu0 %4664
    %4666 = vrot.lane.b32.xlu0 %v4359, 4
    %v4667 = vpop.permute.xlu0 %4666
    %4668 = vrot.lane.b32.xlu0 %v4360, 4
    %v4669 = vpop.permute.xlu0 %4668
    %4670 = vrot.lane.b32.xlu0 %v4361, 4
    %v4671 = vpop.permute.xlu0 %4670
    %4672 = vrot.lane.b32.xlu0 %v4362, 4
    %v4673 = vpop.permute.xlu0 %4672
    %4674 = vrot.lane.b32.xlu0 %v4363, 4
    %v4675 = vpop.permute.xlu0 %4674
    %4676 = vrot.lane.b32.xlu0 %v4364, 4
    %v4677 = vpop.permute.xlu0 %4676
    %4678 = vrot.lane.b32.xlu0 %v4365, 4
    %v4679 = vpop.permute.xlu0 %4678
    %4680 = vrot.lane.b32.xlu0 %v4366, 4
    %v4681 = vpop.permute.xlu0 %4680
    %4682 = vrot.lane.b32.xlu0 %v4367, 4
    %v4683 = vpop.permute.xlu0 %4682
    %4684 = vrot.lane.b32.xlu0 %v4368, 4
    %v4685 = vpop.permute.xlu0 %4684
    %4686 = vrot.lane.b32.xlu0 %v4369, 4
    %v4687 = vpop.permute.xlu0 %4686
    %4688 = vrot.lane.b32.xlu0 %v4370, 4
    %v4689 = vpop.permute.xlu0 %4688
    %4690 = vrot.lane.b32.xlu0 %v4371, 4
    %v4691 = vpop.permute.xlu0 %4690
    %4692 = vrot.lane.b32.xlu0 %v4372, 4
    %v4693 = vpop.permute.xlu0 %4692
    %4694 = vrot.lane.b32.xlu0 %v4373, 4
    %v4695 = vpop.permute.xlu0 %4694
    %4760 = vrot.lane.b32.xlu0 %v4374, 8
    %v4761 = vpop.permute.xlu0 %4760
    %4762 = vrot.lane.b32.xlu0 %v4375, 8
    %v4763 = vpop.permute.xlu0 %4762
    %4764 = vrot.lane.b32.xlu0 %v4376, 8
    %v4765 = vpop.permute.xlu0 %4764
    %4766 = vrot.lane.b32.xlu0 %v4377, 8
    %v4767 = vpop.permute.xlu0 %4766
    %4768 = vrot.lane.b32.xlu0 %v4378, 8
    %v4769 = vpop.permute.xlu0 %4768
    %4770 = vrot.lane.b32.xlu0 %v4379, 8
    %v4771 = vpop.permute.xlu0 %4770
    %4772 = vrot.lane.b32.xlu0 %v4380, 8
    %v4773 = vpop.permute.xlu0 %4772
    %4774 = vrot.lane.b32.xlu0 %v4381, 8
    %v4775 = vpop.permute.xlu0 %4774
    %4776 = vrot.lane.b32.xlu0 %v4382, 8
    %v4777 = vpop.permute.xlu0 %4776
    %4778 = vrot.lane.b32.xlu0 %v4383, 8
    %v4779 = vpop.permute.xlu0 %4778
    %4780 = vrot.lane.b32.xlu0 %v4384, 8
    %v4781 = vpop.permute.xlu0 %4780
    %4782 = vrot.lane.b32.xlu0 %v4385, 8
    %v4783 = vpop.permute.xlu0 %4782
    %4784 = vrot.lane.b32.xlu0 %v4386, 8
    %v4785 = vpop.permute.xlu0 %4784
    %4786 = vrot.lane.b32.xlu0 %v4387, 8
    %v4787 = vpop.permute.xlu0 %4786
    %4788 = vrot.lane.b32.xlu0 %v4388, 8
    %v4789 = vpop.permute.xlu0 %4788
    %4790 = vrot.lane.b32.xlu0 %v4389, 8
    %v4791 = vpop.permute.xlu0 %4790
    %4792 = vrot.lane.b32.xlu0 %v4390, 8
    %v4793 = vpop.permute.xlu0 %4792
    %4794 = vrot.lane.b32.xlu0 %v4391, 8
    %v4795 = vpop.permute.xlu0 %4794
    %4796 = vrot.lane.b32.xlu0 %v4392, 8
    %v4797 = vpop.permute.xlu0 %4796
    %4798 = vrot.lane.b32.xlu0 %v4393, 8
    %v4799 = vpop.permute.xlu0 %4798
    %4800 = vrot.lane.b32.xlu0 %v4394, 8
    %v4801 = vpop.permute.xlu0 %4800
    %4802 = vrot.lane.b32.xlu0 %v4395, 8
    %v4803 = vpop.permute.xlu0 %4802
    %4804 = vrot.lane.b32.xlu0 %v4396, 8
    %v4805 = vpop.permute.xlu0 %4804
    %4806 = vrot.lane.b32.xlu0 %v4397, 8
    %v4807 = vpop.permute.xlu0 %4806
    %4808 = vrot.lane.b32.xlu0 %v4398, 8
    %v4809 = vpop.permute.xlu0 %4808
    %4810 = vrot.lane.b32.xlu0 %v4399, 8
    %v4811 = vpop.permute.xlu0 %4810
    %4812 = vrot.lane.b32.xlu0 %v4400, 8
    %v4813 = vpop.permute.xlu0 %4812
    %4814 = vrot.lane.b32.xlu0 %v4401, 8
    %v4815 = vpop.permute.xlu0 %4814
    %4816 = vrot.lane.b32.xlu0 %v4402, 8
    %v4817 = vpop.permute.xlu0 %4816
    %4818 = vrot.lane.b32.xlu0 %v4403, 8
    %v4819 = vpop.permute.xlu0 %4818
    %4820 = vrot.lane.b32.xlu0 %v4404, 8
    %v4821 = vpop.permute.xlu0 %4820
    %4822 = vrot.lane.b32.xlu0 %v4405, 8
    %v4823 = vpop.permute.xlu0 %4822
    %4888 = vrot.lane.b32.xlu0 %v4407, 12
    %v4889 = vpop.permute.xlu0 %4888
    %4890 = vrot.lane.b32.xlu0 %v4408, 12
    %v4891 = vpop.permute.xlu0 %4890
    %4892 = vrot.lane.b32.xlu0 %v4409, 12
    %v4893 = vpop.permute.xlu0 %4892
    %4894 = vrot.lane.b32.xlu0 %v4410, 12
    %v4895 = vpop.permute.xlu0 %4894
    %4896 = vrot.lane.b32.xlu0 %v4411, 12
    %v4897 = vpop.permute.xlu0 %4896
    %4898 = vrot.lane.b32.xlu0 %v4412, 12
    %v4899 = vpop.permute.xlu0 %4898
    %4900 = vrot.lane.b32.xlu0 %v4413, 12
    %v4901 = vpop.permute.xlu0 %4900
    %4902 = vrot.lane.b32.xlu0 %v4414, 12
    %v4903 = vpop.permute.xlu0 %4902
    %4904 = vrot.lane.b32.xlu0 %v4415, 12
    %v4905 = vpop.permute.xlu0 %4904
    %4906 = vrot.lane.b32.xlu0 %v4416, 12
    %v4907 = vpop.permute.xlu0 %4906
    %4908 = vrot.lane.b32.xlu0 %v4417, 12
    %v4909 = vpop.permute.xlu0 %4908
    %4910 = vrot.lane.b32.xlu0 %v4418, 12
    %v4911 = vpop.permute.xlu0 %4910
    %4912 = vrot.lane.b32.xlu0 %v4419, 12
    %v4913 = vpop.permute.xlu0 %4912
    %4914 = vrot.lane.b32.xlu0 %v4420, 12
    %v4915 = vpop.permute.xlu0 %4914
    %4916 = vrot.lane.b32.xlu0 %v4421, 12
    %v4917 = vpop.permute.xlu0 %4916
    %4918 = vrot.lane.b32.xlu0 %v4422, 12
    %v4919 = vpop.permute.xlu0 %4918
    %4920 = vrot.lane.b32.xlu0 %v4423, 12
    %v4921 = vpop.permute.xlu0 %4920
    %4922 = vrot.lane.b32.xlu0 %v4424, 12
    %v4923 = vpop.permute.xlu0 %4922
    %4924 = vrot.lane.b32.xlu0 %v4425, 12
    %v4925 = vpop.permute.xlu0 %4924
    %4926 = vrot.lane.b32.xlu0 %v4426, 12
    %v4927 = vpop.permute.xlu0 %4926
    %4928 = vrot.lane.b32.xlu0 %v4427, 12
    %v4929 = vpop.permute.xlu0 %4928
    %4930 = vrot.lane.b32.xlu0 %v4428, 12
    %v4931 = vpop.permute.xlu0 %4930
    %4932 = vrot.lane.b32.xlu0 %v4429, 12
    %v4933 = vpop.permute.xlu0 %4932
    %4934 = vrot.lane.b32.xlu0 %v4430, 12
    %v4935 = vpop.permute.xlu0 %4934
    %4936 = vrot.lane.b32.xlu0 %v4431, 12
    %v4937 = vpop.permute.xlu0 %4936
    %4938 = vrot.lane.b32.xlu0 %v4432, 12
    %v4939 = vpop.permute.xlu0 %4938
    %4940 = vrot.lane.b32.xlu0 %v4433, 12
    %v4941 = vpop.permute.xlu0 %4940
    %4942 = vrot.lane.b32.xlu0 %v4434, 12
    %v4943 = vpop.permute.xlu0 %4942
    %4944 = vrot.lane.b32.xlu0 %v4435, 12
    %v4945 = vpop.permute.xlu0 %4944
    %4946 = vrot.lane.b32.xlu0 %v4436, 12
    %v4947 = vpop.permute.xlu0 %4946
    %4948 = vrot.lane.b32.xlu0 %v4437, 12
    %v4949 = vpop.permute.xlu0 %4948
    %4950 = vrot.lane.b32.xlu0 %v4438, 12
    %v4951 = vpop.permute.xlu0 %4950
    %5016 = vrot.lane.b32.xlu0 %v4439, 16
    %v5017 = vpop.permute.xlu0 %5016
    %5018 = vrot.lane.b32.xlu0 %v4440, 16
    %v5019 = vpop.permute.xlu0 %5018
    %5020 = vrot.lane.b32.xlu0 %v4441, 16
    %v5021 = vpop.permute.xlu0 %5020
    %5022 = vrot.lane.b32.xlu0 %v4442, 16
    %v5023 = vpop.permute.xlu0 %5022
    %5024 = vrot.lane.b32.xlu0 %v4443, 16
    %v5025 = vpop.permute.xlu0 %5024
    %5026 = vrot.lane.b32.xlu0 %v4444, 16
    %v5027 = vpop.permute.xlu0 %5026
    %5028 = vrot.lane.b32.xlu0 %v4445, 16
    %v5029 = vpop.permute.xlu0 %5028
    %5030 = vrot.lane.b32.xlu0 %v4446, 16
    %v5031 = vpop.permute.xlu0 %5030
    %5032 = vrot.lane.b32.xlu0 %v4447, 16
    %v5033 = vpop.permute.xlu0 %5032
    %5034 = vrot.lane.b32.xlu0 %v4448, 16
    %v5035 = vpop.permute.xlu0 %5034
    %5036 = vrot.lane.b32.xlu0 %v4449, 16
    %v5037 = vpop.permute.xlu0 %5036
    %5038 = vrot.lane.b32.xlu0 %v4450, 16
    %v5039 = vpop.permute.xlu0 %5038
    %5040 = vrot.lane.b32.xlu0 %v4451, 16
    %v5041 = vpop.permute.xlu0 %5040
    %5042 = vrot.lane.b32.xlu0 %v4452, 16
    %v5043 = vpop.permute.xlu0 %5042
    %5044 = vrot.lane.b32.xlu0 %v4453, 16
    %v5045 = vpop.permute.xlu0 %5044
    %5046 = vrot.lane.b32.xlu0 %v4454, 16
    %v5047 = vpop.permute.xlu0 %5046
    %5048 = vrot.lane.b32.xlu0 %v4455, 16
    %v5049 = vpop.permute.xlu0 %5048
    %5050 = vrot.lane.b32.xlu0 %v4456, 16
    %v5051 = vpop.permute.xlu0 %5050
    %5052 = vrot.lane.b32.xlu0 %v4457, 16
    %v5053 = vpop.permute.xlu0 %5052
    %5054 = vrot.lane.b32.xlu0 %v4458, 16
    %v5055 = vpop.permute.xlu0 %5054
    %5056 = vrot.lane.b32.xlu0 %v4459, 16
    %v5057 = vpop.permute.xlu0 %5056
    %5058 = vrot.lane.b32.xlu0 %v4460, 16
    %v5059 = vpop.permute.xlu0 %5058
    %5060 = vrot.lane.b32.xlu0 %v4461, 16
    %v5061 = vpop.permute.xlu0 %5060
    %5062 = vrot.lane.b32.xlu0 %v4462, 16
    %v5063 = vpop.permute.xlu0 %5062
    %5064 = vrot.lane.b32.xlu0 %v4463, 16
    %v5065 = vpop.permute.xlu0 %5064
    %5066 = vrot.lane.b32.xlu0 %v4464, 16
    %v5067 = vpop.permute.xlu0 %5066
    %5068 = vrot.lane.b32.xlu0 %v4465, 16
    %v5069 = vpop.permute.xlu0 %5068
    %5070 = vrot.lane.b32.xlu0 %v4466, 16
    %v5071 = vpop.permute.xlu0 %5070
    %5072 = vrot.lane.b32.xlu0 %v4467, 16
    %v5073 = vpop.permute.xlu0 %5072
    %5074 = vrot.lane.b32.xlu0 %v4468, 16
    %v5075 = vpop.permute.xlu0 %5074
    %5076 = vrot.lane.b32.xlu0 %v4469, 16
    %v5077 = vpop.permute.xlu0 %5076
    %5078 = vrot.lane.b32.xlu0 %v4470, 16
    %v5079 = vpop.permute.xlu0 %5078
    %5144 = vrot.lane.b32.xlu0 %v4471, 20
    %v5145 = vpop.permute.xlu0 %5144
    %5146 = vrot.lane.b32.xlu0 %v4472, 20
    %v5147 = vpop.permute.xlu0 %5146
    %5148 = vrot.lane.b32.xlu0 %v4473, 20
    %v5149 = vpop.permute.xlu0 %5148
    %5150 = vrot.lane.b32.xlu0 %v4474, 20
    %v5151 = vpop.permute.xlu0 %5150
    %5152 = vrot.lane.b32.xlu0 %v4475, 20
    %v5153 = vpop.permute.xlu0 %5152
    %5154 = vrot.lane.b32.xlu0 %v4476, 20
    %v5155 = vpop.permute.xlu0 %5154
    %5156 = vrot.lane.b32.xlu0 %v4477, 20
    %v5157 = vpop.permute.xlu0 %5156
    %5158 = vrot.lane.b32.xlu0 %v4478, 20
    %v5159 = vpop.permute.xlu0 %5158
    %5160 = vrot.lane.b32.xlu0 %v4479, 20
    %v5161 = vpop.permute.xlu0 %5160
    %5162 = vrot.lane.b32.xlu0 %v4480, 20
    %v5163 = vpop.permute.xlu0 %5162
    %5164 = vrot.lane.b32.xlu0 %v4481, 20
    %v5165 = vpop.permute.xlu0 %5164
    %5166 = vrot.lane.b32.xlu0 %v4482, 20
    %v5167 = vpop.permute.xlu0 %5166
    %5168 = vrot.lane.b32.xlu0 %v4483, 20
    %v5169 = vpop.permute.xlu0 %5168
    %5170 = vrot.lane.b32.xlu0 %v4484, 20
    %v5171 = vpop.permute.xlu0 %5170
    %5172 = vrot.lane.b32.xlu0 %v4485, 20
    %v5173 = vpop.permute.xlu0 %5172
    %5174 = vrot.lane.b32.xlu0 %v4486, 20
    %v5175 = vpop.permute.xlu0 %5174
    %5176 = vrot.lane.b32.xlu0 %v4487, 20
    %v5177 = vpop.permute.xlu0 %5176
    %5178 = vrot.lane.b32.xlu0 %v4488, 20
    %v5179 = vpop.permute.xlu0 %5178
    %5180 = vrot.lane.b32.xlu0 %v4489, 20
    %v5181 = vpop.permute.xlu0 %5180
    %5182 = vrot.lane.b32.xlu0 %v4490, 20
    %v5183 = vpop.permute.xlu0 %5182
    %5184 = vrot.lane.b32.xlu0 %v4491, 20
    %v5185 = vpop.permute.xlu0 %5184
    %5186 = vrot.lane.b32.xlu0 %v4492, 20
    %v5187 = vpop.permute.xlu0 %5186
    %5188 = vrot.lane.b32.xlu0 %v4493, 20
    %v5189 = vpop.permute.xlu0 %5188
    %5190 = vrot.lane.b32.xlu0 %v4494, 20
    %v5191 = vpop.permute.xlu0 %5190
    %5192 = vrot.lane.b32.xlu0 %v4495, 20
    %v5193 = vpop.permute.xlu0 %5192
    %5194 = vrot.lane.b32.xlu0 %v4496, 20
    %v5195 = vpop.permute.xlu0 %5194
    %5196 = vrot.lane.b32.xlu0 %v4497, 20
    %v5197 = vpop.permute.xlu0 %5196
    %5198 = vrot.lane.b32.xlu0 %v4498, 20
    %v5199 = vpop.permute.xlu0 %5198
    %5200 = vrot.lane.b32.xlu0 %v4499, 20
    %v5201 = vpop.permute.xlu0 %5200
    %5202 = vrot.lane.b32.xlu0 %v4500, 20
    %v5203 = vpop.permute.xlu0 %5202
    %5204 = vrot.lane.b32.xlu0 %v4501, 20
    %v5205 = vpop.permute.xlu0 %5204
    %5206 = vrot.lane.b32.xlu0 %v4502, 20
    %v5207 = vpop.permute.xlu0 %5206
    %5272 = vrot.lane.b32.xlu0 %v4504, 24
    %v5273 = vpop.permute.xlu0 %5272
    %5274 = vrot.lane.b32.xlu0 %v4505, 24
    %v5275 = vpop.permute.xlu0 %5274
    %5276 = vrot.lane.b32.xlu0 %v4506, 24
    %v5277 = vpop.permute.xlu0 %5276
    %5278 = vrot.lane.b32.xlu0 %v4507, 24
    %v5279 = vpop.permute.xlu0 %5278
    %5280 = vrot.lane.b32.xlu0 %v4508, 24
    %v5281 = vpop.permute.xlu0 %5280
    %5282 = vrot.lane.b32.xlu0 %v4509, 24
    %v5283 = vpop.permute.xlu0 %5282
    %5284 = vrot.lane.b32.xlu0 %v4510, 24
    %v5285 = vpop.permute.xlu0 %5284
    %5286 = vrot.lane.b32.xlu0 %v4511, 24
    %v5287 = vpop.permute.xlu0 %5286
    %5288 = vrot.lane.b32.xlu0 %v4512, 24
    %v5289 = vpop.permute.xlu0 %5288
    %5290 = vrot.lane.b32.xlu0 %v4513, 24
    %v5291 = vpop.permute.xlu0 %5290
    %5292 = vrot.lane.b32.xlu0 %v4514, 24
    %v5293 = vpop.permute.xlu0 %5292
    %5294 = vrot.lane.b32.xlu0 %v4515, 24
    %v5295 = vpop.permute.xlu0 %5294
    %5296 = vrot.lane.b32.xlu0 %v4516, 24
    %v5297 = vpop.permute.xlu0 %5296
    %5298 = vrot.lane.b32.xlu0 %v4517, 24
    %v5299 = vpop.permute.xlu0 %5298
    %5300 = vrot.lane.b32.xlu0 %v4518, 24
    %v5301 = vpop.permute.xlu0 %5300
    %5302 = vrot.lane.b32.xlu0 %v4519, 24
    %v5303 = vpop.permute.xlu0 %5302
    %5304 = vrot.lane.b32.xlu0 %v4520, 24
    %v5305 = vpop.permute.xlu0 %5304
    %5306 = vrot.lane.b32.xlu0 %v4521, 24
    %v5307 = vpop.permute.xlu0 %5306
    %5308 = vrot.lane.b32.xlu0 %v4522, 24
    %v5309 = vpop.permute.xlu0 %5308
    %5310 = vrot.lane.b32.xlu0 %v4523, 24
    %v5311 = vpop.permute.xlu0 %5310
    %5312 = vrot.lane.b32.xlu0 %v4524, 24
    %v5313 = vpop.permute.xlu0 %5312
    %5314 = vrot.lane.b32.xlu0 %v4525, 24
    %v5315 = vpop.permute.xlu0 %5314
    %5316 = vrot.lane.b32.xlu0 %v4526, 24
    %v5317 = vpop.permute.xlu0 %5316
    %5318 = vrot.lane.b32.xlu0 %v4527, 24
    %v5319 = vpop.permute.xlu0 %5318
    %5320 = vrot.lane.b32.xlu0 %v4528, 24
    %v5321 = vpop.permute.xlu0 %5320
    %5322 = vrot.lane.b32.xlu0 %v4529, 24
    %v5323 = vpop.permute.xlu0 %5322
    %5324 = vrot.lane.b32.xlu0 %v4530, 24
    %v5325 = vpop.permute.xlu0 %5324
    %5326 = vrot.lane.b32.xlu0 %v4531, 24
    %v5327 = vpop.permute.xlu0 %5326
    %5328 = vrot.lane.b32.xlu0 %v4532, 24
    %v5329 = vpop.permute.xlu0 %5328
    %5330 = vrot.lane.b32.xlu0 %v4533, 24
    %v5331 = vpop.permute.xlu0 %5330
    %5332 = vrot.lane.b32.xlu0 %v4534, 24
    %v5333 = vpop.permute.xlu0 %5332
    %5334 = vrot.lane.b32.xlu0 %v4535, 24
    %v5335 = vpop.permute.xlu0 %5334
    %5400 = vrot.lane.b32.xlu0 %v4536, 28
    %v5401 = vpop.permute.xlu0 %5400
    %5402 = vrot.lane.b32.xlu0 %v4537, 28
    %v5403 = vpop.permute.xlu0 %5402
    %5404 = vrot.lane.b32.xlu0 %v4538, 28
    %v5405 = vpop.permute.xlu0 %5404
    %5406 = vrot.lane.b32.xlu0 %v4539, 28
    %v5407 = vpop.permute.xlu0 %5406
    %5408 = vrot.lane.b32.xlu0 %v4540, 28
    %v5409 = vpop.permute.xlu0 %5408
    %5410 = vrot.lane.b32.xlu0 %v4541, 28
    %v5411 = vpop.permute.xlu0 %5410
    %5412 = vrot.lane.b32.xlu0 %v4542, 28
    %v5413 = vpop.permute.xlu0 %5412
    %5414 = vrot.lane.b32.xlu0 %v4543, 28
    %v5415 = vpop.permute.xlu0 %5414
    %5416 = vrot.lane.b32.xlu0 %v4544, 28
    %v5417 = vpop.permute.xlu0 %5416
    %5418 = vrot.lane.b32.xlu0 %v4545, 28
    %v5419 = vpop.permute.xlu0 %5418
    %5420 = vrot.lane.b32.xlu0 %v4546, 28
    %v5421 = vpop.permute.xlu0 %5420
    %5422 = vrot.lane.b32.xlu0 %v4547, 28
    %v5423 = vpop.permute.xlu0 %5422
    %5424 = vrot.lane.b32.xlu0 %v4548, 28
    %v5425 = vpop.permute.xlu0 %5424
    %5426 = vrot.lane.b32.xlu0 %v4549, 28
    %v5427 = vpop.permute.xlu0 %5426
    %5428 = vrot.lane.b32.xlu0 %v4550, 28
    %v5429 = vpop.permute.xlu0 %5428
    %5430 = vrot.lane.b32.xlu0 %v4551, 28
    %v5431 = vpop.permute.xlu0 %5430
    %5432 = vrot.lane.b32.xlu0 %v4552, 28
    %v5433 = vpop.permute.xlu0 %5432
    %5434 = vrot.lane.b32.xlu0 %v4553, 28
    %v5435 = vpop.permute.xlu0 %5434
    %5436 = vrot.lane.b32.xlu0 %v4554, 28
    %v5437 = vpop.permute.xlu0 %5436
    %5438 = vrot.lane.b32.xlu0 %v4555, 28
    %v5439 = vpop.permute.xlu0 %5438
    %5440 = vrot.lane.b32.xlu0 %v4556, 28
    %v5441 = vpop.permute.xlu0 %5440
    %5442 = vrot.lane.b32.xlu0 %v4557, 28
    %v5443 = vpop.permute.xlu0 %5442
    %5444 = vrot.lane.b32.xlu0 %v4558, 28
    %v5445 = vpop.permute.xlu0 %5444
    %5446 = vrot.lane.b32.xlu0 %v4559, 28
    %v5447 = vpop.permute.xlu0 %5446
    %5448 = vrot.lane.b32.xlu0 %v4560, 28
    %v5449 = vpop.permute.xlu0 %5448
    %5450 = vrot.lane.b32.xlu0 %v4561, 28
    %v5451 = vpop.permute.xlu0 %5450
    %5452 = vrot.lane.b32.xlu0 %v4562, 28
    %v5453 = vpop.permute.xlu0 %5452
    %5454 = vrot.lane.b32.xlu0 %v4563, 28
    %v5455 = vpop.permute.xlu0 %5454
    %5456 = vrot.lane.b32.xlu0 %v4564, 28
    %v5457 = vpop.permute.xlu0 %5456
    %5458 = vrot.lane.b32.xlu0 %v4565, 28
    %v5459 = vpop.permute.xlu0 %5458
    %5460 = vrot.lane.b32.xlu0 %v4566, 28
    %v5461 = vpop.permute.xlu0 %5460
    %5462 = vrot.lane.b32.xlu0 %v4567, 28
    %v5463 = vpop.permute.xlu0 %5462
    %5528 = vrot.lane.b32.xlu0 %v4568, 32
    %v5529 = vpop.permute.xlu0 %5528
    %5530 = vrot.lane.b32.xlu0 %v4569, 32
    %v5531 = vpop.permute.xlu0 %5530
    %5532 = vrot.lane.b32.xlu0 %v4570, 32
    %v5533 = vpop.permute.xlu0 %5532
    %5534 = vrot.lane.b32.xlu0 %v4571, 32
    %v5535 = vpop.permute.xlu0 %5534
    %5536 = vrot.lane.b32.xlu0 %v4572, 32
    %v5537 = vpop.permute.xlu0 %5536
    %5538 = vrot.lane.b32.xlu0 %v4573, 32
    %v5539 = vpop.permute.xlu0 %5538
    %5540 = vrot.lane.b32.xlu0 %v4574, 32
    %v5541 = vpop.permute.xlu0 %5540
    %5542 = vrot.lane.b32.xlu0 %v4575, 32
    %v5543 = vpop.permute.xlu0 %5542
    %5544 = vrot.lane.b32.xlu0 %v4576, 32
    %v5545 = vpop.permute.xlu0 %5544
    %5546 = vrot.lane.b32.xlu0 %v4577, 32
    %v5547 = vpop.permute.xlu0 %5546
    %5548 = vrot.lane.b32.xlu0 %v4578, 32
    %v5549 = vpop.permute.xlu0 %5548
    %5550 = vrot.lane.b32.xlu0 %v4579, 32
    %v5551 = vpop.permute.xlu0 %5550
    %5552 = vrot.lane.b32.xlu0 %v4580, 32
    %v5553 = vpop.permute.xlu0 %5552
    %5554 = vrot.lane.b32.xlu0 %v4581, 32
    %v5555 = vpop.permute.xlu0 %5554
    %5556 = vrot.lane.b32.xlu0 %v4582, 32
    %v5557 = vpop.permute.xlu0 %5556
    %5558 = vrot.lane.b32.xlu0 %v4583, 32
    %v5559 = vpop.permute.xlu0 %5558
    %5560 = vrot.lane.b32.xlu0 %v4584, 32
    %v5561 = vpop.permute.xlu0 %5560
    %5562 = vrot.lane.b32.xlu0 %v4585, 32
    %v5563 = vpop.permute.xlu0 %5562
    %5564 = vrot.lane.b32.xlu0 %v4586, 32
    %v5565 = vpop.permute.xlu0 %5564
    %5566 = vrot.lane.b32.xlu0 %v4587, 32
    %v5567 = vpop.permute.xlu0 %5566
    %5568 = vrot.lane.b32.xlu0 %v4588, 32
    %v5569 = vpop.permute.xlu0 %5568
    %5570 = vrot.lane.b32.xlu0 %v4589, 32
    %v5571 = vpop.permute.xlu0 %5570
    %5572 = vrot.lane.b32.xlu0 %v4590, 32
    %v5573 = vpop.permute.xlu0 %5572
    %5574 = vrot.lane.b32.xlu0 %v4591, 32
    %v5575 = vpop.permute.xlu0 %5574
    %5576 = vrot.lane.b32.xlu0 %v4592, 32
    %v5577 = vpop.permute.xlu0 %5576
    %5578 = vrot.lane.b32.xlu0 %v4593, 32
    %v5579 = vpop.permute.xlu0 %5578
    %5580 = vrot.lane.b32.xlu0 %v4594, 32
    %v5581 = vpop.permute.xlu0 %5580
    %5582 = vrot.lane.b32.xlu0 %v4595, 32
    %v5583 = vpop.permute.xlu0 %5582
    %5584 = vrot.lane.b32.xlu0 %v4596, 32
    %v5585 = vpop.permute.xlu0 %5584
    %5586 = vrot.lane.b32.xlu0 %v4597, 32
    %v5587 = vpop.permute.xlu0 %5586
    %5588 = vrot.lane.b32.xlu0 %v4598, 32
    %v5589 = vpop.permute.xlu0 %5588
    %5590 = vrot.lane.b32.xlu0 %v4599, 32
    %v5591 = vpop.permute.xlu0 %5590
    %v5624 = vsel %vm21, %v4310, %v4633
    %v5625 = vsel %vm21, %v4311, %v4635
    %v5626 = vsel %vm21, %v4312, %v4637
    %v5627 = vsel %vm21, %v4313, %v4639
    %v5628 = vsel %vm21, %v4314, %v4641
    %v5629 = vsel %vm21, %v4315, %v4643
    %v5630 = vsel %vm21, %v4316, %v4645
    %v5631 = vsel %vm21, %v4317, %v4647
    %v5632 = vsel %vm21, %v4318, %v4649
    %v5633 = vsel %vm21, %v4319, %v4651
    %v5634 = vsel %vm21, %v4320, %v4653
    %v5635 = vsel %vm21, %v4321, %v4655
    %v5636 = vsel %vm21, %v4322, %v4657
    %v5637 = vsel %vm21, %v4323, %v4659
    %v5638 = vsel %vm21, %v4324, %v4661
    %v5639 = vsel %vm21, %v4325, %v4663
    %v5640 = vsel %vm21, %v4326, %v4665
    %v5641 = vsel %vm21, %v4327, %v4667
    %v5642 = vsel %vm21, %v4328, %v4669
    %v5643 = vsel %vm21, %v4329, %v4671
    %v5644 = vsel %vm21, %v4330, %v4673
    %v5645 = vsel %vm21, %v4331, %v4675
    %v5646 = vsel %vm21, %v4332, %v4677
    %v5647 = vsel %vm21, %v4333, %v4679
    %v5648 = vsel %vm21, %v4334, %v4681
    %v5649 = vsel %vm21, %v4335, %v4683
    %v5650 = vsel %vm21, %v4336, %v4685
    %v5651 = vsel %vm21, %v4337, %v4687
    %v5652 = vsel %vm21, %v4338, %v4689
    %v5653 = vsel %vm21, %v4339, %v4691
    %v5654 = vsel %vm21, %v4340, %v4693
    %v5655 = vsel %vm21, %v4341, %v4695
    %v5656 = vsel %vm1477, %v5624, %v4761
    %v5657 = vsel %vm1477, %v5625, %v4763
    %v5658 = vsel %vm1477, %v5626, %v4765
    %v5659 = vsel %vm1477, %v5627, %v4767
    %v5660 = vsel %vm1477, %v5628, %v4769
    %v5661 = vsel %vm1477, %v5629, %v4771
    %v5662 = vsel %vm1477, %v5630, %v4773
    %v5663 = vsel %vm1477, %v5631, %v4775
    %v5664 = vsel %vm1477, %v5632, %v4777
    %v5665 = vsel %vm1477, %v5633, %v4779
    %v5666 = vsel %vm1477, %v5634, %v4781
    %v5667 = vsel %vm1477, %v5635, %v4783
    %v5668 = vsel %vm1477, %v5636, %v4785
    %v5669 = vsel %vm1477, %v5637, %v4787
    %v5670 = vsel %vm1477, %v5638, %v4789
    %v5671 = vsel %vm1477, %v5639, %v4791
    %v5672 = vsel %vm1477, %v5640, %v4793
    %v5673 = vsel %vm1477, %v5641, %v4795
    %v5674 = vsel %vm1477, %v5642, %v4797
    %v5675 = vsel %vm1477, %v5643, %v4799
    %v5676 = vsel %vm1477, %v5644, %v4801
    %v5677 = vsel %vm1477, %v5645, %v4803
    %v5678 = vsel %vm1477, %v5646, %v4805
    %v5679 = vsel %vm1477, %v5647, %v4807
    %v5680 = vsel %vm1477, %v5648, %v4809
    %v5681 = vsel %vm1477, %v5649, %v4811
    %v5682 = vsel %vm1477, %v5650, %v4813
    %v5683 = vsel %vm1477, %v5651, %v4815
    %v5684 = vsel %vm1477, %v5652, %v4817
    %v5685 = vsel %vm1477, %v5653, %v4819
    %v5686 = vsel %vm1477, %v5654, %v4821
    %v5687 = vsel %vm1477, %v5655, %v4823
    %v5688 = vsel %vm1510, %v5656, %v4889
    %v5689 = vsel %vm1510, %v5657, %v4891
    %v5690 = vsel %vm1510, %v5658, %v4893
    %v5691 = vsel %vm1510, %v5659, %v4895
    %v5692 = vsel %vm1510, %v5660, %v4897
    %v5693 = vsel %vm1510, %v5661, %v4899
    %v5694 = vsel %vm1510, %v5662, %v4901
    %v5695 = vsel %vm1510, %v5663, %v4903
    %v5696 = vsel %vm1510, %v5664, %v4905
    %v5697 = vsel %vm1510, %v5665, %v4907
    %v5698 = vsel %vm1510, %v5666, %v4909
    %v5699 = vsel %vm1510, %v5667, %v4911
    %v5700 = vsel %vm1510, %v5668, %v4913
    %v5701 = vsel %vm1510, %v5669, %v4915
    %v5702 = vsel %vm1510, %v5670, %v4917
    %v5703 = vsel %vm1510, %v5671, %v4919
    %v5704 = vsel %vm1510, %v5672, %v4921
    %v5705 = vsel %vm1510, %v5673, %v4923
    %v5706 = vsel %vm1510, %v5674, %v4925
    %v5707 = vsel %vm1510, %v5675, %v4927
    %v5708 = vsel %vm1510, %v5676, %v4929
    %v5709 = vsel %vm1510, %v5677, %v4931
    %v5710 = vsel %vm1510, %v5678, %v4933
    %v5711 = vsel %vm1510, %v5679, %v4935
    %v5712 = vsel %vm1510, %v5680, %v4937
    %v5713 = vsel %vm1510, %v5681, %v4939
    %v5714 = vsel %vm1510, %v5682, %v4941
    %v5715 = vsel %vm1510, %v5683, %v4943
    %v5716 = vsel %vm1510, %v5684, %v4945
    %v5717 = vsel %vm1510, %v5685, %v4947
    %v5718 = vsel %vm1510, %v5686, %v4949
    %v5719 = vsel %vm1510, %v5687, %v4951
    %v5720 = vsel %vm1543, %v5688, %v5017
    %v5721 = vsel %vm1543, %v5689, %v5019
    %v5722 = vsel %vm1543, %v5690, %v5021
    %v5723 = vsel %vm1543, %v5691, %v5023
    %v5724 = vsel %vm1543, %v5692, %v5025
    %v5725 = vsel %vm1543, %v5693, %v5027
    %v5726 = vsel %vm1543, %v5694, %v5029
    %v5727 = vsel %vm1543, %v5695, %v5031
    %v5728 = vsel %vm1543, %v5696, %v5033
    %v5729 = vsel %vm1543, %v5697, %v5035
    %v5730 = vsel %vm1543, %v5698, %v5037
    %v5731 = vsel %vm1543, %v5699, %v5039
    %v5732 = vsel %vm1543, %v5700, %v5041
    %v5733 = vsel %vm1543, %v5701, %v5043
    %v5734 = vsel %vm1543, %v5702, %v5045
    %v5735 = vsel %vm1543, %v5703, %v5047
    %v5736 = vsel %vm1543, %v5704, %v5049
    %v5737 = vsel %vm1543, %v5705, %v5051
    %v5738 = vsel %vm1543, %v5706, %v5053
    %v5739 = vsel %vm1543, %v5707, %v5055
    %v5740 = vsel %vm1543, %v5708, %v5057
    %v5741 = vsel %vm1543, %v5709, %v5059
    %v5742 = vsel %vm1543, %v5710, %v5061
    %v5743 = vsel %vm1543, %v5711, %v5063
    %v5744 = vsel %vm1543, %v5712, %v5065
    %v5745 = vsel %vm1543, %v5713, %v5067
    %v5746 = vsel %vm1543, %v5714, %v5069
    %v5747 = vsel %vm1543, %v5715, %v5071
    %v5748 = vsel %vm1543, %v5716, %v5073
    %v5749 = vsel %vm1543, %v5717, %v5075
    %v5750 = vsel %vm1543, %v5718, %v5077
    %v5751 = vsel %vm1543, %v5719, %v5079
    %v5752 = vsel %vm1576, %v5720, %v5145
    %v5753 = vsel %vm1576, %v5721, %v5147
    %v5754 = vsel %vm1576, %v5722, %v5149
    %v5755 = vsel %vm1576, %v5723, %v5151
    %v5756 = vsel %vm1576, %v5724, %v5153
    %v5757 = vsel %vm1576, %v5725, %v5155
    %v5758 = vsel %vm1576, %v5726, %v5157
    %v5759 = vsel %vm1576, %v5727, %v5159
    %v5760 = vsel %vm1576, %v5728, %v5161
    %v5761 = vsel %vm1576, %v5729, %v5163
    %v5762 = vsel %vm1576, %v5730, %v5165
    %v5763 = vsel %vm1576, %v5731, %v5167
    %v5764 = vsel %vm1576, %v5732, %v5169
    %v5765 = vsel %vm1576, %v5733, %v5171
    %v5766 = vsel %vm1576, %v5734, %v5173
    %v5767 = vsel %vm1576, %v5735, %v5175
    %v5768 = vsel %vm1576, %v5736, %v5177
    %v5769 = vsel %vm1576, %v5737, %v5179
    %v5770 = vsel %vm1576, %v5738, %v5181
    %v5771 = vsel %vm1576, %v5739, %v5183
    %v5772 = vsel %vm1576, %v5740, %v5185
    %v5773 = vsel %vm1576, %v5741, %v5187
    %v5774 = vsel %vm1576, %v5742, %v5189
    %v5775 = vsel %vm1576, %v5743, %v5191
    %v5776 = vsel %vm1576, %v5744, %v5193
    %v5777 = vsel %vm1576, %v5745, %v5195
    %v5778 = vsel %vm1576, %v5746, %v5197
    %v5779 = vsel %vm1576, %v5747, %v5199
    %v5780 = vsel %vm1576, %v5748, %v5201
    %v5781 = vsel %vm1576, %v5749, %v5203
    %v5782 = vsel %vm1576, %v5750, %v5205
    %v5783 = vsel %vm1576, %v5751, %v5207
    %v5784 = vsel %vm1609, %v5752, %v5273
    %v5785 = vsel %vm1609, %v5753, %v5275
    %v5786 = vsel %vm1609, %v5754, %v5277
    %v5787 = vsel %vm1609, %v5755, %v5279
    %v5788 = vsel %vm1609, %v5756, %v5281
    %v5789 = vsel %vm1609, %v5757, %v5283
    %v5790 = vsel %vm1609, %v5758, %v5285
    %v5791 = vsel %vm1609, %v5759, %v5287
    %v5792 = vsel %vm1609, %v5760, %v5289
    %v5793 = vsel %vm1609, %v5761, %v5291
    %v5794 = vsel %vm1609, %v5762, %v5293
    %v5795 = vsel %vm1609, %v5763, %v5295
    %v5796 = vsel %vm1609, %v5764, %v5297
    %v5797 = vsel %vm1609, %v5765, %v5299
    %v5798 = vsel %vm1609, %v5766, %v5301
    %v5799 = vsel %vm1609, %v5767, %v5303
    %v5800 = vsel %vm1609, %v5768, %v5305
    %v5801 = vsel %vm1609, %v5769, %v5307
    %v5802 = vsel %vm1609, %v5770, %v5309
    %v5803 = vsel %vm1609, %v5771, %v5311
    %v5804 = vsel %vm1609, %v5772, %v5313
    %v5805 = vsel %vm1609, %v5773, %v5315
    %v5806 = vsel %vm1609, %v5774, %v5317
    %v5807 = vsel %vm1609, %v5775, %v5319
    %v5808 = vsel %vm1609, %v5776, %v5321
    %v5809 = vsel %vm1609, %v5777, %v5323
    %v5810 = vsel %vm1609, %v5778, %v5325
    %v5811 = vsel %vm1609, %v5779, %v5327
    %v5812 = vsel %vm1609, %v5780, %v5329
    %v5813 = vsel %vm1609, %v5781, %v5331
    %v5814 = vsel %vm1609, %v5782, %v5333
    %v5815 = vsel %vm1609, %v5783, %v5335
    %v5816 = vsel %vm1642, %v5784, %v5401
    %v5817 = vsel %vm1642, %v5785, %v5403
    %v5818 = vsel %vm1642, %v5786, %v5405
    %v5819 = vsel %vm1642, %v5787, %v5407
    %v5820 = vsel %vm1642, %v5788, %v5409
    %v5821 = vsel %vm1642, %v5789, %v5411
    %v5822 = vsel %vm1642, %v5790, %v5413
    %v5823 = vsel %vm1642, %v5791, %v5415
    %v5824 = vsel %vm1642, %v5792, %v5417
    %v5825 = vsel %vm1642, %v5793, %v5419
    %v5826 = vsel %vm1642, %v5794, %v5421
    %v5827 = vsel %vm1642, %v5795, %v5423
    %v5828 = vsel %vm1642, %v5796, %v5425
    %v5829 = vsel %vm1642, %v5797, %v5427
    %v5830 = vsel %vm1642, %v5798, %v5429
    %v5831 = vsel %vm1642, %v5799, %v5431
    %v5832 = vsel %vm1642, %v5800, %v5433
    %v5833 = vsel %vm1642, %v5801, %v5435
    %v5834 = vsel %vm1642, %v5802, %v5437
    %v5835 = vsel %vm1642, %v5803, %v5439
    %v5836 = vsel %vm1642, %v5804, %v5441
    %v5837 = vsel %vm1642, %v5805, %v5443
    %v5838 = vsel %vm1642, %v5806, %v5445
    %v5839 = vsel %vm1642, %v5807, %v5447
    %v5840 = vsel %vm1642, %v5808, %v5449
    %v5841 = vsel %vm1642, %v5809, %v5451
    %v5842 = vsel %vm1642, %v5810, %v5453
    %v5843 = vsel %vm1642, %v5811, %v5455
    %v5844 = vsel %vm1642, %v5812, %v5457
    %v5845 = vsel %vm1642, %v5813, %v5459
    %v5846 = vsel %vm1642, %v5814, %v5461
    %v5847 = vsel %vm1642, %v5815, %v5463
    %v5848 = vsel %vm1675, %v5816, %v5529
    %v5849 = vsel %vm1675, %v5817, %v5531
    %v5850 = vsel %vm1675, %v5818, %v5533
    %v5851 = vsel %vm1675, %v5819, %v5535
    %v5852 = vsel %vm1675, %v5820, %v5537
    %v5853 = vsel %vm1675, %v5821, %v5539
    %v5854 = vsel %vm1675, %v5822, %v5541
    %v5855 = vsel %vm1675, %v5823, %v5543
    %v5856 = vsel %vm1675, %v5824, %v5545
    %v5857 = vsel %vm1675, %v5825, %v5547
    %v5858 = vsel %vm1675, %v5826, %v5549
    %v5859 = vsel %vm1675, %v5827, %v5551
    %v5860 = vsel %vm1675, %v5828, %v5553
    %v5861 = vsel %vm1675, %v5829, %v5555
    %v5862 = vsel %vm1675, %v5830, %v5557
    %v5863 = vsel %vm1675, %v5831, %v5559
    %v5864 = vsel %vm1675, %v5832, %v5561
    %v5865 = vsel %vm1675, %v5833, %v5563
    %v5866 = vsel %vm1675, %v5834, %v5565
    %v5867 = vsel %vm1675, %v5835, %v5567
    %v5868 = vsel %vm1675, %v5836, %v5569
    %v5869 = vsel %vm1675, %v5837, %v5571
    %v5870 = vsel %vm1675, %v5838, %v5573
    %v5871 = vsel %vm1675, %v5839, %v5575
    %v5872 = vsel %vm1675, %v5840, %v5577
    %v5873 = vsel %vm1675, %v5841, %v5579
    %v5874 = vsel %vm1675, %v5842, %v5581
    %v5875 = vsel %vm1675, %v5843, %v5583
    %v5876 = vsel %vm1675, %v5844, %v5585
    %v5877 = vsel %vm1675, %v5845, %v5587
    %v5878 = vsel %vm1675, %v5846, %v5589
    %v5879 = vsel %vm1675, %v5847, %v5591
    %v5880 = vld [vmem:[%s1] sm:$0xff]
    %v5881 = vld [vmem:[%s1 + $0x8] sm:$0xff]
    %v5882 = vld [vmem:[%s1 + $0x10] sm:$0xff]
    %v5883 = vld [vmem:[%s1 + $0x18] sm:$0xff]
    %v5884 = vld [vmem:[%s1 + $0x20] sm:$0xf]
    %v5885 = vld [vmem:[%s2] sm:$0x1]
    %v5887 = vlaneseq
    %v5888 = vshrl.u32 %v5887, 7
    %v5889 = vsub.s32 0, %v5888
    %v5890 = vrot.slane %v5885, %v5889
    %v5893 = vsel %vm1720, %v5848, 0
    %v5896 = vsel %vm1720, %v5849, 0
    %v5899 = vsel %vm1720, %v5850, 0
    %v5902 = vsel %vm1720, %v5851, 0
    %v5905 = vsel %vm1720, %v5852, 0
    %v5908 = vsel %vm1720, %v5853, 0
    %v5911 = vsel %vm1720, %v5854, 0
    %v5914 = vsel %vm1720, %v5855, 0
    %v5917 = vsel %vm1720, %v5856, 0
    %v5920 = vsel %vm1720, %v5857, 0
    %v5923 = vsel %vm1720, %v5858, 0
    %v5926 = vsel %vm1720, %v5859, 0
    %v5929 = vsel %vm1720, %v5860, 0
    %v5932 = vsel %vm1720, %v5861, 0
    %v5935 = vsel %vm1720, %v5862, 0
    %v5938 = vsel %vm1720, %v5863, 0
    %v5941 = vsel %vm1720, %v5864, 0
    %v5944 = vsel %vm1720, %v5865, 0
    %v5947 = vsel %vm1720, %v5866, 0
    %v5950 = vsel %vm1720, %v5867, 0
    %v5953 = vsel %vm1720, %v5868, 0
    %v5956 = vsel %vm1720, %v5869, 0
    %v5959 = vsel %vm1720, %v5870, 0
    %v5962 = vsel %vm1720, %v5871, 0
    %v5965 = vsel %vm1720, %v5872, 0
    %v5968 = vsel %vm1720, %v5873, 0
    %v5971 = vsel %vm1720, %v5874, 0
    %v5974 = vsel %vm1720, %v5875, 0
    %v5977 = vsel %vm1720, %v5876, 0
    %v5980 = vsel %vm1720, %v5877, 0
    %v5983 = vsel %vm1720, %v5878, 0
    %v5986 = vsel %vm1720, %v5879, 0
    %v5989 = vsel %vm1817, %v5884, 0
    %5991 = vmatprep.subr.mxu0 0.0
    %5992 = vmatpush1.msra.mxu0 %v5880
    %5993 = vmatprep.subr.mxu0 0.0
    %5994 = vmatpush1.msra.mxu0 %v5881
    %5995 = vmatprep.subr.mxu0 0.0
    %5996 = vmatpush1.msra.mxu0 %v5882
    %5997 = vmatprep.subr.mxu0 0.0
    %5998 = vmatpush1.msra.mxu0 %v5883
    %5999 = vmatprep.subr.mxu0 0.0
    %6000 = vmatpush1.msra.mxu0 %v5989
    %6001 = vmatprep.subr.mxu0 0.0
    %6002 = vmatpush1.msra.mxu0 0.0
    %6003 = vmatprep.subr.mxu0 0.0
    %6004 = vmatpush1.msra.mxu0 0.0
    %6005 = vmatprep.subr.mxu0 0.0
    %6006 = vmatpush1.msra.mxu0 0.0
    %6007 = vmatprep.subr.mxu0 0.0
    %6008 = vmatpush1.msra.mxu0 0.0
    %6009 = vmatprep.subr.mxu0 0.0
    %6010 = vmatpush1.msra.mxu0 0.0
    %6011 = vmatprep.subr.mxu0 0.0
    %6012 = vmatpush1.msra.mxu0 0.0
    %6013 = vmatprep.subr.mxu0 0.0
    %6014 = vmatpush1.msra.mxu0 0.0
    %6015 = vmatprep.subr.mxu0 0.0
    %6016 = vmatpush1.msra.mxu0 0.0
    %6017 = vmatprep.subr.mxu0 0.0
    %6018 = vmatpush1.msra.mxu0 0.0
    %6019 = vmatprep.subr.mxu0 0.0
    %6020 = vmatpush1.msra.mxu0 0.0
    %6021 = vmatprep.subr.mxu0 0.0
    %6022 = vmatpush1.msra.mxu0 0.0
    %6023 = vmatprep.subr.mxu0 0.0
    %6024 = vmatpush1.msra.mxu0 0.0
    %6025 = vmatprep.subr.mxu0 0.0
    %6026 = vmatpush1.msra.mxu0 0.0
    %6027 = vmatprep.subr.mxu0 0.0
    %6028 = vmatpush1.msra.mxu0 0.0
    %6029 = vmatprep.subr.mxu0 0.0
    %6030 = vmatpush1.msra.mxu0 0.0
    %6031 = vmatprep.subr.mxu0 0.0
    %6032 = vmatpush1.msra.mxu0 0.0
    %6033 = vmatprep.subr.mxu0 0.0
    %6034 = vmatpush1.msra.mxu0 0.0
    %6035 = vmatprep.subr.mxu0 0.0
    %6036 = vmatpush1.msra.mxu0 0.0
    %6037 = vmatprep.subr.mxu0 0.0
    %6038 = vmatpush1.msra.mxu0 0.0
    %6039 = vmatprep.subr.mxu0 0.0
    %6040 = vmatpush1.msra.mxu0 0.0
    %6041 = vmatprep.subr.mxu0 0.0
    %6042 = vmatpush1.msra.mxu0 0.0
    %6043 = vmatprep.subr.mxu0 0.0
    %6044 = vmatpush1.msra.mxu0 0.0
    %6045 = vmatprep.subr.mxu0 0.0
    %6046 = vmatpush1.msra.mxu0 0.0
    %6047 = vmatprep.subr.mxu0 0.0
    %6048 = vmatpush1.msra.mxu0 0.0
    %6049 = vmatprep.subr.mxu0 0.0
    %6050 = vmatpush1.msra.mxu0 0.0
    %6051 = vmatprep.subr.mxu0 0.0
    %6052 = vmatpush1.msra.mxu0 0.0
    %6053 = vmatprep.subr.mxu0 0.0
    %6054 = vmatpush1.msra.mxu0 0.0
    %6055 = vmatprep.mubr.f32.mxu0 0.0
    %6056 = vmatmul.mubr.f32.gmra.mrb[0].mxu0 %v5893
    %v6057 = vpop.f32.mrb[0].mxu0
    %v6058 = vadd.f32 %v5890, %v6057
    %v6059 = vpop.f32.mrb[0].mxu0
    %6060 = vmatprep.mubr.f32.mxu0 0.0
    %6061 = vmatmul.mubr.f32.gmra.mrb[0].mxu0 %v5896
    %v6062 = vpop.f32.mrb[0].mxu0
    %v6063 = vadd.f32 %v5890, %v6062
    %v6064 = vpop.f32.mrb[0].mxu0
    %6065 = vmatprep.mubr.f32.mxu0 0.0
    %6066 = vmatmul.mubr.f32.gmra.mrb[0].mxu0 %v5899
    %v6067 = vpop.f32.mrb[0].mxu0
    %v6068 = vadd.f32 %v5890, %v6067
    %v6069 = vpop.f32.mrb[0].mxu0
    %6070 = vmatprep.mubr.f32.mxu0 0.0
    %6071 = vmatmul.mubr.f32.gmra.mrb[0].mxu0 %v5902
    %v6072 = vpop.f32.mrb[0].mxu0
    %v6073 = vadd.f32 %v5890, %v6072
    %v6074 = vpop.f32.mrb[0].mxu0
    %6075 = vmatprep.mubr.f32.mxu0 0.0
    %6076 = vmatmul.mubr.f32.gmra.mrb[0].mxu0 %v5905
    %v6077 = vpop.f32.mrb[0].mxu0
    %v6078 = vadd.f32 %v5890, %v6077
    %v6079 = vpop.f32.mrb[0].mxu0
    %6080 = vmatprep.mubr.f32.mxu0 0.0
    %6081 = vmatmul.mubr.f32.gmra.mrb[0].mxu0 %v5908
    %v6082 = vpop.f32.mrb[0].mxu0
    %v6083 = vadd.f32 %v5890, %v6082
    %v6084 = vpop.f32.mrb[0].mxu0
    %6085 = vmatprep.mubr.f32.mxu0 0.0
    %6086 = vmatmul.mubr.f32.gmra.mrb[0].mxu0 %v5911
    %v6087 = vpop.f32.mrb[0].mxu0
    %v6088 = vadd.f32 %v5890, %v6087
    %v6089 = vpop.f32.mrb[0].mxu0
    %6090 = vmatprep.mubr.f32.mxu0 0.0
    %6091 = vmatmul.mubr.f32.gmra.mrb[0].mxu0 %v5914
    %v6092 = vpop.f32.mrb[0].mxu0
    %v6093 = vadd.f32 %v5890, %v6092
    %v6094 = vpop.f32.mrb[0].mxu0
    %6095 = vmatprep.mubr.f32.mxu0 0.0
    %6096 = vmatmul.mubr.f32.gmra.mrb[0].mxu0 %v5917
    %v6097 = vpop.f32.mrb[0].mxu0
    %v6098 = vadd.f32 %v5890, %v6097
    %v6099 = vpop.f32.mrb[0].mxu0
    %6100 = vmatprep.mubr.f32.mxu0 0.0
    %6101 = vmatmul.mubr.f32.gmra.mrb[0].mxu0 %v5920
    %v6102 = vpop.f32.mrb[0].mxu0
    %v6103 = vadd.f32 %v5890, %v6102
    %v6104 = vpop.f32.mrb[0].mxu0
    %6105 = vmatprep.mubr.f32.mxu0 0.0
    %6106 = vmatmul.mubr.f32.gmra.mrb[0].mxu0 %v5923
    %v6107 = vpop.f32.mrb[0].mxu0
    %v6108 = vadd.f32 %v5890, %v6107
    %v6109 = vpop.f32.mrb[0].mxu0
    %6110 = vmatprep.mubr.f32.mxu0 0.0
    %6111 = vmatmul.mubr.f32.gmra.mrb[0].mxu0 %v5926
    %v6112 = vpop.f32.mrb[0].mxu0
    %v6113 = vadd.f32 %v5890, %v6112
    %v6114 = vpop.f32.mrb[0].mxu0
    %6115 = vmatprep.mubr.f32.mxu0 0.0
    %6116 = vmatmul.mubr.f32.gmra.mrb[0].mxu0 %v5929
    %v6117 = vpop.f32.mrb[0].mxu0
    %v6118 = vadd.f32 %v5890, %v6117
    %v6119 = vpop.f32.mrb[0].mxu0
    %6120 = vmatprep.mubr.f32.mxu0 0.0
    %6121 = vmatmul.mubr.f32.gmra.mrb[0].mxu0 %v5932
    %v6122 = vpop.f32.mrb[0].mxu0
    %v6123 = vadd.f32 %v5890, %v6122
    %v6124 = vpop.f32.mrb[0].mxu0
    %6125 = vmatprep.mubr.f32.mxu0 0.0
    %6126 = vmatmul.mubr.f32.gmra.mrb[0].mxu0 %v5935
    %v6127 = vpop.f32.mrb[0].mxu0
    %v6128 = vadd.f32 %v5890, %v6127
    %v6129 = vpop.f32.mrb[0].mxu0
    %6130 = vmatprep.mubr.f32.mxu0 0.0
    %6131 = vmatmul.mubr.f32.gmra.mrb[0].mxu0 %v5938
    %v6132 = vpop.f32.mrb[0].mxu0
    %v6133 = vadd.f32 %v5890, %v6132
    %v6134 = vpop.f32.mrb[0].mxu0
    %6135 = vmatprep.mubr.f32.mxu0 0.0
    %6136 = vmatmul.mubr.f32.gmra.mrb[0].mxu0 %v5941
    %v6137 = vpop.f32.mrb[0].mxu0
    %v6138 = vadd.f32 %v5890, %v6137
    %v6139 = vpop.f32.mrb[0].mxu0
    %6140 = vmatprep.mubr.f32.mxu0 0.0
    %6141 = vmatmul.mubr.f32.gmra.mrb[0].mxu0 %v5944
    %v6142 = vpop.f32.mrb[0].mxu0
    %v6143 = vadd.f32 %v5890, %v6142
    %v6144 = vpop.f32.mrb[0].mxu0
    %6145 = vmatprep.mubr.f32.mxu0 0.0
    %6146 = vmatmul.mubr.f32.gmra.mrb[0].mxu0 %v5947
    %v6147 = vpop.f32.mrb[0].mxu0
    %v6148 = vadd.f32 %v5890, %v6147
    %v6149 = vpop.f32.mrb[0].mxu0
    %6150 = vmatprep.mubr.f32.mxu0 0.0
    %6151 = vmatmul.mubr.f32.gmra.mrb[0].mxu0 %v5950
    %v6152 = vpop.f32.mrb[0].mxu0
    %v6153 = vadd.f32 %v5890, %v6152
    %v6154 = vpop.f32.mrb[0].mxu0
    %6155 = vmatprep.mubr.f32.mxu0 0.0
    %6156 = vmatmul.mubr.f32.gmra.mrb[0].mxu0 %v5953
    %v6157 = vpop.f32.mrb[0].mxu0
    %v6158 = vadd.f32 %v5890, %v6157
    %v6159 = vpop.f32.mrb[0].mxu0
    %6160 = vmatprep.mubr.f32.mxu0 0.0
    %6161 = vmatmul.mubr.f32.gmra.mrb[0].mxu0 %v5956
    %v6162 = vpop.f32.mrb[0].mxu0
    %v6163 = vadd.f32 %v5890, %v6162
    %v6164 = vpop.f32.mrb[0].mxu0
    %6165 = vmatprep.mubr.f32.mxu0 0.0
    %6166 = vmatmul.mubr.f32.gmra.mrb[0].mxu0 %v5959
    %v6167 = vpop.f32.mrb[0].mxu0
    %v6168 = vadd.f32 %v5890, %v6167
    %v6169 = vpop.f32.mrb[0].mxu0
    %6170 = vmatprep.mubr.f32.mxu0 0.0
    %6171 = vmatmul.mubr.f32.gmra.mrb[0].mxu0 %v5962
    %v6172 = vpop.f32.mrb[0].mxu0
    %v6173 = vadd.f32 %v5890, %v6172
    %v6174 = vpop.f32.mrb[0].mxu0
    %6175 = vmatprep.mubr.f32.mxu0 0.0
    %6176 = vmatmul.mubr.f32.gmra.mrb[0].mxu0 %v5965
    %v6177 = vpop.f32.mrb[0].mxu0
    %v6178 = vadd.f32 %v5890, %v6177
    %v6179 = vpop.f32.mrb[0].mxu0
    %6180 = vmatprep.mubr.f32.mxu0 0.0
    %6181 = vmatmul.mubr.f32.gmra.mrb[0].mxu0 %v5968
    %v6182 = vpop.f32.mrb[0].mxu0
    %v6183 = vadd.f32 %v5890, %v6182
    %v6184 = vpop.f32.mrb[0].mxu0
    %6185 = vmatprep.mubr.f32.mxu0 0.0
    %6186 = vmatmul.mubr.f32.gmra.mrb[0].mxu0 %v5971
    %v6187 = vpop.f32.mrb[0].mxu0
    %v6188 = vadd.f32 %v5890, %v6187
    %v6189 = vpop.f32.mrb[0].mxu0
    %6190 = vmatprep.mubr.f32.mxu0 0.0
    %6191 = vmatmul.mubr.f32.gmra.mrb[0].mxu0 %v5974
    %v6192 = vpop.f32.mrb[0].mxu0
    %v6193 = vadd.f32 %v5890, %v6192
    %v6194 = vpop.f32.mrb[0].mxu0
    %6195 = vmatprep.mubr.f32.mxu0 0.0
    %6196 = vmatmul.mubr.f32.gmra.mrb[0].mxu0 %v5977
    %v6197 = vpop.f32.mrb[0].mxu0
    %v6198 = vadd.f32 %v5890, %v6197
    %v6199 = vpop.f32.mrb[0].mxu0
    %6200 = vmatprep.mubr.f32.mxu0 0.0
    %6201 = vmatmul.mubr.f32.gmra.mrb[0].mxu0 %v5980
    %v6202 = vpop.f32.mrb[0].mxu0
    %v6203 = vadd.f32 %v5890, %v6202
    %v6204 = vpop.f32.mrb[0].mxu0
    %6205 = vmatprep.mubr.f32.mxu0 0.0
    %6206 = vmatmul.mubr.f32.gmra.mrb[0].mxu0 %v5983
    %v6207 = vpop.f32.mrb[0].mxu0
    %v6208 = vadd.f32 %v5890, %v6207
    %v6209 = vpop.f32.mrb[0].mxu0
    %6210 = vmatprep.mubr.f32.mxu0 0.0
    %6211 = vmatmul.mubr.f32.gmra.mrb[0].mxu0 %v5986
    %v6212 = vpop.f32.mrb[0].mxu0
    %v6213 = vadd.f32 %v5890, %v6212
    %v6214 = vpop.f32.mrb[0].mxu0
    %6215 = vdwg.mxu0
    %vm6216 = vcmp.gt.f32.partialorder %v6058, 0.0
    %vm6217 = vcmp.gt.f32.partialorder %v6063, 0.0
    %vm6218 = vcmp.gt.f32.partialorder %v6068, 0.0
    %vm6219 = vcmp.gt.f32.partialorder %v6073, 0.0
    %vm6220 = vcmp.gt.f32.partialorder %v6078, 0.0
    %vm6221 = vcmp.gt.f32.partialorder %v6083, 0.0
    %vm6222 = vcmp.gt.f32.partialorder %v6088, 0.0
    %vm6223 = vcmp.gt.f32.partialorder %v6093, 0.0
    %vm6224 = vcmp.gt.f32.partialorder %v6098, 0.0
    %vm6225 = vcmp.gt.f32.partialorder %v6103, 0.0
    %vm6226 = vcmp.gt.f32.partialorder %v6108, 0.0
    %vm6227 = vcmp.gt.f32.partialorder %v6113, 0.0
    %vm6228 = vcmp.gt.f32.partialorder %v6118, 0.0
    %vm6229 = vcmp.gt.f32.partialorder %v6123, 0.0
    %vm6230 = vcmp.gt.f32.partialorder %v6128, 0.0
    %vm6231 = vcmp.gt.f32.partialorder %v6133, 0.0
    %vm6232 = vcmp.gt.f32.partialorder %v6138, 0.0
    %vm6233 = vcmp.gt.f32.partialorder %v6143, 0.0
    %vm6234 = vcmp.gt.f32.partialorder %v6148, 0.0
    %vm6235 = vcmp.gt.f32.partialorder %v6153, 0.0
    %vm6236 = vcmp.gt.f32.partialorder %v6158, 0.0
    %vm6237 = vcmp.gt.f32.partialorder %v6163, 0.0
    %vm6238 = vcmp.gt.f32.partialorder %v6168, 0.0
    %vm6239 = vcmp.gt.f32.partialorder %v6173, 0.0
    %vm6240 = vcmp.gt.f32.partialorder %v6178, 0.0
    %vm6241 = vcmp.gt.f32.partialorder %v6183, 0.0
    %vm6242 = vcmp.gt.f32.partialorder %v6188, 0.0
    %vm6243 = vcmp.gt.f32.partialorder %v6193, 0.0
    %vm6244 = vcmp.gt.f32.partialorder %v6198, 0.0
    %vm6245 = vcmp.gt.f32.partialorder %v6203, 0.0
    %vm6246 = vcmp.gt.f32.partialorder %v6208, 0.0
    %vm6247 = vcmp.gt.f32.partialorder %v6213, 0.0
    %v6248 = vmul.f32 %v6058, 0.2
    %v6249 = vmul.f32 %v6063, 0.2
    %v6250 = vmul.f32 %v6068, 0.2
    %v6251 = vmul.f32 %v6073, 0.2
    %v6252 = vmul.f32 %v6078, 0.2
    %v6253 = vmul.f32 %v6083, 0.2
    %v6254 = vmul.f32 %v6088, 0.2
    %v6255 = vmul.f32 %v6093, 0.2
    %v6256 = vmul.f32 %v6098, 0.2
    %v6257 = vmul.f32 %v6103, 0.2
    %v6258 = vmul.f32 %v6108, 0.2
    %v6259 = vmul.f32 %v6113, 0.2
    %v6260 = vmul.f32 %v6118, 0.2
    %v6261 = vmul.f32 %v6123, 0.2
    %v6262 = vmul.f32 %v6128, 0.2
    %v6263 = vmul.f32 %v6133, 0.2
    %v6264 = vmul.f32 %v6138, 0.2
    %v6265 = vmul.f32 %v6143, 0.2
    %v6266 = vmul.f32 %v6148, 0.2
    %v6267 = vmul.f32 %v6153, 0.2
    %v6268 = vmul.f32 %v6158, 0.2
    %v6269 = vmul.f32 %v6163, 0.2
    %v6270 = vmul.f32 %v6168, 0.2
    %v6271 = vmul.f32 %v6173, 0.2
    %v6272 = vmul.f32 %v6178, 0.2
    %v6273 = vmul.f32 %v6183, 0.2
    %v6274 = vmul.f32 %v6188, 0.2
    %v6275 = vmul.f32 %v6193, 0.2
    %v6276 = vmul.f32 %v6198, 0.2
    %v6277 = vmul.f32 %v6203, 0.2
    %v6278 = vmul.f32 %v6208, 0.2
    %v6279 = vmul.f32 %v6213, 0.2
    %v6280 = vsel %vm6216, %v6058, %v6248
    %v6281 = vsel %vm6217, %v6063, %v6249
    %v6282 = vsel %vm6218, %v6068, %v6250
    %v6283 = vsel %vm6219, %v6073, %v6251
    %v6284 = vsel %vm6220, %v6078, %v6252
    %v6285 = vsel %vm6221, %v6083, %v6253
    %v6286 = vsel %vm6222, %v6088, %v6254
    %v6287 = vsel %vm6223, %v6093, %v6255
    %v6288 = vsel %vm6224, %v6098, %v6256
    %v6289 = vsel %vm6225, %v6103, %v6257
    %v6290 = vsel %vm6226, %v6108, %v6258
    %v6291 = vsel %vm6227, %v6113, %v6259
    %v6292 = vsel %vm6228, %v6118, %v6260
    %v6293 = vsel %vm6229, %v6123, %v6261
    %v6294 = vsel %vm6230, %v6128, %v6262
    %v6295 = vsel %vm6231, %v6133, %v6263
    %v6296 = vsel %vm6232, %v6138, %v6264
    %v6297 = vsel %vm6233, %v6143, %v6265
    %v6298 = vsel %vm6234, %v6148, %v6266
    %v6299 = vsel %vm6235, %v6153, %v6267
    %v6300 = vsel %vm6236, %v6158, %v6268
    %v6301 = vsel %vm6237, %v6163, %v6269
    %v6302 = vsel %vm6238, %v6168, %v6270
    %v6303 = vsel %vm6239, %v6173, %v6271
    %v6304 = vsel %vm6240, %v6178, %v6272
    %v6305 = vsel %vm6241, %v6183, %v6273
    %v6306 = vsel %vm6242, %v6188, %v6274
    %v6307 = vsel %vm6243, %v6193, %v6275
    %v6308 = vsel %vm6244, %v6198, %v6276
    %v6309 = vsel %vm6245, %v6203, %v6277
    %v6310 = vsel %vm6246, %v6208, %v6278
    %v6311 = vsel %vm6247, %v6213, %v6279
    %s6312 = scalar_lea.vmem [#allocation2], 456
    %6313 = vst.msk [vmem:[%s6312 + $0x1] sm:$0xff] %vm21, %v6280
    %6314 = vst.msk [vmem:[%s6312 + $0x9] sm:$0xff] %vm21, %v6281
    %6315 = vst.msk [vmem:[%s6312 + $0x19] sm:$0xff] %vm21, %v6282
    %6316 = vst.msk [vmem:[%s6312 + $0x21] sm:$0xff] %vm21, %v6283
    %6317 = vst.msk [vmem:[%s6312 + $0x31] sm:$0xff] %vm21, %v6284
    %6318 = vst.msk [vmem:[%s6312 + $0x39] sm:$0xff] %vm21, %v6285
    %6319 = vst.msk [vmem:[%s6312 + $0x49] sm:$0xff] %vm21, %v6286
    %6320 = vst.msk [vmem:[%s6312 + $0x51] sm:$0xff] %vm21, %v6287
    %6321 = vst.msk [vmem:[%s6312 + $0x61] sm:$0xff] %vm21, %v6288
    %6322 = vst.msk [vmem:[%s6312 + $0x69] sm:$0xff] %vm21, %v6289
    %6323 = vst.msk [vmem:[%s6312 + $0x79] sm:$0xff] %vm21, %v6290
    %6324 = vst.msk [vmem:[%s6312 + $0x81] sm:$0xff] %vm21, %v6291
    %6325 = vst.msk [vmem:[%s6312 + $0x91] sm:$0xff] %vm21, %v6292
    %6326 = vst.msk [vmem:[%s6312 + $0x99] sm:$0xff] %vm21, %v6293
    %6327 = vst.msk [vmem:[%s6312 + $0xa9] sm:$0xff] %vm21, %v6294
    %6328 = vst.msk [vmem:[%s6312 + $0xb1] sm:$0xff] %vm21, %v6295
    %6329 = vst.msk [vmem:[%s6312 + $0xc1] sm:$0xff] %vm21, %v6296
    %6330 = vst.msk [vmem:[%s6312 + $0xc9] sm:$0xff] %vm21, %v6297
    %6331 = vst.msk [vmem:[%s6312 + $0xd9] sm:$0xff] %vm21, %v6298
    %6332 = vst.msk [vmem:[%s6312 + $0xe1] sm:$0xff] %vm21, %v6299
    %6333 = vst.msk [vmem:[%s6312 + $0xf1] sm:$0xff] %vm21, %v6300
    %6334 = vst.msk [vmem:[%s6312 + $0xf9] sm:$0xff] %vm21, %v6301
    %6335 = vst.msk [vmem:[%s6312 + $0x109] sm:$0xff] %vm21, %v6302
    %6336 = vst.msk [vmem:[%s6312 + $0x111] sm:$0xff] %vm21, %v6303
    %6337 = vst.msk [vmem:[%s6312 + $0x121] sm:$0xff] %vm21, %v6304
    %6338 = vst.msk [vmem:[%s6312 + $0x129] sm:$0xff] %vm21, %v6305
    %6339 = vst.msk [vmem:[%s6312 + $0x139] sm:$0xff] %vm21, %v6306
    %6340 = vst.msk [vmem:[%s6312 + $0x141] sm:$0xff] %vm21, %v6307
    %6341 = vst.msk [vmem:[%s6312 + $0x151] sm:$0xff] %vm21, %v6308
    %6342 = vst.msk [vmem:[%s6312 + $0x159] sm:$0xff] %vm21, %v6309
    %6343 = vst.msk [vmem:[%s6312 + $0x169] sm:$0xff] %vm21, %v6310
    %6344 = vst.msk [vmem:[%s6312 + $0x171] sm:$0xff] %vm21, %v6311
    %s6345 = scalar_lea.vmem [#allocation2], 432
    %v6346 = vld [vmem:[%s6345] sm:$0xff]
    %v6347 = vld [vmem:[%s6345 + $0x8] sm:$0xff]
    %v6348 = vld [vmem:[%s6345 + $0x18] sm:$0xff]
    %v6349 = vld [vmem:[%s6345 + $0x20] sm:$0xff]
    %v6350 = vld [vmem:[%s6345 + $0x30] sm:$0xff]
    %v6351 = vld [vmem:[%s6345 + $0x38] sm:$0xff]
    %v6352 = vld [vmem:[%s6345 + $0x48] sm:$0xff]
    %v6353 = vld [vmem:[%s6345 + $0x50] sm:$0xff]
    %v6354 = vld [vmem:[%s6345 + $0x60] sm:$0xff]
    %v6355 = vld [vmem:[%s6345 + $0x68] sm:$0xff]
    %v6356 = vld [vmem:[%s6345 + $0x78] sm:$0xff]
    %v6357 = vld [vmem:[%s6345 + $0x80] sm:$0xff]
    %v6358 = vld [vmem:[%s6345 + $0x90] sm:$0xff]
    %v6359 = vld [vmem:[%s6345 + $0x98] sm:$0xff]
    %v6360 = vld [vmem:[%s6345 + $0xa8] sm:$0xff]
    %v6361 = vld [vmem:[%s6345 + $0xb0] sm:$0xff]
    %v6362 = vld [vmem:[%s6345 + $0xc0] sm:$0xff]
    %v6363 = vld [vmem:[%s6345 + $0xc8] sm:$0xff]
    %v6364 = vld [vmem:[%s6345 + $0xd8] sm:$0xff]
    %v6365 = vld [vmem:[%s6345 + $0xe0] sm:$0xff]
    %v6366 = vld [vmem:[%s6345 + $0xf0] sm:$0xff]
    %v6367 = vld [vmem:[%s6345 + $0xf8] sm:$0xff]
    %v6368 = vld [vmem:[%s6345 + $0x108] sm:$0xff]
    %v6369 = vld [vmem:[%s6345 + $0x110] sm:$0xff]
    %v6370 = vld [vmem:[%s6345 + $0x120] sm:$0xff]
    %v6371 = vld [vmem:[%s6345 + $0x128] sm:$0xff]
    %v6372 = vld [vmem:[%s6345 + $0x138] sm:$0xff]
    %v6373 = vld [vmem:[%s6345 + $0x140] sm:$0xff]
    %v6374 = vld [vmem:[%s6345 + $0x150] sm:$0xff]
    %v6375 = vld [vmem:[%s6345 + $0x158] sm:$0xff]
    %v6376 = vld [vmem:[%s6345 + $0x168] sm:$0xff]
    %v6377 = vld [vmem:[%s6345 + $0x170] sm:$0xff]
    %v6378 = vld [vmem:[%s6345 + $0x1] sm:$0xff]
    %v6379 = vld [vmem:[%s6345 + $0x9] sm:$0xff]
    %v6380 = vld [vmem:[%s6345 + $0x19] sm:$0xff]
    %v6381 = vld [vmem:[%s6345 + $0x21] sm:$0xff]
    %v6382 = vld [vmem:[%s6345 + $0x31] sm:$0xff]
    %v6383 = vld [vmem:[%s6345 + $0x39] sm:$0xff]
    %v6384 = vld [vmem:[%s6345 + $0x49] sm:$0xff]
    %v6385 = vld [vmem:[%s6345 + $0x51] sm:$0xff]
    %v6386 = vld [vmem:[%s6345 + $0x61] sm:$0xff]
    %v6387 = vld [vmem:[%s6345 + $0x69] sm:$0xff]
    %v6388 = vld [vmem:[%s6345 + $0x79] sm:$0xff]
    %v6389 = vld [vmem:[%s6345 + $0x81] sm:$0xff]
    %v6390 = vld [vmem:[%s6345 + $0x91] sm:$0xff]
    %v6391 = vld [vmem:[%s6345 + $0x99] sm:$0xff]
    %v6392 = vld [vmem:[%s6345 + $0xa9] sm:$0xff]
    %v6393 = vld [vmem:[%s6345 + $0xb1] sm:$0xff]
    %v6394 = vld [vmem:[%s6345 + $0xc1] sm:$0xff]
    %v6395 = vld [vmem:[%s6345 + $0xc9] sm:$0xff]
    %v6396 = vld [vmem:[%s6345 + $0xd9] sm:$0xff]
    %v6397 = vld [vmem:[%s6345 + $0xe1] sm:$0xff]
    %v6398 = vld [vmem:[%s6345 + $0xf1] sm:$0xff]
    %v6399 = vld [vmem:[%s6345 + $0xf9] sm:$0xff]
    %v6400 = vld [vmem:[%s6345 + $0x109] sm:$0xff]
    %v6401 = vld [vmem:[%s6345 + $0x111] sm:$0xff]
    %v6402 = vld [vmem:[%s6345 + $0x121] sm:$0xff]
    %v6403 = vld [vmem:[%s6345 + $0x129] sm:$0xff]
    %v6404 = vld [vmem:[%s6345 + $0x139] sm:$0xff]
    %v6405 = vld [vmem:[%s6345 + $0x141] sm:$0xff]
    %v6406 = vld [vmem:[%s6345 + $0x151] sm:$0xff]
    %v6407 = vld [vmem:[%s6345 + $0x159] sm:$0xff]
    %v6408 = vld [vmem:[%s6345 + $0x169] sm:$0xff]
    %v6409 = vld [vmem:[%s6345 + $0x171] sm:$0xff]
    %v6410 = vld [vmem:[%s6345 + $0x2] sm:$0xff]
    %v6411 = vld [vmem:[%s6345 + $0xa] sm:$0xff]
    %v6412 = vld [vmem:[%s6345 + $0x1a] sm:$0xff]
    %v6413 = vld [vmem:[%s6345 + $0x22] sm:$0xff]
    %v6414 = vld [vmem:[%s6345 + $0x32] sm:$0xff]
    %v6415 = vld [vmem:[%s6345 + $0x3a] sm:$0xff]
    %v6416 = vld [vmem:[%s6345 + $0x4a] sm:$0xff]
    %v6417 = vld [vmem:[%s6345 + $0x52] sm:$0xff]
    %v6418 = vld [vmem:[%s6345 + $0x62] sm:$0xff]
    %v6419 = vld [vmem:[%s6345 + $0x6a] sm:$0xff]
    %v6420 = vld [vmem:[%s6345 + $0x7a] sm:$0xff]
    %v6421 = vld [vmem:[%s6345 + $0x82] sm:$0xff]
    %v6422 = vld [vmem:[%s6345 + $0x92] sm:$0xff]
    %v6423 = vld [vmem:[%s6345 + $0x9a] sm:$0xff]
    %v6424 = vld [vmem:[%s6345 + $0xaa] sm:$0xff]
    %v6425 = vld [vmem:[%s6345 + $0xb2] sm:$0xff]
    %v6426 = vld [vmem:[%s6345 + $0xc2] sm:$0xff]
    %v6427 = vld [vmem:[%s6345 + $0xca] sm:$0xff]
    %v6428 = vld [vmem:[%s6345 + $0xda] sm:$0xff]
    %v6429 = vld [vmem:[%s6345 + $0xe2] sm:$0xff]
    %v6430 = vld [vmem:[%s6345 + $0xf2] sm:$0xff]
    %v6431 = vld [vmem:[%s6345 + $0xfa] sm:$0xff]
    %v6432 = vld [vmem:[%s6345 + $0x10a] sm:$0xff]
    %v6433 = vld [vmem:[%s6345 + $0x112] sm:$0xff]
    %v6434 = vld [vmem:[%s6345 + $0x122] sm:$0xff]
    %v6435 = vld [vmem:[%s6345 + $0x12a] sm:$0xff]
    %v6436 = vld [vmem:[%s6345 + $0x13a] sm:$0xff]
    %v6437 = vld [vmem:[%s6345 + $0x142] sm:$0xff]
    %v6438 = vld [vmem:[%s6345 + $0x152] sm:$0xff]
    %v6439 = vld [vmem:[%s6345 + $0x15a] sm:$0xff]
    %v6440 = vld [vmem:[%s6345 + $0x16a] sm:$0xff]
    %v6441 = vld [vmem:[%s6345 + $0x172] sm:$0xff]
    %v6442 = vld [vmem:[%s6312] sm:$0xff]
    %v6443 = vld [vmem:[%s6312 + $0x8] sm:$0xff]
    %v6444 = vld [vmem:[%s6312 + $0x18] sm:$0xff]
    %v6445 = vld [vmem:[%s6312 + $0x20] sm:$0xff]
    %v6446 = vld [vmem:[%s6312 + $0x30] sm:$0xff]
    %v6447 = vld [vmem:[%s6312 + $0x38] sm:$0xff]
    %v6448 = vld [vmem:[%s6312 + $0x48] sm:$0xff]
    %v6449 = vld [vmem:[%s6312 + $0x50] sm:$0xff]
    %v6450 = vld [vmem:[%s6312 + $0x60] sm:$0xff]
    %v6451 = vld [vmem:[%s6312 + $0x68] sm:$0xff]
    %v6452 = vld [vmem:[%s6312 + $0x78] sm:$0xff]
    %v6453 = vld [vmem:[%s6312 + $0x80] sm:$0xff]
    %v6454 = vld [vmem:[%s6312 + $0x90] sm:$0xff]
    %v6455 = vld [vmem:[%s6312 + $0x98] sm:$0xff]
    %v6456 = vld [vmem:[%s6312 + $0xa8] sm:$0xff]
    %v6457 = vld [vmem:[%s6312 + $0xb0] sm:$0xff]
    %v6458 = vld [vmem:[%s6312 + $0xc0] sm:$0xff]
    %v6459 = vld [vmem:[%s6312 + $0xc8] sm:$0xff]
    %v6460 = vld [vmem:[%s6312 + $0xd8] sm:$0xff]
    %v6461 = vld [vmem:[%s6312 + $0xe0] sm:$0xff]
    %v6462 = vld [vmem:[%s6312 + $0xf0] sm:$0xff]
    %v6463 = vld [vmem:[%s6312 + $0xf8] sm:$0xff]
    %v6464 = vld [vmem:[%s6312 + $0x108] sm:$0xff]
    %v6465 = vld [vmem:[%s6312 + $0x110] sm:$0xff]
    %v6466 = vld [vmem:[%s6312 + $0x120] sm:$0xff]
    %v6467 = vld [vmem:[%s6312 + $0x128] sm:$0xff]
    %v6468 = vld [vmem:[%s6312 + $0x138] sm:$0xff]
    %v6469 = vld [vmem:[%s6312 + $0x140] sm:$0xff]
    %v6470 = vld [vmem:[%s6312 + $0x150] sm:$0xff]
    %v6471 = vld [vmem:[%s6312 + $0x158] sm:$0xff]
    %v6472 = vld [vmem:[%s6312 + $0x168] sm:$0xff]
    %v6473 = vld [vmem:[%s6312 + $0x170] sm:$0xff]
    %v6474 = vld [vmem:[%s6312 + $0x1] sm:$0xff]
    %v6475 = vld [vmem:[%s6312 + $0x9] sm:$0xff]
    %v6476 = vld [vmem:[%s6312 + $0x19] sm:$0xff]
    %v6477 = vld [vmem:[%s6312 + $0x21] sm:$0xff]
    %v6478 = vld [vmem:[%s6312 + $0x31] sm:$0xff]
    %v6479 = vld [vmem:[%s6312 + $0x39] sm:$0xff]
    %v6480 = vld [vmem:[%s6312 + $0x49] sm:$0xff]
    %v6481 = vld [vmem:[%s6312 + $0x51] sm:$0xff]
    %v6482 = vld [vmem:[%s6312 + $0x61] sm:$0xff]
    %v6483 = vld [vmem:[%s6312 + $0x69] sm:$0xff]
    %v6484 = vld [vmem:[%s6312 + $0x79] sm:$0xff]
    %v6485 = vld [vmem:[%s6312 + $0x81] sm:$0xff]
    %v6486 = vld [vmem:[%s6312 + $0x91] sm:$0xff]
    %v6487 = vld [vmem:[%s6312 + $0x99] sm:$0xff]
    %v6488 = vld [vmem:[%s6312 + $0xa9] sm:$0xff]
    %v6489 = vld [vmem:[%s6312 + $0xb1] sm:$0xff]
    %v6490 = vld [vmem:[%s6312 + $0xc1] sm:$0xff]
    %v6491 = vld [vmem:[%s6312 + $0xc9] sm:$0xff]
    %v6492 = vld [vmem:[%s6312 + $0xd9] sm:$0xff]
    %v6493 = vld [vmem:[%s6312 + $0xe1] sm:$0xff]
    %v6494 = vld [vmem:[%s6312 + $0xf1] sm:$0xff]
    %v6495 = vld [vmem:[%s6312 + $0xf9] sm:$0xff]
    %v6496 = vld [vmem:[%s6312 + $0x109] sm:$0xff]
    %v6497 = vld [vmem:[%s6312 + $0x111] sm:$0xff]
    %v6498 = vld [vmem:[%s6312 + $0x121] sm:$0xff]
    %v6499 = vld [vmem:[%s6312 + $0x129] sm:$0xff]
    %v6500 = vld [vmem:[%s6312 + $0x139] sm:$0xff]
    %v6501 = vld [vmem:[%s6312 + $0x141] sm:$0xff]
    %v6502 = vld [vmem:[%s6312 + $0x151] sm:$0xff]
    %v6503 = vld [vmem:[%s6312 + $0x159] sm:$0xff]
    %v6504 = vld [vmem:[%s6312 + $0x169] sm:$0xff]
    %v6505 = vld [vmem:[%s6312 + $0x171] sm:$0xff]
    %v6506 = vld [vmem:[%s6312 + $0x2] sm:$0xff]
    %v6507 = vld [vmem:[%s6312 + $0xa] sm:$0xff]
    %v6508 = vld [vmem:[%s6312 + $0x1a] sm:$0xff]
    %v6509 = vld [vmem:[%s6312 + $0x22] sm:$0xff]
    %v6510 = vld [vmem:[%s6312 + $0x32] sm:$0xff]
    %v6511 = vld [vmem:[%s6312 + $0x3a] sm:$0xff]
    %v6512 = vld [vmem:[%s6312 + $0x4a] sm:$0xff]
    %v6513 = vld [vmem:[%s6312 + $0x52] sm:$0xff]
    %v6514 = vld [vmem:[%s6312 + $0x62] sm:$0xff]
    %v6515 = vld [vmem:[%s6312 + $0x6a] sm:$0xff]
    %v6516 = vld [vmem:[%s6312 + $0x7a] sm:$0xff]
    %v6517 = vld [vmem:[%s6312 + $0x82] sm:$0xff]
    %v6518 = vld [vmem:[%s6312 + $0x92] sm:$0xff]
    %v6519 = vld [vmem:[%s6312 + $0x9a] sm:$0xff]
    %v6520 = vld [vmem:[%s6312 + $0xaa] sm:$0xff]
    %v6521 = vld [vmem:[%s6312 + $0xb2] sm:$0xff]
    %v6522 = vld [vmem:[%s6312 + $0xc2] sm:$0xff]
    %v6523 = vld [vmem:[%s6312 + $0xca] sm:$0xff]
    %v6524 = vld [vmem:[%s6312 + $0xda] sm:$0xff]
    %v6525 = vld [vmem:[%s6312 + $0xe2] sm:$0xff]
    %v6526 = vld [vmem:[%s6312 + $0xf2] sm:$0xff]
    %v6527 = vld [vmem:[%s6312 + $0xfa] sm:$0xff]
    %v6528 = vld [vmem:[%s6312 + $0x10a] sm:$0xff]
    %v6529 = vld [vmem:[%s6312 + $0x112] sm:$0xff]
    %v6530 = vld [vmem:[%s6312 + $0x122] sm:$0xff]
    %v6531 = vld [vmem:[%s6312 + $0x12a] sm:$0xff]
    %v6532 = vld [vmem:[%s6312 + $0x13a] sm:$0xff]
    %v6533 = vld [vmem:[%s6312 + $0x142] sm:$0xff]
    %v6534 = vld [vmem:[%s6312 + $0x152] sm:$0xff]
    %v6535 = vld [vmem:[%s6312 + $0x15a] sm:$0xff]
    %v6536 = vld [vmem:[%s6312 + $0x16a] sm:$0xff]
    %v6537 = vld [vmem:[%s6312 + $0x172] sm:$0xff]
    %s6538 = scalar_lea.vmem [#allocation2], 480
    %v6539 = vld [vmem:[%s6538] sm:$0xff]
    %v6540 = vld [vmem:[%s6538 + $0x8] sm:$0xff]
    %v6541 = vld [vmem:[%s6538 + $0x18] sm:$0xff]
    %v6542 = vld [vmem:[%s6538 + $0x20] sm:$0xff]
    %v6543 = vld [vmem:[%s6538 + $0x30] sm:$0xff]
    %v6544 = vld [vmem:[%s6538 + $0x38] sm:$0xff]
    %v6545 = vld [vmem:[%s6538 + $0x48] sm:$0xff]
    %v6546 = vld [vmem:[%s6538 + $0x50] sm:$0xff]
    %v6547 = vld [vmem:[%s6538 + $0x60] sm:$0xff]
    %v6548 = vld [vmem:[%s6538 + $0x68] sm:$0xff]
    %v6549 = vld [vmem:[%s6538 + $0x78] sm:$0xff]
    %v6550 = vld [vmem:[%s6538 + $0x80] sm:$0xff]
    %v6551 = vld [vmem:[%s6538 + $0x90] sm:$0xff]
    %v6552 = vld [vmem:[%s6538 + $0x98] sm:$0xff]
    %v6553 = vld [vmem:[%s6538 + $0xa8] sm:$0xff]
    %v6554 = vld [vmem:[%s6538 + $0xb0] sm:$0xff]
    %v6555 = vld [vmem:[%s6538 + $0xc0] sm:$0xff]
    %v6556 = vld [vmem:[%s6538 + $0xc8] sm:$0xff]
    %v6557 = vld [vmem:[%s6538 + $0xd8] sm:$0xff]
    %v6558 = vld [vmem:[%s6538 + $0xe0] sm:$0xff]
    %v6559 = vld [vmem:[%s6538 + $0xf0] sm:$0xff]
    %v6560 = vld [vmem:[%s6538 + $0xf8] sm:$0xff]
    %v6561 = vld [vmem:[%s6538 + $0x108] sm:$0xff]
    %v6562 = vld [vmem:[%s6538 + $0x110] sm:$0xff]
    %v6563 = vld [vmem:[%s6538 + $0x120] sm:$0xff]
    %v6564 = vld [vmem:[%s6538 + $0x128] sm:$0xff]
    %v6565 = vld [vmem:[%s6538 + $0x138] sm:$0xff]
    %v6566 = vld [vmem:[%s6538 + $0x140] sm:$0xff]
    %v6567 = vld [vmem:[%s6538 + $0x150] sm:$0xff]
    %v6568 = vld [vmem:[%s6538 + $0x158] sm:$0xff]
    %v6569 = vld [vmem:[%s6538 + $0x168] sm:$0xff]
    %v6570 = vld [vmem:[%s6538 + $0x170] sm:$0xff]
    %v6571 = vld [vmem:[%s6538 + $0x1] sm:$0xff]
    %v6572 = vld [vmem:[%s6538 + $0x9] sm:$0xff]
    %v6573 = vld [vmem:[%s6538 + $0x19] sm:$0xff]
    %v6574 = vld [vmem:[%s6538 + $0x21] sm:$0xff]
    %v6575 = vld [vmem:[%s6538 + $0x31] sm:$0xff]
    %v6576 = vld [vmem:[%s6538 + $0x39] sm:$0xff]
    %v6577 = vld [vmem:[%s6538 + $0x49] sm:$0xff]
    %v6578 = vld [vmem:[%s6538 + $0x51] sm:$0xff]
    %v6579 = vld [vmem:[%s6538 + $0x61] sm:$0xff]
    %v6580 = vld [vmem:[%s6538 + $0x69] sm:$0xff]
    %v6581 = vld [vmem:[%s6538 + $0x79] sm:$0xff]
    %v6582 = vld [vmem:[%s6538 + $0x81] sm:$0xff]
    %v6583 = vld [vmem:[%s6538 + $0x91] sm:$0xff]
    %v6584 = vld [vmem:[%s6538 + $0x99] sm:$0xff]
    %v6585 = vld [vmem:[%s6538 + $0xa9] sm:$0xff]
    %v6586 = vld [vmem:[%s6538 + $0xb1] sm:$0xff]
    %v6587 = vld [vmem:[%s6538 + $0xc1] sm:$0xff]
    %v6588 = vld [vmem:[%s6538 + $0xc9] sm:$0xff]
    %v6589 = vld [vmem:[%s6538 + $0xd9] sm:$0xff]
    %v6590 = vld [vmem:[%s6538 + $0xe1] sm:$0xff]
    %v6591 = vld [vmem:[%s6538 + $0xf1] sm:$0xff]
    %v6592 = vld [vmem:[%s6538 + $0xf9] sm:$0xff]
    %v6593 = vld [vmem:[%s6538 + $0x109] sm:$0xff]
    %v6594 = vld [vmem:[%s6538 + $0x111] sm:$0xff]
    %v6595 = vld [vmem:[%s6538 + $0x121] sm:$0xff]
    %v6596 = vld [vmem:[%s6538 + $0x129] sm:$0xff]
    %v6597 = vld [vmem:[%s6538 + $0x139] sm:$0xff]
    %v6598 = vld [vmem:[%s6538 + $0x141] sm:$0xff]
    %v6599 = vld [vmem:[%s6538 + $0x151] sm:$0xff]
    %v6600 = vld [vmem:[%s6538 + $0x159] sm:$0xff]
    %v6601 = vld [vmem:[%s6538 + $0x169] sm:$0xff]
    %v6602 = vld [vmem:[%s6538 + $0x171] sm:$0xff]
    %v6603 = vld [vmem:[%s6538 + $0x2] sm:$0xff]
    %v6604 = vld [vmem:[%s6538 + $0xa] sm:$0xff]
    %v6605 = vld [vmem:[%s6538 + $0x1a] sm:$0xff]
    %v6606 = vld [vmem:[%s6538 + $0x22] sm:$0xff]
    %v6607 = vld [vmem:[%s6538 + $0x32] sm:$0xff]
    %v6608 = vld [vmem:[%s6538 + $0x3a] sm:$0xff]
    %v6609 = vld [vmem:[%s6538 + $0x4a] sm:$0xff]
    %v6610 = vld [vmem:[%s6538 + $0x52] sm:$0xff]
    %v6611 = vld [vmem:[%s6538 + $0x62] sm:$0xff]
    %v6612 = vld [vmem:[%s6538 + $0x6a] sm:$0xff]
    %v6613 = vld [vmem:[%s6538 + $0x7a] sm:$0xff]
    %v6614 = vld [vmem:[%s6538 + $0x82] sm:$0xff]
    %v6615 = vld [vmem:[%s6538 + $0x92] sm:$0xff]
    %v6616 = vld [vmem:[%s6538 + $0x9a] sm:$0xff]
    %v6617 = vld [vmem:[%s6538 + $0xaa] sm:$0xff]
    %v6618 = vld [vmem:[%s6538 + $0xb2] sm:$0xff]
    %v6619 = vld [vmem:[%s6538 + $0xc2] sm:$0xff]
    %v6620 = vld [vmem:[%s6538 + $0xca] sm:$0xff]
    %v6621 = vld [vmem:[%s6538 + $0xda] sm:$0xff]
    %v6622 = vld [vmem:[%s6538 + $0xe2] sm:$0xff]
    %v6623 = vld [vmem:[%s6538 + $0xf2] sm:$0xff]
    %v6624 = vld [vmem:[%s6538 + $0xfa] sm:$0xff]
    %v6625 = vld [vmem:[%s6538 + $0x10a] sm:$0xff]
    %v6626 = vld [vmem:[%s6538 + $0x112] sm:$0xff]
    %v6627 = vld [vmem:[%s6538 + $0x122] sm:$0xff]
    %v6628 = vld [vmem:[%s6538 + $0x12a] sm:$0xff]
    %v6629 = vld [vmem:[%s6538 + $0x13a] sm:$0xff]
    %v6630 = vld [vmem:[%s6538 + $0x142] sm:$0xff]
    %v6631 = vld [vmem:[%s6538 + $0x152] sm:$0xff]
    %v6632 = vld [vmem:[%s6538 + $0x15a] sm:$0xff]
    %v6633 = vld [vmem:[%s6538 + $0x16a] sm:$0xff]
    %v6634 = vld [vmem:[%s6538 + $0x172] sm:$0xff]
    %6667 = vrot.lane.b32.xlu0 %v6378, 4
    %v6668 = vpop.permute.xlu0 %6667
    %6669 = vrot.lane.b32.xlu0 %v6379, 4
    %v6670 = vpop.permute.xlu0 %6669
    %6671 = vrot.lane.b32.xlu0 %v6380, 4
    %v6672 = vpop.permute.xlu0 %6671
    %6673 = vrot.lane.b32.xlu0 %v6381, 4
    %v6674 = vpop.permute.xlu0 %6673
    %6675 = vrot.lane.b32.xlu0 %v6382, 4
    %v6676 = vpop.permute.xlu0 %6675
    %6677 = vrot.lane.b32.xlu0 %v6383, 4
    %v6678 = vpop.permute.xlu0 %6677
    %6679 = vrot.lane.b32.xlu0 %v6384, 4
    %v6680 = vpop.permute.xlu0 %6679
    %6681 = vrot.lane.b32.xlu0 %v6385, 4
    %v6682 = vpop.permute.xlu0 %6681
    %6683 = vrot.lane.b32.xlu0 %v6386, 4
    %v6684 = vpop.permute.xlu0 %6683
    %6685 = vrot.lane.b32.xlu0 %v6387, 4
    %v6686 = vpop.permute.xlu0 %6685
    %6687 = vrot.lane.b32.xlu0 %v6388, 4
    %v6688 = vpop.permute.xlu0 %6687
    %6689 = vrot.lane.b32.xlu0 %v6389, 4
    %v6690 = vpop.permute.xlu0 %6689
    %6691 = vrot.lane.b32.xlu0 %v6390, 4
    %v6692 = vpop.permute.xlu0 %6691
    %6693 = vrot.lane.b32.xlu0 %v6391, 4
    %v6694 = vpop.permute.xlu0 %6693
    %6695 = vrot.lane.b32.xlu0 %v6392, 4
    %v6696 = vpop.permute.xlu0 %6695
    %6697 = vrot.lane.b32.xlu0 %v6393, 4
    %v6698 = vpop.permute.xlu0 %6697
    %6699 = vrot.lane.b32.xlu0 %v6394, 4
    %v6700 = vpop.permute.xlu0 %6699
    %6701 = vrot.lane.b32.xlu0 %v6395, 4
    %v6702 = vpop.permute.xlu0 %6701
    %6703 = vrot.lane.b32.xlu0 %v6396, 4
    %v6704 = vpop.permute.xlu0 %6703
    %6705 = vrot.lane.b32.xlu0 %v6397, 4
    %v6706 = vpop.permute.xlu0 %6705
    %6707 = vrot.lane.b32.xlu0 %v6398, 4
    %v6708 = vpop.permute.xlu0 %6707
    %6709 = vrot.lane.b32.xlu0 %v6399, 4
    %v6710 = vpop.permute.xlu0 %6709
    %6711 = vrot.lane.b32.xlu0 %v6400, 4
    %v6712 = vpop.permute.xlu0 %6711
    %6713 = vrot.lane.b32.xlu0 %v6401, 4
    %v6714 = vpop.permute.xlu0 %6713
    %6715 = vrot.lane.b32.xlu0 %v6402, 4
    %v6716 = vpop.permute.xlu0 %6715
    %6717 = vrot.lane.b32.xlu0 %v6403, 4
    %v6718 = vpop.permute.xlu0 %6717
    %6719 = vrot.lane.b32.xlu0 %v6404, 4
    %v6720 = vpop.permute.xlu0 %6719
    %6721 = vrot.lane.b32.xlu0 %v6405, 4
    %v6722 = vpop.permute.xlu0 %6721
    %6723 = vrot.lane.b32.xlu0 %v6406, 4
    %v6724 = vpop.permute.xlu0 %6723
    %6725 = vrot.lane.b32.xlu0 %v6407, 4
    %v6726 = vpop.permute.xlu0 %6725
    %6727 = vrot.lane.b32.xlu0 %v6408, 4
    %v6728 = vpop.permute.xlu0 %6727
    %6729 = vrot.lane.b32.xlu0 %v6409, 4
    %v6730 = vpop.permute.xlu0 %6729
    %6795 = vrot.lane.b32.xlu0 %v6410, 8
    %v6796 = vpop.permute.xlu0 %6795
    %6797 = vrot.lane.b32.xlu0 %v6411, 8
    %v6798 = vpop.permute.xlu0 %6797
    %6799 = vrot.lane.b32.xlu0 %v6412, 8
    %v6800 = vpop.permute.xlu0 %6799
    %6801 = vrot.lane.b32.xlu0 %v6413, 8
    %v6802 = vpop.permute.xlu0 %6801
    %6803 = vrot.lane.b32.xlu0 %v6414, 8
    %v6804 = vpop.permute.xlu0 %6803
    %6805 = vrot.lane.b32.xlu0 %v6415, 8
    %v6806 = vpop.permute.xlu0 %6805
    %6807 = vrot.lane.b32.xlu0 %v6416, 8
    %v6808 = vpop.permute.xlu0 %6807
    %6809 = vrot.lane.b32.xlu0 %v6417, 8
    %v6810 = vpop.permute.xlu0 %6809
    %6811 = vrot.lane.b32.xlu0 %v6418, 8
    %v6812 = vpop.permute.xlu0 %6811
    %6813 = vrot.lane.b32.xlu0 %v6419, 8
    %v6814 = vpop.permute.xlu0 %6813
    %6815 = vrot.lane.b32.xlu0 %v6420, 8
    %v6816 = vpop.permute.xlu0 %6815
    %6817 = vrot.lane.b32.xlu0 %v6421, 8
    %v6818 = vpop.permute.xlu0 %6817
    %6819 = vrot.lane.b32.xlu0 %v6422, 8
    %v6820 = vpop.permute.xlu0 %6819
    %6821 = vrot.lane.b32.xlu0 %v6423, 8
    %v6822 = vpop.permute.xlu0 %6821
    %6823 = vrot.lane.b32.xlu0 %v6424, 8
    %v6824 = vpop.permute.xlu0 %6823
    %6825 = vrot.lane.b32.xlu0 %v6425, 8
    %v6826 = vpop.permute.xlu0 %6825
    %6827 = vrot.lane.b32.xlu0 %v6426, 8
    %v6828 = vpop.permute.xlu0 %6827
    %6829 = vrot.lane.b32.xlu0 %v6427, 8
    %v6830 = vpop.permute.xlu0 %6829
    %6831 = vrot.lane.b32.xlu0 %v6428, 8
    %v6832 = vpop.permute.xlu0 %6831
    %6833 = vrot.lane.b32.xlu0 %v6429, 8
    %v6834 = vpop.permute.xlu0 %6833
    %6835 = vrot.lane.b32.xlu0 %v6430, 8
    %v6836 = vpop.permute.xlu0 %6835
    %6837 = vrot.lane.b32.xlu0 %v6431, 8
    %v6838 = vpop.permute.xlu0 %6837
    %6839 = vrot.lane.b32.xlu0 %v6432, 8
    %v6840 = vpop.permute.xlu0 %6839
    %6841 = vrot.lane.b32.xlu0 %v6433, 8
    %v6842 = vpop.permute.xlu0 %6841
    %6843 = vrot.lane.b32.xlu0 %v6434, 8
    %v6844 = vpop.permute.xlu0 %6843
    %6845 = vrot.lane.b32.xlu0 %v6435, 8
    %v6846 = vpop.permute.xlu0 %6845
    %6847 = vrot.lane.b32.xlu0 %v6436, 8
    %v6848 = vpop.permute.xlu0 %6847
    %6849 = vrot.lane.b32.xlu0 %v6437, 8
    %v6850 = vpop.permute.xlu0 %6849
    %6851 = vrot.lane.b32.xlu0 %v6438, 8
    %v6852 = vpop.permute.xlu0 %6851
    %6853 = vrot.lane.b32.xlu0 %v6439, 8
    %v6854 = vpop.permute.xlu0 %6853
    %6855 = vrot.lane.b32.xlu0 %v6440, 8
    %v6856 = vpop.permute.xlu0 %6855
    %6857 = vrot.lane.b32.xlu0 %v6441, 8
    %v6858 = vpop.permute.xlu0 %6857
    %6923 = vrot.lane.b32.xlu0 %v6442, 12
    %v6924 = vpop.permute.xlu0 %6923
    %6925 = vrot.lane.b32.xlu0 %v6443, 12
    %v6926 = vpop.permute.xlu0 %6925
    %6927 = vrot.lane.b32.xlu0 %v6444, 12
    %v6928 = vpop.permute.xlu0 %6927
    %6929 = vrot.lane.b32.xlu0 %v6445, 12
    %v6930 = vpop.permute.xlu0 %6929
    %6931 = vrot.lane.b32.xlu0 %v6446, 12
    %v6932 = vpop.permute.xlu0 %6931
    %6933 = vrot.lane.b32.xlu0 %v6447, 12
    %v6934 = vpop.permute.xlu0 %6933
    %6935 = vrot.lane.b32.xlu0 %v6448, 12
    %v6936 = vpop.permute.xlu0 %6935
    %6937 = vrot.lane.b32.xlu0 %v6449, 12
    %v6938 = vpop.permute.xlu0 %6937
    %6939 = vrot.lane.b32.xlu0 %v6450, 12
    %v6940 = vpop.permute.xlu0 %6939
    %6941 = vrot.lane.b32.xlu0 %v6451, 12
    %v6942 = vpop.permute.xlu0 %6941
    %6943 = vrot.lane.b32.xlu0 %v6452, 12
    %v6944 = vpop.permute.xlu0 %6943
    %6945 = vrot.lane.b32.xlu0 %v6453, 12
    %v6946 = vpop.permute.xlu0 %6945
    %6947 = vrot.lane.b32.xlu0 %v6454, 12
    %v6948 = vpop.permute.xlu0 %6947
    %6949 = vrot.lane.b32.xlu0 %v6455, 12
    %v6950 = vpop.permute.xlu0 %6949
    %6951 = vrot.lane.b32.xlu0 %v6456, 12
    %v6952 = vpop.permute.xlu0 %6951
    %6953 = vrot.lane.b32.xlu0 %v6457, 12
    %v6954 = vpop.permute.xlu0 %6953
    %6955 = vrot.lane.b32.xlu0 %v6458, 12
    %v6956 = vpop.permute.xlu0 %6955
    %6957 = vrot.lane.b32.xlu0 %v6459, 12
    %v6958 = vpop.permute.xlu0 %6957
    %6959 = vrot.lane.b32.xlu0 %v6460, 12
    %v6960 = vpop.permute.xlu0 %6959
    %6961 = vrot.lane.b32.xlu0 %v6461, 12
    %v6962 = vpop.permute.xlu0 %6961
    %6963 = vrot.lane.b32.xlu0 %v6462, 12
    %v6964 = vpop.permute.xlu0 %6963
    %6965 = vrot.lane.b32.xlu0 %v6463, 12
    %v6966 = vpop.permute.xlu0 %6965
    %6967 = vrot.lane.b32.xlu0 %v6464, 12
    %v6968 = vpop.permute.xlu0 %6967
    %6969 = vrot.lane.b32.xlu0 %v6465, 12
    %v6970 = vpop.permute.xlu0 %6969
    %6971 = vrot.lane.b32.xlu0 %v6466, 12
    %v6972 = vpop.permute.xlu0 %6971
    %6973 = vrot.lane.b32.xlu0 %v6467, 12
    %v6974 = vpop.permute.xlu0 %6973
    %6975 = vrot.lane.b32.xlu0 %v6468, 12
    %v6976 = vpop.permute.xlu0 %6975
    %6977 = vrot.lane.b32.xlu0 %v6469, 12
    %v6978 = vpop.permute.xlu0 %6977
    %6979 = vrot.lane.b32.xlu0 %v6470, 12
    %v6980 = vpop.permute.xlu0 %6979
    %6981 = vrot.lane.b32.xlu0 %v6471, 12
    %v6982 = vpop.permute.xlu0 %6981
    %6983 = vrot.lane.b32.xlu0 %v6472, 12
    %v6984 = vpop.permute.xlu0 %6983
    %6985 = vrot.lane.b32.xlu0 %v6473, 12
    %v6986 = vpop.permute.xlu0 %6985
    %7051 = vrot.lane.b32.xlu0 %v6474, 16
    %v7052 = vpop.permute.xlu0 %7051
    %7053 = vrot.lane.b32.xlu0 %v6475, 16
    %v7054 = vpop.permute.xlu0 %7053
    %7055 = vrot.lane.b32.xlu0 %v6476, 16
    %v7056 = vpop.permute.xlu0 %7055
    %7057 = vrot.lane.b32.xlu0 %v6477, 16
    %v7058 = vpop.permute.xlu0 %7057
    %7059 = vrot.lane.b32.xlu0 %v6478, 16
    %v7060 = vpop.permute.xlu0 %7059
    %7061 = vrot.lane.b32.xlu0 %v6479, 16
    %v7062 = vpop.permute.xlu0 %7061
    %7063 = vrot.lane.b32.xlu0 %v6480, 16
    %v7064 = vpop.permute.xlu0 %7063
    %7065 = vrot.lane.b32.xlu0 %v6481, 16
    %v7066 = vpop.permute.xlu0 %7065
    %7067 = vrot.lane.b32.xlu0 %v6482, 16
    %v7068 = vpop.permute.xlu0 %7067
    %7069 = vrot.lane.b32.xlu0 %v6483, 16
    %v7070 = vpop.permute.xlu0 %7069
    %7071 = vrot.lane.b32.xlu0 %v6484, 16
    %v7072 = vpop.permute.xlu0 %7071
    %7073 = vrot.lane.b32.xlu0 %v6485, 16
    %v7074 = vpop.permute.xlu0 %7073
    %7075 = vrot.lane.b32.xlu0 %v6486, 16
    %v7076 = vpop.permute.xlu0 %7075
    %7077 = vrot.lane.b32.xlu0 %v6487, 16
    %v7078 = vpop.permute.xlu0 %7077
    %7079 = vrot.lane.b32.xlu0 %v6488, 16
    %v7080 = vpop.permute.xlu0 %7079
    %7081 = vrot.lane.b32.xlu0 %v6489, 16
    %v7082 = vpop.permute.xlu0 %7081
    %7083 = vrot.lane.b32.xlu0 %v6490, 16
    %v7084 = vpop.permute.xlu0 %7083
    %7085 = vrot.lane.b32.xlu0 %v6491, 16
    %v7086 = vpop.permute.xlu0 %7085
    %7087 = vrot.lane.b32.xlu0 %v6492, 16
    %v7088 = vpop.permute.xlu0 %7087
    %7089 = vrot.lane.b32.xlu0 %v6493, 16
    %v7090 = vpop.permute.xlu0 %7089
    %7091 = vrot.lane.b32.xlu0 %v6494, 16
    %v7092 = vpop.permute.xlu0 %7091
    %7093 = vrot.lane.b32.xlu0 %v6495, 16
    %v7094 = vpop.permute.xlu0 %7093
    %7095 = vrot.lane.b32.xlu0 %v6496, 16
    %v7096 = vpop.permute.xlu0 %7095
    %7097 = vrot.lane.b32.xlu0 %v6497, 16
    %v7098 = vpop.permute.xlu0 %7097
    %7099 = vrot.lane.b32.xlu0 %v6498, 16
    %v7100 = vpop.permute.xlu0 %7099
    %7101 = vrot.lane.b32.xlu0 %v6499, 16
    %v7102 = vpop.permute.xlu0 %7101
    %7103 = vrot.lane.b32.xlu0 %v6500, 16
    %v7104 = vpop.permute.xlu0 %7103
    %7105 = vrot.lane.b32.xlu0 %v6501, 16
    %v7106 = vpop.permute.xlu0 %7105
    %7107 = vrot.lane.b32.xlu0 %v6502, 16
    %v7108 = vpop.permute.xlu0 %7107
    %7109 = vrot.lane.b32.xlu0 %v6503, 16
    %v7110 = vpop.permute.xlu0 %7109
    %7111 = vrot.lane.b32.xlu0 %v6504, 16
    %v7112 = vpop.permute.xlu0 %7111
    %7113 = vrot.lane.b32.xlu0 %v6505, 16
    %v7114 = vpop.permute.xlu0 %7113
    %7179 = vrot.lane.b32.xlu0 %v6506, 20
    %v7180 = vpop.permute.xlu0 %7179
    %7181 = vrot.lane.b32.xlu0 %v6507, 20
    %v7182 = vpop.permute.xlu0 %7181
    %7183 = vrot.lane.b32.xlu0 %v6508, 20
    %v7184 = vpop.permute.xlu0 %7183
    %7185 = vrot.lane.b32.xlu0 %v6509, 20
    %v7186 = vpop.permute.xlu0 %7185
    %7187 = vrot.lane.b32.xlu0 %v6510, 20
    %v7188 = vpop.permute.xlu0 %7187
    %7189 = vrot.lane.b32.xlu0 %v6511, 20
    %v7190 = vpop.permute.xlu0 %7189
    %7191 = vrot.lane.b32.xlu0 %v6512, 20
    %v7192 = vpop.permute.xlu0 %7191
    %7193 = vrot.lane.b32.xlu0 %v6513, 20
    %v7194 = vpop.permute.xlu0 %7193
    %7195 = vrot.lane.b32.xlu0 %v6514, 20
    %v7196 = vpop.permute.xlu0 %7195
    %7197 = vrot.lane.b32.xlu0 %v6515, 20
    %v7198 = vpop.permute.xlu0 %7197
    %7199 = vrot.lane.b32.xlu0 %v6516, 20
    %v7200 = vpop.permute.xlu0 %7199
    %7201 = vrot.lane.b32.xlu0 %v6517, 20
    %v7202 = vpop.permute.xlu0 %7201
    %7203 = vrot.lane.b32.xlu0 %v6518, 20
    %v7204 = vpop.permute.xlu0 %7203
    %7205 = vrot.lane.b32.xlu0 %v6519, 20
    %v7206 = vpop.permute.xlu0 %7205
    %7207 = vrot.lane.b32.xlu0 %v6520, 20
    %v7208 = vpop.permute.xlu0 %7207
    %7209 = vrot.lane.b32.xlu0 %v6521, 20
    %v7210 = vpop.permute.xlu0 %7209
    %7211 = vrot.lane.b32.xlu0 %v6522, 20
    %v7212 = vpop.permute.xlu0 %7211
    %7213 = vrot.lane.b32.xlu0 %v6523, 20
    %v7214 = vpop.permute.xlu0 %7213
    %7215 = vrot.lane.b32.xlu0 %v6524, 20
    %v7216 = vpop.permute.xlu0 %7215
    %7217 = vrot.lane.b32.xlu0 %v6525, 20
    %v7218 = vpop.permute.xlu0 %7217
    %7219 = vrot.lane.b32.xlu0 %v6526, 20
    %v7220 = vpop.permute.xlu0 %7219
    %7221 = vrot.lane.b32.xlu0 %v6527, 20
    %v7222 = vpop.permute.xlu0 %7221
    %7223 = vrot.lane.b32.xlu0 %v6528, 20
    %v7224 = vpop.permute.xlu0 %7223
    %7225 = vrot.lane.b32.xlu0 %v6529, 20
    %v7226 = vpop.permute.xlu0 %7225
    %7227 = vrot.lane.b32.xlu0 %v6530, 20
    %v7228 = vpop.permute.xlu0 %7227
    %7229 = vrot.lane.b32.xlu0 %v6531, 20
    %v7230 = vpop.permute.xlu0 %7229
    %7231 = vrot.lane.b32.xlu0 %v6532, 20
    %v7232 = vpop.permute.xlu0 %7231
    %7233 = vrot.lane.b32.xlu0 %v6533, 20
    %v7234 = vpop.permute.xlu0 %7233
    %7235 = vrot.lane.b32.xlu0 %v6534, 20
    %v7236 = vpop.permute.xlu0 %7235
    %7237 = vrot.lane.b32.xlu0 %v6535, 20
    %v7238 = vpop.permute.xlu0 %7237
    %7239 = vrot.lane.b32.xlu0 %v6536, 20
    %v7240 = vpop.permute.xlu0 %7239
    %7241 = vrot.lane.b32.xlu0 %v6537, 20
    %v7242 = vpop.permute.xlu0 %7241
    %7307 = vrot.lane.b32.xlu0 %v6539, 24
    %v7308 = vpop.permute.xlu0 %7307
    %7309 = vrot.lane.b32.xlu0 %v6540, 24
    %v7310 = vpop.permute.xlu0 %7309
    %7311 = vrot.lane.b32.xlu0 %v6541, 24
    %v7312 = vpop.permute.xlu0 %7311
    %7313 = vrot.lane.b32.xlu0 %v6542, 24
    %v7314 = vpop.permute.xlu0 %7313
    %7315 = vrot.lane.b32.xlu0 %v6543, 24
    %v7316 = vpop.permute.xlu0 %7315
    %7317 = vrot.lane.b32.xlu0 %v6544, 24
    %v7318 = vpop.permute.xlu0 %7317
    %7319 = vrot.lane.b32.xlu0 %v6545, 24
    %v7320 = vpop.permute.xlu0 %7319
    %7321 = vrot.lane.b32.xlu0 %v6546, 24
    %v7322 = vpop.permute.xlu0 %7321
    %7323 = vrot.lane.b32.xlu0 %v6547, 24
    %v7324 = vpop.permute.xlu0 %7323
    %7325 = vrot.lane.b32.xlu0 %v6548, 24
    %v7326 = vpop.permute.xlu0 %7325
    %7327 = vrot.lane.b32.xlu0 %v6549, 24
    %v7328 = vpop.permute.xlu0 %7327
    %7329 = vrot.lane.b32.xlu0 %v6550, 24
    %v7330 = vpop.permute.xlu0 %7329
    %7331 = vrot.lane.b32.xlu0 %v6551, 24
    %v7332 = vpop.permute.xlu0 %7331
    %7333 = vrot.lane.b32.xlu0 %v6552, 24
    %v7334 = vpop.permute.xlu0 %7333
    %7335 = vrot.lane.b32.xlu0 %v6553, 24
    %v7336 = vpop.permute.xlu0 %7335
    %7337 = vrot.lane.b32.xlu0 %v6554, 24
    %v7338 = vpop.permute.xlu0 %7337
    %7339 = vrot.lane.b32.xlu0 %v6555, 24
    %v7340 = vpop.permute.xlu0 %7339
    %7341 = vrot.lane.b32.xlu0 %v6556, 24
    %v7342 = vpop.permute.xlu0 %7341
    %7343 = vrot.lane.b32.xlu0 %v6557, 24
    %v7344 = vpop.permute.xlu0 %7343
    %7345 = vrot.lane.b32.xlu0 %v6558, 24
    %v7346 = vpop.permute.xlu0 %7345
    %7347 = vrot.lane.b32.xlu0 %v6559, 24
    %v7348 = vpop.permute.xlu0 %7347
    %7349 = vrot.lane.b32.xlu0 %v6560, 24
    %v7350 = vpop.permute.xlu0 %7349
    %7351 = vrot.lane.b32.xlu0 %v6561, 24
    %v7352 = vpop.permute.xlu0 %7351
    %7353 = vrot.lane.b32.xlu0 %v6562, 24
    %v7354 = vpop.permute.xlu0 %7353
    %7355 = vrot.lane.b32.xlu0 %v6563, 24
    %v7356 = vpop.permute.xlu0 %7355
    %7357 = vrot.lane.b32.xlu0 %v6564, 24
    %v7358 = vpop.permute.xlu0 %7357
    %7359 = vrot.lane.b32.xlu0 %v6565, 24
    %v7360 = vpop.permute.xlu0 %7359
    %7361 = vrot.lane.b32.xlu0 %v6566, 24
    %v7362 = vpop.permute.xlu0 %7361
    %7363 = vrot.lane.b32.xlu0 %v6567, 24
    %v7364 = vpop.permute.xlu0 %7363
    %7365 = vrot.lane.b32.xlu0 %v6568, 24
    %v7366 = vpop.permute.xlu0 %7365
    %7367 = vrot.lane.b32.xlu0 %v6569, 24
    %v7368 = vpop.permute.xlu0 %7367
    %7369 = vrot.lane.b32.xlu0 %v6570, 24
    %v7370 = vpop.permute.xlu0 %7369
    %7435 = vrot.lane.b32.xlu0 %v6571, 28
    %v7436 = vpop.permute.xlu0 %7435
    %7437 = vrot.lane.b32.xlu0 %v6572, 28
    %v7438 = vpop.permute.xlu0 %7437
    %7439 = vrot.lane.b32.xlu0 %v6573, 28
    %v7440 = vpop.permute.xlu0 %7439
    %7441 = vrot.lane.b32.xlu0 %v6574, 28
    %v7442 = vpop.permute.xlu0 %7441
    %7443 = vrot.lane.b32.xlu0 %v6575, 28
    %v7444 = vpop.permute.xlu0 %7443
    %7445 = vrot.lane.b32.xlu0 %v6576, 28
    %v7446 = vpop.permute.xlu0 %7445
    %7447 = vrot.lane.b32.xlu0 %v6577, 28
    %v7448 = vpop.permute.xlu0 %7447
    %7449 = vrot.lane.b32.xlu0 %v6578, 28
    %v7450 = vpop.permute.xlu0 %7449
    %7451 = vrot.lane.b32.xlu0 %v6579, 28
    %v7452 = vpop.permute.xlu0 %7451
    %7453 = vrot.lane.b32.xlu0 %v6580, 28
    %v7454 = vpop.permute.xlu0 %7453
    %7455 = vrot.lane.b32.xlu0 %v6581, 28
    %v7456 = vpop.permute.xlu0 %7455
    %7457 = vrot.lane.b32.xlu0 %v6582, 28
    %v7458 = vpop.permute.xlu0 %7457
    %7459 = vrot.lane.b32.xlu0 %v6583, 28
    %v7460 = vpop.permute.xlu0 %7459
    %7461 = vrot.lane.b32.xlu0 %v6584, 28
    %v7462 = vpop.permute.xlu0 %7461
    %7463 = vrot.lane.b32.xlu0 %v6585, 28
    %v7464 = vpop.permute.xlu0 %7463
    %7465 = vrot.lane.b32.xlu0 %v6586, 28
    %v7466 = vpop.permute.xlu0 %7465
    %7467 = vrot.lane.b32.xlu0 %v6587, 28
    %v7468 = vpop.permute.xlu0 %7467
    %7469 = vrot.lane.b32.xlu0 %v6588, 28
    %v7470 = vpop.permute.xlu0 %7469
    %7471 = vrot.lane.b32.xlu0 %v6589, 28
    %v7472 = vpop.permute.xlu0 %7471
    %7473 = vrot.lane.b32.xlu0 %v6590, 28
    %v7474 = vpop.permute.xlu0 %7473
    %7475 = vrot.lane.b32.xlu0 %v6591, 28
    %v7476 = vpop.permute.xlu0 %7475
    %7477 = vrot.lane.b32.xlu0 %v6592, 28
    %v7478 = vpop.permute.xlu0 %7477
    %7479 = vrot.lane.b32.xlu0 %v6593, 28
    %v7480 = vpop.permute.xlu0 %7479
    %7481 = vrot.lane.b32.xlu0 %v6594, 28
    %v7482 = vpop.permute.xlu0 %7481
    %7483 = vrot.lane.b32.xlu0 %v6595, 28
    %v7484 = vpop.permute.xlu0 %7483
    %7485 = vrot.lane.b32.xlu0 %v6596, 28
    %v7486 = vpop.permute.xlu0 %7485
    %7487 = vrot.lane.b32.xlu0 %v6597, 28
    %v7488 = vpop.permute.xlu0 %7487
    %7489 = vrot.lane.b32.xlu0 %v6598, 28
    %v7490 = vpop.permute.xlu0 %7489
    %7491 = vrot.lane.b32.xlu0 %v6599, 28
    %v7492 = vpop.permute.xlu0 %7491
    %7493 = vrot.lane.b32.xlu0 %v6600, 28
    %v7494 = vpop.permute.xlu0 %7493
    %7495 = vrot.lane.b32.xlu0 %v6601, 28
    %v7496 = vpop.permute.xlu0 %7495
    %7497 = vrot.lane.b32.xlu0 %v6602, 28
    %v7498 = vpop.permute.xlu0 %7497
    %7563 = vrot.lane.b32.xlu0 %v6603, 32
    %v7564 = vpop.permute.xlu0 %7563
    %7565 = vrot.lane.b32.xlu0 %v6604, 32
    %v7566 = vpop.permute.xlu0 %7565
    %7567 = vrot.lane.b32.xlu0 %v6605, 32
    %v7568 = vpop.permute.xlu0 %7567
    %7569 = vrot.lane.b32.xlu0 %v6606, 32
    %v7570 = vpop.permute.xlu0 %7569
    %7571 = vrot.lane.b32.xlu0 %v6607, 32
    %v7572 = vpop.permute.xlu0 %7571
    %7573 = vrot.lane.b32.xlu0 %v6608, 32
    %v7574 = vpop.permute.xlu0 %7573
    %7575 = vrot.lane.b32.xlu0 %v6609, 32
    %v7576 = vpop.permute.xlu0 %7575
    %7577 = vrot.lane.b32.xlu0 %v6610, 32
    %v7578 = vpop.permute.xlu0 %7577
    %7579 = vrot.lane.b32.xlu0 %v6611, 32
    %v7580 = vpop.permute.xlu0 %7579
    %7581 = vrot.lane.b32.xlu0 %v6612, 32
    %v7582 = vpop.permute.xlu0 %7581
    %7583 = vrot.lane.b32.xlu0 %v6613, 32
    %v7584 = vpop.permute.xlu0 %7583
    %7585 = vrot.lane.b32.xlu0 %v6614, 32
    %v7586 = vpop.permute.xlu0 %7585
    %7587 = vrot.lane.b32.xlu0 %v6615, 32
    %v7588 = vpop.permute.xlu0 %7587
    %7589 = vrot.lane.b32.xlu0 %v6616, 32
    %v7590 = vpop.permute.xlu0 %7589
    %7591 = vrot.lane.b32.xlu0 %v6617, 32
    %v7592 = vpop.permute.xlu0 %7591
    %7593 = vrot.lane.b32.xlu0 %v6618, 32
    %v7594 = vpop.permute.xlu0 %7593
    %7595 = vrot.lane.b32.xlu0 %v6619, 32
    %v7596 = vpop.permute.xlu0 %7595
    %7597 = vrot.lane.b32.xlu0 %v6620, 32
    %v7598 = vpop.permute.xlu0 %7597
    %7599 = vrot.lane.b32.xlu0 %v6621, 32
    %v7600 = vpop.permute.xlu0 %7599
    %7601 = vrot.lane.b32.xlu0 %v6622, 32
    %v7602 = vpop.permute.xlu0 %7601
    %7603 = vrot.lane.b32.xlu0 %v6623, 32
    %v7604 = vpop.permute.xlu0 %7603
    %7605 = vrot.lane.b32.xlu0 %v6624, 32
    %v7606 = vpop.permute.xlu0 %7605
    %7607 = vrot.lane.b32.xlu0 %v6625, 32
    %v7608 = vpop.permute.xlu0 %7607
    %7609 = vrot.lane.b32.xlu0 %v6626, 32
    %v7610 = vpop.permute.xlu0 %7609
    %7611 = vrot.lane.b32.xlu0 %v6627, 32
    %v7612 = vpop.permute.xlu0 %7611
    %7613 = vrot.lane.b32.xlu0 %v6628, 32
    %v7614 = vpop.permute.xlu0 %7613
    %7615 = vrot.lane.b32.xlu0 %v6629, 32
    %v7616 = vpop.permute.xlu0 %7615
    %7617 = vrot.lane.b32.xlu0 %v6630, 32
    %v7618 = vpop.permute.xlu0 %7617
    %7619 = vrot.lane.b32.xlu0 %v6631, 32
    %v7620 = vpop.permute.xlu0 %7619
    %7621 = vrot.lane.b32.xlu0 %v6632, 32
    %v7622 = vpop.permute.xlu0 %7621
    %7623 = vrot.lane.b32.xlu0 %v6633, 32
    %v7624 = vpop.permute.xlu0 %7623
    %7625 = vrot.lane.b32.xlu0 %v6634, 32
    %v7626 = vpop.permute.xlu0 %7625
    %v7659 = vsel %vm21, %v6346, %v6668
    %v7660 = vsel %vm21, %v6347, %v6670
    %v7661 = vsel %vm21, %v6348, %v6672
    %v7662 = vsel %vm21, %v6349, %v6674
    %v7663 = vsel %vm21, %v6350, %v6676
    %v7664 = vsel %vm21, %v6351, %v6678
    %v7665 = vsel %vm21, %v6352, %v6680
    %v7666 = vsel %vm21, %v6353, %v6682
    %v7667 = vsel %vm21, %v6354, %v6684
    %v7668 = vsel %vm21, %v6355, %v6686
    %v7669 = vsel %vm21, %v6356, %v6688
    %v7670 = vsel %vm21, %v6357, %v6690
    %v7671 = vsel %vm21, %v6358, %v6692
    %v7672 = vsel %vm21, %v6359, %v6694
    %v7673 = vsel %vm21, %v6360, %v6696
    %v7674 = vsel %vm21, %v6361, %v6698
    %v7675 = vsel %vm21, %v6362, %v6700
    %v7676 = vsel %vm21, %v6363, %v6702
    %v7677 = vsel %vm21, %v6364, %v6704
    %v7678 = vsel %vm21, %v6365, %v6706
    %v7679 = vsel %vm21, %v6366, %v6708
    %v7680 = vsel %vm21, %v6367, %v6710
    %v7681 = vsel %vm21, %v6368, %v6712
    %v7682 = vsel %vm21, %v6369, %v6714
    %v7683 = vsel %vm21, %v6370, %v6716
    %v7684 = vsel %vm21, %v6371, %v6718
    %v7685 = vsel %vm21, %v6372, %v6720
    %v7686 = vsel %vm21, %v6373, %v6722
    %v7687 = vsel %vm21, %v6374, %v6724
    %v7688 = vsel %vm21, %v6375, %v6726
    %v7689 = vsel %vm21, %v6376, %v6728
    %v7690 = vsel %vm21, %v6377, %v6730
    %v7691 = vsel %vm1477, %v7659, %v6796
    %v7692 = vsel %vm1477, %v7660, %v6798
    %v7693 = vsel %vm1477, %v7661, %v6800
    %v7694 = vsel %vm1477, %v7662, %v6802
    %v7695 = vsel %vm1477, %v7663, %v6804
    %v7696 = vsel %vm1477, %v7664, %v6806
    %v7697 = vsel %vm1477, %v7665, %v6808
    %v7698 = vsel %vm1477, %v7666, %v6810
    %v7699 = vsel %vm1477, %v7667, %v6812
    %v7700 = vsel %vm1477, %v7668, %v6814
    %v7701 = vsel %vm1477, %v7669, %v6816
    %v7702 = vsel %vm1477, %v7670, %v6818
    %v7703 = vsel %vm1477, %v7671, %v6820
    %v7704 = vsel %vm1477, %v7672, %v6822
    %v7705 = vsel %vm1477, %v7673, %v6824
    %v7706 = vsel %vm1477, %v7674, %v6826
    %v7707 = vsel %vm1477, %v7675, %v6828
    %v7708 = vsel %vm1477, %v7676, %v6830
    %v7709 = vsel %vm1477, %v7677, %v6832
    %v7710 = vsel %vm1477, %v7678, %v6834
    %v7711 = vsel %vm1477, %v7679, %v6836
    %v7712 = vsel %vm1477, %v7680, %v6838
    %v7713 = vsel %vm1477, %v7681, %v6840
    %v7714 = vsel %vm1477, %v7682, %v6842
    %v7715 = vsel %vm1477, %v7683, %v6844
    %v7716 = vsel %vm1477, %v7684, %v6846
    %v7717 = vsel %vm1477, %v7685, %v6848
    %v7718 = vsel %vm1477, %v7686, %v6850
    %v7719 = vsel %vm1477, %v7687, %v6852
    %v7720 = vsel %vm1477, %v7688, %v6854
    %v7721 = vsel %vm1477, %v7689, %v6856
    %v7722 = vsel %vm1477, %v7690, %v6858
    %v7723 = vsel %vm1510, %v7691, %v6924
    %v7724 = vsel %vm1510, %v7692, %v6926
    %v7725 = vsel %vm1510, %v7693, %v6928
    %v7726 = vsel %vm1510, %v7694, %v6930
    %v7727 = vsel %vm1510, %v7695, %v6932
    %v7728 = vsel %vm1510, %v7696, %v6934
    %v7729 = vsel %vm1510, %v7697, %v6936
    %v7730 = vsel %vm1510, %v7698, %v6938
    %v7731 = vsel %vm1510, %v7699, %v6940
    %v7732 = vsel %vm1510, %v7700, %v6942
    %v7733 = vsel %vm1510, %v7701, %v6944
    %v7734 = vsel %vm1510, %v7702, %v6946
    %v7735 = vsel %vm1510, %v7703, %v6948
    %v7736 = vsel %vm1510, %v7704, %v6950
    %v7737 = vsel %vm1510, %v7705, %v6952
    %v7738 = vsel %vm1510, %v7706, %v6954
    %v7739 = vsel %vm1510, %v7707, %v6956
    %v7740 = vsel %vm1510, %v7708, %v6958
    %v7741 = vsel %vm1510, %v7709, %v6960
    %v7742 = vsel %vm1510, %v7710, %v6962
    %v7743 = vsel %vm1510, %v7711, %v6964
    %v7744 = vsel %vm1510, %v7712, %v6966
    %v7745 = vsel %vm1510, %v7713, %v6968
    %v7746 = vsel %vm1510, %v7714, %v6970
    %v7747 = vsel %vm1510, %v7715, %v6972
    %v7748 = vsel %vm1510, %v7716, %v6974
    %v7749 = vsel %vm1510, %v7717, %v6976
    %v7750 = vsel %vm1510, %v7718, %v6978
    %v7751 = vsel %vm1510, %v7719, %v6980
    %v7752 = vsel %vm1510, %v7720, %v6982
    %v7753 = vsel %vm1510, %v7721, %v6984
    %v7754 = vsel %vm1510, %v7722, %v6986
    %v7755 = vsel %vm1543, %v7723, %v7052
    %v7756 = vsel %vm1543, %v7724, %v7054
    %v7757 = vsel %vm1543, %v7725, %v7056
    %v7758 = vsel %vm1543, %v7726, %v7058
    %v7759 = vsel %vm1543, %v7727, %v7060
    %v7760 = vsel %vm1543, %v7728, %v7062
    %v7761 = vsel %vm1543, %v7729, %v7064
    %v7762 = vsel %vm1543, %v7730, %v7066
    %v7763 = vsel %vm1543, %v7731, %v7068
    %v7764 = vsel %vm1543, %v7732, %v7070
    %v7765 = vsel %vm1543, %v7733, %v7072
    %v7766 = vsel %vm1543, %v7734, %v7074
    %v7767 = vsel %vm1543, %v7735, %v7076
    %v7768 = vsel %vm1543, %v7736, %v7078
    %v7769 = vsel %vm1543, %v7737, %v7080
    %v7770 = vsel %vm1543, %v7738, %v7082
    %v7771 = vsel %vm1543, %v7739, %v7084
    %v7772 = vsel %vm1543, %v7740, %v7086
    %v7773 = vsel %vm1543, %v7741, %v7088
    %v7774 = vsel %vm1543, %v7742, %v7090
    %v7775 = vsel %vm1543, %v7743, %v7092
    %v7776 = vsel %vm1543, %v7744, %v7094
    %v7777 = vsel %vm1543, %v7745, %v7096
    %v7778 = vsel %vm1543, %v7746, %v7098
    %v7779 = vsel %vm1543, %v7747, %v7100
    %v7780 = vsel %vm1543, %v7748, %v7102
    %v7781 = vsel %vm1543, %v7749, %v7104
    %v7782 = vsel %vm1543, %v7750, %v7106
    %v7783 = vsel %vm1543, %v7751, %v7108
    %v7784 = vsel %vm1543, %v7752, %v7110
    %v7785 = vsel %vm1543, %v7753, %v7112
    %v7786 = vsel %vm1543, %v7754, %v7114
    %v7787 = vsel %vm1576, %v7755, %v7180
    %v7788 = vsel %vm1576, %v7756, %v7182
    %v7789 = vsel %vm1576, %v7757, %v7184
    %v7790 = vsel %vm1576, %v7758, %v7186
    %v7791 = vsel %vm1576, %v7759, %v7188
    %v7792 = vsel %vm1576, %v7760, %v7190
    %v7793 = vsel %vm1576, %v7761, %v7192
    %v7794 = vsel %vm1576, %v7762, %v7194
    %v7795 = vsel %vm1576, %v7763, %v7196
    %v7796 = vsel %vm1576, %v7764, %v7198
    %v7797 = vsel %vm1576, %v7765, %v7200
    %v7798 = vsel %vm1576, %v7766, %v7202
    %v7799 = vsel %vm1576, %v7767, %v7204
    %v7800 = vsel %vm1576, %v7768, %v7206
    %v7801 = vsel %vm1576, %v7769, %v7208
    %v7802 = vsel %vm1576, %v7770, %v7210
    %v7803 = vsel %vm1576, %v7771, %v7212
    %v7804 = vsel %vm1576, %v7772, %v7214
    %v7805 = vsel %vm1576, %v7773, %v7216
    %v7806 = vsel %vm1576, %v7774, %v7218
    %v7807 = vsel %vm1576, %v7775, %v7220
    %v7808 = vsel %vm1576, %v7776, %v7222
    %v7809 = vsel %vm1576, %v7777, %v7224
    %v7810 = vsel %vm1576, %v7778, %v7226
    %v7811 = vsel %vm1576, %v7779, %v7228
    %v7812 = vsel %vm1576, %v7780, %v7230
    %v7813 = vsel %vm1576, %v7781, %v7232
    %v7814 = vsel %vm1576, %v7782, %v7234
    %v7815 = vsel %vm1576, %v7783, %v7236
    %v7816 = vsel %vm1576, %v7784, %v7238
    %v7817 = vsel %vm1576, %v7785, %v7240
    %v7818 = vsel %vm1576, %v7786, %v7242
    %v7819 = vsel %vm1609, %v7787, %v7308
    %v7820 = vsel %vm1609, %v7788, %v7310
    %v7821 = vsel %vm1609, %v7789, %v7312
    %v7822 = vsel %vm1609, %v7790, %v7314
    %v7823 = vsel %vm1609, %v7791, %v7316
    %v7824 = vsel %vm1609, %v7792, %v7318
    %v7825 = vsel %vm1609, %v7793, %v7320
    %v7826 = vsel %vm1609, %v7794, %v7322
    %v7827 = vsel %vm1609, %v7795, %v7324
    %v7828 = vsel %vm1609, %v7796, %v7326
    %v7829 = vsel %vm1609, %v7797, %v7328
    %v7830 = vsel %vm1609, %v7798, %v7330
    %v7831 = vsel %vm1609, %v7799, %v7332
    %v7832 = vsel %vm1609, %v7800, %v7334
    %v7833 = vsel %vm1609, %v7801, %v7336
    %v7834 = vsel %vm1609, %v7802, %v7338
    %v7835 = vsel %vm1609, %v7803, %v7340
    %v7836 = vsel %vm1609, %v7804, %v7342
    %v7837 = vsel %vm1609, %v7805, %v7344
    %v7838 = vsel %vm1609, %v7806, %v7346
    %v7839 = vsel %vm1609, %v7807, %v7348
    %v7840 = vsel %vm1609, %v7808, %v7350
    %v7841 = vsel %vm1609, %v7809, %v7352
    %v7842 = vsel %vm1609, %v7810, %v7354
    %v7843 = vsel %vm1609, %v7811, %v7356
    %v7844 = vsel %vm1609, %v7812, %v7358
    %v7845 = vsel %vm1609, %v7813, %v7360
    %v7846 = vsel %vm1609, %v7814, %v7362
    %v7847 = vsel %vm1609, %v7815, %v7364
    %v7848 = vsel %vm1609, %v7816, %v7366
    %v7849 = vsel %vm1609, %v7817, %v7368
    %v7850 = vsel %vm1609, %v7818, %v7370
    %v7851 = vsel %vm1642, %v7819, %v7436
    %v7852 = vsel %vm1642, %v7820, %v7438
    %v7853 = vsel %vm1642, %v7821, %v7440
    %v7854 = vsel %vm1642, %v7822, %v7442
    %v7855 = vsel %vm1642, %v7823, %v7444
    %v7856 = vsel %vm1642, %v7824, %v7446
    %v7857 = vsel %vm1642, %v7825, %v7448
    %v7858 = vsel %vm1642, %v7826, %v7450
    %v7859 = vsel %vm1642, %v7827, %v7452
    %v7860 = vsel %vm1642, %v7828, %v7454
    %v7861 = vsel %vm1642, %v7829, %v7456
    %v7862 = vsel %vm1642, %v7830, %v7458
    %v7863 = vsel %vm1642, %v7831, %v7460
    %v7864 = vsel %vm1642, %v7832, %v7462
    %v7865 = vsel %vm1642, %v7833, %v7464
    %v7866 = vsel %vm1642, %v7834, %v7466
    %v7867 = vsel %vm1642, %v7835, %v7468
    %v7868 = vsel %vm1642, %v7836, %v7470
    %v7869 = vsel %vm1642, %v7837, %v7472
    %v7870 = vsel %vm1642, %v7838, %v7474
    %v7871 = vsel %vm1642, %v7839, %v7476
    %v7872 = vsel %vm1642, %v7840, %v7478
    %v7873 = vsel %vm1642, %v7841, %v7480
    %v7874 = vsel %vm1642, %v7842, %v7482
    %v7875 = vsel %vm1642, %v7843, %v7484
    %v7876 = vsel %vm1642, %v7844, %v7486
    %v7877 = vsel %vm1642, %v7845, %v7488
    %v7878 = vsel %vm1642, %v7846, %v7490
    %v7879 = vsel %vm1642, %v7847, %v7492
    %v7880 = vsel %vm1642, %v7848, %v7494
    %v7881 = vsel %vm1642, %v7849, %v7496
    %v7882 = vsel %vm1642, %v7850, %v7498
    %v7883 = vsel %vm1675, %v7851, %v7564
    %v7884 = vsel %vm1675, %v7852, %v7566
    %v7885 = vsel %vm1675, %v7853, %v7568
    %v7886 = vsel %vm1675, %v7854, %v7570
    %v7887 = vsel %vm1675, %v7855, %v7572
    %v7888 = vsel %vm1675, %v7856, %v7574
    %v7889 = vsel %vm1675, %v7857, %v7576
    %v7890 = vsel %vm1675, %v7858, %v7578
    %v7891 = vsel %vm1675, %v7859, %v7580
    %v7892 = vsel %vm1675, %v7860, %v7582
    %v7893 = vsel %vm1675, %v7861, %v7584
    %v7894 = vsel %vm1675, %v7862, %v7586
    %v7895 = vsel %vm1675, %v7863, %v7588
    %v7896 = vsel %vm1675, %v7864, %v7590
    %v7897 = vsel %vm1675, %v7865, %v7592
    %v7898 = vsel %vm1675, %v7866, %v7594
    %v7899 = vsel %vm1675, %v7867, %v7596
    %v7900 = vsel %vm1675, %v7868, %v7598
    %v7901 = vsel %vm1675, %v7869, %v7600
    %v7902 = vsel %vm1675, %v7870, %v7602
    %v7903 = vsel %vm1675, %v7871, %v7604
    %v7904 = vsel %vm1675, %v7872, %v7606
    %v7905 = vsel %vm1675, %v7873, %v7608
    %v7906 = vsel %vm1675, %v7874, %v7610
    %v7907 = vsel %vm1675, %v7875, %v7612
    %v7908 = vsel %vm1675, %v7876, %v7614
    %v7909 = vsel %vm1675, %v7877, %v7616
    %v7910 = vsel %vm1675, %v7878, %v7618
    %v7911 = vsel %vm1675, %v7879, %v7620
    %v7912 = vsel %vm1675, %v7880, %v7622
    %v7913 = vsel %vm1675, %v7881, %v7624
    %v7914 = vsel %vm1675, %v7882, %v7626
    %v7915 = vld [vmem:[%s3] sm:$0xff]
    %v7916 = vld [vmem:[%s3 + $0x8] sm:$0xff]
    %v7917 = vld [vmem:[%s3 + $0x10] sm:$0xff]
    %v7918 = vld [vmem:[%s3 + $0x18] sm:$0xff]
    %v7919 = vld [vmem:[%s3 + $0x20] sm:$0xf]
    %v7920 = vld [vmem:[%s4] sm:$0x1]
    %v7922 = vlaneseq
    %v7923 = vshrl.u32 %v7922, 7
    %v7924 = vsub.s32 0, %v7923
    %v7925 = vrot.slane %v7920, %v7924
    %v7928 = vsel %vm1720, %v7883, 0
    %v7931 = vsel %vm1720, %v7884, 0
    %v7934 = vsel %vm1720, %v7885, 0
    %v7937 = vsel %vm1720, %v7886, 0
    %v7940 = vsel %vm1720, %v7887, 0
    %v7943 = vsel %vm1720, %v7888, 0
    %v7946 = vsel %vm1720, %v7889, 0
    %v7949 = vsel %vm1720, %v7890, 0
    %v7952 = vsel %vm1720, %v7891, 0
    %v7955 = vsel %vm1720, %v7892, 0
    %v7958 = vsel %vm1720, %v7893, 0
    %v7961 = vsel %vm1720, %v7894, 0
    %v7964 = vsel %vm1720, %v7895, 0
    %v7967 = vsel %vm1720, %v7896, 0
    %v7970 = vsel %vm1720, %v7897, 0
    %v7973 = vsel %vm1720, %v7898, 0
    %v7976 = vsel %vm1720, %v7899, 0
    %v7979 = vsel %vm1720, %v7900, 0
    %v7982 = vsel %vm1720, %v7901, 0
    %v7985 = vsel %vm1720, %v7902, 0
    %v7988 = vsel %vm1720, %v7903, 0
    %v7991 = vsel %vm1720, %v7904, 0
    %v7994 = vsel %vm1720, %v7905, 0
    %v7997 = vsel %vm1720, %v7906, 0
    %v8000 = vsel %vm1720, %v7907, 0
    %v8003 = vsel %vm1720, %v7908, 0
    %v8006 = vsel %vm1720, %v7909, 0
    %v8009 = vsel %vm1720, %v7910, 0
    %v8012 = vsel %vm1720, %v7911, 0
    %v8015 = vsel %vm1720, %v7912, 0
    %v8018 = vsel %vm1720, %v7913, 0
    %v8021 = vsel %vm1720, %v7914, 0
    %v8024 = vsel %vm1817, %v7919, 0
    %8026 = vmatprep.subr.mxu0 0.0
    %8027 = vmatpush1.msra.mxu0 %v7915
    %8028 = vmatprep.subr.mxu0 0.0
    %8029 = vmatpush1.msra.mxu0 %v7916
    %8030 = vmatprep.subr.mxu0 0.0
    %8031 = vmatpush1.msra.mxu0 %v7917
    %8032 = vmatprep.subr.mxu0 0.0
    %8033 = vmatpush1.msra.mxu0 %v7918
    %8034 = vmatprep.subr.mxu0 0.0
    %8035 = vmatpush1.msra.mxu0 %v8024
    %8036 = vmatprep.subr.mxu0 0.0
    %8037 = vmatpush1.msra.mxu0 0.0
    %8038 = vmatprep.subr.mxu0 0.0
    %8039 = vmatpush1.msra.mxu0 0.0
    %8040 = vmatprep.subr.mxu0 0.0
    %8041 = vmatpush1.msra.mxu0 0.0
    %8042 = vmatprep.subr.mxu0 0.0
    %8043 = vmatpush1.msra.mxu0 0.0
    %8044 = vmatprep.subr.mxu0 0.0
    %8045 = vmatpush1.msra.mxu0 0.0
    %8046 = vmatprep.subr.mxu0 0.0
    %8047 = vmatpush1.msra.mxu0 0.0
    %8048 = vmatprep.subr.mxu0 0.0
    %8049 = vmatpush1.msra.mxu0 0.0
    %8050 = vmatprep.subr.mxu0 0.0
    %8051 = vmatpush1.msra.mxu0 0.0
    %8052 = vmatprep.subr.mxu0 0.0
    %8053 = vmatpush1.msra.mxu0 0.0
    %8054 = vmatprep.subr.mxu0 0.0
    %8055 = vmatpush1.msra.mxu0 0.0
    %8056 = vmatprep.subr.mxu0 0.0
    %8057 = vmatpush1.msra.mxu0 0.0
    %8058 = vmatprep.subr.mxu0 0.0
    %8059 = vmatpush1.msra.mxu0 0.0
    %8060 = vmatprep.subr.mxu0 0.0
    %8061 = vmatpush1.msra.mxu0 0.0
    %8062 = vmatprep.subr.mxu0 0.0
    %8063 = vmatpush1.msra.mxu0 0.0
    %8064 = vmatprep.subr.mxu0 0.0
    %8065 = vmatpush1.msra.mxu0 0.0
    %8066 = vmatprep.subr.mxu0 0.0
    %8067 = vmatpush1.msra.mxu0 0.0
    %8068 = vmatprep.subr.mxu0 0.0
    %8069 = vmatpush1.msra.mxu0 0.0
    %8070 = vmatprep.subr.mxu0 0.0
    %8071 = vmatpush1.msra.mxu0 0.0
    %8072 = vmatprep.subr.mxu0 0.0
    %8073 = vmatpush1.msra.mxu0 0.0
    %8074 = vmatprep.subr.mxu0 0.0
    %8075 = vmatpush1.msra.mxu0 0.0
    %8076 = vmatprep.subr.mxu0 0.0
    %8077 = vmatpush1.msra.mxu0 0.0
    %8078 = vmatprep.subr.mxu0 0.0
    %8079 = vmatpush1.msra.mxu0 0.0
    %8080 = vmatprep.subr.mxu0 0.0
    %8081 = vmatpush1.msra.mxu0 0.0
    %8082 = vmatprep.subr.mxu0 0.0
    %8083 = vmatpush1.msra.mxu0 0.0
    %8084 = vmatprep.subr.mxu0 0.0
    %8085 = vmatpush1.msra.mxu0 0.0
    %8086 = vmatprep.subr.mxu0 0.0
    %8087 = vmatpush1.msra.mxu0 0.0
    %8088 = vmatprep.subr.mxu0 0.0
    %8089 = vmatpush1.msra.mxu0 0.0
    %8090 = vmatprep.mubr.f32.mxu0 0.0
    %8091 = vmatmul.mubr.f32.gmra.mrb[0].mxu0 %v7928
    %v8092 = vpop.f32.mrb[0].mxu0
    %v8093 = vadd.f32 %v7925, %v8092
    %v8094 = vpop.f32.mrb[0].mxu0
    %8095 = vmatprep.mubr.f32.mxu0 0.0
    %8096 = vmatmul.mubr.f32.gmra.mrb[0].mxu0 %v7931
    %v8097 = vpop.f32.mrb[0].mxu0
    %v8098 = vadd.f32 %v7925, %v8097
    %v8099 = vpop.f32.mrb[0].mxu0
    %8100 = vmatprep.mubr.f32.mxu0 0.0
    %8101 = vmatmul.mubr.f32.gmra.mrb[0].mxu0 %v7934
    %v8102 = vpop.f32.mrb[0].mxu0
    %v8103 = vadd.f32 %v7925, %v8102
    %v8104 = vpop.f32.mrb[0].mxu0
    %8105 = vmatprep.mubr.f32.mxu0 0.0
    %8106 = vmatmul.mubr.f32.gmra.mrb[0].mxu0 %v7937
    %v8107 = vpop.f32.mrb[0].mxu0
    %v8108 = vadd.f32 %v7925, %v8107
    %v8109 = vpop.f32.mrb[0].mxu0
    %8110 = vmatprep.mubr.f32.mxu0 0.0
    %8111 = vmatmul.mubr.f32.gmra.mrb[0].mxu0 %v7940
    %v8112 = vpop.f32.mrb[0].mxu0
    %v8113 = vadd.f32 %v7925, %v8112
    %v8114 = vpop.f32.mrb[0].mxu0
    %8115 = vmatprep.mubr.f32.mxu0 0.0
    %8116 = vmatmul.mubr.f32.gmra.mrb[0].mxu0 %v7943
    %v8117 = vpop.f32.mrb[0].mxu0
    %v8118 = vadd.f32 %v7925, %v8117
    %v8119 = vpop.f32.mrb[0].mxu0
    %8120 = vmatprep.mubr.f32.mxu0 0.0
    %8121 = vmatmul.mubr.f32.gmra.mrb[0].mxu0 %v7946
    %v8122 = vpop.f32.mrb[0].mxu0
    %v8123 = vadd.f32 %v7925, %v8122
    %v8124 = vpop.f32.mrb[0].mxu0
    %8125 = vmatprep.mubr.f32.mxu0 0.0
    %8126 = vmatmul.mubr.f32.gmra.mrb[0].mxu0 %v7949
    %v8127 = vpop.f32.mrb[0].mxu0
    %v8128 = vadd.f32 %v7925, %v8127
    %v8129 = vpop.f32.mrb[0].mxu0
    %8130 = vmatprep.mubr.f32.mxu0 0.0
    %8131 = vmatmul.mubr.f32.gmra.mrb[0].mxu0 %v7952
    %v8132 = vpop.f32.mrb[0].mxu0
    %v8133 = vadd.f32 %v7925, %v8132
    %v8134 = vpop.f32.mrb[0].mxu0
    %8135 = vmatprep.mubr.f32.mxu0 0.0
    %8136 = vmatmul.mubr.f32.gmra.mrb[0].mxu0 %v7955
    %v8137 = vpop.f32.mrb[0].mxu0
    %v8138 = vadd.f32 %v7925, %v8137
    %v8139 = vpop.f32.mrb[0].mxu0
    %8140 = vmatprep.mubr.f32.mxu0 0.0
    %8141 = vmatmul.mubr.f32.gmra.mrb[0].mxu0 %v7958
    %v8142 = vpop.f32.mrb[0].mxu0
    %v8143 = vadd.f32 %v7925, %v8142
    %v8144 = vpop.f32.mrb[0].mxu0
    %8145 = vmatprep.mubr.f32.mxu0 0.0
    %8146 = vmatmul.mubr.f32.gmra.mrb[0].mxu0 %v7961
    %v8147 = vpop.f32.mrb[0].mxu0
    %v8148 = vadd.f32 %v7925, %v8147
    %v8149 = vpop.f32.mrb[0].mxu0
    %8150 = vmatprep.mubr.f32.mxu0 0.0
    %8151 = vmatmul.mubr.f32.gmra.mrb[0].mxu0 %v7964
    %v8152 = vpop.f32.mrb[0].mxu0
    %v8153 = vadd.f32 %v7925, %v8152
    %v8154 = vpop.f32.mrb[0].mxu0
    %8155 = vmatprep.mubr.f32.mxu0 0.0
    %8156 = vmatmul.mubr.f32.gmra.mrb[0].mxu0 %v7967
    %v8157 = vpop.f32.mrb[0].mxu0
    %v8158 = vadd.f32 %v7925, %v8157
    %v8159 = vpop.f32.mrb[0].mxu0
    %8160 = vmatprep.mubr.f32.mxu0 0.0
    %8161 = vmatmul.mubr.f32.gmra.mrb[0].mxu0 %v7970
    %v8162 = vpop.f32.mrb[0].mxu0
    %v8163 = vadd.f32 %v7925, %v8162
    %v8164 = vpop.f32.mrb[0].mxu0
    %8165 = vmatprep.mubr.f32.mxu0 0.0
    %8166 = vmatmul.mubr.f32.gmra.mrb[0].mxu0 %v7973
    %v8167 = vpop.f32.mrb[0].mxu0
    %v8168 = vadd.f32 %v7925, %v8167
    %v8169 = vpop.f32.mrb[0].mxu0
    %8170 = vmatprep.mubr.f32.mxu0 0.0
    %8171 = vmatmul.mubr.f32.gmra.mrb[0].mxu0 %v7976
    %v8172 = vpop.f32.mrb[0].mxu0
    %v8173 = vadd.f32 %v7925, %v8172
    %v8174 = vpop.f32.mrb[0].mxu0
    %8175 = vmatprep.mubr.f32.mxu0 0.0
    %8176 = vmatmul.mubr.f32.gmra.mrb[0].mxu0 %v7979
    %v8177 = vpop.f32.mrb[0].mxu0
    %v8178 = vadd.f32 %v7925, %v8177
    %v8179 = vpop.f32.mrb[0].mxu0
    %8180 = vmatprep.mubr.f32.mxu0 0.0
    %8181 = vmatmul.mubr.f32.gmra.mrb[0].mxu0 %v7982
    %v8182 = vpop.f32.mrb[0].mxu0
    %v8183 = vadd.f32 %v7925, %v8182
    %v8184 = vpop.f32.mrb[0].mxu0
    %8185 = vmatprep.mubr.f32.mxu0 0.0
    %8186 = vmatmul.mubr.f32.gmra.mrb[0].mxu0 %v7985
    %v8187 = vpop.f32.mrb[0].mxu0
    %v8188 = vadd.f32 %v7925, %v8187
    %v8189 = vpop.f32.mrb[0].mxu0
    %8190 = vmatprep.mubr.f32.mxu0 0.0
    %8191 = vmatmul.mubr.f32.gmra.mrb[0].mxu0 %v7988
    %v8192 = vpop.f32.mrb[0].mxu0
    %v8193 = vadd.f32 %v7925, %v8192
    %v8194 = vpop.f32.mrb[0].mxu0
    %8195 = vmatprep.mubr.f32.mxu0 0.0
    %8196 = vmatmul.mubr.f32.gmra.mrb[0].mxu0 %v7991
    %v8197 = vpop.f32.mrb[0].mxu0
    %v8198 = vadd.f32 %v7925, %v8197
    %v8199 = vpop.f32.mrb[0].mxu0
    %8200 = vmatprep.mubr.f32.mxu0 0.0
    %8201 = vmatmul.mubr.f32.gmra.mrb[0].mxu0 %v7994
    %v8202 = vpop.f32.mrb[0].mxu0
    %v8203 = vadd.f32 %v7925, %v8202
    %v8204 = vpop.f32.mrb[0].mxu0
    %8205 = vmatprep.mubr.f32.mxu0 0.0
    %8206 = vmatmul.mubr.f32.gmra.mrb[0].mxu0 %v7997
    %v8207 = vpop.f32.mrb[0].mxu0
    %v8208 = vadd.f32 %v7925, %v8207
    %v8209 = vpop.f32.mrb[0].mxu0
    %8210 = vmatprep.mubr.f32.mxu0 0.0
    %8211 = vmatmul.mubr.f32.gmra.mrb[0].mxu0 %v8000
    %v8212 = vpop.f32.mrb[0].mxu0
    %v8213 = vadd.f32 %v7925, %v8212
    %v8214 = vpop.f32.mrb[0].mxu0
    %8215 = vmatprep.mubr.f32.mxu0 0.0
    %8216 = vmatmul.mubr.f32.gmra.mrb[0].mxu0 %v8003
    %v8217 = vpop.f32.mrb[0].mxu0
    %v8218 = vadd.f32 %v7925, %v8217
    %v8219 = vpop.f32.mrb[0].mxu0
    %8220 = vmatprep.mubr.f32.mxu0 0.0
    %8221 = vmatmul.mubr.f32.gmra.mrb[0].mxu0 %v8006
    %v8222 = vpop.f32.mrb[0].mxu0
    %v8223 = vadd.f32 %v7925, %v8222
    %v8224 = vpop.f32.mrb[0].mxu0
    %8225 = vmatprep.mubr.f32.mxu0 0.0
    %8226 = vmatmul.mubr.f32.gmra.mrb[0].mxu0 %v8009
    %v8227 = vpop.f32.mrb[0].mxu0
    %v8228 = vadd.f32 %v7925, %v8227
    %v8229 = vpop.f32.mrb[0].mxu0
    %8230 = vmatprep.mubr.f32.mxu0 0.0
    %8231 = vmatmul.mubr.f32.gmra.mrb[0].mxu0 %v8012
    %v8232 = vpop.f32.mrb[0].mxu0
    %v8233 = vadd.f32 %v7925, %v8232
    %v8234 = vpop.f32.mrb[0].mxu0
    %8235 = vmatprep.mubr.f32.mxu0 0.0
    %8236 = vmatmul.mubr.f32.gmra.mrb[0].mxu0 %v8015
    %v8237 = vpop.f32.mrb[0].mxu0
    %v8238 = vadd.f32 %v7925, %v8237
    %v8239 = vpop.f32.mrb[0].mxu0
    %8240 = vmatprep.mubr.f32.mxu0 0.0
    %8241 = vmatmul.mubr.f32.gmra.mrb[0].mxu0 %v8018
    %v8242 = vpop.f32.mrb[0].mxu0
    %v8243 = vadd.f32 %v7925, %v8242
    %v8244 = vpop.f32.mrb[0].mxu0
    %8245 = vmatprep.mubr.f32.mxu0 0.0
    %8246 = vmatmul.mubr.f32.gmra.mrb[0].mxu0 %v8021
    %v8247 = vpop.f32.mrb[0].mxu0
    %v8248 = vadd.f32 %v7925, %v8247
    %v8249 = vpop.f32.mrb[0].mxu0
    %8250 = vdwg.mxu0
    %v8251 = vld [vmem:[%s4406 + $0x1] sm:$0xff]
    %v8252 = vld [vmem:[%s4406 + $0x9] sm:$0xff]
    %v8253 = vld [vmem:[%s4406 + $0x19] sm:$0xff]
    %v8254 = vld [vmem:[%s4406 + $0x21] sm:$0xff]
    %v8255 = vld [vmem:[%s4406 + $0x31] sm:$0xff]
    %v8256 = vld [vmem:[%s4406 + $0x39] sm:$0xff]
    %v8257 = vld [vmem:[%s4406 + $0x49] sm:$0xff]
    %v8258 = vld [vmem:[%s4406 + $0x51] sm:$0xff]
    %v8259 = vld [vmem:[%s4406 + $0x61] sm:$0xff]
    %v8260 = vld [vmem:[%s4406 + $0x69] sm:$0xff]
    %v8261 = vld [vmem:[%s4406 + $0x79] sm:$0xff]
    %v8262 = vld [vmem:[%s4406 + $0x81] sm:$0xff]
    %v8263 = vld [vmem:[%s4406 + $0x91] sm:$0xff]
    %v8264 = vld [vmem:[%s4406 + $0x99] sm:$0xff]
    %v8265 = vld [vmem:[%s4406 + $0xa9] sm:$0xff]
    %v8266 = vld [vmem:[%s4406 + $0xb1] sm:$0xff]
    %v8267 = vld [vmem:[%s4406 + $0xc1] sm:$0xff]
    %v8268 = vld [vmem:[%s4406 + $0xc9] sm:$0xff]
    %v8269 = vld [vmem:[%s4406 + $0xd9] sm:$0xff]
    %v8270 = vld [vmem:[%s4406 + $0xe1] sm:$0xff]
    %v8271 = vld [vmem:[%s4406 + $0xf1] sm:$0xff]
    %v8272 = vld [vmem:[%s4406 + $0xf9] sm:$0xff]
    %v8273 = vld [vmem:[%s4406 + $0x109] sm:$0xff]
    %v8274 = vld [vmem:[%s4406 + $0x111] sm:$0xff]
    %v8275 = vld [vmem:[%s4406 + $0x121] sm:$0xff]
    %v8276 = vld [vmem:[%s4406 + $0x129] sm:$0xff]
    %v8277 = vld [vmem:[%s4406 + $0x139] sm:$0xff]
    %v8278 = vld [vmem:[%s4406 + $0x141] sm:$0xff]
    %v8279 = vld [vmem:[%s4406 + $0x151] sm:$0xff]
    %v8280 = vld [vmem:[%s4406 + $0x159] sm:$0xff]
    %v8281 = vld [vmem:[%s4406 + $0x169] sm:$0xff]
    %v8282 = vld [vmem:[%s4406 + $0x171] sm:$0xff]
    %v8283 = vadd.f32 %v8093, %v8251
    %v8284 = vadd.f32 %v8098, %v8252
    %v8285 = vadd.f32 %v8103, %v8253
    %v8286 = vadd.f32 %v8108, %v8254
    %v8287 = vadd.f32 %v8113, %v8255
    %v8288 = vadd.f32 %v8118, %v8256
    %v8289 = vadd.f32 %v8123, %v8257
    %v8290 = vadd.f32 %v8128, %v8258
    %v8291 = vadd.f32 %v8133, %v8259
    %v8292 = vadd.f32 %v8138, %v8260
    %v8293 = vadd.f32 %v8143, %v8261
    %v8294 = vadd.f32 %v8148, %v8262
    %v8295 = vadd.f32 %v8153, %v8263
    %v8296 = vadd.f32 %v8158, %v8264
    %v8297 = vadd.f32 %v8163, %v8265
    %v8298 = vadd.f32 %v8168, %v8266
    %v8299 = vadd.f32 %v8173, %v8267
    %v8300 = vadd.f32 %v8178, %v8268
    %v8301 = vadd.f32 %v8183, %v8269
    %v8302 = vadd.f32 %v8188, %v8270
    %v8303 = vadd.f32 %v8193, %v8271
    %v8304 = vadd.f32 %v8198, %v8272
    %v8305 = vadd.f32 %v8203, %v8273
    %v8306 = vadd.f32 %v8208, %v8274
    %v8307 = vadd.f32 %v8213, %v8275
    %v8308 = vadd.f32 %v8218, %v8276
    %v8309 = vadd.f32 %v8223, %v8277
    %v8310 = vadd.f32 %v8228, %v8278
    %v8311 = vadd.f32 %v8233, %v8279
    %v8312 = vadd.f32 %v8238, %v8280
    %v8313 = vadd.f32 %v8243, %v8281
    %v8314 = vadd.f32 %v8248, %v8282
    %vm8315 = vcmp.gt.f32.partialorder %v8283, 0.0
    %vm8316 = vcmp.gt.f32.partialorder %v8284, 0.0
    %vm8317 = vcmp.gt.f32.partialorder %v8285, 0.0
    %vm8318 = vcmp.gt.f32.partialorder %v8286, 0.0
    %vm8319 = vcmp.gt.f32.partialorder %v8287, 0.0
    %vm8320 = vcmp.gt.f32.partialorder %v8288, 0.0
    %vm8321 = vcmp.gt.f32.partialorder %v8289, 0.0
    %vm8322 = vcmp.gt.f32.partialorder %v8290, 0.0
    %vm8323 = vcmp.gt.f32.partialorder %v8291, 0.0
    %vm8324 = vcmp.gt.f32.partialorder %v8292, 0.0
    %vm8325 = vcmp.gt.f32.partialorder %v8293, 0.0
    %vm8326 = vcmp.gt.f32.partialorder %v8294, 0.0
    %vm8327 = vcmp.gt.f32.partialorder %v8295, 0.0
    %vm8328 = vcmp.gt.f32.partialorder %v8296, 0.0
    %vm8329 = vcmp.gt.f32.partialorder %v8297, 0.0
    %vm8330 = vcmp.gt.f32.partialorder %v8298, 0.0
    %vm8331 = vcmp.gt.f32.partialorder %v8299, 0.0
    %vm8332 = vcmp.gt.f32.partialorder %v8300, 0.0
    %vm8333 = vcmp.gt.f32.partialorder %v8301, 0.0
    %vm8334 = vcmp.gt.f32.partialorder %v8302, 0.0
    %vm8335 = vcmp.gt.f32.partialorder %v8303, 0.0
    %vm8336 = vcmp.gt.f32.partialorder %v8304, 0.0
    %vm8337 = vcmp.gt.f32.partialorder %v8305, 0.0
    %vm8338 = vcmp.gt.f32.partialorder %v8306, 0.0
    %vm8339 = vcmp.gt.f32.partialorder %v8307, 0.0
    %vm8340 = vcmp.gt.f32.partialorder %v8308, 0.0
    %vm8341 = vcmp.gt.f32.partialorder %v8309, 0.0
    %vm8342 = vcmp.gt.f32.partialorder %v8310, 0.0
    %vm8343 = vcmp.gt.f32.partialorder %v8311, 0.0
    %vm8344 = vcmp.gt.f32.partialorder %v8312, 0.0
    %vm8345 = vcmp.gt.f32.partialorder %v8313, 0.0
    %vm8346 = vcmp.gt.f32.partialorder %v8314, 0.0
    %v8347 = vmul.f32 %v8283, 0.2
    %v8348 = vmul.f32 %v8284, 0.2
    %v8349 = vmul.f32 %v8285, 0.2
    %v8350 = vmul.f32 %v8286, 0.2
    %v8351 = vmul.f32 %v8287, 0.2
    %v8352 = vmul.f32 %v8288, 0.2
    %v8353 = vmul.f32 %v8289, 0.2
    %v8354 = vmul.f32 %v8290, 0.2
    %v8355 = vmul.f32 %v8291, 0.2
    %v8356 = vmul.f32 %v8292, 0.2
    %v8357 = vmul.f32 %v8293, 0.2
    %v8358 = vmul.f32 %v8294, 0.2
    %v8359 = vmul.f32 %v8295, 0.2
    %v8360 = vmul.f32 %v8296, 0.2
    %v8361 = vmul.f32 %v8297, 0.2
    %v8362 = vmul.f32 %v8298, 0.2
    %v8363 = vmul.f32 %v8299, 0.2
    %v8364 = vmul.f32 %v8300, 0.2
    %v8365 = vmul.f32 %v8301, 0.2
    %v8366 = vmul.f32 %v8302, 0.2
    %v8367 = vmul.f32 %v8303, 0.2
    %v8368 = vmul.f32 %v8304, 0.2
    %v8369 = vmul.f32 %v8305, 0.2
    %v8370 = vmul.f32 %v8306, 0.2
    %v8371 = vmul.f32 %v8307, 0.2
    %v8372 = vmul.f32 %v8308, 0.2
    %v8373 = vmul.f32 %v8309, 0.2
    %v8374 = vmul.f32 %v8310, 0.2
    %v8375 = vmul.f32 %v8311, 0.2
    %v8376 = vmul.f32 %v8312, 0.2
    %v8377 = vmul.f32 %v8313, 0.2
    %v8378 = vmul.f32 %v8314, 0.2
    %v8379 = vsel %vm8315, %v8283, %v8347
    %v8380 = vsel %vm8316, %v8284, %v8348
    %v8381 = vsel %vm8317, %v8285, %v8349
    %v8382 = vsel %vm8318, %v8286, %v8350
    %v8383 = vsel %vm8319, %v8287, %v8351
    %v8384 = vsel %vm8320, %v8288, %v8352
    %v8385 = vsel %vm8321, %v8289, %v8353
    %v8386 = vsel %vm8322, %v8290, %v8354
    %v8387 = vsel %vm8323, %v8291, %v8355
    %v8388 = vsel %vm8324, %v8292, %v8356
    %v8389 = vsel %vm8325, %v8293, %v8357
    %v8390 = vsel %vm8326, %v8294, %v8358
    %v8391 = vsel %vm8327, %v8295, %v8359
    %v8392 = vsel %vm8328, %v8296, %v8360
    %v8393 = vsel %vm8329, %v8297, %v8361
    %v8394 = vsel %vm8330, %v8298, %v8362
    %v8395 = vsel %vm8331, %v8299, %v8363
    %v8396 = vsel %vm8332, %v8300, %v8364
    %v8397 = vsel %vm8333, %v8301, %v8365
    %v8398 = vsel %vm8334, %v8302, %v8366
    %v8399 = vsel %vm8335, %v8303, %v8367
    %v8400 = vsel %vm8336, %v8304, %v8368
    %v8401 = vsel %vm8337, %v8305, %v8369
    %v8402 = vsel %vm8338, %v8306, %v8370
    %v8403 = vsel %vm8339, %v8307, %v8371
    %v8404 = vsel %vm8340, %v8308, %v8372
    %v8405 = vsel %vm8341, %v8309, %v8373
    %v8406 = vsel %vm8342, %v8310, %v8374
    %v8407 = vsel %vm8343, %v8311, %v8375
    %v8408 = vsel %vm8344, %v8312, %v8376
    %v8409 = vsel %vm8345, %v8313, %v8377
    %v8410 = vsel %vm8346, %v8314, %v8378
    %8411 = vxpose.xlu0.b32.start [1/16] %v8379, 128
    %8412 = vxpose.xlu0.b32.cont [2/16] %v8380, 128
    %8413 = vxpose.xlu0.b32.cont [3/16] %v8381, 128
    %8414 = vxpose.xlu0.b32.cont [4/16] %v8382, 128
    %8415 = vxpose.xlu0.b32.cont [5/16] %v8383, 128
    %8416 = vxpose.xlu0.b32.cont [6/16] %v8384, 128
    %8417 = vxpose.xlu0.b32.cont [7/16] %v8385, 128
    %8418 = vxpose.xlu0.b32.cont [8/16] %v8386, 128
    %8419 = vxpose.xlu0.b32.cont [9/16] %v8387, 128
    %8420 = vxpose.xlu0.b32.cont [10/16] %v8388, 128
    %8421 = vxpose.xlu0.b32.cont [11/16] %v8389, 128
    %8422 = vxpose.xlu0.b32.cont [12/16] %v8390, 128
    %8423 = vxpose.xlu0.b32.cont [13/16] %v8391, 128
    %8424 = vxpose.xlu0.b32.cont [14/16] %v8392, 128
    %8425 = vxpose.xlu0.b32.cont [15/16] %v8393, 128
    %8426 = vxpose.xlu0.b32.end [16/16] %v8394, 128
    %v8427 = vpop.trf.xlu0
    %v8428 = vpop.trf.xlu0
    %v8429 = vpop.trf.xlu0
    %v8430 = vpop.trf.xlu0
    %v8431 = vpop.trf.xlu0
    %v8432 = vpop.trf.xlu0
    %v8433 = vpop.trf.xlu0
    %v8434 = vpop.trf.xlu0
    %v8435 = vpop.trf.xlu0
    %v8436 = vpop.trf.xlu0
    %v8437 = vpop.trf.xlu0
    %v8438 = vpop.trf.xlu0
    %v8439 = vpop.trf.xlu0
    %v8440 = vpop.trf.xlu0
    %v8441 = vpop.trf.xlu0
    %v8442 = vpop.trf.xlu0
    %8443 = vxpose.xlu0.b32.start [1/16] %v8395, 128
    %8444 = vxpose.xlu0.b32.cont [2/16] %v8396, 128
    %8445 = vxpose.xlu0.b32.cont [3/16] %v8397, 128
    %8446 = vxpose.xlu0.b32.cont [4/16] %v8398, 128
    %8447 = vxpose.xlu0.b32.cont [5/16] %v8399, 128
    %8448 = vxpose.xlu0.b32.cont [6/16] %v8400, 128
    %8449 = vxpose.xlu0.b32.cont [7/16] %v8401, 128
    %8450 = vxpose.xlu0.b32.cont [8/16] %v8402, 128
    %8451 = vxpose.xlu0.b32.cont [9/16] %v8403, 128
    %8452 = vxpose.xlu0.b32.cont [10/16] %v8404, 128
    %8453 = vxpose.xlu0.b32.cont [11/16] %v8405, 128
    %8454 = vxpose.xlu0.b32.cont [12/16] %v8406, 128
    %8455 = vxpose.xlu0.b32.cont [13/16] %v8407, 128
    %8456 = vxpose.xlu0.b32.cont [14/16] %v8408, 128
    %8457 = vxpose.xlu0.b32.cont [15/16] %v8409, 128
    %8458 = vxpose.xlu0.b32.end [16/16] %v8410, 128
    %v8459 = vpop.trf.xlu0
    %v8460 = vpop.trf.xlu0
    %v8461 = vpop.trf.xlu0
    %v8462 = vpop.trf.xlu0
    %v8463 = vpop.trf.xlu0
    %v8464 = vpop.trf.xlu0
    %v8465 = vpop.trf.xlu0
    %v8466 = vpop.trf.xlu0
    %v8467 = vpop.trf.xlu0
    %v8468 = vpop.trf.xlu0
    %v8469 = vpop.trf.xlu0
    %v8470 = vpop.trf.xlu0
    %v8471 = vpop.trf.xlu0
    %v8472 = vpop.trf.xlu0
    %v8473 = vpop.trf.xlu0
    %v8474 = vpop.trf.xlu0
    %v8477 = vcombine.low %v8427, %v8459
    %s8479 = scalar_lea.vmem [#allocation3], 8
    %8480 = vst [vmem:[%s8479] sm:$0xff] %v8477
    // Predicated region
    $region22: #{tpu_custom_call.1} parent=1 // pred_check
      _
    $region23: #{tpu_custom_call.1} parent=1 // pred_check_branch
      %8482 = sbr.rel (0) target = $region25
    $region24: #{tpu_custom_call.1} parent=1 // pred_region
      %s8484 = ssub.s32 256, 256
      %8485 = vsyncadd [#allocation4], %s8484
      %s8486 = sshll.u32 [#allocation3], 4
      %s8487 = int_to_ptr.vmem [resolvable:$true] %s8486
      %8492 = dma.vmem_to_hbm [thread:$0]  %s8487, 256, %s5, [#allocation4], 128, 128, 8
    $region25: #{tpu_custom_call.1} parent=1 // pred_fallthru
      _
    // Predicated region
    $region26: #{tpu_custom_call.1} parent=1 // pred_check
      _
    $region27: #{tpu_custom_call.1} parent=1 // pred_check_branch
      %8494 = sbr.rel (0) target = $region29
    $region28: #{tpu_custom_call.1} parent=1 // pred_region
      %8495 = dma.done [#allocation4], 256
    $region29: #{tpu_custom_call.1} parent=1 // pred_fallthru
      _
    %8496 = vsyncpa [#allocation4], 1

</llo_original>
